<compile_context>
chip_gen: v7x
topology: tpu7x:2x2x1
jax: 0.10.0
libtpu: 0.0.40
codegen_flags: <defaults>
</compile_context>

<pallas_src>
import functools

import jax
import jax.numpy as jnp
from jax.experimental import pallas as pl
from jax.experimental.pallas import tpu as pltpu

BN_EPS = 1e-5


def _round_up(x, m):
    return ((x + m - 1) // m) * m


# ----------------------------- Pallas kernels ------------------------------ #

def _mm_kernel(p_ref, w_ref, b_ref, *rest, relu, has_res):
    """K-tiled (patches @ w) with f32 scratch acc; epilogue: +bias [+res] [relu]."""
    if has_res:
        r_ref, o_ref, acc_ref = rest
    else:
        o_ref, acc_ref = rest
    k = pl.program_id(1)

    @pl.when(k == 0)
    def _():
        acc_ref[...] = jnp.zeros_like(acc_ref)

    acc_ref[...] += jnp.dot(p_ref[...], w_ref[...],
                            preferred_element_type=jnp.float32)

    @pl.when(k == pl.num_programs(1) - 1)
    def _():
        acc = acc_ref[...] + b_ref[...]
        if has_res:
            acc = acc + r_ref[...].astype(jnp.float32)
        if relu:
            acc = jnp.maximum(acc, 0.0)
        o_ref[...] = acc.astype(o_ref.dtype)


def fused_matmul_bias(x, w, bias, residual=None, relu=True,
                      out_dtype=jnp.bfloat16, tm_max=256, tk_max=1024):
    """x:(M,K) @ w:(K,N) + bias(N,) [+ residual(M,N)] [relu], tiled over (M, K).

    bf16 MXU inputs, f32 accumulation/epilogue.  M padded to a multiple of tm
    (<=256), K padded to a multiple of 128 and split into <=tk_max chunks,
    N padded to a lane-dense multiple of 128.  Per-step working set stays far
    below the scoped VMEM budget on v5e / v6e / v7x.
    """
    M, K = x.shape
    Kw, N = w.shape
    assert K == Kw

    tm = min(tm_max, _round_up(M, 8))
    M_pad = _round_up(M, tm)
    K_128 = _round_up(K, 128)
    n_k = -(-K_128 // tk_max)
    tk = _round_up(-(-K_128 // n_k), 128)
    K_pad = tk * n_k
    N_pad = _round_up(N, 128)

    x_p = jnp.pad(x, ((0, M_pad - M), (0, K_pad - K))).astype(jnp.bfloat16)
    w_p = jnp.pad(w, ((0, K_pad - K), (0, N_pad - N))).astype(jnp.bfloat16)
    b_p = jnp.pad(bias, (0, N_pad - N)).astype(jnp.float32).reshape(1, N_pad)

    inputs = [x_p, w_p, b_p]
    in_specs = [
        pl.BlockSpec((tm, tk), lambda i, k: (i, k)),
        pl.BlockSpec((tk, N_pad), lambda i, k: (k, 0)),
        pl.BlockSpec((1, N_pad), lambda i, k: (0, 0)),
    ]
    has_res = residual is not None
    if has_res:
        r_p = jnp.pad(residual,
                      ((0, M_pad - M), (0, N_pad - N))).astype(jnp.bfloat16)
        inputs.append(r_p)
        in_specs.append(pl.BlockSpec((tm, N_pad), lambda i, k: (i, 0)))

    kernel = functools.partial(_mm_kernel, relu=relu, has_res=has_res)
    out = pl.pallas_call(
        kernel,
        out_shape=jax.ShapeDtypeStruct((M_pad, N_pad), out_dtype),
        grid=(M_pad // tm, n_k),
        in_specs=in_specs,
        out_specs=pl.BlockSpec((tm, N_pad), lambda i, k: (i, 0)),
        scratch_shapes=[pltpu.VMEM((tm, N_pad), jnp.float32)],
        compiler_params=pltpu.CompilerParams(
            dimension_semantics=("parallel", "arbitrary"),
            vmem_limit_bytes=32 * 1024 * 1024,
        ),
    )(*inputs)
    return out[:M, :N]


def _max9_kernel(*refs):
    """Running elementwise max of the 9 shifted-window slices (lane-dense tiles)."""
    o_ref = refs[-1]
    m = refs[0][...]
    for r in refs[1:-1]:
        m = jnp.maximum(m, r[...])
    o_ref[...] = m


def maxpool_3x3_s2_p1(x):
    """x: (N, H, W, C) -> MaxPool2d(kernel=3, stride=2, padding=1).

    The 9 strided window slices are flattened and repacked into (rows, 128)
    lane-dense tiles (max is elementwise so layout does not matter), giving
    unmasked vector stores even when C < 128.
    """
    n, h, w, c = x.shape
    oh = (h + 2 - 3) // 2 + 1
    ow = (w + 2 - 3) // 2 + 1
    xp = jnp.pad(x, ((0, 0), (1, 1), (1, 1), (0, 0)),
                 constant_values=-jnp.inf)
    total = n * oh * ow * c
    slices = []
    for ki in range(3):
        for kj in range(3):
            s = xp[:, ki:ki + 2 * (oh - 1) + 1:2,
                   kj:kj + 2 * (ow - 1) + 1:2, :]
            slices.append(s.reshape(total))

    rows = -(-total // 128)
    tm = min(512, _round_up(rows, 8))
    rows_pad = _round_up(rows, tm)
    total_pad = rows_pad * 128
    padded = [jnp.pad(s, (0, total_pad - total),
                      constant_values=-jnp.inf).reshape(rows_pad, 128)
              for s in slices]

    out = pl.pallas_call(
        _max9_kernel,
        out_shape=jax.ShapeDtypeStruct((rows_pad, 128), x.dtype),
        grid=(rows_pad // tm,),
        in_specs=[pl.BlockSpec((tm, 128), lambda i: (i, 0)) for _ in padded],
        out_specs=pl.BlockSpec((tm, 128), lambda i: (i, 0)),
        compiler_params=pltpu.CompilerParams(
            dimension_semantics=("parallel",),
            vmem_limit_bytes=32 * 1024 * 1024,
        ),
    )(*padded)
    return out.reshape(total_pad)[:total].reshape(n, oh, ow, c)


# ------------------------------- glue (JAX) -------------------------------- #

def _im2col(x, kh, kw, stride, padding):
    """x: (N, H, W, C) -> patches (N, OH, OW, KH*KW, C) in x.dtype (bf16)."""
    n, h, w, c = x.shape
    oh = (h + 2 * padding - kh) // stride + 1
    ow = (w + 2 * padding - kw) // stride + 1
    xp = jnp.pad(x, ((0, 0), (padding, padding), (padding, padding), (0, 0)))
    cols = []
    for ki in range(kh):
        for kj in range(kw):
            cols.append(xp[:, ki:ki + stride * (oh - 1) + 1:stride,
                           kj:kj + stride * (ow - 1) + 1:stride, :])
    patches = jnp.stack(cols, axis=3)
    return patches, oh, ow


def conv_bn(x, w_folded, bias, stride, padding, relu=True, residual=None):
    """x: (N,H,W,C) bf16; w_folded: (KH,KW,IC,OC) bf16 with BN scale folded in."""
    kh, kw, ic, oc = w_folded.shape
    n = x.shape[0]
    patches, oh, ow = _im2col(x, kh, kw, stride, padding)
    p2 = patches.reshape(n * oh * ow, kh * kw * ic)
    wm = w_folded.reshape(kh * kw * ic, oc)
    res = None if residual is None else residual.reshape(n * oh * ow, oc)
    out = fused_matmul_bias(p2, wm, bias, residual=res, relu=relu,
                            out_dtype=jnp.bfloat16)
    return out.reshape(n, oh, ow, oc)


# ----------------------------- parameter init ------------------------------ #

def _conv_w(key, kh, kw, ic, oc):
    fan_in = kh * kw * ic
    return jax.random.normal(key, (kh, kw, ic, oc), jnp.float32) / jnp.sqrt(fan_in)


def _bn_fold(key, c):
    """Eval-mode BN (running_mean=0, running_var=1) -> (scale, bias)."""
    k1, k2 = jax.random.split(key)
    gamma = 1.0 + 0.1 * jax.random.normal(k1, (c,), jnp.float32)
    beta = 0.1 * jax.random.normal(k2, (c,), jnp.float32)
    running_mean = jnp.zeros((c,), jnp.float32)
    running_var = jnp.ones((c,), jnp.float32)
    scale = gamma / jnp.sqrt(running_var + BN_EPS)
    bias = beta - running_mean * scale
    return scale, bias


def _fold_weight(w, scale):
    # Fold BN scale into the conv weight (over OC) in f32, store bf16.
    return (w * scale).astype(jnp.bfloat16)


def init_block(key, ic, oc, stride):
    ks = jax.random.split(key, 6)
    s1, b1 = _bn_fold(ks[1], oc)
    s2, b2 = _bn_fold(ks[3], oc)
    p = {
        "conv1_w": _fold_weight(_conv_w(ks[0], 3, 3, ic, oc), s1),
        "bn1_b": b1,
        "conv2_w": _fold_weight(_conv_w(ks[2], 3, 3, oc, oc), s2),
        "bn2_b": b2,
        "stride": stride,
        "has_sc": (stride != 1) or (ic != oc),
    }
    if p["has_sc"]:
        ss, bs = _bn_fold(ks[5], oc)
        p["sc_w"] = _fold_weight(_conv_w(ks[4], 1, 1, ic, oc), ss)
        p["sc_b"] = bs
    return p


def init_params(key, n_class=6):
    keys = jax.random.split(key, 10)
    s0, b0 = _bn_fold(keys[1], 64)
    return {
        "conv1_w": _fold_weight(_conv_w(keys[0], 7, 7, 3, 64), s0),
        "bn1_b": b0,
        "layer1": [init_block(keys[2], 64, 64, 1), init_block(keys[3], 64, 64, 1)],
        "layer2": [init_block(keys[4], 64, 128, 2), init_block(keys[5], 128, 128, 1)],
        "layer3": [init_block(keys[6], 128, 256, 2), init_block(keys[7], 256, 256, 1)],
        "fc_w": (jax.random.normal(keys[8], (256, n_class), jnp.float32)
                 / jnp.sqrt(256.0)).astype(jnp.bfloat16),
        "fc_b": 0.01 * jax.random.normal(keys[9], (n_class,), jnp.float32),
    }


# ------------------------------ model forward ------------------------------ #

def residual_block(x, p):
    out = conv_bn(x, p["conv1_w"], p["bn1_b"], stride=p["stride"], padding=1,
                  relu=True)
    if p["has_sc"]:
        sc = conv_bn(x, p["sc_w"], p["sc_b"], stride=p["stride"], padding=0,
                     relu=False)
    else:
        sc = x
    # conv2 + bn2 + residual add + final relu, all fused in one Pallas call.
    out = conv_bn(out, p["conv2_w"], p["bn2_b"], stride=1, padding=1,
                  relu=True, residual=sc)
    return out


def base_resnet_forward(x_nchw, params):
    x = jnp.transpose(x_nchw, (0, 2, 3, 1)).astype(jnp.bfloat16)  # NCHW -> NHWC
    x = conv_bn(x, params["conv1_w"], params["bn1_b"], stride=2, padding=3,
                relu=True)
    x = maxpool_3x3_s2_p1(x)
    for blk in params["layer1"] + params["layer2"] + params["layer3"]:
        x = residual_block(x, blk)
    # AdaptiveAvgPool2d((1,1)) + flatten (f32 reduction, tiny -> plain XLA).
    x = jnp.mean(x.astype(jnp.float32), axis=(1, 2))
    # fc head: 6 output columns padded to 128 inside the fused matmul.
    x = fused_matmul_bias(x, params["fc_w"], params["fc_b"], relu=False,
                          out_dtype=jnp.float32)
    # Dropout(0.3): identity in eval mode.
    return x


if __name__ == "__main__":
    key = jax.random.PRNGKey(0)
    kp, kx = jax.random.split(key)
    params = init_params(kp, n_class=6)
    x = jax.random.normal(kx, (2, 3, 16, 16), jnp.float32)  # NCHW like PyTorch
    fwd = jax.jit(lambda inp: base_resnet_forward(inp, params))
    out = jax.block_until_ready(fwd(x))
    assert out.shape == (2, 6), out.shape
    assert bool(jnp.all(jnp.isfinite(out)))
    print("KERNEL_OK")
</pallas_src>

<mosaic_0001>
module attributes {stable_mosaic.version = 11 : i64} {
  func.func @_mm_kernel(%arg0: i32, %arg1: i32, %arg2: memref<128x256xbf16, #tpu.memory_space<vmem>>, %arg3: memref<256x128xbf16, #tpu.memory_space<vmem>>, %arg4: memref<1x128xf32, #tpu.memory_space<vmem>>, %arg5: memref<128x128xbf16, #tpu.memory_space<vmem>>, %arg6: memref<128x128xf32, #tpu.memory_space<vmem>>) attributes {dimension_semantics = [#tpu.dimension_semantics<parallel>, #tpu.dimension_semantics<arbitrary>], iteration_bounds = array<i64: 1, 1>, scalar_prefetch = 0 : i64, scratch_operands = 1 : i64, tpu.core_type = #tpu.core_type<tc>, window_params = [{transform_indices = @transform_0, window_bounds = array<i64: 128, 256>}, {transform_indices = @transform_1, window_bounds = array<i64: 256, 128>}, {pipeline_mode = #tpu.pipeline_mode<synchronous>, transform_indices = @transform_2, window_bounds = array<i64: 1, 128>}, {transform_indices = @transform_3, window_bounds = array<i64: 128, 128>}]} {
    %c0_i32 = arith.constant 0 : i32
    %0 = arith.cmpi eq, %arg1, %c0_i32 : i32
    %1 = arith.extui %0 : i1 to i32
    %c0_i32_0 = arith.constant 0 : i32
    %2 = arith.cmpi ne, %1, %c0_i32_0 : i32
    scf.if %2 {
      %cst_10 = arith.constant 0.000000e+00 : f32
      %12 = vector.broadcast %cst_10 : f32 to vector<128x128xf32>
      %c0_11 = arith.constant 0 : index
      %c0_12 = arith.constant 0 : index
      %13 = vector.load %arg6[%c0_11, %c0_12] : memref<128x128xf32, #tpu.memory_space<vmem>>, vector<128x128xf32>
      tpu.vector_store %arg6[%c0_11, %c0_12], %12 {strides = array<i32>} : memref<128x128xf32, #tpu.memory_space<vmem>>, vector<128x128xf32>,
    } else {
    }
    %c0 = arith.constant 0 : index
    %c0_1 = arith.constant 0 : index
    %3 = vector.load %arg6[%c0, %c0_1] : memref<128x128xf32, #tpu.memory_space<vmem>>, vector<128x128xf32>
    %c0_2 = arith.constant 0 : index
    %c0_3 = arith.constant 0 : index
    %4 = vector.load %arg2[%c0_2, %c0_3] : memref<128x256xbf16, #tpu.memory_space<vmem>>, vector<128x256xbf16>
    %c0_4 = arith.constant 0 : index
    %c0_5 = arith.constant 0 : index
    %5 = vector.load %arg3[%c0_4, %c0_5] : memref<256x128xbf16, #tpu.memory_space<vmem>>, vector<256x128xbf16>
    %cst = arith.constant dense<0.000000e+00> : vector<128x128xf32>
    %6 = tpu.matmul %4, %5, %cst {dimension_numbers = #tpu.dot_dimension_numbers<[1], [0], [0], [1], [0, 0, 1, 1], [], []>} : vector<128x256xbf16>, vector<256x128xbf16>, vector<128x128xf32> -> vector<128x128xf32>
    %7 = arith.addf %3, %6 : vector<128x128xf32>
    %c0_6 = arith.constant 0 : index
    %c0_7 = arith.constant 0 : index
    %8 = vector.load %arg6[%c0_6, %c0_7] : memref<128x128xf32, #tpu.memory_space<vmem>>, vector<128x128xf32>
    tpu.vector_store %arg6[%c0_6, %c0_7], %7 {strides = array<i32>} : memref<128x128xf32, #tpu.memory_space<vmem>>, vector<128x128xf32>,
    %c0_i32_8 = arith.constant 0 : i32
    %9 = arith.cmpi eq, %arg1, %c0_i32_8 : i32
    %10 = arith.extui %9 : i1 to i32
    %c0_i32_9 = arith.constant 0 : i32
    %11 = arith.cmpi ne, %10, %c0_i32_9 : i32
    scf.if %11 {
      %c0_10 = arith.constant 0 : index
      %c0_11 = arith.constant 0 : index
      %12 = vector.load %arg6[%c0_10, %c0_11] : memref<128x128xf32, #tpu.memory_space<vmem>>, vector<128x128xf32>
      %c0_12 = arith.constant 0 : index
      %c0_13 = arith.constant 0 : index
      %13 = vector.load %arg4[%c0_12, %c0_13] : memref<1x128xf32, #tpu.memory_space<vmem>>, vector<1x128xf32>
      %14 = vector.broadcast %13 : vector<1x128xf32> to vector<128x128xf32>
      %15 = arith.addf %12, %14 : vector<128x128xf32>
      %cst_14 = arith.constant 0.000000e+00 : f32
      %16 = vector.broadcast %cst_14 : f32 to vector<128x128xf32>
      %17 = arith.maximumf %15, %16 : vector<128x128xf32>
      %18 = arith.truncf %17 : vector<128x128xf32> to vector<128x128xbf16>
      %c0_15 = arith.constant 0 : index
      %c0_16 = arith.constant 0 : index
      %19 = vector.load %arg5[%c0_15, %c0_16] : memref<128x128xbf16, #tpu.memory_space<vmem>>, vector<128x128xbf16>
      tpu.vector_store %arg5[%c0_15, %c0_16], %18 {strides = array<i32>} : memref<128x128xbf16, #tpu.memory_space<vmem>>, vector<128x128xbf16>,
    } else {
    }
    return
  }
  func.func @transform_0(%arg0: i32, %arg1: i32) -> (i32, i32) {
    %c0_i32 = arith.constant 0 : i32
    return %arg0, %arg1 : i32, i32
  }
  func.func @transform_1(%arg0: i32, %arg1: i32) -> (i32, i32) {
    %c0_i32 = arith.constant 0 : i32
    %c0_i32_0 = arith.constant 0 : i32
    return %arg1, %c0_i32 : i32, i32
  }
  func.func @transform_2(%arg0: i32, %arg1: i32) -> (i32, i32) {
    %c0_i32 = arith.constant 0 : i32
    %c0_i32_0 = arith.constant 0 : i32
    %c0_i32_1 = arith.constant 0 : i32
    return %c0_i32, %c0_i32_0 : i32, i32
  }
  func.func @transform_3(%arg0: i32, %arg1: i32) -> (i32, i32) {
    %c0_i32 = arith.constant 0 : i32
    %c0_i32_0 = arith.constant 0 : i32
    return %arg0, %c0_i32 : i32, i32
  }
}

module attributes {stable_mosaic.version = 11 : i64} {
  func.func @_max9_kernel(%arg0: i32, %arg1: memref<16x128xbf16, #tpu.memory_space<vmem>>, %arg2: memref<16x128xbf16, #tpu.memory_space<vmem>>, %arg3: memref<16x128xbf16, #tpu.memory_space<vmem>>, %arg4: memref<16x128xbf16, #tpu.memory_space<vmem>>, %arg5: memref<16x128xbf16, #tpu.memory_space<vmem>>, %arg6: memref<16x128xbf16, #tpu.memory_space<vmem>>, %arg7: memref<16x128xbf16, #tpu.memory_space<vmem>>, %arg8: memref<16x128xbf16, #tpu.memory_space<vmem>>, %arg9: memref<16x128xbf16, #tpu.memory_space<vmem>>, %arg10: memref<16x128xbf16, #tpu.memory_space<vmem>>) attributes {dimension_semantics = [#tpu.dimension_semantics<parallel>], iteration_bounds = array<i64: 1>, scalar_prefetch = 0 : i64, scratch_operands = 0 : i64, tpu.core_type = #tpu.core_type<tc>, window_params = [{transform_indices = @transform_0, window_bounds = array<i64: 16, 128>}, {transform_indices = @transform_1, window_bounds = array<i64: 16, 128>}, {transform_indices = @transform_2, window_bounds = array<i64: 16, 128>}, {transform_indices = @transform_3, window_bounds = array<i64: 16, 128>}, {transform_indices = @transform_4, window_bounds = array<i64: 16, 128>}, {transform_indices = @transform_5, window_bounds = array<i64: 16, 128>}, {transform_indices = @transform_6, window_bounds = array<i64: 16, 128>}, {transform_indices = @transform_7, window_bounds = array<i64: 16, 128>}, {transform_indices = @transform_8, window_bounds = array<i64: 16, 128>}, {transform_indices = @transform_9, window_bounds = array<i64: 16, 128>}]} {
    %c0 = arith.constant 0 : index
    %c0_0 = arith.constant 0 : index
    %0 = vector.load %arg1[%c0, %c0_0] : memref<16x128xbf16, #tpu.memory_space<vmem>>, vector<16x128xbf16>
    %c0_1 = arith.constant 0 : index
    %c0_2 = arith.constant 0 : index
    %1 = vector.load %arg2[%c0_1, %c0_2] : memref<16x128xbf16, #tpu.memory_space<vmem>>, vector<16x128xbf16>
    %2 = arith.maximumf %0, %1 : vector<16x128xbf16>
    %c0_3 = arith.constant 0 : index
    %c0_4 = arith.constant 0 : index
    %3 = vector.load %arg3[%c0_3, %c0_4] : memref<16x128xbf16, #tpu.memory_space<vmem>>, vector<16x128xbf16>
    %4 = arith.maximumf %2, %3 : vector<16x128xbf16>
    %c0_5 = arith.constant 0 : index
    %c0_6 = arith.constant 0 : index
    %5 = vector.load %arg4[%c0_5, %c0_6] : memref<16x128xbf16, #tpu.memory_space<vmem>>, vector<16x128xbf16>
    %6 = arith.maximumf %4, %5 : vector<16x128xbf16>
    %c0_7 = arith.constant 0 : index
    %c0_8 = arith.constant 0 : index
    %7 = vector.load %arg5[%c0_7, %c0_8] : memref<16x128xbf16, #tpu.memory_space<vmem>>, vector<16x128xbf16>
    %8 = arith.maximumf %6, %7 : vector<16x128xbf16>
    %c0_9 = arith.constant 0 : index
    %c0_10 = arith.constant 0 : index
    %9 = vector.load %arg6[%c0_9, %c0_10] : memref<16x128xbf16, #tpu.memory_space<vmem>>, vector<16x128xbf16>
    %10 = arith.maximumf %8, %9 : vector<16x128xbf16>
    %c0_11 = arith.constant 0 : index
    %c0_12 = arith.constant 0 : index
    %11 = vector.load %arg7[%c0_11, %c0_12] : memref<16x128xbf16, #tpu.memory_space<vmem>>, vector<16x128xbf16>
    %12 = arith.maximumf %10, %11 : vector<16x128xbf16>
    %c0_13 = arith.constant 0 : index
    %c0_14 = arith.constant 0 : index
    %13 = vector.load %arg8[%c0_13, %c0_14] : memref<16x128xbf16, #tpu.memory_space<vmem>>, vector<16x128xbf16>
    %14 = arith.maximumf %12, %13 : vector<16x128xbf16>
    %c0_15 = arith.constant 0 : index
    %c0_16 = arith.constant 0 : index
    %15 = vector.load %arg9[%c0_15, %c0_16] : memref<16x128xbf16, #tpu.memory_space<vmem>>, vector<16x128xbf16>
    %16 = arith.maximumf %14, %15 : vector<16x128xbf16>
    %c0_17 = arith.constant 0 : index
    %c0_18 = arith.constant 0 : index
    %17 = vector.load %arg10[%c0_17, %c0_18] : memref<16x128xbf16, #tpu.memory_space<vmem>>, vector<16x128xbf16>
    tpu.vector_store %arg10[%c0_17, %c0_18], %16 {strides = array<i32>} : memref<16x128xbf16, #tpu.memory_space<vmem>>, vector<16x128xbf16>,
    return
  }
  func.func @transform_0(%arg0: i32) -> (i32, i32) {
    %c0_i32 = arith.constant 0 : i32
    %c0_i32_0 = arith.constant 0 : i32
    return %arg0, %c0_i32 : i32, i32
  }
  func.func @transform_1(%arg0: i32) -> (i32, i32) {
    %c0_i32 = arith.constant 0 : i32
    %c0_i32_0 = arith.constant 0 : i32
    return %arg0, %c0_i32 : i32, i32
  }
  func.func @transform_2(%arg0: i32) -> (i32, i32) {
    %c0_i32 = arith.constant 0 : i32
    %c0_i32_0 = arith.constant 0 : i32
    return %arg0, %c0_i32 : i32, i32
  }
  func.func @transform_3(%arg0: i32) -> (i32, i32) {
    %c0_i32 = arith.constant 0 : i32
    %c0_i32_0 = arith.constant 0 : i32
    return %arg0, %c0_i32 : i32, i32
  }
  func.func @transform_4(%arg0: i32) -> (i32, i32) {
    %c0_i32 = arith.constant 0 : i32
    %c0_i32_0 = arith.constant 0 : i32
    return %arg0, %c0_i32 : i32, i32
  }
  func.func @transform_5(%arg0: i32) -> (i32, i32) {
    %c0_i32 = arith.constant 0 : i32
    %c0_i32_0 = arith.constant 0 : i32
    return %arg0, %c0_i32 : i32, i32
  }
  func.func @transform_6(%arg0: i32) -> (i32, i32) {
    %c0_i32 = arith.constant 0 : i32
    %c0_i32_0 = arith.constant 0 : i32
    return %arg0, %c0_i32 : i32, i32
  }
  func.func @transform_7(%arg0: i32) -> (i32, i32) {
    %c0_i32 = arith.constant 0 : i32
    %c0_i32_0 = arith.constant 0 : i32
    return %arg0, %c0_i32 : i32, i32
  }
  func.func @transform_8(%arg0: i32) -> (i32, i32) {
    %c0_i32 = arith.constant 0 : i32
    %c0_i32_0 = arith.constant 0 : i32
    return %arg0, %c0_i32 : i32, i32
  }
  func.func @transform_9(%arg0: i32) -> (i32, i32) {
    %c0_i32 = arith.constant 0 : i32
    %c0_i32_0 = arith.constant 0 : i32
    return %arg0, %c0_i32 : i32, i32
  }
}

module attributes {stable_mosaic.version = 11 : i64} {
  func.func @_mm_kernel(%arg0: i32, %arg1: i32, %arg2: memref<32x640xbf16, #tpu.memory_space<vmem>>, %arg3: memref<640x128xbf16, #tpu.memory_space<vmem>>, %arg4: memref<1x128xf32, #tpu.memory_space<vmem>>, %arg5: memref<32x128xbf16, #tpu.memory_space<vmem>>, %arg6: memref<32x128xf32, #tpu.memory_space<vmem>>) attributes {dimension_semantics = [#tpu.dimension_semantics<parallel>, #tpu.dimension_semantics<arbitrary>], iteration_bounds = array<i64: 1, 1>, scalar_prefetch = 0 : i64, scratch_operands = 1 : i64, tpu.core_type = #tpu.core_type<tc>, window_params = [{transform_indices = @transform_0, window_bounds = array<i64: 32, 640>}, {transform_indices = @transform_1, window_bounds = array<i64: 640, 128>}, {pipeline_mode = #tpu.pipeline_mode<synchronous>, transform_indices = @transform_2, window_bounds = array<i64: 1, 128>}, {transform_indices = @transform_3, window_bounds = array<i64: 32, 128>}]} {
    %c0_i32 = arith.constant 0 : i32
    %0 = arith.cmpi eq, %arg1, %c0_i32 : i32
    %1 = arith.extui %0 : i1 to i32
    %c0_i32_0 = arith.constant 0 : i32
    %2 = arith.cmpi ne, %1, %c0_i32_0 : i32
    scf.if %2 {
      %cst_10 = arith.constant 0.000000e+00 : f32
      %12 = vector.broadcast %cst_10 : f32 to vector<32x128xf32>
      %c0_11 = arith.constant 0 : index
      %c0_12 = arith.constant 0 : index
      %13 = vector.load %arg6[%c0_11, %c0_12] : memref<32x128xf32, #tpu.memory_space<vmem>>, vector<32x128xf32>
      tpu.vector_store %arg6[%c0_11, %c0_12], %12 {strides = array<i32>} : memref<32x128xf32, #tpu.memory_space<vmem>>, vector<32x128xf32>,
    } else {
    }
    %c0 = arith.constant 0 : index
    %c0_1 = arith.constant 0 : index
    %3 = vector.load %arg6[%c0, %c0_1] : memref<32x128xf32, #tpu.memory_space<vmem>>, vector<32x128xf32>
    %c0_2 = arith.constant 0 : index
    %c0_3 = arith.constant 0 : index
    %4 = vector.load %arg2[%c0_2, %c0_3] : memref<32x640xbf16, #tpu.memory_space<vmem>>, vector<32x640xbf16>
    %c0_4 = arith.constant 0 : index
    %c0_5 = arith.constant 0 : index
    %5 = vector.load %arg3[%c0_4, %c0_5] : memref<640x128xbf16, #tpu.memory_space<vmem>>, vector<640x128xbf16>
    %cst = arith.constant dense<0.000000e+00> : vector<32x128xf32>
    %6 = tpu.matmul %4, %5, %cst {dimension_numbers = #tpu.dot_dimension_numbers<[1], [0], [0], [1], [0, 0, 1, 1], [], []>} : vector<32x640xbf16>, vector<640x128xbf16>, vector<32x128xf32> -> vector<32x128xf32>
    %7 = arith.addf %3, %6 : vector<32x128xf32>
    %c0_6 = arith.constant 0 : index
    %c0_7 = arith.constant 0 : index
    %8 = vector.load %arg6[%c0_6, %c0_7] : memref<32x128xf32, #tpu.memory_space<vmem>>, vector<32x128xf32>
    tpu.vector_store %arg6[%c0_6, %c0_7], %7 {strides = array<i32>} : memref<32x128xf32, #tpu.memory_space<vmem>>, vector<32x128xf32>,
    %c0_i32_8 = arith.constant 0 : i32
    %9 = arith.cmpi eq, %arg1, %c0_i32_8 : i32
    %10 = arith.extui %9 : i1 to i32
    %c0_i32_9 = arith.constant 0 : i32
    %11 = arith.cmpi ne, %10, %c0_i32_9 : i32
    scf.if %11 {
      %c0_10 = arith.constant 0 : index
      %c0_11 = arith.constant 0 : index
      %12 = vector.load %arg6[%c0_10, %c0_11] : memref<32x128xf32, #tpu.memory_space<vmem>>, vector<32x128xf32>
      %c0_12 = arith.constant 0 : index
      %c0_13 = arith.constant 0 : index
      %13 = vector.load %arg4[%c0_12, %c0_13] : memref<1x128xf32, #tpu.memory_space<vmem>>, vector<1x128xf32>
      %14 = vector.broadcast %13 : vector<1x128xf32> to vector<32x128xf32>
      %15 = arith.addf %12, %14 : vector<32x128xf32>
      %cst_14 = arith.constant 0.000000e+00 : f32
      %16 = vector.broadcast %cst_14 : f32 to vector<32x128xf32>
      %17 = arith.maximumf %15, %16 : vector<32x128xf32>
      %18 = arith.truncf %17 : vector<32x128xf32> to vector<32x128xbf16>
      %c0_15 = arith.constant 0 : index
      %c0_16 = arith.constant 0 : index
      %19 = vector.load %arg5[%c0_15, %c0_16] : memref<32x128xbf16, #tpu.memory_space<vmem>>, vector<32x128xbf16>
      tpu.vector_store %arg5[%c0_15, %c0_16], %18 {strides = array<i32>} : memref<32x128xbf16, #tpu.memory_space<vmem>>, vector<32x128xbf16>,
    } else {
    }
    return
  }
  func.func @transform_0(%arg0: i32, %arg1: i32) -> (i32, i32) {
    %c0_i32 = arith.constant 0 : i32
    return %arg0, %arg1 : i32, i32
  }
  func.func @transform_1(%arg0: i32, %arg1: i32) -> (i32, i32) {
    %c0_i32 = arith.constant 0 : i32
    %c0_i32_0 = arith.constant 0 : i32
    return %arg1, %c0_i32 : i32, i32
  }
  func.func @transform_2(%arg0: i32, %arg1: i32) -> (i32, i32) {
    %c0_i32 = arith.constant 0 : i32
    %c0_i32_0 = arith.constant 0 : i32
    %c0_i32_1 = arith.constant 0 : i32
    return %c0_i32, %c0_i32_0 : i32, i32
  }
  func.func @transform_3(%arg0: i32, %arg1: i32) -> (i32, i32) {
    %c0_i32 = arith.constant 0 : i32
    %c0_i32_0 = arith.constant 0 : i32
    return %arg0, %c0_i32 : i32, i32
  }
}

module attributes {stable_mosaic.version = 11 : i64} {
  func.func @_mm_kernel(%arg0: i32, %arg1: i32, %arg2: memref<32x640xbf16, #tpu.memory_space<vmem>>, %arg3: memref<640x128xbf16, #tpu.memory_space<vmem>>, %arg4: memref<1x128xf32, #tpu.memory_space<vmem>>, %arg5: memref<32x128xbf16, #tpu.memory_space<vmem>>, %arg6: memref<32x128xbf16, #tpu.memory_space<vmem>>, %arg7: memref<32x128xf32, #tpu.memory_space<vmem>>) attributes {dimension_semantics = [#tpu.dimension_semantics<parallel>, #tpu.dimension_semantics<arbitrary>], iteration_bounds = array<i64: 1, 1>, scalar_prefetch = 0 : i64, scratch_operands = 1 : i64, tpu.core_type = #tpu.core_type<tc>, window_params = [{transform_indices = @transform_0, window_bounds = array<i64: 32, 640>}, {transform_indices = @transform_1, window_bounds = array<i64: 640, 128>}, {pipeline_mode = #tpu.pipeline_mode<synchronous>, transform_indices = @transform_2, window_bounds = array<i64: 1, 128>}, {transform_indices = @transform_3, window_bounds = array<i64: 32, 128>}, {transform_indices = @transform_4, window_bounds = array<i64: 32, 128>}]} {
    %c0_i32 = arith.constant 0 : i32
    %0 = arith.cmpi eq, %arg1, %c0_i32 : i32
    %1 = arith.extui %0 : i1 to i32
    %c0_i32_0 = arith.constant 0 : i32
    %2 = arith.cmpi ne, %1, %c0_i32_0 : i32
    scf.if %2 {
      %cst_10 = arith.constant 0.000000e+00 : f32
      %12 = vector.broadcast %cst_10 : f32 to vector<32x128xf32>
      %c0_11 = arith.constant 0 : index
      %c0_12 = arith.constant 0 : index
      %13 = vector.load %arg7[%c0_11, %c0_12] : memref<32x128xf32, #tpu.memory_space<vmem>>, vector<32x128xf32>
      tpu.vector_store %arg7[%c0_11, %c0_12], %12 {strides = array<i32>} : memref<32x128xf32, #tpu.memory_space<vmem>>, vector<32x128xf32>,
    } else {
    }
    %c0 = arith.constant 0 : index
    %c0_1 = arith.constant 0 : index
    %3 = vector.load %arg7[%c0, %c0_1] : memref<32x128xf32, #tpu.memory_space<vmem>>, vector<32x128xf32>
    %c0_2 = arith.constant 0 : index
    %c0_3 = arith.constant 0 : index
    %4 = vector.load %arg2[%c0_2, %c0_3] : memref<32x640xbf16, #tpu.memory_space<vmem>>, vector<32x640xbf16>
    %c0_4 = arith.constant 0 : index
    %c0_5 = arith.constant 0 : index
    %5 = vector.load %arg3[%c0_4, %c0_5] : memref<640x128xbf16, #tpu.memory_space<vmem>>, vector<640x128xbf16>
    %cst = arith.constant dense<0.000000e+00> : vector<32x128xf32>
    %6 = tpu.matmul %4, %5, %cst {dimension_numbers = #tpu.dot_dimension_numbers<[1], [0], [0], [1], [0, 0, 1, 1], [], []>} : vector<32x640xbf16>, vector<640x128xbf16>, vector<32x128xf32> -> vector<32x128xf32>
    %7 = arith.addf %3, %6 : vector<32x128xf32>
    %c0_6 = arith.constant 0 : index
    %c0_7 = arith.constant 0 : index
    %8 = vector.load %arg7[%c0_6, %c0_7] : memref<32x128xf32, #tpu.memory_space<vmem>>, vector<32x128xf32>
    tpu.vector_store %arg7[%c0_6, %c0_7], %7 {strides = array<i32>} : memref<32x128xf32, #tpu.memory_space<vmem>>, vector<32x128xf32>,
    %c0_i32_8 = arith.constant 0 : i32
    %9 = arith.cmpi eq, %arg1, %c0_i32_8 : i32
    %10 = arith.extui %9 : i1 to i32
    %c0_i32_9 = arith.constant 0 : i32
    %11 = arith.cmpi ne, %10, %c0_i32_9 : i32
    scf.if %11 {
      %c0_10 = arith.constant 0 : index
      %c0_11 = arith.constant 0 : index
      %12 = vector.load %arg7[%c0_10, %c0_11] : memref<32x128xf32, #tpu.memory_space<vmem>>, vector<32x128xf32>
      %c0_12 = arith.constant 0 : index
      %c0_13 = arith.constant 0 : index
      %13 = vector.load %arg4[%c0_12, %c0_13] : memref<1x128xf32, #tpu.memory_space<vmem>>, vector<1x128xf32>
      %14 = vector.broadcast %13 : vector<1x128xf32> to vector<32x128xf32>
      %15 = arith.addf %12, %14 : vector<32x128xf32>
      %c0_14 = arith.constant 0 : index
      %c0_15 = arith.constant 0 : index
      %16 = vector.load %arg5[%c0_14, %c0_15] : memref<32x128xbf16, #tpu.memory_space<vmem>>, vector<32x128xbf16>
      %17 = arith.extf %16 : vector<32x128xbf16> to vector<32x128xf32>
      %18 = arith.addf %15, %17 : vector<32x128xf32>
      %cst_16 = arith.constant 0.000000e+00 : f32
      %19 = vector.broadcast %cst_16 : f32 to vector<32x128xf32>
      %20 = arith.maximumf %18, %19 : vector<32x128xf32>
      %21 = arith.truncf %20 : vector<32x128xf32> to vector<32x128xbf16>
      %c0_17 = arith.constant 0 : index
      %c0_18 = arith.constant 0 : index
      %22 = vector.load %arg6[%c0_17, %c0_18] : memref<32x128xbf16, #tpu.memory_space<vmem>>, vector<32x128xbf16>
      tpu.vector_store %arg6[%c0_17, %c0_18], %21 {strides = array<i32>} : memref<32x128xbf16, #tpu.memory_space<vmem>>, vector<32x128xbf16>,
    } else {
    }
    return
  }
  func.func @transform_0(%arg0: i32, %arg1: i32) -> (i32, i32) {
    %c0_i32 = arith.constant 0 : i32
    return %arg0, %arg1 : i32, i32
  }
  func.func @transform_1(%arg0: i32, %arg1: i32) -> (i32, i32) {
    %c0_i32 = arith.constant 0 : i32
    %c0_i32_0 = arith.constant 0 : i32
    return %arg1, %c0_i32 : i32, i32
  }
  func.func @transform_2(%arg0: i32, %arg1: i32) -> (i32, i32) {
    %c0_i32 = arith.constant 0 : i32
    %c0_i32_0 = arith.constant 0 : i32
    %c0_i32_1 = arith.constant 0 : i32
    return %c0_i32, %c0_i32_0 : i32, i32
  }
  func.func @transform_3(%arg0: i32, %arg1: i32) -> (i32, i32) {
    %c0_i32 = arith.constant 0 : i32
    %c0_i32_0 = arith.constant 0 : i32
    return %arg0, %c0_i32 : i32, i32
  }
  func.func @transform_4(%arg0: i32, %arg1: i32) -> (i32, i32) {
    %c0_i32 = arith.constant 0 : i32
    %c0_i32_0 = arith.constant 0 : i32
    return %arg0, %c0_i32 : i32, i32
  }
}

module attributes {stable_mosaic.version = 11 : i64} {
  func.func @_mm_kernel(%arg0: i32, %arg1: i32, %arg2: memref<8x640xbf16, #tpu.memory_space<vmem>>, %arg3: memref<640x128xbf16, #tpu.memory_space<vmem>>, %arg4: memref<1x128xf32, #tpu.memory_space<vmem>>, %arg5: memref<8x128xbf16, #tpu.memory_space<vmem>>, %arg6: memref<8x128xf32, #tpu.memory_space<vmem>>) attributes {dimension_semantics = [#tpu.dimension_semantics<parallel>, #tpu.dimension_semantics<arbitrary>], iteration_bounds = array<i64: 1, 1>, scalar_prefetch = 0 : i64, scratch_operands = 1 : i64, tpu.core_type = #tpu.core_type<tc>, window_params = [{transform_indices = @transform_0, window_bounds = array<i64: 8, 640>}, {transform_indices = @transform_1, window_bounds = array<i64: 640, 128>}, {pipeline_mode = #tpu.pipeline_mode<synchronous>, transform_indices = @transform_2, window_bounds = array<i64: 1, 128>}, {transform_indices = @transform_3, window_bounds = array<i64: 8, 128>}]} {
    %c0_i32 = arith.constant 0 : i32
    %0 = arith.cmpi eq, %arg1, %c0_i32 : i32
    %1 = arith.extui %0 : i1 to i32
    %c0_i32_0 = arith.constant 0 : i32
    %2 = arith.cmpi ne, %1, %c0_i32_0 : i32
    scf.if %2 {
      %cst_10 = arith.constant 0.000000e+00 : f32
      %12 = vector.broadcast %cst_10 : f32 to vector<8x128xf32>
      %c0_11 = arith.constant 0 : index
      %c0_12 = arith.constant 0 : index
      %13 = vector.load %arg6[%c0_11, %c0_12] : memref<8x128xf32, #tpu.memory_space<vmem>>, vector<8x128xf32>
      tpu.vector_store %arg6[%c0_11, %c0_12], %12 {strides = array<i32>} : memref<8x128xf32, #tpu.memory_space<vmem>>, vector<8x128xf32>,
    } else {
    }
    %c0 = arith.constant 0 : index
    %c0_1 = arith.constant 0 : index
    %3 = vector.load %arg6[%c0, %c0_1] : memref<8x128xf32, #tpu.memory_space<vmem>>, vector<8x128xf32>
    %c0_2 = arith.constant 0 : index
    %c0_3 = arith.constant 0 : index
    %4 = vector.load %arg2[%c0_2, %c0_3] : memref<8x640xbf16, #tpu.memory_space<vmem>>, vector<8x640xbf16>
    %c0_4 = arith.constant 0 : index
    %c0_5 = arith.constant 0 : index
    %5 = vector.load %arg3[%c0_4, %c0_5] : memref<640x128xbf16, #tpu.memory_space<vmem>>, vector<640x128xbf16>
    %cst = arith.constant dense<0.000000e+00> : vector<8x128xf32>
    %6 = tpu.matmul %4, %5, %cst {dimension_numbers = #tpu.dot_dimension_numbers<[1], [0], [0], [1], [0, 0, 1, 1], [], []>} : vector<8x640xbf16>, vector<640x128xbf16>, vector<8x128xf32> -> vector<8x128xf32>
    %7 = arith.addf %3, %6 : vector<8x128xf32>
    %c0_6 = arith.constant 0 : index
    %c0_7 = arith.constant 0 : index
    %8 = vector.load %arg6[%c0_6, %c0_7] : memref<8x128xf32, #tpu.memory_space<vmem>>, vector<8x128xf32>
    tpu.vector_store %arg6[%c0_6, %c0_7], %7 {strides = array<i32>} : memref<8x128xf32, #tpu.memory_space<vmem>>, vector<8x128xf32>,
    %c0_i32_8 = arith.constant 0 : i32
    %9 = arith.cmpi eq, %arg1, %c0_i32_8 : i32
    %10 = arith.extui %9 : i1 to i32
    %c0_i32_9 = arith.constant 0 : i32
    %11 = arith.cmpi ne, %10, %c0_i32_9 : i32
    scf.if %11 {
      %c0_10 = arith.constant 0 : index
      %c0_11 = arith.constant 0 : index
      %12 = vector.load %arg6[%c0_10, %c0_11] : memref<8x128xf32, #tpu.memory_space<vmem>>, vector<8x128xf32>
      %c0_12 = arith.constant 0 : index
      %c0_13 = arith.constant 0 : index
      %13 = vector.load %arg4[%c0_12, %c0_13] : memref<1x128xf32, #tpu.memory_space<vmem>>, vector<1x128xf32>
      %14 = vector.broadcast %13 : vector<1x128xf32> to vector<8x128xf32>
      %15 = arith.addf %12, %14 : vector<8x128xf32>
      %cst_14 = arith.constant 0.000000e+00 : f32
      %16 = vector.broadcast %cst_14 : f32 to vector<8x128xf32>
      %17 = arith.maximumf %15, %16 : vector<8x128xf32>
      %18 = arith.truncf %17 : vector<8x128xf32> to vector<8x128xbf16>
      %c0_15 = arith.constant 0 : index
      %c0_16 = arith.constant 0 : index
      %19 = vector.load %arg5[%c0_15, %c0_16] : memref<8x128xbf16, #tpu.memory_space<vmem>>, vector<8x128xbf16>
      tpu.vector_store %arg5[%c0_15, %c0_16], %18 {strides = array<i32>} : memref<8x128xbf16, #tpu.memory_space<vmem>>, vector<8x128xbf16>,
    } else {
    }
    return
  }
  func.func @transform_0(%arg0: i32, %arg1: i32) -> (i32, i32) {
    %c0_i32 = arith.constant 0 : i32
    return %arg0, %arg1 : i32, i32
  }
  func.func @transform_1(%arg0: i32, %arg1: i32) -> (i32, i32) {
    %c0_i32 = arith.constant 0 : i32
    %c0_i32_0 = arith.constant 0 : i32
    return %arg1, %c0_i32 : i32, i32
  }
  func.func @transform_2(%arg0: i32, %arg1: i32) -> (i32, i32) {
    %c0_i32 = arith.constant 0 : i32
    %c0_i32_0 = arith.constant 0 : i32
    %c0_i32_1 = arith.constant 0 : i32
    return %c0_i32, %c0_i32_0 : i32, i32
  }
  func.func @transform_3(%arg0: i32, %arg1: i32) -> (i32, i32) {
    %c0_i32 = arith.constant 0 : i32
    %c0_i32_0 = arith.constant 0 : i32
    return %arg0, %c0_i32 : i32, i32
  }
}

module attributes {stable_mosaic.version = 11 : i64} {
  func.func @_mm_kernel(%arg0: i32, %arg1: i32, %arg2: memref<8x640xbf16, #tpu.memory_space<vmem>>, %arg3: memref<640x128xbf16, #tpu.memory_space<vmem>>, %arg4: memref<1x128xf32, #tpu.memory_space<vmem>>, %arg5: memref<8x128xbf16, #tpu.memory_space<vmem>>, %arg6: memref<8x128xbf16, #tpu.memory_space<vmem>>, %arg7: memref<8x128xf32, #tpu.memory_space<vmem>>) attributes {dimension_semantics = [#tpu.dimension_semantics<parallel>, #tpu.dimension_semantics<arbitrary>], iteration_bounds = array<i64: 1, 2>, scalar_prefetch = 0 : i64, scratch_operands = 1 : i64, tpu.core_type = #tpu.core_type<tc>, window_params = [{transform_indices = @transform_0, window_bounds = array<i64: 8, 640>}, {transform_indices = @transform_1, window_bounds = array<i64: 640, 128>}, {pipeline_mode = #tpu.pipeline_mode<synchronous>, transform_indices = @transform_2, window_bounds = array<i64: 1, 128>}, {transform_indices = @transform_3, window_bounds = array<i64: 8, 128>}, {transform_indices = @transform_4, window_bounds = array<i64: 8, 128>}]} {
    %c0_i32 = arith.constant 0 : i32
    %0 = arith.cmpi eq, %arg1, %c0_i32 : i32
    %1 = arith.extui %0 : i1 to i32
    %c0_i32_0 = arith.constant 0 : i32
    %2 = arith.cmpi ne, %1, %c0_i32_0 : i32
    scf.if %2 {
      %cst_9 = arith.constant 0.000000e+00 : f32
      %12 = vector.broadcast %cst_9 : f32 to vector<8x128xf32>
      %c0_10 = arith.constant 0 : index
      %c0_11 = arith.constant 0 : index
      %13 = vector.load %arg7[%c0_10, %c0_11] : memref<8x128xf32, #tpu.memory_space<vmem>>, vector<8x128xf32>
      tpu.vector_store %arg7[%c0_10, %c0_11], %12 {strides = array<i32>} : memref<8x128xf32, #tpu.memory_space<vmem>>, vector<8x128xf32>,
    } else {
    }
    %c0 = arith.constant 0 : index
    %c0_1 = arith.constant 0 : index
    %3 = vector.load %arg7[%c0, %c0_1] : memref<8x128xf32, #tpu.memory_space<vmem>>, vector<8x128xf32>
    %c0_2 = arith.constant 0 : index
    %c0_3 = arith.constant 0 : index
    %4 = vector.load %arg2[%c0_2, %c0_3] : memref<8x640xbf16, #tpu.memory_space<vmem>>, vector<8x640xbf16>
    %c0_4 = arith.constant 0 : index
    %c0_5 = arith.constant 0 : index
    %5 = vector.load %arg3[%c0_4, %c0_5] : memref<640x128xbf16, #tpu.memory_space<vmem>>, vector<640x128xbf16>
    %cst = arith.constant dense<0.000000e+00> : vector<8x128xf32>
    %6 = tpu.matmul %4, %5, %cst {dimension_numbers = #tpu.dot_dimension_numbers<[1], [0], [0], [1], [0, 0, 1, 1], [], []>} : vector<8x640xbf16>, vector<640x128xbf16>, vector<8x128xf32> -> vector<8x128xf32>
    %7 = arith.addf %3, %6 : vector<8x128xf32>
    %c0_6 = arith.constant 0 : index
    %c0_7 = arith.constant 0 : index
    %8 = vector.load %arg7[%c0_6, %c0_7] : memref<8x128xf32, #tpu.memory_space<vmem>>, vector<8x128xf32>
    tpu.vector_store %arg7[%c0_6, %c0_7], %7 {strides = array<i32>} : memref<8x128xf32, #tpu.memory_space<vmem>>, vector<8x128xf32>,
    %c1_i32 = arith.constant 1 : i32
    %9 = arith.cmpi eq, %arg1, %c1_i32 : i32
    %10 = arith.extui %9 : i1 to i32
    %c0_i32_8 = arith.constant 0 : i32
    %11 = arith.cmpi ne, %10, %c0_i32_8 : i32
    scf.if %11 {
      %c0_9 = arith.constant 0 : index
      %c0_10 = arith.constant 0 : index
      %12 = vector.load %arg7[%c0_9, %c0_10] : memref<8x128xf32, #tpu.memory_space<vmem>>, vector<8x128xf32>
      %c0_11 = arith.constant 0 : index
      %c0_12 = arith.constant 0 : index
      %13 = vector.load %arg4[%c0_11, %c0_12] : memref<1x128xf32, #tpu.memory_space<vmem>>, vector<1x128xf32>
      %14 = vector.broadcast %13 : vector<1x128xf32> to vector<8x128xf32>
      %15 = arith.addf %12, %14 : vector<8x128xf32>
      %c0_13 = arith.constant 0 : index
      %c0_14 = arith.constant 0 : index
      %16 = vector.load %arg5[%c0_13, %c0_14] : memref<8x128xbf16, #tpu.memory_space<vmem>>, vector<8x128xbf16>
      %17 = arith.extf %16 : vector<8x128xbf16> to vector<8x128xf32>
      %18 = arith.addf %15, %17 : vector<8x128xf32>
      %cst_15 = arith.constant 0.000000e+00 : f32
      %19 = vector.broadcast %cst_15 : f32 to vector<8x128xf32>
      %20 = arith.maximumf %18, %19 : vector<8x128xf32>
      %21 = arith.truncf %20 : vector<8x128xf32> to vector<8x128xbf16>
      %c0_16 = arith.constant 0 : index
      %c0_17 = arith.constant 0 : index
      %22 = vector.load %arg6[%c0_16, %c0_17] : memref<8x128xbf16, #tpu.memory_space<vmem>>, vector<8x128xbf16>
      tpu.vector_store %arg6[%c0_16, %c0_17], %21 {strides = array<i32>} : memref<8x128xbf16, #tpu.memory_space<vmem>>, vector<8x128xbf16>,
    } else {
    }
    return
  }
  func.func @transform_0(%arg0: i32, %arg1: i32) -> (i32, i32) {
    %c0_i32 = arith.constant 0 : i32
    return %arg0, %arg1 : i32, i32
  }
  func.func @transform_1(%arg0: i32, %arg1: i32) -> (i32, i32) {
    %c0_i32 = arith.constant 0 : i32
    %c0_i32_0 = arith.constant 0 : i32
    return %arg1, %c0_i32 : i32, i32
  }
  func.func @transform_2(%arg0: i32, %arg1: i32) -> (i32, i32) {
    %c0_i32 = arith.constant 0 : i32
    %c0_i32_0 = arith.constant 0 : i32
    %c0_i32_1 = arith.constant 0 : i32
    return %c0_i32, %c0_i32_0 : i32, i32
  }
  func.func @transform_3(%arg0: i32, %arg1: i32) -> (i32, i32) {
    %c0_i32 = arith.constant 0 : i32
    %c0_i32_0 = arith.constant 0 : i32
    return %arg0, %c0_i32 : i32, i32
  }
  func.func @transform_4(%arg0: i32, %arg1: i32) -> (i32, i32) {
    %c0_i32 = arith.constant 0 : i32
    %c0_i32_0 = arith.constant 0 : i32
    return %arg0, %c0_i32 : i32, i32
  }
}

module attributes {stable_mosaic.version = 11 : i64} {
  func.func @_mm_kernel(%arg0: i32, %arg1: i32, %arg2: memref<8x128xbf16, #tpu.memory_space<vmem>>, %arg3: memref<128x128xbf16, #tpu.memory_space<vmem>>, %arg4: memref<1x128xf32, #tpu.memory_space<vmem>>, %arg5: memref<8x128xbf16, #tpu.memory_space<vmem>>, %arg6: memref<8x128xf32, #tpu.memory_space<vmem>>) attributes {dimension_semantics = [#tpu.dimension_semantics<parallel>, #tpu.dimension_semantics<arbitrary>], iteration_bounds = array<i64: 1, 1>, scalar_prefetch = 0 : i64, scratch_operands = 1 : i64, tpu.core_type = #tpu.core_type<tc>, window_params = [{transform_indices = @transform_0, window_bounds = array<i64: 8, 128>}, {transform_indices = @transform_1, window_bounds = array<i64: 128, 128>}, {pipeline_mode = #tpu.pipeline_mode<synchronous>, transform_indices = @transform_2, window_bounds = array<i64: 1, 128>}, {transform_indices = @transform_3, window_bounds = array<i64: 8, 128>}]} {
    %c0_i32 = arith.constant 0 : i32
    %0 = arith.cmpi eq, %arg1, %c0_i32 : i32
    %1 = arith.extui %0 : i1 to i32
    %c0_i32_0 = arith.constant 0 : i32
    %2 = arith.cmpi ne, %1, %c0_i32_0 : i32
    scf.if %2 {
      %cst_10 = arith.constant 0.000000e+00 : f32
      %12 = vector.broadcast %cst_10 : f32 to vector<8x128xf32>
      %c0_11 = arith.constant 0 : index
      %c0_12 = arith.constant 0 : index
      %13 = vector.load %arg6[%c0_11, %c0_12] : memref<8x128xf32, #tpu.memory_space<vmem>>, vector<8x128xf32>
      tpu.vector_store %arg6[%c0_11, %c0_12], %12 {strides = array<i32>} : memref<8x128xf32, #tpu.memory_space<vmem>>, vector<8x128xf32>,
    } else {
    }
    %c0 = arith.constant 0 : index
    %c0_1 = arith.constant 0 : index
    %3 = vector.load %arg6[%c0, %c0_1] : memref<8x128xf32, #tpu.memory_space<vmem>>, vector<8x128xf32>
    %c0_2 = arith.constant 0 : index
    %c0_3 = arith.constant 0 : index
    %4 = vector.load %arg2[%c0_2, %c0_3] : memref<8x128xbf16, #tpu.memory_space<vmem>>, vector<8x128xbf16>
    %c0_4 = arith.constant 0 : index
    %c0_5 = arith.constant 0 : index
    %5 = vector.load %arg3[%c0_4, %c0_5] : memref<128x128xbf16, #tpu.memory_space<vmem>>, vector<128x128xbf16>
    %cst = arith.constant dense<0.000000e+00> : vector<8x128xf32>
    %6 = tpu.matmul %4, %5, %cst {dimension_numbers = #tpu.dot_dimension_numbers<[1], [0], [0], [1], [0, 0, 1, 1], [], []>} : vector<8x128xbf16>, vector<128x128xbf16>, vector<8x128xf32> -> vector<8x128xf32>
    %7 = arith.addf %3, %6 : vector<8x128xf32>
    %c0_6 = arith.constant 0 : index
    %c0_7 = arith.constant 0 : index
    %8 = vector.load %arg6[%c0_6, %c0_7] : memref<8x128xf32, #tpu.memory_space<vmem>>, vector<8x128xf32>
    tpu.vector_store %arg6[%c0_6, %c0_7], %7 {strides = array<i32>} : memref<8x128xf32, #tpu.memory_space<vmem>>, vector<8x128xf32>,
    %c0_i32_8 = arith.constant 0 : i32
    %9 = arith.cmpi eq, %arg1, %c0_i32_8 : i32
    %10 = arith.extui %9 : i1 to i32
    %c0_i32_9 = arith.constant 0 : i32
    %11 = arith.cmpi ne, %10, %c0_i32_9 : i32
    scf.if %11 {
      %c0_10 = arith.constant 0 : index
      %c0_11 = arith.constant 0 : index
      %12 = vector.load %arg6[%c0_10, %c0_11] : memref<8x128xf32, #tpu.memory_space<vmem>>, vector<8x128xf32>
      %c0_12 = arith.constant 0 : index
      %c0_13 = arith.constant 0 : index
      %13 = vector.load %arg4[%c0_12, %c0_13] : memref<1x128xf32, #tpu.memory_space<vmem>>, vector<1x128xf32>
      %14 = vector.broadcast %13 : vector<1x128xf32> to vector<8x128xf32>
      %15 = arith.addf %12, %14 : vector<8x128xf32>
      %16 = arith.truncf %15 : vector<8x128xf32> to vector<8x128xbf16>
      %c0_14 = arith.constant 0 : index
      %c0_15 = arith.constant 0 : index
      %17 = vector.load %arg5[%c0_14, %c0_15] : memref<8x128xbf16, #tpu.memory_space<vmem>>, vector<8x128xbf16>
      tpu.vector_store %arg5[%c0_14, %c0_15], %16 {strides = array<i32>} : memref<8x128xbf16, #tpu.memory_space<vmem>>, vector<8x128xbf16>,
    } else {
    }
    return
  }
  func.func @transform_0(%arg0: i32, %arg1: i32) -> (i32, i32) {
    %c0_i32 = arith.constant 0 : i32
    return %arg0, %arg1 : i32, i32
  }
  func.func @transform_1(%arg0: i32, %arg1: i32) -> (i32, i32) {
    %c0_i32 = arith.constant 0 : i32
    %c0_i32_0 = arith.constant 0 : i32
    return %arg1, %c0_i32 : i32, i32
  }
  func.func @transform_2(%arg0: i32, %arg1: i32) -> (i32, i32) {
    %c0_i32 = arith.constant 0 : i32
    %c0_i32_0 = arith.constant 0 : i32
    %c0_i32_1 = arith.constant 0 : i32
    return %c0_i32, %c0_i32_0 : i32, i32
  }
  func.func @transform_3(%arg0: i32, %arg1: i32) -> (i32, i32) {
    %c0_i32 = arith.constant 0 : i32
    %c0_i32_0 = arith.constant 0 : i32
    return %arg0, %c0_i32 : i32, i32
  }
}

module attributes {stable_mosaic.version = 11 : i64} {
  func.func @_mm_kernel(%arg0: i32, %arg1: i32, %arg2: memref<8x640xbf16, #tpu.memory_space<vmem>>, %arg3: memref<640x128xbf16, #tpu.memory_space<vmem>>, %arg4: memref<1x128xf32, #tpu.memory_space<vmem>>, %arg5: memref<8x128xbf16, #tpu.memory_space<vmem>>, %arg6: memref<8x128xf32, #tpu.memory_space<vmem>>) attributes {dimension_semantics = [#tpu.dimension_semantics<parallel>, #tpu.dimension_semantics<arbitrary>], iteration_bounds = array<i64: 1, 2>, scalar_prefetch = 0 : i64, scratch_operands = 1 : i64, tpu.core_type = #tpu.core_type<tc>, window_params = [{transform_indices = @transform_0, window_bounds = array<i64: 8, 640>}, {transform_indices = @transform_1, window_bounds = array<i64: 640, 128>}, {pipeline_mode = #tpu.pipeline_mode<synchronous>, transform_indices = @transform_2, window_bounds = array<i64: 1, 128>}, {transform_indices = @transform_3, window_bounds = array<i64: 8, 128>}]} {
    %c0_i32 = arith.constant 0 : i32
    %0 = arith.cmpi eq, %arg1, %c0_i32 : i32
    %1 = arith.extui %0 : i1 to i32
    %c0_i32_0 = arith.constant 0 : i32
    %2 = arith.cmpi ne, %1, %c0_i32_0 : i32
    scf.if %2 {
      %cst_9 = arith.constant 0.000000e+00 : f32
      %12 = vector.broadcast %cst_9 : f32 to vector<8x128xf32>
      %c0_10 = arith.constant 0 : index
      %c0_11 = arith.constant 0 : index
      %13 = vector.load %arg6[%c0_10, %c0_11] : memref<8x128xf32, #tpu.memory_space<vmem>>, vector<8x128xf32>
      tpu.vector_store %arg6[%c0_10, %c0_11], %12 {strides = array<i32>} : memref<8x128xf32, #tpu.memory_space<vmem>>, vector<8x128xf32>,
    } else {
    }
    %c0 = arith.constant 0 : index
    %c0_1 = arith.constant 0 : index
    %3 = vector.load %arg6[%c0, %c0_1] : memref<8x128xf32, #tpu.memory_space<vmem>>, vector<8x128xf32>
    %c0_2 = arith.constant 0 : index
    %c0_3 = arith.constant 0 : index
    %4 = vector.load %arg2[%c0_2, %c0_3] : memref<8x640xbf16, #tpu.memory_space<vmem>>, vector<8x640xbf16>
    %c0_4 = arith.constant 0 : index
    %c0_5 = arith.constant 0 : index
    %5 = vector.load %arg3[%c0_4, %c0_5] : memref<640x128xbf16, #tpu.memory_space<vmem>>, vector<640x128xbf16>
    %cst = arith.constant dense<0.000000e+00> : vector<8x128xf32>
    %6 = tpu.matmul %4, %5, %cst {dimension_numbers = #tpu.dot_dimension_numbers<[1], [0], [0], [1], [0, 0, 1, 1], [], []>} : vector<8x640xbf16>, vector<640x128xbf16>, vector<8x128xf32> -> vector<8x128xf32>
    %7 = arith.addf %3, %6 : vector<8x128xf32>
    %c0_6 = arith.constant 0 : index
    %c0_7 = arith.constant 0 : index
    %8 = vector.load %arg6[%c0_6, %c0_7] : memref<8x128xf32, #tpu.memory_space<vmem>>, vector<8x128xf32>
    tpu.vector_store %arg6[%c0_6, %c0_7], %7 {strides = array<i32>} : memref<8x128xf32, #tpu.memory_space<vmem>>, vector<8x128xf32>,
    %c1_i32 = arith.constant 1 : i32
    %9 = arith.cmpi eq, %arg1, %c1_i32 : i32
    %10 = arith.extui %9 : i1 to i32
    %c0_i32_8 = arith.constant 0 : i32
    %11 = arith.cmpi ne, %10, %c0_i32_8 : i32
    scf.if %11 {
      %c0_9 = arith.constant 0 : index
      %c0_10 = arith.constant 0 : index
      %12 = vector.load %arg6[%c0_9, %c0_10] : memref<8x128xf32, #tpu.memory_space<vmem>>, vector<8x128xf32>
      %c0_11 = arith.constant 0 : index
      %c0_12 = arith.constant 0 : index
      %13 = vector.load %arg4[%c0_11, %c0_12] : memref<1x128xf32, #tpu.memory_space<vmem>>, vector<1x128xf32>
      %14 = vector.broadcast %13 : vector<1x128xf32> to vector<8x128xf32>
      %15 = arith.addf %12, %14 : vector<8x128xf32>
      %cst_13 = arith.constant 0.000000e+00 : f32
      %16 = vector.broadcast %cst_13 : f32 to vector<8x128xf32>
      %17 = arith.maximumf %15, %16 : vector<8x128xf32>
      %18 = arith.truncf %17 : vector<8x128xf32> to vector<8x128xbf16>
      %c0_14 = arith.constant 0 : index
      %c0_15 = arith.constant 0 : index
      %19 = vector.load %arg5[%c0_14, %c0_15] : memref<8x128xbf16, #tpu.memory_space<vmem>>, vector<8x128xbf16>
      tpu.vector_store %arg5[%c0_14, %c0_15], %18 {strides = array<i32>} : memref<8x128xbf16, #tpu.memory_space<vmem>>, vector<8x128xbf16>,
    } else {
    }
    return
  }
  func.func @transform_0(%arg0: i32, %arg1: i32) -> (i32, i32) {
    %c0_i32 = arith.constant 0 : i32
    return %arg0, %arg1 : i32, i32
  }
  func.func @transform_1(%arg0: i32, %arg1: i32) -> (i32, i32) {
    %c0_i32 = arith.constant 0 : i32
    %c0_i32_0 = arith.constant 0 : i32
    return %arg1, %c0_i32 : i32, i32
  }
  func.func @transform_2(%arg0: i32, %arg1: i32) -> (i32, i32) {
    %c0_i32 = arith.constant 0 : i32
    %c0_i32_0 = arith.constant 0 : i32
    %c0_i32_1 = arith.constant 0 : i32
    return %c0_i32, %c0_i32_0 : i32, i32
  }
  func.func @transform_3(%arg0: i32, %arg1: i32) -> (i32, i32) {
    %c0_i32 = arith.constant 0 : i32
    %c0_i32_0 = arith.constant 0 : i32
    return %arg0, %c0_i32 : i32, i32
  }
}

module attributes {stable_mosaic.version = 11 : i64} {
  func.func @_mm_kernel(%arg0: i32, %arg1: i32, %arg2: memref<8x640xbf16, #tpu.memory_space<vmem>>, %arg3: memref<640x256xbf16, #tpu.memory_space<vmem>>, %arg4: memref<1x256xf32, #tpu.memory_space<vmem>>, %arg5: memref<8x256xbf16, #tpu.memory_space<vmem>>, %arg6: memref<8x256xf32, #tpu.memory_space<vmem>>) attributes {dimension_semantics = [#tpu.dimension_semantics<parallel>, #tpu.dimension_semantics<arbitrary>], iteration_bounds = array<i64: 1, 2>, scalar_prefetch = 0 : i64, scratch_operands = 1 : i64, tpu.core_type = #tpu.core_type<tc>, window_params = [{transform_indices = @transform_0, window_bounds = array<i64: 8, 640>}, {transform_indices = @transform_1, window_bounds = array<i64: 640, 256>}, {pipeline_mode = #tpu.pipeline_mode<synchronous>, transform_indices = @transform_2, window_bounds = array<i64: 1, 256>}, {transform_indices = @transform_3, window_bounds = array<i64: 8, 256>}]} {
    %c0_i32 = arith.constant 0 : i32
    %0 = arith.cmpi eq, %arg1, %c0_i32 : i32
    %1 = arith.extui %0 : i1 to i32
    %c0_i32_0 = arith.constant 0 : i32
    %2 = arith.cmpi ne, %1, %c0_i32_0 : i32
    scf.if %2 {
      %cst_9 = arith.constant 0.000000e+00 : f32
      %12 = vector.broadcast %cst_9 : f32 to vector<8x256xf32>
      %c0_10 = arith.constant 0 : index
      %c0_11 = arith.constant 0 : index
      %13 = vector.load %arg6[%c0_10, %c0_11] : memref<8x256xf32, #tpu.memory_space<vmem>>, vector<8x256xf32>
      tpu.vector_store %arg6[%c0_10, %c0_11], %12 {strides = array<i32>} : memref<8x256xf32, #tpu.memory_space<vmem>>, vector<8x256xf32>,
    } else {
    }
    %c0 = arith.constant 0 : index
    %c0_1 = arith.constant 0 : index
    %3 = vector.load %arg6[%c0, %c0_1] : memref<8x256xf32, #tpu.memory_space<vmem>>, vector<8x256xf32>
    %c0_2 = arith.constant 0 : index
    %c0_3 = arith.constant 0 : index
    %4 = vector.load %arg2[%c0_2, %c0_3] : memref<8x640xbf16, #tpu.memory_space<vmem>>, vector<8x640xbf16>
    %c0_4 = arith.constant 0 : index
    %c0_5 = arith.constant 0 : index
    %5 = vector.load %arg3[%c0_4, %c0_5] : memref<640x256xbf16, #tpu.memory_space<vmem>>, vector<640x256xbf16>
    %cst = arith.constant dense<0.000000e+00> : vector<8x256xf32>
    %6 = tpu.matmul %4, %5, %cst {dimension_numbers = #tpu.dot_dimension_numbers<[1], [0], [0], [1], [0, 0, 1, 1], [], []>} : vector<8x640xbf16>, vector<640x256xbf16>, vector<8x256xf32> -> vector<8x256xf32>
    %7 = arith.addf %3, %6 : vector<8x256xf32>
    %c0_6 = arith.constant 0 : index
    %c0_7 = arith.constant 0 : index
    %8 = vector.load %arg6[%c0_6, %c0_7] : memref<8x256xf32, #tpu.memory_space<vmem>>, vector<8x256xf32>
    tpu.vector_store %arg6[%c0_6, %c0_7], %7 {strides = array<i32>} : memref<8x256xf32, #tpu.memory_space<vmem>>, vector<8x256xf32>,
    %c1_i32 = arith.constant 1 : i32
    %9 = arith.cmpi eq, %arg1, %c1_i32 : i32
    %10 = arith.extui %9 : i1 to i32
    %c0_i32_8 = arith.constant 0 : i32
    %11 = arith.cmpi ne, %10, %c0_i32_8 : i32
    scf.if %11 {
      %c0_9 = arith.constant 0 : index
      %c0_10 = arith.constant 0 : index
      %12 = vector.load %arg6[%c0_9, %c0_10] : memref<8x256xf32, #tpu.memory_space<vmem>>, vector<8x256xf32>
      %c0_11 = arith.constant 0 : index
      %c0_12 = arith.constant 0 : index
      %13 = vector.load %arg4[%c0_11, %c0_12] : memref<1x256xf32, #tpu.memory_space<vmem>>, vector<1x256xf32>
      %14 = vector.broadcast %13 : vector<1x256xf32> to vector<8x256xf32>
      %15 = arith.addf %12, %14 : vector<8x256xf32>
      %cst_13 = arith.constant 0.000000e+00 : f32
      %16 = vector.broadcast %cst_13 : f32 to vector<8x256xf32>
      %17 = arith.maximumf %15, %16 : vector<8x256xf32>
      %18 = arith.truncf %17 : vector<8x256xf32> to vector<8x256xbf16>
      %c0_14 = arith.constant 0 : index
      %c0_15 = arith.constant 0 : index
      %19 = vector.load %arg5[%c0_14, %c0_15] : memref<8x256xbf16, #tpu.memory_space<vmem>>, vector<8x256xbf16>
      tpu.vector_store %arg5[%c0_14, %c0_15], %18 {strides = array<i32>} : memref<8x256xbf16, #tpu.memory_space<vmem>>, vector<8x256xbf16>,
    } else {
    }
    return
  }
  func.func @transform_0(%arg0: i32, %arg1: i32) -> (i32, i32) {
    %c0_i32 = arith.constant 0 : i32
    return %arg0, %arg1 : i32, i32
  }
  func.func @transform_1(%arg0: i32, %arg1: i32) -> (i32, i32) {
    %c0_i32 = arith.constant 0 : i32
    %c0_i32_0 = arith.constant 0 : i32
    return %arg1, %c0_i32 : i32, i32
  }
  func.func @transform_2(%arg0: i32, %arg1: i32) -> (i32, i32) {
    %c0_i32 = arith.constant 0 : i32
    %c0_i32_0 = arith.constant 0 : i32
    %c0_i32_1 = arith.constant 0 : i32
    return %c0_i32, %c0_i32_0 : i32, i32
  }
  func.func @transform_3(%arg0: i32, %arg1: i32) -> (i32, i32) {
    %c0_i32 = arith.constant 0 : i32
    %c0_i32_0 = arith.constant 0 : i32
    return %arg0, %c0_i32 : i32, i32
  }
}

module attributes {stable_mosaic.version = 11 : i64} {
  func.func @_mm_kernel(%arg0: i32, %arg1: i32, %arg2: memref<8x768xbf16, #tpu.memory_space<vmem>>, %arg3: memref<768x256xbf16, #tpu.memory_space<vmem>>, %arg4: memref<1x256xf32, #tpu.memory_space<vmem>>, %arg5: memref<8x256xbf16, #tpu.memory_space<vmem>>, %arg6: memref<8x256xf32, #tpu.memory_space<vmem>>) attributes {dimension_semantics = [#tpu.dimension_semantics<parallel>, #tpu.dimension_semantics<arbitrary>], iteration_bounds = array<i64: 1, 3>, scalar_prefetch = 0 : i64, scratch_operands = 1 : i64, tpu.core_type = #tpu.core_type<tc>, window_params = [{transform_indices = @transform_0, window_bounds = array<i64: 8, 768>}, {transform_indices = @transform_1, window_bounds = array<i64: 768, 256>}, {pipeline_mode = #tpu.pipeline_mode<synchronous>, transform_indices = @transform_2, window_bounds = array<i64: 1, 256>}, {transform_indices = @transform_3, window_bounds = array<i64: 8, 256>}]} {
    %c0_i32 = arith.constant 0 : i32
    %0 = arith.cmpi eq, %arg1, %c0_i32 : i32
    %1 = arith.extui %0 : i1 to i32
    %c0_i32_0 = arith.constant 0 : i32
    %2 = arith.cmpi ne, %1, %c0_i32_0 : i32
    scf.if %2 {
      %cst_9 = arith.constant 0.000000e+00 : f32
      %12 = vector.broadcast %cst_9 : f32 to vector<8x256xf32>
      %c0_10 = arith.constant 0 : index
      %c0_11 = arith.constant 0 : index
      %13 = vector.load %arg6[%c0_10, %c0_11] : memref<8x256xf32, #tpu.memory_space<vmem>>, vector<8x256xf32>
      tpu.vector_store %arg6[%c0_10, %c0_11], %12 {strides = array<i32>} : memref<8x256xf32, #tpu.memory_space<vmem>>, vector<8x256xf32>,
    } else {
    }
    %c0 = arith.constant 0 : index
    %c0_1 = arith.constant 0 : index
    %3 = vector.load %arg6[%c0, %c0_1] : memref<8x256xf32, #tpu.memory_space<vmem>>, vector<8x256xf32>
    %c0_2 = arith.constant 0 : index
    %c0_3 = arith.constant 0 : index
    %4 = vector.load %arg2[%c0_2, %c0_3] : memref<8x768xbf16, #tpu.memory_space<vmem>>, vector<8x768xbf16>
    %c0_4 = arith.constant 0 : index
    %c0_5 = arith.constant 0 : index
    %5 = vector.load %arg3[%c0_4, %c0_5] : memref<768x256xbf16, #tpu.memory_space<vmem>>, vector<768x256xbf16>
    %cst = arith.constant dense<0.000000e+00> : vector<8x256xf32>
    %6 = tpu.matmul %4, %5, %cst {dimension_numbers = #tpu.dot_dimension_numbers<[1], [0], [0], [1], [0, 0, 1, 1], [], []>} : vector<8x768xbf16>, vector<768x256xbf16>, vector<8x256xf32> -> vector<8x256xf32>
    %7 = arith.addf %3, %6 : vector<8x256xf32>
    %c0_6 = arith.constant 0 : index
    %c0_7 = arith.constant 0 : index
    %8 = vector.load %arg6[%c0_6, %c0_7] : memref<8x256xf32, #tpu.memory_space<vmem>>, vector<8x256xf32>
    tpu.vector_store %arg6[%c0_6, %c0_7], %7 {strides = array<i32>} : memref<8x256xf32, #tpu.memory_space<vmem>>, vector<8x256xf32>,
    %c2_i32 = arith.constant 2 : i32
    %9 = arith.cmpi eq, %arg1, %c2_i32 : i32
    %10 = arith.extui %9 : i1 to i32
    %c0_i32_8 = arith.constant 0 : i32
    %11 = arith.cmpi ne, %10, %c0_i32_8 : i32
    scf.if %11 {
      %c0_9 = arith.constant 0 : index
      %c0_10 = arith.constant 0 : index
      %12 = vector.load %arg6[%c0_9, %c0_10] : memref<8x256xf32, #tpu.memory_space<vmem>>, vector<8x256xf32>
      %c0_11 = arith.constant 0 : index
      %c0_12 = arith.constant 0 : index
      %13 = vector.load %arg4[%c0_11, %c0_12] : memref<1x256xf32, #tpu.memory_space<vmem>>, vector<1x256xf32>
      %14 = vector.broadcast %13 : vector<1x256xf32> to vector<8x256xf32>
      %15 = arith.addf %12, %14 : vector<8x256xf32>
      %cst_13 = arith.constant 0.000000e+00 : f32
      %16 = vector.broadcast %cst_13 : f32 to vector<8x256xf32>
      %17 = arith.maximumf %15, %16 : vector<8x256xf32>
      %18 = arith.truncf %17 : vector<8x256xf32> to vector<8x256xbf16>
      %c0_14 = arith.constant 0 : index
      %c0_15 = arith.constant 0 : index
      %19 = vector.load %arg5[%c0_14, %c0_15] : memref<8x256xbf16, #tpu.memory_space<vmem>>, vector<8x256xbf16>
      tpu.vector_store %arg5[%c0_14, %c0_15], %18 {strides = array<i32>} : memref<8x256xbf16, #tpu.memory_space<vmem>>, vector<8x256xbf16>,
    } else {
    }
    return
  }
  func.func @transform_0(%arg0: i32, %arg1: i32) -> (i32, i32) {
    %c0_i32 = arith.constant 0 : i32
    return %arg0, %arg1 : i32, i32
  }
  func.func @transform_1(%arg0: i32, %arg1: i32) -> (i32, i32) {
    %c0_i32 = arith.constant 0 : i32
    %c0_i32_0 = arith.constant 0 : i32
    return %arg1, %c0_i32 : i32, i32
  }
  func.func @transform_2(%arg0: i32, %arg1: i32) -> (i32, i32) {
    %c0_i32 = arith.constant 0 : i32
    %c0_i32_0 = arith.constant 0 : i32
    %c0_i32_1 = arith.constant 0 : i32
    return %c0_i32, %c0_i32_0 : i32, i32
  }
  func.func @transform_3(%arg0: i32, %arg1: i32) -> (i32, i32) {
    %c0_i32 = arith.constant 0 : i32
    %c0_i32_0 = arith.constant 0 : i32
    return %arg0, %c0_i32 : i32, i32
  }
}

module attributes {stable_mosaic.version = 11 : i64} {
  func.func @_mm_kernel(%arg0: i32, %arg1: i32, %arg2: memref<8x128xbf16, #tpu.memory_space<vmem>>, %arg3: memref<128x256xbf16, #tpu.memory_space<vmem>>, %arg4: memref<1x256xf32, #tpu.memory_space<vmem>>, %arg5: memref<8x256xbf16, #tpu.memory_space<vmem>>, %arg6: memref<8x256xf32, #tpu.memory_space<vmem>>) attributes {dimension_semantics = [#tpu.dimension_semantics<parallel>, #tpu.dimension_semantics<arbitrary>], iteration_bounds = array<i64: 1, 1>, scalar_prefetch = 0 : i64, scratch_operands = 1 : i64, tpu.core_type = #tpu.core_type<tc>, window_params = [{transform_indices = @transform_0, window_bounds = array<i64: 8, 128>}, {transform_indices = @transform_1, window_bounds = array<i64: 128, 256>}, {pipeline_mode = #tpu.pipeline_mode<synchronous>, transform_indices = @transform_2, window_bounds = array<i64: 1, 256>}, {transform_indices = @transform_3, window_bounds = array<i64: 8, 256>}]} {
    %c0_i32 = arith.constant 0 : i32
    %0 = arith.cmpi eq, %arg1, %c0_i32 : i32
    %1 = arith.extui %0 : i1 to i32
    %c0_i32_0 = arith.constant 0 : i32
    %2 = arith.cmpi ne, %1, %c0_i32_0 : i32
    scf.if %2 {
      %cst_10 = arith.constant 0.000000e+00 : f32
      %12 = vector.broadcast %cst_10 : f32 to vector<8x256xf32>
      %c0_11 = arith.constant 0 : index
      %c0_12 = arith.constant 0 : index
      %13 = vector.load %arg6[%c0_11, %c0_12] : memref<8x256xf32, #tpu.memory_space<vmem>>, vector<8x256xf32>
      tpu.vector_store %arg6[%c0_11, %c0_12], %12 {strides = array<i32>} : memref<8x256xf32, #tpu.memory_space<vmem>>, vector<8x256xf32>,
    } else {
    }
    %c0 = arith.constant 0 : index
    %c0_1 = arith.constant 0 : index
    %3 = vector.load %arg6[%c0, %c0_1] : memref<8x256xf32, #tpu.memory_space<vmem>>, vector<8x256xf32>
    %c0_2 = arith.constant 0 : index
    %c0_3 = arith.constant 0 : index
    %4 = vector.load %arg2[%c0_2, %c0_3] : memref<8x128xbf16, #tpu.memory_space<vmem>>, vector<8x128xbf16>
    %c0_4 = arith.constant 0 : index
    %c0_5 = arith.constant 0 : index
    %5 = vector.load %arg3[%c0_4, %c0_5] : memref<128x256xbf16, #tpu.memory_space<vmem>>, vector<128x256xbf16>
    %cst = arith.constant dense<0.000000e+00> : vector<8x256xf32>
    %6 = tpu.matmul %4, %5, %cst {dimension_numbers = #tpu.dot_dimension_numbers<[1], [0], [0], [1], [0, 0, 1, 1], [], []>} : vector<8x128xbf16>, vector<128x256xbf16>, vector<8x256xf32> -> vector<8x256xf32>
    %7 = arith.addf %3, %6 : vector<8x256xf32>
    %c0_6 = arith.constant 0 : index
    %c0_7 = arith.constant 0 : index
    %8 = vector.load %arg6[%c0_6, %c0_7] : memref<8x256xf32, #tpu.memory_space<vmem>>, vector<8x256xf32>
    tpu.vector_store %arg6[%c0_6, %c0_7], %7 {strides = array<i32>} : memref<8x256xf32, #tpu.memory_space<vmem>>, vector<8x256xf32>,
    %c0_i32_8 = arith.constant 0 : i32
    %9 = arith.cmpi eq, %arg1, %c0_i32_8 : i32
    %10 = arith.extui %9 : i1 to i32
    %c0_i32_9 = arith.constant 0 : i32
    %11 = arith.cmpi ne, %10, %c0_i32_9 : i32
    scf.if %11 {
      %c0_10 = arith.constant 0 : index
      %c0_11 = arith.constant 0 : index
      %12 = vector.load %arg6[%c0_10, %c0_11] : memref<8x256xf32, #tpu.memory_space<vmem>>, vector<8x256xf32>
      %c0_12 = arith.constant 0 : index
      %c0_13 = arith.constant 0 : index
      %13 = vector.load %arg4[%c0_12, %c0_13] : memref<1x256xf32, #tpu.memory_space<vmem>>, vector<1x256xf32>
      %14 = vector.broadcast %13 : vector<1x256xf32> to vector<8x256xf32>
      %15 = arith.addf %12, %14 : vector<8x256xf32>
      %16 = arith.truncf %15 : vector<8x256xf32> to vector<8x256xbf16>
      %c0_14 = arith.constant 0 : index
      %c0_15 = arith.constant 0 : index
      %17 = vector.load %arg5[%c0_14, %c0_15] : memref<8x256xbf16, #tpu.memory_space<vmem>>, vector<8x256xbf16>
      tpu.vector_store %arg5[%c0_14, %c0_15], %16 {strides = array<i32>} : memref<8x256xbf16, #tpu.memory_space<vmem>>, vector<8x256xbf16>,
    } else {
    }
    return
  }
  func.func @transform_0(%arg0: i32, %arg1: i32) -> (i32, i32) {
    %c0_i32 = arith.constant 0 : i32
    return %arg0, %arg1 : i32, i32
  }
  func.func @transform_1(%arg0: i32, %arg1: i32) -> (i32, i32) {
    %c0_i32 = arith.constant 0 : i32
    %c0_i32_0 = arith.constant 0 : i32
    return %arg1, %c0_i32 : i32, i32
  }
  func.func @transform_2(%arg0: i32, %arg1: i32) -> (i32, i32) {
    %c0_i32 = arith.constant 0 : i32
    %c0_i32_0 = arith.constant 0 : i32
    %c0_i32_1 = arith.constant 0 : i32
    return %c0_i32, %c0_i32_0 : i32, i32
  }
  func.func @transform_3(%arg0: i32, %arg1: i32) -> (i32, i32) {
    %c0_i32 = arith.constant 0 : i32
    %c0_i32_0 = arith.constant 0 : i32
    return %arg0, %c0_i32 : i32, i32
  }
}

module attributes {stable_mosaic.version = 11 : i64} {
  func.func @_mm_kernel(%arg0: i32, %arg1: i32, %arg2: memref<8x768xbf16, #tpu.memory_space<vmem>>, %arg3: memref<768x256xbf16, #tpu.memory_space<vmem>>, %arg4: memref<1x256xf32, #tpu.memory_space<vmem>>, %arg5: memref<8x256xbf16, #tpu.memory_space<vmem>>, %arg6: memref<8x256xbf16, #tpu.memory_space<vmem>>, %arg7: memref<8x256xf32, #tpu.memory_space<vmem>>) attributes {dimension_semantics = [#tpu.dimension_semantics<parallel>, #tpu.dimension_semantics<arbitrary>], iteration_bounds = array<i64: 1, 3>, scalar_prefetch = 0 : i64, scratch_operands = 1 : i64, tpu.core_type = #tpu.core_type<tc>, window_params = [{transform_indices = @transform_0, window_bounds = array<i64: 8, 768>}, {transform_indices = @transform_1, window_bounds = array<i64: 768, 256>}, {pipeline_mode = #tpu.pipeline_mode<synchronous>, transform_indices = @transform_2, window_bounds = array<i64: 1, 256>}, {transform_indices = @transform_3, window_bounds = array<i64: 8, 256>}, {transform_indices = @transform_4, window_bounds = array<i64: 8, 256>}]} {
    %c0_i32 = arith.constant 0 : i32
    %0 = arith.cmpi eq, %arg1, %c0_i32 : i32
    %1 = arith.extui %0 : i1 to i32
    %c0_i32_0 = arith.constant 0 : i32
    %2 = arith.cmpi ne, %1, %c0_i32_0 : i32
    scf.if %2 {
      %cst_9 = arith.constant 0.000000e+00 : f32
      %12 = vector.broadcast %cst_9 : f32 to vector<8x256xf32>
      %c0_10 = arith.constant 0 : index
      %c0_11 = arith.constant 0 : index
      %13 = vector.load %arg7[%c0_10, %c0_11] : memref<8x256xf32, #tpu.memory_space<vmem>>, vector<8x256xf32>
      tpu.vector_store %arg7[%c0_10, %c0_11], %12 {strides = array<i32>} : memref<8x256xf32, #tpu.memory_space<vmem>>, vector<8x256xf32>,
    } else {
    }
    %c0 = arith.constant 0 : index
    %c0_1 = arith.constant 0 : index
    %3 = vector.load %arg7[%c0, %c0_1] : memref<8x256xf32, #tpu.memory_space<vmem>>, vector<8x256xf32>
    %c0_2 = arith.constant 0 : index
    %c0_3 = arith.constant 0 : index
    %4 = vector.load %arg2[%c0_2, %c0_3] : memref<8x768xbf16, #tpu.memory_space<vmem>>, vector<8x768xbf16>
    %c0_4 = arith.constant 0 : index
    %c0_5 = arith.constant 0 : index
    %5 = vector.load %arg3[%c0_4, %c0_5] : memref<768x256xbf16, #tpu.memory_space<vmem>>, vector<768x256xbf16>
    %cst = arith.constant dense<0.000000e+00> : vector<8x256xf32>
    %6 = tpu.matmul %4, %5, %cst {dimension_numbers = #tpu.dot_dimension_numbers<[1], [0], [0], [1], [0, 0, 1, 1], [], []>} : vector<8x768xbf16>, vector<768x256xbf16>, vector<8x256xf32> -> vector<8x256xf32>
    %7 = arith.addf %3, %6 : vector<8x256xf32>
    %c0_6 = arith.constant 0 : index
    %c0_7 = arith.constant 0 : index
    %8 = vector.load %arg7[%c0_6, %c0_7] : memref<8x256xf32, #tpu.memory_space<vmem>>, vector<8x256xf32>
    tpu.vector_store %arg7[%c0_6, %c0_7], %7 {strides = array<i32>} : memref<8x256xf32, #tpu.memory_space<vmem>>, vector<8x256xf32>,
    %c2_i32 = arith.constant 2 : i32
    %9 = arith.cmpi eq, %arg1, %c2_i32 : i32
    %10 = arith.extui %9 : i1 to i32
    %c0_i32_8 = arith.constant 0 : i32
    %11 = arith.cmpi ne, %10, %c0_i32_8 : i32
    scf.if %11 {
      %c0_9 = arith.constant 0 : index
      %c0_10 = arith.constant 0 : index
      %12 = vector.load %arg7[%c0_9, %c0_10] : memref<8x256xf32, #tpu.memory_space<vmem>>, vector<8x256xf32>
      %c0_11 = arith.constant 0 : index
      %c0_12 = arith.constant 0 : index
      %13 = vector.load %arg4[%c0_11, %c0_12] : memref<1x256xf32, #tpu.memory_space<vmem>>, vector<1x256xf32>
      %14 = vector.broadcast %13 : vector<1x256xf32> to vector<8x256xf32>
      %15 = arith.addf %12, %14 : vector<8x256xf32>
      %c0_13 = arith.constant 0 : index
      %c0_14 = arith.constant 0 : index
      %16 = vector.load %arg5[%c0_13, %c0_14] : memref<8x256xbf16, #tpu.memory_space<vmem>>, vector<8x256xbf16>
      %17 = arith.extf %16 : vector<8x256xbf16> to vector<8x256xf32>
      %18 = arith.addf %15, %17 : vector<8x256xf32>
      %cst_15 = arith.constant 0.000000e+00 : f32
      %19 = vector.broadcast %cst_15 : f32 to vector<8x256xf32>
      %20 = arith.maximumf %18, %19 : vector<8x256xf32>
      %21 = arith.truncf %20 : vector<8x256xf32> to vector<8x256xbf16>
      %c0_16 = arith.constant 0 : index
      %c0_17 = arith.constant 0 : index
      %22 = vector.load %arg6[%c0_16, %c0_17] : memref<8x256xbf16, #tpu.memory_space<vmem>>, vector<8x256xbf16>
      tpu.vector_store %arg6[%c0_16, %c0_17], %21 {strides = array<i32>} : memref<8x256xbf16, #tpu.memory_space<vmem>>, vector<8x256xbf16>,
    } else {
    }
    return
  }
  func.func @transform_0(%arg0: i32, %arg1: i32) -> (i32, i32) {
    %c0_i32 = arith.constant 0 : i32
    return %arg0, %arg1 : i32, i32
  }
  func.func @transform_1(%arg0: i32, %arg1: i32) -> (i32, i32) {
    %c0_i32 = arith.constant 0 : i32
    %c0_i32_0 = arith.constant 0 : i32
    return %arg1, %c0_i32 : i32, i32
  }
  func.func @transform_2(%arg0: i32, %arg1: i32) -> (i32, i32) {
    %c0_i32 = arith.constant 0 : i32
    %c0_i32_0 = arith.constant 0 : i32
    %c0_i32_1 = arith.constant 0 : i32
    return %c0_i32, %c0_i32_0 : i32, i32
  }
  func.func @transform_3(%arg0: i32, %arg1: i32) -> (i32, i32) {
    %c0_i32 = arith.constant 0 : i32
    %c0_i32_0 = arith.constant 0 : i32
    return %arg0, %c0_i32 : i32, i32
  }
  func.func @transform_4(%arg0: i32, %arg1: i32) -> (i32, i32) {
    %c0_i32 = arith.constant 0 : i32
    %c0_i32_0 = arith.constant 0 : i32
    return %arg0, %c0_i32 : i32, i32
  }
}

module attributes {stable_mosaic.version = 11 : i64} {
  func.func @_mm_kernel(%arg0: i32, %arg1: i32, %arg2: memref<8x256xbf16, #tpu.memory_space<vmem>>, %arg3: memref<256x128xbf16, #tpu.memory_space<vmem>>, %arg4: memref<1x128xf32, #tpu.memory_space<vmem>>, %arg5: memref<8x128xf32, #tpu.memory_space<vmem>>, %arg6: memref<8x128xf32, #tpu.memory_space<vmem>>) attributes {dimension_semantics = [#tpu.dimension_semantics<parallel>, #tpu.dimension_semantics<arbitrary>], iteration_bounds = array<i64: 1, 1>, scalar_prefetch = 0 : i64, scratch_operands = 1 : i64, tpu.core_type = #tpu.core_type<tc>, window_params = [{transform_indices = @transform_0, window_bounds = array<i64: 8, 256>}, {transform_indices = @transform_1, window_bounds = array<i64: 256, 128>}, {pipeline_mode = #tpu.pipeline_mode<synchronous>, transform_indices = @transform_2, window_bounds = array<i64: 1, 128>}, {transform_indices = @transform_3, window_bounds = array<i64: 8, 128>}]} {
    %c0_i32 = arith.constant 0 : i32
    %0 = arith.cmpi eq, %arg1, %c0_i32 : i32
    %1 = arith.extui %0 : i1 to i32
    %c0_i32_0 = arith.constant 0 : i32
    %2 = arith.cmpi ne, %1, %c0_i32_0 : i32
    scf.if %2 {
      %cst_10 = arith.constant 0.000000e+00 : f32
      %12 = vector.broadcast %cst_10 : f32 to vector<8x128xf32>
      %c0_11 = arith.constant 0 : index
      %c0_12 = arith.constant 0 : index
      %13 = vector.load %arg6[%c0_11, %c0_12] : memref<8x128xf32, #tpu.memory_space<vmem>>, vector<8x128xf32>
      tpu.vector_store %arg6[%c0_11, %c0_12], %12 {strides = array<i32>} : memref<8x128xf32, #tpu.memory_space<vmem>>, vector<8x128xf32>,
    } else {
    }
    %c0 = arith.constant 0 : index
    %c0_1 = arith.constant 0 : index
    %3 = vector.load %arg6[%c0, %c0_1] : memref<8x128xf32, #tpu.memory_space<vmem>>, vector<8x128xf32>
    %c0_2 = arith.constant 0 : index
    %c0_3 = arith.constant 0 : index
    %4 = vector.load %arg2[%c0_2, %c0_3] : memref<8x256xbf16, #tpu.memory_space<vmem>>, vector<8x256xbf16>
    %c0_4 = arith.constant 0 : index
    %c0_5 = arith.constant 0 : index
    %5 = vector.load %arg3[%c0_4, %c0_5] : memref<256x128xbf16, #tpu.memory_space<vmem>>, vector<256x128xbf16>
    %cst = arith.constant dense<0.000000e+00> : vector<8x128xf32>
    %6 = tpu.matmul %4, %5, %cst {dimension_numbers = #tpu.dot_dimension_numbers<[1], [0], [0], [1], [0, 0, 1, 1], [], []>} : vector<8x256xbf16>, vector<256x128xbf16>, vector<8x128xf32> -> vector<8x128xf32>
    %7 = arith.addf %3, %6 : vector<8x128xf32>
    %c0_6 = arith.constant 0 : index
    %c0_7 = arith.constant 0 : index
    %8 = vector.load %arg6[%c0_6, %c0_7] : memref<8x128xf32, #tpu.memory_space<vmem>>, vector<8x128xf32>
    tpu.vector_store %arg6[%c0_6, %c0_7], %7 {strides = array<i32>} : memref<8x128xf32, #tpu.memory_space<vmem>>, vector<8x128xf32>,
    %c0_i32_8 = arith.constant 0 : i32
    %9 = arith.cmpi eq, %arg1, %c0_i32_8 : i32
    %10 = arith.extui %9 : i1 to i32
    %c0_i32_9 = arith.constant 0 : i32
    %11 = arith.cmpi ne, %10, %c0_i32_9 : i32
    scf.if %11 {
      %c0_10 = arith.constant 0 : index
      %c0_11 = arith.constant 0 : index
      %12 = vector.load %arg6[%c0_10, %c0_11] : memref<8x128xf32, #tpu.memory_space<vmem>>, vector<8x128xf32>
      %c0_12 = arith.constant 0 : index
      %c0_13 = arith.constant 0 : index
      %13 = vector.load %arg4[%c0_12, %c0_13] : memref<1x128xf32, #tpu.memory_space<vmem>>, vector<1x128xf32>
      %14 = vector.broadcast %13 : vector<1x128xf32> to vector<8x128xf32>
      %15 = arith.addf %12, %14 : vector<8x128xf32>
      %c0_14 = arith.constant 0 : index
      %c0_15 = arith.constant 0 : index
      %16 = vector.load %arg5[%c0_14, %c0_15] : memref<8x128xf32, #tpu.memory_space<vmem>>, vector<8x128xf32>
      tpu.vector_store %arg5[%c0_14, %c0_15], %15 {strides = array<i32>} : memref<8x128xf32, #tpu.memory_space<vmem>>, vector<8x128xf32>,
    } else {
    }
    return
  }
  func.func @transform_0(%arg0: i32, %arg1: i32) -> (i32, i32) {
    %c0_i32 = arith.constant 0 : i32
    return %arg0, %arg1 : i32, i32
  }
  func.func @transform_1(%arg0: i32, %arg1: i32) -> (i32, i32) {
    %c0_i32 = arith.constant 0 : i32
    %c0_i32_0 = arith.constant 0 : i32
    return %arg1, %c0_i32 : i32, i32
  }
  func.func @transform_2(%arg0: i32, %arg1: i32) -> (i32, i32) {
    %c0_i32 = arith.constant 0 : i32
    %c0_i32_0 = arith.constant 0 : i32
    %c0_i32_1 = arith.constant 0 : i32
    return %c0_i32, %c0_i32_0 : i32, i32
  }
  func.func @transform_3(%arg0: i32, %arg1: i32) -> (i32, i32) {
    %c0_i32 = arith.constant 0 : i32
    %c0_i32_0 = arith.constant 0 : i32
    return %arg0, %c0_i32 : i32, i32
  }
}

</mosaic_0001>

<llo_original>
// kernel: _lambda_.17
$region0: #{_lambda_.17}
  #allocation0 [shape = 'u32[]', space=smem, size = 0x4, offset = 0x4, fixed_abs, tag = 'smem constant byte address 0x4 - core index']
  #allocation1 [shape = 'u32[144,128]{1,0:T(1,128)}', space=vmem, size = 0x12000, scoped, tag = 'internal scratch']
  #allocation2 [shape = 'f32[128,128]{1,0:T(8,128)}', space=vmem, size = 0x10000, scoped, tag = 'scratch operand']
  %s0 = inlined_call_operand.vmem [shape: bf16[128,256], index: 0, kind: input, shape index: {}]
  %s1 = inlined_call_operand.vmem [shape: bf16[256,128], index: 1, kind: input, shape index: {}]
  %s2 = inlined_call_operand.vmem [shape: f32[1,128], index: 2, kind: input, shape index: {}]
  %s3 = inlined_call_operand.vmem [shape: bf16[128,128], index: 3, kind: output, shape index: {}]
  %s4 = sld [smem:[#allocation0]]
  $region30: #{_lambda_.17} parent=0
    _
  %s6 = ssub.s32 1, %s4
  %s7 = scalar_select 0, %s6, %s4
  // Predicated region
  $region2: #{_lambda_.17} parent=0 // pred_check
    _
  $region3: #{_lambda_.17} parent=0 // pred_check_branch
    %9 = sbr.rel (0) target = $region5
  $region4: #{_lambda_.17} parent=0 // pred_region
    _
  $region5: #{_lambda_.17} parent=0 // pred_fallthru
    _
  // Predicated region
  $region6: #{_lambda_.17} parent=0 // pred_check
    _
  $region7: #{_lambda_.17} parent=0 // pred_check_branch
    %11 = sbr.rel (0) target = $region9
  $region8: #{_lambda_.17} parent=0 // pred_region
    _
  $region9: #{_lambda_.17} parent=0 // pred_fallthru
    _
  // Predicated region
  $region10: #{_lambda_.17} parent=0 // pred_check
    _
  $region11: #{_lambda_.17} parent=0 // pred_check_branch
    %13 = sbr.rel (0) target = $region13
  $region12: #{_lambda_.17} parent=0 // pred_region
    _
  $region13: #{_lambda_.17} parent=0 // pred_fallthru
    _
  %p15 = scmp.eq.s32.totalorder 0, 0
  // Predicated region
  $region14: #{_lambda_.17} parent=0 // pred_check
    %p16 = pneg %p15
  $region15: #{_lambda_.17} parent=0 // pred_check_branch
    %18 = sbr.rel (%p16) target = $region17
  $region16: #{_lambda_.17} parent=0 // pred_region
    %19 = vst [vmem:[#allocation2] sm:$0xff] 0.0
    %20 = vst [vmem:[#allocation2 + $0x8] sm:$0xff] 0.0
    %21 = vst [vmem:[#allocation2 + $0x10] sm:$0xff] 0.0
    %22 = vst [vmem:[#allocation2 + $0x18] sm:$0xff] 0.0
    %23 = vst [vmem:[#allocation2 + $0x20] sm:$0xff] 0.0
    %24 = vst [vmem:[#allocation2 + $0x28] sm:$0xff] 0.0
    %25 = vst [vmem:[#allocation2 + $0x30] sm:$0xff] 0.0
    %26 = vst [vmem:[#allocation2 + $0x38] sm:$0xff] 0.0
    %27 = vst [vmem:[#allocation2 + $0x40] sm:$0xff] 0.0
    %28 = vst [vmem:[#allocation2 + $0x48] sm:$0xff] 0.0
    %29 = vst [vmem:[#allocation2 + $0x50] sm:$0xff] 0.0
    %30 = vst [vmem:[#allocation2 + $0x58] sm:$0xff] 0.0
    %31 = vst [vmem:[#allocation2 + $0x60] sm:$0xff] 0.0
    %32 = vst [vmem:[#allocation2 + $0x68] sm:$0xff] 0.0
    %33 = vst [vmem:[#allocation2 + $0x70] sm:$0xff] 0.0
    %34 = vst [vmem:[#allocation2 + $0x78] sm:$0xff] 0.0
  $region17: #{_lambda_.17} parent=0 // pred_fallthru
    _
  %v35 = vld [vmem:[#allocation2] sm:$0xff]
  %v36 = vld [vmem:[#allocation2 + $0x8] sm:$0xff]
  %v37 = vld [vmem:[#allocation2 + $0x10] sm:$0xff]
  %v38 = vld [vmem:[#allocation2 + $0x18] sm:$0xff]
  %v39 = vld [vmem:[#allocation2 + $0x20] sm:$0xff]
  %v40 = vld [vmem:[#allocation2 + $0x28] sm:$0xff]
  %v41 = vld [vmem:[#allocation2 + $0x30] sm:$0xff]
  %v42 = vld [vmem:[#allocation2 + $0x38] sm:$0xff]
  %v43 = vld [vmem:[#allocation2 + $0x40] sm:$0xff]
  %v44 = vld [vmem:[#allocation2 + $0x48] sm:$0xff]
  %v45 = vld [vmem:[#allocation2 + $0x50] sm:$0xff]
  %v46 = vld [vmem:[#allocation2 + $0x58] sm:$0xff]
  %v47 = vld [vmem:[#allocation2 + $0x60] sm:$0xff]
  %v48 = vld [vmem:[#allocation2 + $0x68] sm:$0xff]
  %v49 = vld [vmem:[#allocation2 + $0x70] sm:$0xff]
  %v50 = vld [vmem:[#allocation2 + $0x78] sm:$0xff]
  %v51 = vld [vmem:[%s0] sm:$0xff]
  %v52 = vld [vmem:[%s0 + $0x8] sm:$0xff]
  %v53 = vld [vmem:[%s0 + $0x10] sm:$0xff]
  %v54 = vld [vmem:[%s0 + $0x18] sm:$0xff]
  %v55 = vld [vmem:[%s0 + $0x20] sm:$0xff]
  %v56 = vld [vmem:[%s0 + $0x28] sm:$0xff]
  %v57 = vld [vmem:[%s0 + $0x30] sm:$0xff]
  %v58 = vld [vmem:[%s0 + $0x38] sm:$0xff]
  %v59 = vld [vmem:[%s0 + $0x40] sm:$0xff]
  %v60 = vld [vmem:[%s0 + $0x48] sm:$0xff]
  %v61 = vld [vmem:[%s0 + $0x50] sm:$0xff]
  %v62 = vld [vmem:[%s0 + $0x58] sm:$0xff]
  %v63 = vld [vmem:[%s0 + $0x60] sm:$0xff]
  %v64 = vld [vmem:[%s0 + $0x68] sm:$0xff]
  %v65 = vld [vmem:[%s0 + $0x70] sm:$0xff]
  %v66 = vld [vmem:[%s0 + $0x78] sm:$0xff]
  %v67 = vld [vmem:[%s1] sm:$0xf]
  %v68 = vld [vmem:[%s1 + $0x4] sm:$0xf]
  %v69 = vld [vmem:[%s1 + $0x8] sm:$0xf]
  %v70 = vld [vmem:[%s1 + $0xc] sm:$0xf]
  %v71 = vld [vmem:[%s1 + $0x10] sm:$0xf]
  %v72 = vld [vmem:[%s1 + $0x14] sm:$0xf]
  %v73 = vld [vmem:[%s1 + $0x18] sm:$0xf]
  %v74 = vld [vmem:[%s1 + $0x1c] sm:$0xf]
  %v75 = vld [vmem:[%s1 + $0x20] sm:$0xf]
  %v76 = vld [vmem:[%s1 + $0x24] sm:$0xf]
  %v77 = vld [vmem:[%s1 + $0x28] sm:$0xf]
  %v78 = vld [vmem:[%s1 + $0x2c] sm:$0xf]
  %v79 = vld [vmem:[%s1 + $0x30] sm:$0xf]
  %v80 = vld [vmem:[%s1 + $0x34] sm:$0xf]
  %v81 = vld [vmem:[%s1 + $0x38] sm:$0xf]
  %v82 = vld [vmem:[%s1 + $0x3c] sm:$0xf]
  %v83 = vld [vmem:[%s1 + $0x40] sm:$0xf]
  %v84 = vld [vmem:[%s1 + $0x44] sm:$0xf]
  %v85 = vld [vmem:[%s1 + $0x48] sm:$0xf]
  %v86 = vld [vmem:[%s1 + $0x4c] sm:$0xf]
  %v87 = vld [vmem:[%s1 + $0x50] sm:$0xf]
  %v88 = vld [vmem:[%s1 + $0x54] sm:$0xf]
  %v89 = vld [vmem:[%s1 + $0x58] sm:$0xf]
  %v90 = vld [vmem:[%s1 + $0x5c] sm:$0xf]
  %v91 = vld [vmem:[%s1 + $0x60] sm:$0xf]
  %v92 = vld [vmem:[%s1 + $0x64] sm:$0xf]
  %v93 = vld [vmem:[%s1 + $0x68] sm:$0xf]
  %v94 = vld [vmem:[%s1 + $0x6c] sm:$0xf]
  %v95 = vld [vmem:[%s1 + $0x70] sm:$0xf]
  %v96 = vld [vmem:[%s1 + $0x74] sm:$0xf]
  %v97 = vld [vmem:[%s1 + $0x78] sm:$0xf]
  %v98 = vld [vmem:[%s1 + $0x7c] sm:$0xf]
  %v115 = vunpack.c.l.b16 %v51
  %v116 = vunpack.c.h.b16 %v51
  %v117 = vunpack.c.l.b16 %v52
  %v118 = vunpack.c.h.b16 %v52
  %v119 = vunpack.c.l.b16 %v53
  %v120 = vunpack.c.h.b16 %v53
  %v121 = vunpack.c.l.b16 %v54
  %v122 = vunpack.c.h.b16 %v54
  %v123 = vunpack.c.l.b16 %v55
  %v124 = vunpack.c.h.b16 %v55
  %v125 = vunpack.c.l.b16 %v56
  %v126 = vunpack.c.h.b16 %v56
  %v127 = vunpack.c.l.b16 %v57
  %v128 = vunpack.c.h.b16 %v57
  %v129 = vunpack.c.l.b16 %v58
  %v130 = vunpack.c.h.b16 %v58
  %v131 = vunpack.c.l.b16 %v59
  %v132 = vunpack.c.h.b16 %v59
  %v133 = vunpack.c.l.b16 %v60
  %v134 = vunpack.c.h.b16 %v60
  %v135 = vunpack.c.l.b16 %v61
  %v136 = vunpack.c.h.b16 %v61
  %v137 = vunpack.c.l.b16 %v62
  %v138 = vunpack.c.h.b16 %v62
  %v139 = vunpack.c.l.b16 %v63
  %v140 = vunpack.c.h.b16 %v63
  %v141 = vunpack.c.l.b16 %v64
  %v142 = vunpack.c.h.b16 %v64
  %v143 = vunpack.c.l.b16 %v65
  %v144 = vunpack.c.h.b16 %v65
  %v145 = vunpack.c.l.b16 %v66
  %v146 = vunpack.c.h.b16 %v66
  %v147 = vpack.c.b16 %v117, %v115
  %v148 = vpack.c.b16 %v118, %v116
  %v149 = vpack.c.b16 %v121, %v119
  %v150 = vpack.c.b16 %v122, %v120
  %v151 = vpack.c.b16 %v125, %v123
  %v152 = vpack.c.b16 %v126, %v124
  %v153 = vpack.c.b16 %v129, %v127
  %v154 = vpack.c.b16 %v130, %v128
  %v155 = vpack.c.b16 %v133, %v131
  %v156 = vpack.c.b16 %v134, %v132
  %v157 = vpack.c.b16 %v137, %v135
  %v158 = vpack.c.b16 %v138, %v136
  %v159 = vpack.c.b16 %v141, %v139
  %v160 = vpack.c.b16 %v142, %v140
  %v161 = vpack.c.b16 %v145, %v143
  %v162 = vpack.c.b16 %v146, %v144
  %v211 = vunpack.c.l.b16 %v67
  %v212 = vunpack.c.l.b16 %v68
  %v213 = vunpack.c.l.b16 %v69
  %v214 = vunpack.c.l.b16 %v70
  %v215 = vunpack.c.l.b16 %v71
  %v216 = vunpack.c.l.b16 %v72
  %v217 = vunpack.c.l.b16 %v73
  %v218 = vunpack.c.l.b16 %v74
  %v219 = vunpack.c.l.b16 %v75
  %v220 = vunpack.c.l.b16 %v76
  %v221 = vunpack.c.l.b16 %v77
  %v222 = vunpack.c.l.b16 %v78
  %v223 = vunpack.c.l.b16 %v79
  %v224 = vunpack.c.l.b16 %v80
  %v225 = vunpack.c.l.b16 %v81
  %v226 = vunpack.c.l.b16 %v82
  %v227 = vunpack.c.l.b16 %v83
  %v228 = vunpack.c.l.b16 %v84
  %v229 = vunpack.c.l.b16 %v85
  %v230 = vunpack.c.l.b16 %v86
  %v231 = vunpack.c.l.b16 %v87
  %v232 = vunpack.c.l.b16 %v88
  %v233 = vunpack.c.l.b16 %v89
  %v234 = vunpack.c.l.b16 %v90
  %v235 = vunpack.c.l.b16 %v91
  %v236 = vunpack.c.l.b16 %v92
  %v237 = vunpack.c.l.b16 %v93
  %v238 = vunpack.c.l.b16 %v94
  %v239 = vunpack.c.l.b16 %v95
  %v240 = vunpack.c.l.b16 %v96
  %v241 = vunpack.c.l.b16 %v97
  %v242 = vunpack.c.l.b16 %v98
  %v243 = vpack.c.b16 %v212, %v211
  %v244 = vpack.c.b16 %v214, %v213
  %v245 = vpack.c.b16 %v216, %v215
  %v246 = vpack.c.b16 %v218, %v217
  %v247 = vpack.c.b16 %v220, %v219
  %v248 = vpack.c.b16 %v222, %v221
  %v249 = vpack.c.b16 %v224, %v223
  %v250 = vpack.c.b16 %v226, %v225
  %v251 = vpack.c.b16 %v228, %v227
  %v252 = vpack.c.b16 %v230, %v229
  %v253 = vpack.c.b16 %v232, %v231
  %v254 = vpack.c.b16 %v234, %v233
  %v255 = vpack.c.b16 %v236, %v235
  %v256 = vpack.c.b16 %v238, %v237
  %v257 = vpack.c.b16 %v240, %v239
  %v258 = vpack.c.b16 %v242, %v241
  %275 = vmatprep.subr.bf16.mxu0 0
  %276 = vmatpush1.bf16.msra.mxu0 %v243
  %277 = vmatprep.subr.bf16.mxu0 0
  %278 = vmatpush1.bf16.msra.mxu0 %v244
  %279 = vmatprep.subr.bf16.mxu0 0
  %280 = vmatpush1.bf16.msra.mxu0 %v245
  %281 = vmatprep.subr.bf16.mxu0 0
  %282 = vmatpush1.bf16.msra.mxu0 %v246
  %283 = vmatprep.subr.bf16.mxu0 0
  %284 = vmatpush1.bf16.msra.mxu0 %v247
  %285 = vmatprep.subr.bf16.mxu0 0
  %286 = vmatpush1.bf16.msra.mxu0 %v248
  %287 = vmatprep.subr.bf16.mxu0 0
  %288 = vmatpush1.bf16.msra.mxu0 %v249
  %289 = vmatprep.subr.bf16.mxu0 0
  %290 = vmatpush1.bf16.msra.mxu0 %v250
  %291 = vmatprep.subr.bf16.mxu0 0
  %292 = vmatpush1.bf16.msra.mxu0 %v251
  %293 = vmatprep.subr.bf16.mxu0 0
  %294 = vmatpush1.bf16.msra.mxu0 %v252
  %295 = vmatprep.subr.bf16.mxu0 0
  %296 = vmatpush1.bf16.msra.mxu0 %v253
  %297 = vmatprep.subr.bf16.mxu0 0
  %298 = vmatpush1.bf16.msra.mxu0 %v254
  %299 = vmatprep.subr.bf16.mxu0 0
  %300 = vmatpush1.bf16.msra.mxu0 %v255
  %301 = vmatprep.subr.bf16.mxu0 0
  %302 = vmatpush1.bf16.msra.mxu0 %v256
  %303 = vmatprep.subr.bf16.mxu0 0
  %304 = vmatpush1.bf16.msra.mxu0 %v257
  %305 = vmatprep.subr.bf16.mxu0 0
  %306 = vmatpush1.bf16.msra.mxu0 %v258
  %307 = vmatprep.mubr.bf16.mxu0 %v148
  %308 = vmatmul.mubr.bf16.gmra.mrb[0].mxu0 %v147
  %v309 = vpop.f32.mrb[0].mxu0
  %v310 = vadd.f32 0.0, %v309
  %v311 = vpop.f32.mrb[0].mxu0
  %v312 = vpop.f32.mrb[0].mxu0
  %v313 = vadd.f32 0.0, %v312
  %v314 = vpop.f32.mrb[0].mxu0
  %315 = vmatprep.mubr.bf16.mxu0 %v150
  %316 = vmatmul.mubr.bf16.gmra.mrb[0].mxu0 %v149
  %v317 = vpop.f32.mrb[0].mxu0
  %v318 = vadd.f32 0.0, %v317
  %v319 = vpop.f32.mrb[0].mxu0
  %v320 = vpop.f32.mrb[0].mxu0
  %v321 = vadd.f32 0.0, %v320
  %v322 = vpop.f32.mrb[0].mxu0
  %323 = vmatprep.mubr.bf16.mxu0 %v152
  %324 = vmatmul.mubr.bf16.gmra.mrb[0].mxu0 %v151
  %v325 = vpop.f32.mrb[0].mxu0
  %v326 = vadd.f32 0.0, %v325
  %v327 = vpop.f32.mrb[0].mxu0
  %v328 = vpop.f32.mrb[0].mxu0
  %v329 = vadd.f32 0.0, %v328
  %v330 = vpop.f32.mrb[0].mxu0
  %331 = vmatprep.mubr.bf16.mxu0 %v154
  %332 = vmatmul.mubr.bf16.gmra.mrb[0].mxu0 %v153
  %v333 = vpop.f32.mrb[0].mxu0
  %v334 = vadd.f32 0.0, %v333
  %v335 = vpop.f32.mrb[0].mxu0
  %v336 = vpop.f32.mrb[0].mxu0
  %v337 = vadd.f32 0.0, %v336
  %v338 = vpop.f32.mrb[0].mxu0
  %339 = vmatprep.mubr.bf16.mxu0 %v156
  %340 = vmatmul.mubr.bf16.gmra.mrb[0].mxu0 %v155
  %v341 = vpop.f32.mrb[0].mxu0
  %v342 = vadd.f32 0.0, %v341
  %v343 = vpop.f32.mrb[0].mxu0
  %v344 = vpop.f32.mrb[0].mxu0
  %v345 = vadd.f32 0.0, %v344
  %v346 = vpop.f32.mrb[0].mxu0
  %347 = vmatprep.mubr.bf16.mxu0 %v158
  %348 = vmatmul.mubr.bf16.gmra.mrb[0].mxu0 %v157
  %v349 = vpop.f32.mrb[0].mxu0
  %v350 = vadd.f32 0.0, %v349
  %v351 = vpop.f32.mrb[0].mxu0
  %v352 = vpop.f32.mrb[0].mxu0
  %v353 = vadd.f32 0.0, %v352
  %v354 = vpop.f32.mrb[0].mxu0
  %355 = vmatprep.mubr.bf16.mxu0 %v160
  %356 = vmatmul.mubr.bf16.gmra.mrb[0].mxu0 %v159
  %v357 = vpop.f32.mrb[0].mxu0
  %v358 = vadd.f32 0.0, %v357
  %v359 = vpop.f32.mrb[0].mxu0
  %v360 = vpop.f32.mrb[0].mxu0
  %v361 = vadd.f32 0.0, %v360
  %v362 = vpop.f32.mrb[0].mxu0
  %363 = vmatprep.mubr.bf16.mxu0 %v162
  %364 = vmatmul.mubr.bf16.gmra.mrb[0].mxu0 %v161
  %v365 = vpop.f32.mrb[0].mxu0
  %v366 = vadd.f32 0.0, %v365
  %v367 = vpop.f32.mrb[0].mxu0
  %v368 = vpop.f32.mrb[0].mxu0
  %v369 = vadd.f32 0.0, %v368
  %v370 = vpop.f32.mrb[0].mxu0
  %371 = vdwg.mxu0
  %v372 = vadd.f32 %v35, %v310
  %v373 = vadd.f32 %v36, %v313
  %v374 = vadd.f32 %v37, %v318
  %v375 = vadd.f32 %v38, %v321
  %v376 = vadd.f32 %v39, %v326
  %v377 = vadd.f32 %v40, %v329
  %v378 = vadd.f32 %v41, %v334
  %v379 = vadd.f32 %v42, %v337
  %v380 = vadd.f32 %v43, %v342
  %v381 = vadd.f32 %v44, %v345
  %v382 = vadd.f32 %v45, %v350
  %v383 = vadd.f32 %v46, %v353
  %v384 = vadd.f32 %v47, %v358
  %v385 = vadd.f32 %v48, %v361
  %v386 = vadd.f32 %v49, %v366
  %v387 = vadd.f32 %v50, %v369
  %388 = vst [vmem:[#allocation2] sm:$0xff] %v372
  %389 = vst [vmem:[#allocation2 + $0x8] sm:$0xff] %v373
  %390 = vst [vmem:[#allocation2 + $0x10] sm:$0xff] %v374
  %391 = vst [vmem:[#allocation2 + $0x18] sm:$0xff] %v375
  %392 = vst [vmem:[#allocation2 + $0x20] sm:$0xff] %v376
  %393 = vst [vmem:[#allocation2 + $0x28] sm:$0xff] %v377
  %394 = vst [vmem:[#allocation2 + $0x30] sm:$0xff] %v378
  %395 = vst [vmem:[#allocation2 + $0x38] sm:$0xff] %v379
  %396 = vst [vmem:[#allocation2 + $0x40] sm:$0xff] %v380
  %397 = vst [vmem:[#allocation2 + $0x48] sm:$0xff] %v381
  %398 = vst [vmem:[#allocation2 + $0x50] sm:$0xff] %v382
  %399 = vst [vmem:[#allocation2 + $0x58] sm:$0xff] %v383
  %400 = vst [vmem:[#allocation2 + $0x60] sm:$0xff] %v384
  %401 = vst [vmem:[#allocation2 + $0x68] sm:$0xff] %v385
  %402 = vst [vmem:[#allocation2 + $0x70] sm:$0xff] %v386
  %403 = vst [vmem:[#allocation2 + $0x78] sm:$0xff] %v387
  // Predicated region
  $region18: #{_lambda_.17} parent=0 // pred_check
    %p404 = pneg %p15
  $region19: #{_lambda_.17} parent=0 // pred_check_branch
    %406 = sbr.rel (%p404) target = $region21
  $region20: #{_lambda_.17} parent=0 // pred_region
    %v407 = vld [vmem:[#allocation2] sm:$0xff]
    %v408 = vld [vmem:[#allocation2 + $0x8] sm:$0xff]
    %v409 = vld [vmem:[#allocation2 + $0x10] sm:$0xff]
    %v410 = vld [vmem:[#allocation2 + $0x18] sm:$0xff]
    %v411 = vld [vmem:[#allocation2 + $0x20] sm:$0xff]
    %v412 = vld [vmem:[#allocation2 + $0x28] sm:$0xff]
    %v413 = vld [vmem:[#allocation2 + $0x30] sm:$0xff]
    %v414 = vld [vmem:[#allocation2 + $0x38] sm:$0xff]
    %v415 = vld [vmem:[#allocation2 + $0x40] sm:$0xff]
    %v416 = vld [vmem:[#allocation2 + $0x48] sm:$0xff]
    %v417 = vld [vmem:[#allocation2 + $0x50] sm:$0xff]
    %v418 = vld [vmem:[#allocation2 + $0x58] sm:$0xff]
    %v419 = vld [vmem:[#allocation2 + $0x60] sm:$0xff]
    %v420 = vld [vmem:[#allocation2 + $0x68] sm:$0xff]
    %v421 = vld [vmem:[#allocation2 + $0x70] sm:$0xff]
    %v422 = vld [vmem:[#allocation2 + $0x78] sm:$0xff]
    %v423 = vld [vmem:[%s2] sm:$0x1]
    %v425 = vlaneseq
    %v426 = vshrl.u32 %v425, 7
    %v427 = vsub.s32 0, %v426
    %v428 = vrot.slane %v423, %v427
    %v430 = vadd.f32 %v407, %v428
    %v431 = vadd.f32 %v408, %v428
    %v432 = vadd.f32 %v409, %v428
    %v433 = vadd.f32 %v410, %v428
    %v434 = vadd.f32 %v411, %v428
    %v435 = vadd.f32 %v412, %v428
    %v436 = vadd.f32 %v413, %v428
    %v437 = vadd.f32 %v414, %v428
    %v438 = vadd.f32 %v415, %v428
    %v439 = vadd.f32 %v416, %v428
    %v440 = vadd.f32 %v417, %v428
    %v441 = vadd.f32 %v418, %v428
    %v442 = vadd.f32 %v419, %v428
    %v443 = vadd.f32 %v420, %v428
    %v444 = vadd.f32 %v421, %v428
    %v445 = vadd.f32 %v422, %v428
    %v446 = vmax.f32 %v430, 0.0
    %v447 = vmax.f32 %v431, 0.0
    %v448 = vmax.f32 %v432, 0.0
    %v449 = vmax.f32 %v433, 0.0
    %v450 = vmax.f32 %v434, 0.0
    %v451 = vmax.f32 %v435, 0.0
    %v452 = vmax.f32 %v436, 0.0
    %v453 = vmax.f32 %v437, 0.0
    %v454 = vmax.f32 %v438, 0.0
    %v455 = vmax.f32 %v439, 0.0
    %v456 = vmax.f32 %v440, 0.0
    %v457 = vmax.f32 %v441, 0.0
    %v458 = vmax.f32 %v442, 0.0
    %v459 = vmax.f32 %v443, 0.0
    %v460 = vmax.f32 %v444, 0.0
    %v461 = vmax.f32 %v445, 0.0
    %v462 = vpack.c.bf16 %v447, %v446
    %v463 = vpack.c.bf16 %v449, %v448
    %v464 = vpack.c.bf16 %v451, %v450
    %v465 = vpack.c.bf16 %v453, %v452
    %v466 = vpack.c.bf16 %v455, %v454
    %v467 = vpack.c.bf16 %v457, %v456
    %v468 = vpack.c.bf16 %v459, %v458
    %v469 = vpack.c.bf16 %v461, %v460
    %v478 = vunpack.c.l.b16 %v462
    %v479 = vunpack.c.h.b16 %v462
    %v480 = vunpack.c.l.b16 %v463
    %v481 = vunpack.c.h.b16 %v463
    %v482 = vunpack.c.l.b16 %v464
    %v483 = vunpack.c.h.b16 %v464
    %v484 = vunpack.c.l.b16 %v465
    %v485 = vunpack.c.h.b16 %v465
    %v486 = vunpack.c.l.b16 %v466
    %v487 = vunpack.c.h.b16 %v466
    %v488 = vunpack.c.l.b16 %v467
    %v489 = vunpack.c.h.b16 %v467
    %v490 = vunpack.c.l.b16 %v468
    %v491 = vunpack.c.h.b16 %v468
    %v492 = vunpack.c.l.b16 %v469
    %v493 = vunpack.c.h.b16 %v469
    %v494 = vpack.c.b16 %v478, %v478
    %v495 = vpack.c.b16 %v479, %v479
    %v496 = vpack.c.b16 %v480, %v480
    %v497 = vpack.c.b16 %v481, %v481
    %v498 = vpack.c.b16 %v482, %v482
    %v499 = vpack.c.b16 %v483, %v483
    %v500 = vpack.c.b16 %v484, %v484
    %v501 = vpack.c.b16 %v485, %v485
    %v502 = vpack.c.b16 %v486, %v486
    %v503 = vpack.c.b16 %v487, %v487
    %v504 = vpack.c.b16 %v488, %v488
    %v505 = vpack.c.b16 %v489, %v489
    %v506 = vpack.c.b16 %v490, %v490
    %v507 = vpack.c.b16 %v491, %v491
    %v508 = vpack.c.b16 %v492, %v492
    %v509 = vpack.c.b16 %v493, %v493
    %526 = vst [vmem:[%s3] sm:$0xf] %v494
    %527 = vst [vmem:[%s3 + $0x4] sm:$0xf] %v495
    %528 = vst [vmem:[%s3 + $0x8] sm:$0xf] %v496
    %529 = vst [vmem:[%s3 + $0xc] sm:$0xf] %v497
    %530 = vst [vmem:[%s3 + $0x10] sm:$0xf] %v498
    %531 = vst [vmem:[%s3 + $0x14] sm:$0xf] %v499
    %532 = vst [vmem:[%s3 + $0x18] sm:$0xf] %v500
    %533 = vst [vmem:[%s3 + $0x1c] sm:$0xf] %v501
    %534 = vst [vmem:[%s3 + $0x20] sm:$0xf] %v502
    %535 = vst [vmem:[%s3 + $0x24] sm:$0xf] %v503
    %536 = vst [vmem:[%s3 + $0x28] sm:$0xf] %v504
    %537 = vst [vmem:[%s3 + $0x2c] sm:$0xf] %v505
    %538 = vst [vmem:[%s3 + $0x30] sm:$0xf] %v506
    %539 = vst [vmem:[%s3 + $0x34] sm:$0xf] %v507
    %540 = vst [vmem:[%s3 + $0x38] sm:$0xf] %v508
    %541 = vst [vmem:[%s3 + $0x3c] sm:$0xf] %v509
  $region21: #{_lambda_.17} parent=0 // pred_fallthru
    _
  // Predicated region
  $region22: #{_lambda_.17} parent=0 // pred_check
    _
  $region23: #{_lambda_.17} parent=0 // pred_check_branch
    %543 = sbr.rel (0) target = $region25
  $region24: #{_lambda_.17} parent=0 // pred_region
    _
  $region25: #{_lambda_.17} parent=0 // pred_fallthru
    _
  // Predicated region
  $region26: #{_lambda_.17} parent=0 // pred_check
    _
  $region27: #{_lambda_.17} parent=0 // pred_check_branch
    %545 = sbr.rel (0) target = $region29
  $region28: #{_lambda_.17} parent=0 // pred_region
    _
  $region29: #{_lambda_.17} parent=0 // pred_fallthru
    _

// kernel: _lambda_.18
$region0: #{_lambda_.18}
  #allocation0 [shape = 'u32[]', space=smem, size = 0x4, offset = 0x4, fixed_abs, tag = 'smem constant byte address 0x4 - core index']
  #allocation1 [shape = 'u32[144,128]{1,0:T(1,128)}', space=vmem, size = 0x12000, scoped, tag = 'internal scratch']
  %s0 = inlined_call_operand.vmem [shape: bf16[16,128], index: 0, kind: input, shape index: {}]
  %s1 = inlined_call_operand.vmem [shape: bf16[16,128], index: 1, kind: input, shape index: {}]
  %s2 = inlined_call_operand.vmem [shape: bf16[16,128], index: 2, kind: input, shape index: {}]
  %s3 = inlined_call_operand.vmem [shape: bf16[16,128], index: 3, kind: input, shape index: {}]
  %s4 = inlined_call_operand.vmem [shape: bf16[16,128], index: 4, kind: input, shape index: {}]
  %s5 = inlined_call_operand.vmem [shape: bf16[16,128], index: 5, kind: input, shape index: {}]
  %s6 = inlined_call_operand.vmem [shape: bf16[16,128], index: 6, kind: input, shape index: {}]
  %s7 = inlined_call_operand.vmem [shape: bf16[16,128], index: 7, kind: input, shape index: {}]
  %s8 = inlined_call_operand.vmem [shape: bf16[16,128], index: 8, kind: input, shape index: {}]
  %s9 = inlined_call_operand.vmem [shape: bf16[16,128], index: 9, kind: output, shape index: {}]
  %s10 = sld [smem:[#allocation0]]
  $region46: #{_lambda_.18} parent=0
    _
  %s12 = ssub.s32 1, %s10
  %s13 = scalar_select 0, %s12, %s10
  // Predicated region
  $region2: #{_lambda_.18} parent=0 // pred_check
    _
  $region3: #{_lambda_.18} parent=0 // pred_check_branch
    %15 = sbr.rel (0) target = $region5
  $region4: #{_lambda_.18} parent=0 // pred_region
    _
  $region5: #{_lambda_.18} parent=0 // pred_fallthru
    _
  // Predicated region
  $region6: #{_lambda_.18} parent=0 // pred_check
    _
  $region7: #{_lambda_.18} parent=0 // pred_check_branch
    %17 = sbr.rel (0) target = $region9
  $region8: #{_lambda_.18} parent=0 // pred_region
    _
  $region9: #{_lambda_.18} parent=0 // pred_fallthru
    _
  // Predicated region
  $region10: #{_lambda_.18} parent=0 // pred_check
    _
  $region11: #{_lambda_.18} parent=0 // pred_check_branch
    %19 = sbr.rel (0) target = $region13
  $region12: #{_lambda_.18} parent=0 // pred_region
    _
  $region13: #{_lambda_.18} parent=0 // pred_fallthru
    _
  // Predicated region
  $region14: #{_lambda_.18} parent=0 // pred_check
    _
  $region15: #{_lambda_.18} parent=0 // pred_check_branch
    %21 = sbr.rel (0) target = $region17
  $region16: #{_lambda_.18} parent=0 // pred_region
    _
  $region17: #{_lambda_.18} parent=0 // pred_fallthru
    _
  // Predicated region
  $region18: #{_lambda_.18} parent=0 // pred_check
    _
  $region19: #{_lambda_.18} parent=0 // pred_check_branch
    %23 = sbr.rel (0) target = $region21
  $region20: #{_lambda_.18} parent=0 // pred_region
    _
  $region21: #{_lambda_.18} parent=0 // pred_fallthru
    _
  // Predicated region
  $region22: #{_lambda_.18} parent=0 // pred_check
    _
  $region23: #{_lambda_.18} parent=0 // pred_check_branch
    %25 = sbr.rel (0) target = $region25
  $region24: #{_lambda_.18} parent=0 // pred_region
    _
  $region25: #{_lambda_.18} parent=0 // pred_fallthru
    _
  // Predicated region
  $region26: #{_lambda_.18} parent=0 // pred_check
    _
  $region27: #{_lambda_.18} parent=0 // pred_check_branch
    %27 = sbr.rel (0) target = $region29
  $region28: #{_lambda_.18} parent=0 // pred_region
    _
  $region29: #{_lambda_.18} parent=0 // pred_fallthru
    _
  // Predicated region
  $region30: #{_lambda_.18} parent=0 // pred_check
    _
  $region31: #{_lambda_.18} parent=0 // pred_check_branch
    %29 = sbr.rel (0) target = $region33
  $region32: #{_lambda_.18} parent=0 // pred_region
    _
  $region33: #{_lambda_.18} parent=0 // pred_fallthru
    _
  // Predicated region
  $region34: #{_lambda_.18} parent=0 // pred_check
    _
  $region35: #{_lambda_.18} parent=0 // pred_check_branch
    %31 = sbr.rel (0) target = $region37
  $region36: #{_lambda_.18} parent=0 // pred_region
    _
  $region37: #{_lambda_.18} parent=0 // pred_fallthru
    _
  %v32 = vld [vmem:[%s0] sm:$0xf]
  %v33 = vld [vmem:[%s0 + $0x4] sm:$0xf]
  %v34 = vld [vmem:[%s1] sm:$0xf]
  %v35 = vld [vmem:[%s1 + $0x4] sm:$0xf]
  %v36 = vmax.bf16 %v32, %v34
  %v37 = vmax.bf16 %v33, %v35
  %v38 = vld [vmem:[%s2] sm:$0xf]
  %v39 = vld [vmem:[%s2 + $0x4] sm:$0xf]
  %v40 = vmax.bf16 %v36, %v38
  %v41 = vmax.bf16 %v37, %v39
  %v42 = vld [vmem:[%s3] sm:$0xf]
  %v43 = vld [vmem:[%s3 + $0x4] sm:$0xf]
  %v44 = vmax.bf16 %v40, %v42
  %v45 = vmax.bf16 %v41, %v43
  %v46 = vld [vmem:[%s4] sm:$0xf]
  %v47 = vld [vmem:[%s4 + $0x4] sm:$0xf]
  %v48 = vmax.bf16 %v44, %v46
  %v49 = vmax.bf16 %v45, %v47
  %v50 = vld [vmem:[%s5] sm:$0xf]
  %v51 = vld [vmem:[%s5 + $0x4] sm:$0xf]
  %v52 = vmax.bf16 %v48, %v50
  %v53 = vmax.bf16 %v49, %v51
  %v54 = vld [vmem:[%s6] sm:$0xf]
  %v55 = vld [vmem:[%s6 + $0x4] sm:$0xf]
  %v56 = vmax.bf16 %v52, %v54
  %v57 = vmax.bf16 %v53, %v55
  %v58 = vld [vmem:[%s7] sm:$0xf]
  %v59 = vld [vmem:[%s7 + $0x4] sm:$0xf]
  %v60 = vmax.bf16 %v56, %v58
  %v61 = vmax.bf16 %v57, %v59
  %v62 = vld [vmem:[%s8] sm:$0xf]
  %v63 = vld [vmem:[%s8 + $0x4] sm:$0xf]
  %v64 = vmax.bf16 %v60, %v62
  %v65 = vmax.bf16 %v61, %v63
  %66 = vst [vmem:[%s9] sm:$0xf] %v64
  %67 = vst [vmem:[%s9 + $0x4] sm:$0xf] %v65
  // Predicated region
  $region38: #{_lambda_.18} parent=0 // pred_check
    _
  $region39: #{_lambda_.18} parent=0 // pred_check_branch
    %69 = sbr.rel (0) target = $region41
  $region40: #{_lambda_.18} parent=0 // pred_region
    _
  $region41: #{_lambda_.18} parent=0 // pred_fallthru
    _
  // Predicated region
  $region42: #{_lambda_.18} parent=0 // pred_check
    _
  $region43: #{_lambda_.18} parent=0 // pred_check_branch
    %71 = sbr.rel (0) target = $region45
  $region44: #{_lambda_.18} parent=0 // pred_region
    _
  $region45: #{_lambda_.18} parent=0 // pred_fallthru
    _

// kernel: _lambda_.19
$region0: #{_lambda_.19}
  #allocation0 [shape = 'u32[]', space=smem, size = 0x4, offset = 0x4, fixed_abs, tag = 'smem constant byte address 0x4 - core index']
  #allocation1 [shape = 'u32[144,128]{1,0:T(1,128)}', space=vmem, size = 0x12000, scoped, tag = 'internal scratch']
  #allocation2 [shape = 'f32[32,128]{1,0:T(8,128)}', space=vmem, size = 0x4000, scoped, tag = 'scratch operand']
  %s0 = inlined_call_operand.vmem [shape: bf16[32,640], index: 0, kind: input, shape index: {}]
  %s1 = inlined_call_operand.vmem [shape: bf16[640,128], index: 1, kind: input, shape index: {}]
  %s2 = inlined_call_operand.vmem [shape: f32[1,128], index: 2, kind: input, shape index: {}]
  %s3 = inlined_call_operand.vmem [shape: bf16[32,128], index: 3, kind: output, shape index: {}]
  %s4 = sld [smem:[#allocation0]]
  $region30: #{_lambda_.19} parent=0
    _
  %s6 = ssub.s32 1, %s4
  %s7 = scalar_select 0, %s6, %s4
  // Predicated region
  $region2: #{_lambda_.19} parent=0 // pred_check
    _
  $region3: #{_lambda_.19} parent=0 // pred_check_branch
    %9 = sbr.rel (0) target = $region5
  $region4: #{_lambda_.19} parent=0 // pred_region
    _
  $region5: #{_lambda_.19} parent=0 // pred_fallthru
    _
  // Predicated region
  $region6: #{_lambda_.19} parent=0 // pred_check
    _
  $region7: #{_lambda_.19} parent=0 // pred_check_branch
    %11 = sbr.rel (0) target = $region9
  $region8: #{_lambda_.19} parent=0 // pred_region
    _
  $region9: #{_lambda_.19} parent=0 // pred_fallthru
    _
  // Predicated region
  $region10: #{_lambda_.19} parent=0 // pred_check
    _
  $region11: #{_lambda_.19} parent=0 // pred_check_branch
    %13 = sbr.rel (0) target = $region13
  $region12: #{_lambda_.19} parent=0 // pred_region
    _
  $region13: #{_lambda_.19} parent=0 // pred_fallthru
    _
  %p15 = scmp.eq.s32.totalorder 0, 0
  // Predicated region
  $region14: #{_lambda_.19} parent=0 // pred_check
    %p16 = pneg %p15
  $region15: #{_lambda_.19} parent=0 // pred_check_branch
    %18 = sbr.rel (%p16) target = $region17
  $region16: #{_lambda_.19} parent=0 // pred_region
    %19 = vst [vmem:[#allocation2] sm:$0xff] 0.0
    %20 = vst [vmem:[#allocation2 + $0x8] sm:$0xff] 0.0
    %21 = vst [vmem:[#allocation2 + $0x10] sm:$0xff] 0.0
    %22 = vst [vmem:[#allocation2 + $0x18] sm:$0xff] 0.0
  $region17: #{_lambda_.19} parent=0 // pred_fallthru
    _
  %v23 = vld [vmem:[#allocation2] sm:$0xff]
  %v24 = vld [vmem:[#allocation2 + $0x8] sm:$0xff]
  %v25 = vld [vmem:[#allocation2 + $0x10] sm:$0xff]
  %v26 = vld [vmem:[#allocation2 + $0x18] sm:$0xff]
  %v27 = vld [vmem:[%s0] sm:$0xff]
  %v28 = vld [vmem:[%s0 + $0x8] sm:$0xff]
  %v29 = vld [vmem:[%s0 + $0x10] sm:$0xf]
  %v30 = vld [vmem:[%s0 + $0x14] sm:$0xff]
  %v31 = vld [vmem:[%s0 + $0x1c] sm:$0xff]
  %v32 = vld [vmem:[%s0 + $0x24] sm:$0xf]
  %v33 = vld [vmem:[%s0 + $0x28] sm:$0xff]
  %v34 = vld [vmem:[%s0 + $0x30] sm:$0xff]
  %v35 = vld [vmem:[%s0 + $0x38] sm:$0xf]
  %v36 = vld [vmem:[%s0 + $0x3c] sm:$0xff]
  %v37 = vld [vmem:[%s0 + $0x44] sm:$0xff]
  %v38 = vld [vmem:[%s0 + $0x4c] sm:$0xf]
  %v39 = vld [vmem:[%s1] sm:$0xf]
  %v40 = vld [vmem:[%s1 + $0x4] sm:$0xf]
  %v41 = vld [vmem:[%s1 + $0x8] sm:$0xf]
  %v42 = vld [vmem:[%s1 + $0xc] sm:$0xf]
  %v43 = vld [vmem:[%s1 + $0x10] sm:$0xf]
  %v44 = vld [vmem:[%s1 + $0x14] sm:$0xf]
  %v45 = vld [vmem:[%s1 + $0x18] sm:$0xf]
  %v46 = vld [vmem:[%s1 + $0x1c] sm:$0xf]
  %v47 = vld [vmem:[%s1 + $0x20] sm:$0xf]
  %v48 = vld [vmem:[%s1 + $0x24] sm:$0xf]
  %v49 = vld [vmem:[%s1 + $0x28] sm:$0xf]
  %v50 = vld [vmem:[%s1 + $0x2c] sm:$0xf]
  %v51 = vld [vmem:[%s1 + $0x30] sm:$0xf]
  %v52 = vld [vmem:[%s1 + $0x34] sm:$0xf]
  %v53 = vld [vmem:[%s1 + $0x38] sm:$0xf]
  %v54 = vld [vmem:[%s1 + $0x3c] sm:$0xf]
  %v55 = vld [vmem:[%s1 + $0x40] sm:$0xf]
  %v56 = vld [vmem:[%s1 + $0x44] sm:$0xf]
  %v57 = vld [vmem:[%s1 + $0x48] sm:$0xf]
  %v58 = vld [vmem:[%s1 + $0x4c] sm:$0xf]
  %v59 = vld [vmem:[%s1 + $0x50] sm:$0xf]
  %v60 = vld [vmem:[%s1 + $0x54] sm:$0xf]
  %v61 = vld [vmem:[%s1 + $0x58] sm:$0xf]
  %v62 = vld [vmem:[%s1 + $0x5c] sm:$0xf]
  %v63 = vld [vmem:[%s1 + $0x60] sm:$0xf]
  %v64 = vld [vmem:[%s1 + $0x64] sm:$0xf]
  %v65 = vld [vmem:[%s1 + $0x68] sm:$0xf]
  %v66 = vld [vmem:[%s1 + $0x6c] sm:$0xf]
  %v67 = vld [vmem:[%s1 + $0x70] sm:$0xf]
  %v68 = vld [vmem:[%s1 + $0x74] sm:$0xf]
  %v69 = vld [vmem:[%s1 + $0x78] sm:$0xf]
  %v70 = vld [vmem:[%s1 + $0x7c] sm:$0xf]
  %v71 = vld [vmem:[%s1 + $0x80] sm:$0xf]
  %v72 = vld [vmem:[%s1 + $0x84] sm:$0xf]
  %v73 = vld [vmem:[%s1 + $0x88] sm:$0xf]
  %v74 = vld [vmem:[%s1 + $0x8c] sm:$0xf]
  %v75 = vld [vmem:[%s1 + $0x90] sm:$0xf]
  %v76 = vld [vmem:[%s1 + $0x94] sm:$0xf]
  %v77 = vld [vmem:[%s1 + $0x98] sm:$0xf]
  %v78 = vld [vmem:[%s1 + $0x9c] sm:$0xf]
  %v79 = vld [vmem:[%s1 + $0xa0] sm:$0xf]
  %v80 = vld [vmem:[%s1 + $0xa4] sm:$0xf]
  %v81 = vld [vmem:[%s1 + $0xa8] sm:$0xf]
  %v82 = vld [vmem:[%s1 + $0xac] sm:$0xf]
  %v83 = vld [vmem:[%s1 + $0xb0] sm:$0xf]
  %v84 = vld [vmem:[%s1 + $0xb4] sm:$0xf]
  %v85 = vld [vmem:[%s1 + $0xb8] sm:$0xf]
  %v86 = vld [vmem:[%s1 + $0xbc] sm:$0xf]
  %v87 = vld [vmem:[%s1 + $0xc0] sm:$0xf]
  %v88 = vld [vmem:[%s1 + $0xc4] sm:$0xf]
  %v89 = vld [vmem:[%s1 + $0xc8] sm:$0xf]
  %v90 = vld [vmem:[%s1 + $0xcc] sm:$0xf]
  %v91 = vld [vmem:[%s1 + $0xd0] sm:$0xf]
  %v92 = vld [vmem:[%s1 + $0xd4] sm:$0xf]
  %v93 = vld [vmem:[%s1 + $0xd8] sm:$0xf]
  %v94 = vld [vmem:[%s1 + $0xdc] sm:$0xf]
  %v95 = vld [vmem:[%s1 + $0xe0] sm:$0xf]
  %v96 = vld [vmem:[%s1 + $0xe4] sm:$0xf]
  %v97 = vld [vmem:[%s1 + $0xe8] sm:$0xf]
  %v98 = vld [vmem:[%s1 + $0xec] sm:$0xf]
  %v99 = vld [vmem:[%s1 + $0xf0] sm:$0xf]
  %v100 = vld [vmem:[%s1 + $0xf4] sm:$0xf]
  %v101 = vld [vmem:[%s1 + $0xf8] sm:$0xf]
  %v102 = vld [vmem:[%s1 + $0xfc] sm:$0xf]
  %v103 = vld [vmem:[%s1 + $0x100] sm:$0xf]
  %v104 = vld [vmem:[%s1 + $0x104] sm:$0xf]
  %v105 = vld [vmem:[%s1 + $0x108] sm:$0xf]
  %v106 = vld [vmem:[%s1 + $0x10c] sm:$0xf]
  %v107 = vld [vmem:[%s1 + $0x110] sm:$0xf]
  %v108 = vld [vmem:[%s1 + $0x114] sm:$0xf]
  %v109 = vld [vmem:[%s1 + $0x118] sm:$0xf]
  %v110 = vld [vmem:[%s1 + $0x11c] sm:$0xf]
  %v111 = vld [vmem:[%s1 + $0x120] sm:$0xf]
  %v112 = vld [vmem:[%s1 + $0x124] sm:$0xf]
  %v113 = vld [vmem:[%s1 + $0x128] sm:$0xf]
  %v114 = vld [vmem:[%s1 + $0x12c] sm:$0xf]
  %v115 = vld [vmem:[%s1 + $0x130] sm:$0xf]
  %v116 = vld [vmem:[%s1 + $0x134] sm:$0xf]
  %v117 = vld [vmem:[%s1 + $0x138] sm:$0xf]
  %v118 = vld [vmem:[%s1 + $0x13c] sm:$0xf]
  %v131 = vunpack.c.l.b16 %v27
  %v132 = vunpack.c.h.b16 %v27
  %v133 = vunpack.c.l.b16 %v28
  %v134 = vunpack.c.h.b16 %v28
  %v135 = vunpack.c.l.b16 %v29
  %v136 = vunpack.c.l.b16 %v30
  %v137 = vunpack.c.h.b16 %v30
  %v138 = vunpack.c.l.b16 %v31
  %v139 = vunpack.c.h.b16 %v31
  %v140 = vunpack.c.l.b16 %v32
  %v141 = vunpack.c.l.b16 %v33
  %v142 = vunpack.c.h.b16 %v33
  %v143 = vunpack.c.l.b16 %v34
  %v144 = vunpack.c.h.b16 %v34
  %v145 = vunpack.c.l.b16 %v35
  %v146 = vunpack.c.l.b16 %v36
  %v147 = vunpack.c.h.b16 %v36
  %v148 = vunpack.c.l.b16 %v37
  %v149 = vunpack.c.h.b16 %v37
  %v150 = vunpack.c.l.b16 %v38
  %v151 = vpack.c.b16 %v136, %v131
  %v152 = vpack.c.b16 %v137, %v132
  %v153 = vpack.c.b16 %v138, %v133
  %v154 = vpack.c.b16 %v139, %v134
  %v155 = vpack.c.b16 %v140, %v135
  %v156 = vpack.c.b16 %v146, %v141
  %v157 = vpack.c.b16 %v147, %v142
  %v158 = vpack.c.b16 %v148, %v143
  %v159 = vpack.c.b16 %v149, %v144
  %v160 = vpack.c.b16 %v150, %v145
  %v251 = vunpack.c.l.b16 %v39
  %v252 = vunpack.c.l.b16 %v40
  %v253 = vunpack.c.l.b16 %v41
  %v254 = vunpack.c.l.b16 %v42
  %v255 = vunpack.c.l.b16 %v43
  %v256 = vunpack.c.l.b16 %v44
  %v257 = vunpack.c.l.b16 %v45
  %v258 = vunpack.c.l.b16 %v46
  %v259 = vunpack.c.l.b16 %v47
  %v260 = vunpack.c.l.b16 %v48
  %v261 = vunpack.c.l.b16 %v49
  %v262 = vunpack.c.l.b16 %v50
  %v263 = vunpack.c.l.b16 %v51
  %v264 = vunpack.c.l.b16 %v52
  %v265 = vunpack.c.l.b16 %v53
  %v266 = vunpack.c.l.b16 %v54
  %v267 = vunpack.c.l.b16 %v55
  %v268 = vunpack.c.l.b16 %v56
  %v269 = vunpack.c.l.b16 %v57
  %v270 = vunpack.c.l.b16 %v58
  %v271 = vunpack.c.l.b16 %v59
  %v272 = vunpack.c.l.b16 %v60
  %v273 = vunpack.c.l.b16 %v61
  %v274 = vunpack.c.l.b16 %v62
  %v275 = vunpack.c.l.b16 %v63
  %v276 = vunpack.c.l.b16 %v64
  %v277 = vunpack.c.l.b16 %v65
  %v278 = vunpack.c.l.b16 %v66
  %v279 = vunpack.c.l.b16 %v67
  %v280 = vunpack.c.l.b16 %v68
  %v281 = vunpack.c.l.b16 %v69
  %v282 = vunpack.c.l.b16 %v70
  %v283 = vunpack.c.l.b16 %v71
  %v284 = vunpack.c.l.b16 %v72
  %v285 = vunpack.c.l.b16 %v73
  %v286 = vunpack.c.l.b16 %v74
  %v287 = vunpack.c.l.b16 %v75
  %v288 = vunpack.c.l.b16 %v76
  %v289 = vunpack.c.l.b16 %v77
  %v290 = vunpack.c.l.b16 %v78
  %v291 = vunpack.c.l.b16 %v79
  %v292 = vunpack.c.l.b16 %v80
  %v293 = vunpack.c.l.b16 %v81
  %v294 = vunpack.c.l.b16 %v82
  %v295 = vunpack.c.l.b16 %v83
  %v296 = vunpack.c.l.b16 %v84
  %v297 = vunpack.c.l.b16 %v85
  %v298 = vunpack.c.l.b16 %v86
  %v299 = vunpack.c.l.b16 %v87
  %v300 = vunpack.c.l.b16 %v88
  %v301 = vunpack.c.l.b16 %v89
  %v302 = vunpack.c.l.b16 %v90
  %v303 = vunpack.c.l.b16 %v91
  %v304 = vunpack.c.l.b16 %v92
  %v305 = vunpack.c.l.b16 %v93
  %v306 = vunpack.c.l.b16 %v94
  %v307 = vunpack.c.l.b16 %v95
  %v308 = vunpack.c.l.b16 %v96
  %v309 = vunpack.c.l.b16 %v97
  %v310 = vunpack.c.l.b16 %v98
  %v311 = vunpack.c.l.b16 %v99
  %v312 = vunpack.c.l.b16 %v100
  %v313 = vunpack.c.l.b16 %v101
  %v314 = vunpack.c.l.b16 %v102
  %v315 = vunpack.c.l.b16 %v103
  %v316 = vunpack.c.l.b16 %v104
  %v317 = vunpack.c.l.b16 %v105
  %v318 = vunpack.c.l.b16 %v106
  %v319 = vunpack.c.l.b16 %v107
  %v320 = vunpack.c.l.b16 %v108
  %v321 = vunpack.c.l.b16 %v109
  %v322 = vunpack.c.l.b16 %v110
  %v323 = vunpack.c.l.b16 %v111
  %v324 = vunpack.c.l.b16 %v112
  %v325 = vunpack.c.l.b16 %v113
  %v326 = vunpack.c.l.b16 %v114
  %v327 = vunpack.c.l.b16 %v115
  %v328 = vunpack.c.l.b16 %v116
  %v329 = vunpack.c.l.b16 %v117
  %v330 = vunpack.c.l.b16 %v118
  %v331 = vpack.c.b16 %v252, %v251
  %v332 = vpack.c.b16 %v254, %v253
  %v333 = vpack.c.b16 %v256, %v255
  %v334 = vpack.c.b16 %v258, %v257
  %v335 = vpack.c.b16 %v260, %v259
  %v336 = vpack.c.b16 %v262, %v261
  %v337 = vpack.c.b16 %v264, %v263
  %v338 = vpack.c.b16 %v266, %v265
  %v339 = vpack.c.b16 %v268, %v267
  %v340 = vpack.c.b16 %v270, %v269
  %v341 = vpack.c.b16 %v272, %v271
  %v342 = vpack.c.b16 %v274, %v273
  %v343 = vpack.c.b16 %v276, %v275
  %v344 = vpack.c.b16 %v278, %v277
  %v345 = vpack.c.b16 %v280, %v279
  %v346 = vpack.c.b16 %v282, %v281
  %v347 = vpack.c.b16 %v284, %v283
  %v348 = vpack.c.b16 %v286, %v285
  %v349 = vpack.c.b16 %v288, %v287
  %v350 = vpack.c.b16 %v290, %v289
  %v351 = vpack.c.b16 %v292, %v291
  %v352 = vpack.c.b16 %v294, %v293
  %v353 = vpack.c.b16 %v296, %v295
  %v354 = vpack.c.b16 %v298, %v297
  %v355 = vpack.c.b16 %v300, %v299
  %v356 = vpack.c.b16 %v302, %v301
  %v357 = vpack.c.b16 %v304, %v303
  %v358 = vpack.c.b16 %v306, %v305
  %v359 = vpack.c.b16 %v308, %v307
  %v360 = vpack.c.b16 %v310, %v309
  %v361 = vpack.c.b16 %v312, %v311
  %v362 = vpack.c.b16 %v314, %v313
  %v363 = vpack.c.b16 %v316, %v315
  %v364 = vpack.c.b16 %v318, %v317
  %v365 = vpack.c.b16 %v320, %v319
  %v366 = vpack.c.b16 %v322, %v321
  %v367 = vpack.c.b16 %v324, %v323
  %v368 = vpack.c.b16 %v326, %v325
  %v369 = vpack.c.b16 %v328, %v327
  %v370 = vpack.c.b16 %v330, %v329
  %411 = vmatprep.subr.bf16.mxu0 0
  %412 = vmatpush1.bf16.msra.mxu0 %v331
  %413 = vmatprep.subr.bf16.mxu0 0
  %414 = vmatpush1.bf16.msra.mxu0 %v332
  %415 = vmatprep.subr.bf16.mxu0 0
  %416 = vmatpush1.bf16.msra.mxu0 %v333
  %417 = vmatprep.subr.bf16.mxu0 0
  %418 = vmatpush1.bf16.msra.mxu0 %v334
  %419 = vmatprep.subr.bf16.mxu0 0
  %420 = vmatpush1.bf16.msra.mxu0 %v335
  %421 = vmatprep.subr.bf16.mxu0 0
  %422 = vmatpush1.bf16.msra.mxu0 %v336
  %423 = vmatprep.subr.bf16.mxu0 0
  %424 = vmatpush1.bf16.msra.mxu0 %v337
  %425 = vmatprep.subr.bf16.mxu0 0
  %426 = vmatpush1.bf16.msra.mxu0 %v338
  %427 = vmatprep.subr.bf16.mxu0 0
  %428 = vmatpush1.bf16.msra.mxu0 %v339
  %429 = vmatprep.subr.bf16.mxu0 0
  %430 = vmatpush1.bf16.msra.mxu0 %v340
  %431 = vmatprep.subr.bf16.mxu0 0
  %432 = vmatpush1.bf16.msra.mxu0 %v341
  %433 = vmatprep.subr.bf16.mxu0 0
  %434 = vmatpush1.bf16.msra.mxu0 %v342
  %435 = vmatprep.subr.bf16.mxu0 0
  %436 = vmatpush1.bf16.msra.mxu0 %v343
  %437 = vmatprep.subr.bf16.mxu0 0
  %438 = vmatpush1.bf16.msra.mxu0 %v344
  %439 = vmatprep.subr.bf16.mxu0 0
  %440 = vmatpush1.bf16.msra.mxu0 %v345
  %441 = vmatprep.subr.bf16.mxu0 0
  %442 = vmatpush1.bf16.msra.mxu0 %v346
  %443 = vmatprep.mubr.bf16.mxu0 %v152
  %444 = vmatmul.mubr.bf16.gmra.mrb[0].mxu0 %v151
  %v445 = vpop.f32.mrb[0].mxu0
  %v446 = vadd.f32 0.0, %v445
  %v447 = vpop.f32.mrb[0].mxu0
  %v448 = vpop.f32.mrb[0].mxu0
  %v449 = vadd.f32 0.0, %v448
  %v450 = vpop.f32.mrb[0].mxu0
  %451 = vmatprep.mubr.bf16.mxu0 %v157
  %452 = vmatmul.mubr.bf16.gmra.mrb[0].mxu0 %v156
  %v453 = vpop.f32.mrb[0].mxu0
  %v454 = vadd.f32 0.0, %v453
  %v455 = vpop.f32.mrb[0].mxu0
  %v456 = vpop.f32.mrb[0].mxu0
  %v457 = vadd.f32 0.0, %v456
  %v458 = vpop.f32.mrb[0].mxu0
  %459 = vdwg.mxu0
  %460 = vmatprep.subr.bf16.mxu0 0
  %461 = vmatpush1.bf16.msra.mxu0 %v347
  %462 = vmatprep.subr.bf16.mxu0 0
  %463 = vmatpush1.bf16.msra.mxu0 %v348
  %464 = vmatprep.subr.bf16.mxu0 0
  %465 = vmatpush1.bf16.msra.mxu0 %v349
  %466 = vmatprep.subr.bf16.mxu0 0
  %467 = vmatpush1.bf16.msra.mxu0 %v350
  %468 = vmatprep.subr.bf16.mxu0 0
  %469 = vmatpush1.bf16.msra.mxu0 %v351
  %470 = vmatprep.subr.bf16.mxu0 0
  %471 = vmatpush1.bf16.msra.mxu0 %v352
  %472 = vmatprep.subr.bf16.mxu0 0
  %473 = vmatpush1.bf16.msra.mxu0 %v353
  %474 = vmatprep.subr.bf16.mxu0 0
  %475 = vmatpush1.bf16.msra.mxu0 %v354
  %476 = vmatprep.subr.bf16.mxu0 0
  %477 = vmatpush1.bf16.msra.mxu0 %v355
  %478 = vmatprep.subr.bf16.mxu0 0
  %479 = vmatpush1.bf16.msra.mxu0 %v356
  %480 = vmatprep.subr.bf16.mxu0 0
  %481 = vmatpush1.bf16.msra.mxu0 %v357
  %482 = vmatprep.subr.bf16.mxu0 0
  %483 = vmatpush1.bf16.msra.mxu0 %v358
  %484 = vmatprep.subr.bf16.mxu0 0
  %485 = vmatpush1.bf16.msra.mxu0 %v359
  %486 = vmatprep.subr.bf16.mxu0 0
  %487 = vmatpush1.bf16.msra.mxu0 %v360
  %488 = vmatprep.subr.bf16.mxu0 0
  %489 = vmatpush1.bf16.msra.mxu0 %v361
  %490 = vmatprep.subr.bf16.mxu0 0
  %491 = vmatpush1.bf16.msra.mxu0 %v362
  %492 = vmatprep.mubr.bf16.mxu0 %v154
  %493 = vmatmul.mubr.bf16.gmra.mrb[0].mxu0 %v153
  %v494 = vpop.f32.mrb[0].mxu0
  %v495 = vadd.f32 %v446, %v494
  %v496 = vpop.f32.mrb[0].mxu0
  %v497 = vpop.f32.mrb[0].mxu0
  %v498 = vadd.f32 %v449, %v497
  %v499 = vpop.f32.mrb[0].mxu0
  %500 = vmatprep.mubr.bf16.mxu0 %v159
  %501 = vmatmul.mubr.bf16.gmra.mrb[0].mxu0 %v158
  %v502 = vpop.f32.mrb[0].mxu0
  %v503 = vadd.f32 %v454, %v502
  %v504 = vpop.f32.mrb[0].mxu0
  %v505 = vpop.f32.mrb[0].mxu0
  %v506 = vadd.f32 %v457, %v505
  %v507 = vpop.f32.mrb[0].mxu0
  %508 = vdwg.mxu0
  %509 = vmatprep.subr.bf16.mxu0 0
  %510 = vmatpush1.bf16.msra.mxu0 %v363
  %511 = vmatprep.subr.bf16.mxu0 0
  %512 = vmatpush1.bf16.msra.mxu0 %v364
  %513 = vmatprep.subr.bf16.mxu0 0
  %514 = vmatpush1.bf16.msra.mxu0 %v365
  %515 = vmatprep.subr.bf16.mxu0 0
  %516 = vmatpush1.bf16.msra.mxu0 %v366
  %517 = vmatprep.subr.bf16.mxu0 0
  %518 = vmatpush1.bf16.msra.mxu0 %v367
  %519 = vmatprep.subr.bf16.mxu0 0
  %520 = vmatpush1.bf16.msra.mxu0 %v368
  %521 = vmatprep.subr.bf16.mxu0 0
  %522 = vmatpush1.bf16.msra.mxu0 %v369
  %523 = vmatprep.subr.bf16.mxu0 0
  %524 = vmatpush1.bf16.msra.mxu0 %v370
  %525 = vmatprep.subr.bf16.mxu0 0
  %526 = vmatpush1.bf16.msra.mxu0 0
  %527 = vmatprep.subr.bf16.mxu0 0
  %528 = vmatpush1.bf16.msra.mxu0 0
  %529 = vmatprep.subr.bf16.mxu0 0
  %530 = vmatpush1.bf16.msra.mxu0 0
  %531 = vmatprep.subr.bf16.mxu0 0
  %532 = vmatpush1.bf16.msra.mxu0 0
  %533 = vmatprep.subr.bf16.mxu0 0
  %534 = vmatpush1.bf16.msra.mxu0 0
  %535 = vmatprep.subr.bf16.mxu0 0
  %536 = vmatpush1.bf16.msra.mxu0 0
  %537 = vmatprep.subr.bf16.mxu0 0
  %538 = vmatpush1.bf16.msra.mxu0 0
  %539 = vmatprep.subr.bf16.mxu0 0
  %540 = vmatpush1.bf16.msra.mxu0 0
  %541 = vmatprep.mubr.bf16.mxu0 0
  %542 = vmatmul.mubr.bf16.gmra.mrb[0].mxu0 %v155
  %v543 = vpop.f32.mrb[0].mxu0
  %v544 = vadd.f32 %v495, %v543
  %v545 = vpop.f32.mrb[0].mxu0
  %v546 = vpop.f32.mrb[0].mxu0
  %v547 = vadd.f32 %v498, %v546
  %v548 = vpop.f32.mrb[0].mxu0
  %549 = vmatprep.mubr.bf16.mxu0 0
  %550 = vmatmul.mubr.bf16.gmra.mrb[0].mxu0 %v160
  %v551 = vpop.f32.mrb[0].mxu0
  %v552 = vadd.f32 %v503, %v551
  %v553 = vpop.f32.mrb[0].mxu0
  %v554 = vpop.f32.mrb[0].mxu0
  %v555 = vadd.f32 %v506, %v554
  %v556 = vpop.f32.mrb[0].mxu0
  %557 = vdwg.mxu0
  %v558 = vadd.f32 %v23, %v544
  %v559 = vadd.f32 %v24, %v547
  %v560 = vadd.f32 %v25, %v552
  %v561 = vadd.f32 %v26, %v555
  %562 = vst [vmem:[#allocation2] sm:$0xff] %v558
  %563 = vst [vmem:[#allocation2 + $0x8] sm:$0xff] %v559
  %564 = vst [vmem:[#allocation2 + $0x10] sm:$0xff] %v560
  %565 = vst [vmem:[#allocation2 + $0x18] sm:$0xff] %v561
  // Predicated region
  $region18: #{_lambda_.19} parent=0 // pred_check
    %p566 = pneg %p15
  $region19: #{_lambda_.19} parent=0 // pred_check_branch
    %568 = sbr.rel (%p566) target = $region21
  $region20: #{_lambda_.19} parent=0 // pred_region
    %v569 = vld [vmem:[#allocation2] sm:$0xff]
    %v570 = vld [vmem:[#allocation2 + $0x8] sm:$0xff]
    %v571 = vld [vmem:[#allocation2 + $0x10] sm:$0xff]
    %v572 = vld [vmem:[#allocation2 + $0x18] sm:$0xff]
    %v573 = vld [vmem:[%s2] sm:$0x1]
    %v575 = vlaneseq
    %v576 = vshrl.u32 %v575, 7
    %v577 = vsub.s32 0, %v576
    %v578 = vrot.slane %v573, %v577
    %v580 = vadd.f32 %v569, %v578
    %v581 = vadd.f32 %v570, %v578
    %v582 = vadd.f32 %v571, %v578
    %v583 = vadd.f32 %v572, %v578
    %v584 = vmax.f32 %v580, 0.0
    %v585 = vmax.f32 %v581, 0.0
    %v586 = vmax.f32 %v582, 0.0
    %v587 = vmax.f32 %v583, 0.0
    %v588 = vpack.c.bf16 %v585, %v584
    %v589 = vpack.c.bf16 %v587, %v586
    %v592 = vunpack.c.l.b16 %v588
    %v593 = vunpack.c.h.b16 %v588
    %v594 = vunpack.c.l.b16 %v589
    %v595 = vunpack.c.h.b16 %v589
    %v596 = vpack.c.b16 %v592, %v592
    %v597 = vpack.c.b16 %v593, %v593
    %v598 = vpack.c.b16 %v594, %v594
    %v599 = vpack.c.b16 %v595, %v595
    %604 = vst [vmem:[%s3] sm:$0xf] %v596
    %605 = vst [vmem:[%s3 + $0x4] sm:$0xf] %v597
    %606 = vst [vmem:[%s3 + $0x8] sm:$0xf] %v598
    %607 = vst [vmem:[%s3 + $0xc] sm:$0xf] %v599
  $region21: #{_lambda_.19} parent=0 // pred_fallthru
    _
  // Predicated region
  $region22: #{_lambda_.19} parent=0 // pred_check
    _
  $region23: #{_lambda_.19} parent=0 // pred_check_branch
    %609 = sbr.rel (0) target = $region25
  $region24: #{_lambda_.19} parent=0 // pred_region
    _
  $region25: #{_lambda_.19} parent=0 // pred_fallthru
    _
  // Predicated region
  $region26: #{_lambda_.19} parent=0 // pred_check
    _
  $region27: #{_lambda_.19} parent=0 // pred_check_branch
    %611 = sbr.rel (0) target = $region29
  $region28: #{_lambda_.19} parent=0 // pred_region
    _
  $region29: #{_lambda_.19} parent=0 // pred_fallthru
    _

// kernel: _lambda_.20
$region0: #{_lambda_.20}
  #allocation0 [shape = 'u32[]', space=smem, size = 0x4, offset = 0x4, fixed_abs, tag = 'smem constant byte address 0x4 - core index']
  #allocation1 [shape = 'u32[144,128]{1,0:T(1,128)}', space=vmem, size = 0x12000, scoped, tag = 'internal scratch']
  #allocation2 [shape = 'f32[32,128]{1,0:T(8,128)}', space=vmem, size = 0x4000, scoped, tag = 'scratch operand']
  %s0 = inlined_call_operand.vmem [shape: bf16[32,640], index: 0, kind: input, shape index: {}]
  %s1 = inlined_call_operand.vmem [shape: bf16[640,128], index: 1, kind: input, shape index: {}]
  %s2 = inlined_call_operand.vmem [shape: f32[1,128], index: 2, kind: input, shape index: {}]
  %s3 = inlined_call_operand.vmem [shape: bf16[32,128], index: 3, kind: input, shape index: {}]
  %s4 = inlined_call_operand.vmem [shape: bf16[32,128], index: 4, kind: output, shape index: {}]
  %s5 = sld [smem:[#allocation0]]
  $region34: #{_lambda_.20} parent=0
    _
  %s7 = ssub.s32 1, %s5
  %s8 = scalar_select 0, %s7, %s5
  // Predicated region
  $region2: #{_lambda_.20} parent=0 // pred_check
    _
  $region3: #{_lambda_.20} parent=0 // pred_check_branch
    %10 = sbr.rel (0) target = $region5
  $region4: #{_lambda_.20} parent=0 // pred_region
    _
  $region5: #{_lambda_.20} parent=0 // pred_fallthru
    _
  // Predicated region
  $region6: #{_lambda_.20} parent=0 // pred_check
    _
  $region7: #{_lambda_.20} parent=0 // pred_check_branch
    %12 = sbr.rel (0) target = $region9
  $region8: #{_lambda_.20} parent=0 // pred_region
    _
  $region9: #{_lambda_.20} parent=0 // pred_fallthru
    _
  // Predicated region
  $region10: #{_lambda_.20} parent=0 // pred_check
    _
  $region11: #{_lambda_.20} parent=0 // pred_check_branch
    %14 = sbr.rel (0) target = $region13
  $region12: #{_lambda_.20} parent=0 // pred_region
    _
  $region13: #{_lambda_.20} parent=0 // pred_fallthru
    _
  // Predicated region
  $region14: #{_lambda_.20} parent=0 // pred_check
    _
  $region15: #{_lambda_.20} parent=0 // pred_check_branch
    %16 = sbr.rel (0) target = $region17
  $region16: #{_lambda_.20} parent=0 // pred_region
    _
  $region17: #{_lambda_.20} parent=0 // pred_fallthru
    _
  %p18 = scmp.eq.s32.totalorder 0, 0
  // Predicated region
  $region18: #{_lambda_.20} parent=0 // pred_check
    %p19 = pneg %p18
  $region19: #{_lambda_.20} parent=0 // pred_check_branch
    %21 = sbr.rel (%p19) target = $region21
  $region20: #{_lambda_.20} parent=0 // pred_region
    %22 = vst [vmem:[#allocation2] sm:$0xff] 0.0
    %23 = vst [vmem:[#allocation2 + $0x8] sm:$0xff] 0.0
    %24 = vst [vmem:[#allocation2 + $0x10] sm:$0xff] 0.0
    %25 = vst [vmem:[#allocation2 + $0x18] sm:$0xff] 0.0
  $region21: #{_lambda_.20} parent=0 // pred_fallthru
    _
  %v26 = vld [vmem:[#allocation2] sm:$0xff]
  %v27 = vld [vmem:[#allocation2 + $0x8] sm:$0xff]
  %v28 = vld [vmem:[#allocation2 + $0x10] sm:$0xff]
  %v29 = vld [vmem:[#allocation2 + $0x18] sm:$0xff]
  %v30 = vld [vmem:[%s0] sm:$0xff]
  %v31 = vld [vmem:[%s0 + $0x8] sm:$0xff]
  %v32 = vld [vmem:[%s0 + $0x10] sm:$0xf]
  %v33 = vld [vmem:[%s0 + $0x14] sm:$0xff]
  %v34 = vld [vmem:[%s0 + $0x1c] sm:$0xff]
  %v35 = vld [vmem:[%s0 + $0x24] sm:$0xf]
  %v36 = vld [vmem:[%s0 + $0x28] sm:$0xff]
  %v37 = vld [vmem:[%s0 + $0x30] sm:$0xff]
  %v38 = vld [vmem:[%s0 + $0x38] sm:$0xf]
  %v39 = vld [vmem:[%s0 + $0x3c] sm:$0xff]
  %v40 = vld [vmem:[%s0 + $0x44] sm:$0xff]
  %v41 = vld [vmem:[%s0 + $0x4c] sm:$0xf]
  %v42 = vld [vmem:[%s1] sm:$0xf]
  %v43 = vld [vmem:[%s1 + $0x4] sm:$0xf]
  %v44 = vld [vmem:[%s1 + $0x8] sm:$0xf]
  %v45 = vld [vmem:[%s1 + $0xc] sm:$0xf]
  %v46 = vld [vmem:[%s1 + $0x10] sm:$0xf]
  %v47 = vld [vmem:[%s1 + $0x14] sm:$0xf]
  %v48 = vld [vmem:[%s1 + $0x18] sm:$0xf]
  %v49 = vld [vmem:[%s1 + $0x1c] sm:$0xf]
  %v50 = vld [vmem:[%s1 + $0x20] sm:$0xf]
  %v51 = vld [vmem:[%s1 + $0x24] sm:$0xf]
  %v52 = vld [vmem:[%s1 + $0x28] sm:$0xf]
  %v53 = vld [vmem:[%s1 + $0x2c] sm:$0xf]
  %v54 = vld [vmem:[%s1 + $0x30] sm:$0xf]
  %v55 = vld [vmem:[%s1 + $0x34] sm:$0xf]
  %v56 = vld [vmem:[%s1 + $0x38] sm:$0xf]
  %v57 = vld [vmem:[%s1 + $0x3c] sm:$0xf]
  %v58 = vld [vmem:[%s1 + $0x40] sm:$0xf]
  %v59 = vld [vmem:[%s1 + $0x44] sm:$0xf]
  %v60 = vld [vmem:[%s1 + $0x48] sm:$0xf]
  %v61 = vld [vmem:[%s1 + $0x4c] sm:$0xf]
  %v62 = vld [vmem:[%s1 + $0x50] sm:$0xf]
  %v63 = vld [vmem:[%s1 + $0x54] sm:$0xf]
  %v64 = vld [vmem:[%s1 + $0x58] sm:$0xf]
  %v65 = vld [vmem:[%s1 + $0x5c] sm:$0xf]
  %v66 = vld [vmem:[%s1 + $0x60] sm:$0xf]
  %v67 = vld [vmem:[%s1 + $0x64] sm:$0xf]
  %v68 = vld [vmem:[%s1 + $0x68] sm:$0xf]
  %v69 = vld [vmem:[%s1 + $0x6c] sm:$0xf]
  %v70 = vld [vmem:[%s1 + $0x70] sm:$0xf]
  %v71 = vld [vmem:[%s1 + $0x74] sm:$0xf]
  %v72 = vld [vmem:[%s1 + $0x78] sm:$0xf]
  %v73 = vld [vmem:[%s1 + $0x7c] sm:$0xf]
  %v74 = vld [vmem:[%s1 + $0x80] sm:$0xf]
  %v75 = vld [vmem:[%s1 + $0x84] sm:$0xf]
  %v76 = vld [vmem:[%s1 + $0x88] sm:$0xf]
  %v77 = vld [vmem:[%s1 + $0x8c] sm:$0xf]
  %v78 = vld [vmem:[%s1 + $0x90] sm:$0xf]
  %v79 = vld [vmem:[%s1 + $0x94] sm:$0xf]
  %v80 = vld [vmem:[%s1 + $0x98] sm:$0xf]
  %v81 = vld [vmem:[%s1 + $0x9c] sm:$0xf]
  %v82 = vld [vmem:[%s1 + $0xa0] sm:$0xf]
  %v83 = vld [vmem:[%s1 + $0xa4] sm:$0xf]
  %v84 = vld [vmem:[%s1 + $0xa8] sm:$0xf]
  %v85 = vld [vmem:[%s1 + $0xac] sm:$0xf]
  %v86 = vld [vmem:[%s1 + $0xb0] sm:$0xf]
  %v87 = vld [vmem:[%s1 + $0xb4] sm:$0xf]
  %v88 = vld [vmem:[%s1 + $0xb8] sm:$0xf]
  %v89 = vld [vmem:[%s1 + $0xbc] sm:$0xf]
  %v90 = vld [vmem:[%s1 + $0xc0] sm:$0xf]
  %v91 = vld [vmem:[%s1 + $0xc4] sm:$0xf]
  %v92 = vld [vmem:[%s1 + $0xc8] sm:$0xf]
  %v93 = vld [vmem:[%s1 + $0xcc] sm:$0xf]
  %v94 = vld [vmem:[%s1 + $0xd0] sm:$0xf]
  %v95 = vld [vmem:[%s1 + $0xd4] sm:$0xf]
  %v96 = vld [vmem:[%s1 + $0xd8] sm:$0xf]
  %v97 = vld [vmem:[%s1 + $0xdc] sm:$0xf]
  %v98 = vld [vmem:[%s1 + $0xe0] sm:$0xf]
  %v99 = vld [vmem:[%s1 + $0xe4] sm:$0xf]
  %v100 = vld [vmem:[%s1 + $0xe8] sm:$0xf]
  %v101 = vld [vmem:[%s1 + $0xec] sm:$0xf]
  %v102 = vld [vmem:[%s1 + $0xf0] sm:$0xf]
  %v103 = vld [vmem:[%s1 + $0xf4] sm:$0xf]
  %v104 = vld [vmem:[%s1 + $0xf8] sm:$0xf]
  %v105 = vld [vmem:[%s1 + $0xfc] sm:$0xf]
  %v106 = vld [vmem:[%s1 + $0x100] sm:$0xf]
  %v107 = vld [vmem:[%s1 + $0x104] sm:$0xf]
  %v108 = vld [vmem:[%s1 + $0x108] sm:$0xf]
  %v109 = vld [vmem:[%s1 + $0x10c] sm:$0xf]
  %v110 = vld [vmem:[%s1 + $0x110] sm:$0xf]
  %v111 = vld [vmem:[%s1 + $0x114] sm:$0xf]
  %v112 = vld [vmem:[%s1 + $0x118] sm:$0xf]
  %v113 = vld [vmem:[%s1 + $0x11c] sm:$0xf]
  %v114 = vld [vmem:[%s1 + $0x120] sm:$0xf]
  %v115 = vld [vmem:[%s1 + $0x124] sm:$0xf]
  %v116 = vld [vmem:[%s1 + $0x128] sm:$0xf]
  %v117 = vld [vmem:[%s1 + $0x12c] sm:$0xf]
  %v118 = vld [vmem:[%s1 + $0x130] sm:$0xf]
  %v119 = vld [vmem:[%s1 + $0x134] sm:$0xf]
  %v120 = vld [vmem:[%s1 + $0x138] sm:$0xf]
  %v121 = vld [vmem:[%s1 + $0x13c] sm:$0xf]
  %v134 = vunpack.c.l.b16 %v30
  %v135 = vunpack.c.h.b16 %v30
  %v136 = vunpack.c.l.b16 %v31
  %v137 = vunpack.c.h.b16 %v31
  %v138 = vunpack.c.l.b16 %v32
  %v139 = vunpack.c.l.b16 %v33
  %v140 = vunpack.c.h.b16 %v33
  %v141 = vunpack.c.l.b16 %v34
  %v142 = vunpack.c.h.b16 %v34
  %v143 = vunpack.c.l.b16 %v35
  %v144 = vunpack.c.l.b16 %v36
  %v145 = vunpack.c.h.b16 %v36
  %v146 = vunpack.c.l.b16 %v37
  %v147 = vunpack.c.h.b16 %v37
  %v148 = vunpack.c.l.b16 %v38
  %v149 = vunpack.c.l.b16 %v39
  %v150 = vunpack.c.h.b16 %v39
  %v151 = vunpack.c.l.b16 %v40
  %v152 = vunpack.c.h.b16 %v40
  %v153 = vunpack.c.l.b16 %v41
  %v154 = vpack.c.b16 %v139, %v134
  %v155 = vpack.c.b16 %v140, %v135
  %v156 = vpack.c.b16 %v141, %v136
  %v157 = vpack.c.b16 %v142, %v137
  %v158 = vpack.c.b16 %v143, %v138
  %v159 = vpack.c.b16 %v149, %v144
  %v160 = vpack.c.b16 %v150, %v145
  %v161 = vpack.c.b16 %v151, %v146
  %v162 = vpack.c.b16 %v152, %v147
  %v163 = vpack.c.b16 %v153, %v148
  %v254 = vunpack.c.l.b16 %v42
  %v255 = vunpack.c.l.b16 %v43
  %v256 = vunpack.c.l.b16 %v44
  %v257 = vunpack.c.l.b16 %v45
  %v258 = vunpack.c.l.b16 %v46
  %v259 = vunpack.c.l.b16 %v47
  %v260 = vunpack.c.l.b16 %v48
  %v261 = vunpack.c.l.b16 %v49
  %v262 = vunpack.c.l.b16 %v50
  %v263 = vunpack.c.l.b16 %v51
  %v264 = vunpack.c.l.b16 %v52
  %v265 = vunpack.c.l.b16 %v53
  %v266 = vunpack.c.l.b16 %v54
  %v267 = vunpack.c.l.b16 %v55
  %v268 = vunpack.c.l.b16 %v56
  %v269 = vunpack.c.l.b16 %v57
  %v270 = vunpack.c.l.b16 %v58
  %v271 = vunpack.c.l.b16 %v59
  %v272 = vunpack.c.l.b16 %v60
  %v273 = vunpack.c.l.b16 %v61
  %v274 = vunpack.c.l.b16 %v62
  %v275 = vunpack.c.l.b16 %v63
  %v276 = vunpack.c.l.b16 %v64
  %v277 = vunpack.c.l.b16 %v65
  %v278 = vunpack.c.l.b16 %v66
  %v279 = vunpack.c.l.b16 %v67
  %v280 = vunpack.c.l.b16 %v68
  %v281 = vunpack.c.l.b16 %v69
  %v282 = vunpack.c.l.b16 %v70
  %v283 = vunpack.c.l.b16 %v71
  %v284 = vunpack.c.l.b16 %v72
  %v285 = vunpack.c.l.b16 %v73
  %v286 = vunpack.c.l.b16 %v74
  %v287 = vunpack.c.l.b16 %v75
  %v288 = vunpack.c.l.b16 %v76
  %v289 = vunpack.c.l.b16 %v77
  %v290 = vunpack.c.l.b16 %v78
  %v291 = vunpack.c.l.b16 %v79
  %v292 = vunpack.c.l.b16 %v80
  %v293 = vunpack.c.l.b16 %v81
  %v294 = vunpack.c.l.b16 %v82
  %v295 = vunpack.c.l.b16 %v83
  %v296 = vunpack.c.l.b16 %v84
  %v297 = vunpack.c.l.b16 %v85
  %v298 = vunpack.c.l.b16 %v86
  %v299 = vunpack.c.l.b16 %v87
  %v300 = vunpack.c.l.b16 %v88
  %v301 = vunpack.c.l.b16 %v89
  %v302 = vunpack.c.l.b16 %v90
  %v303 = vunpack.c.l.b16 %v91
  %v304 = vunpack.c.l.b16 %v92
  %v305 = vunpack.c.l.b16 %v93
  %v306 = vunpack.c.l.b16 %v94
  %v307 = vunpack.c.l.b16 %v95
  %v308 = vunpack.c.l.b16 %v96
  %v309 = vunpack.c.l.b16 %v97
  %v310 = vunpack.c.l.b16 %v98
  %v311 = vunpack.c.l.b16 %v99
  %v312 = vunpack.c.l.b16 %v100
  %v313 = vunpack.c.l.b16 %v101
  %v314 = vunpack.c.l.b16 %v102
  %v315 = vunpack.c.l.b16 %v103
  %v316 = vunpack.c.l.b16 %v104
  %v317 = vunpack.c.l.b16 %v105
  %v318 = vunpack.c.l.b16 %v106
  %v319 = vunpack.c.l.b16 %v107
  %v320 = vunpack.c.l.b16 %v108
  %v321 = vunpack.c.l.b16 %v109
  %v322 = vunpack.c.l.b16 %v110
  %v323 = vunpack.c.l.b16 %v111
  %v324 = vunpack.c.l.b16 %v112
  %v325 = vunpack.c.l.b16 %v113
  %v326 = vunpack.c.l.b16 %v114
  %v327 = vunpack.c.l.b16 %v115
  %v328 = vunpack.c.l.b16 %v116
  %v329 = vunpack.c.l.b16 %v117
  %v330 = vunpack.c.l.b16 %v118
  %v331 = vunpack.c.l.b16 %v119
  %v332 = vunpack.c.l.b16 %v120
  %v333 = vunpack.c.l.b16 %v121
  %v334 = vpack.c.b16 %v255, %v254
  %v335 = vpack.c.b16 %v257, %v256
  %v336 = vpack.c.b16 %v259, %v258
  %v337 = vpack.c.b16 %v261, %v260
  %v338 = vpack.c.b16 %v263, %v262
  %v339 = vpack.c.b16 %v265, %v264
  %v340 = vpack.c.b16 %v267, %v266
  %v341 = vpack.c.b16 %v269, %v268
  %v342 = vpack.c.b16 %v271, %v270
  %v343 = vpack.c.b16 %v273, %v272
  %v344 = vpack.c.b16 %v275, %v274
  %v345 = vpack.c.b16 %v277, %v276
  %v346 = vpack.c.b16 %v279, %v278
  %v347 = vpack.c.b16 %v281, %v280
  %v348 = vpack.c.b16 %v283, %v282
  %v349 = vpack.c.b16 %v285, %v284
  %v350 = vpack.c.b16 %v287, %v286
  %v351 = vpack.c.b16 %v289, %v288
  %v352 = vpack.c.b16 %v291, %v290
  %v353 = vpack.c.b16 %v293, %v292
  %v354 = vpack.c.b16 %v295, %v294
  %v355 = vpack.c.b16 %v297, %v296
  %v356 = vpack.c.b16 %v299, %v298
  %v357 = vpack.c.b16 %v301, %v300
  %v358 = vpack.c.b16 %v303, %v302
  %v359 = vpack.c.b16 %v305, %v304
  %v360 = vpack.c.b16 %v307, %v306
  %v361 = vpack.c.b16 %v309, %v308
  %v362 = vpack.c.b16 %v311, %v310
  %v363 = vpack.c.b16 %v313, %v312
  %v364 = vpack.c.b16 %v315, %v314
  %v365 = vpack.c.b16 %v317, %v316
  %v366 = vpack.c.b16 %v319, %v318
  %v367 = vpack.c.b16 %v321, %v320
  %v368 = vpack.c.b16 %v323, %v322
  %v369 = vpack.c.b16 %v325, %v324
  %v370 = vpack.c.b16 %v327, %v326
  %v371 = vpack.c.b16 %v329, %v328
  %v372 = vpack.c.b16 %v331, %v330
  %v373 = vpack.c.b16 %v333, %v332
  %414 = vmatprep.subr.bf16.mxu0 0
  %415 = vmatpush1.bf16.msra.mxu0 %v334
  %416 = vmatprep.subr.bf16.mxu0 0
  %417 = vmatpush1.bf16.msra.mxu0 %v335
  %418 = vmatprep.subr.bf16.mxu0 0
  %419 = vmatpush1.bf16.msra.mxu0 %v336
  %420 = vmatprep.subr.bf16.mxu0 0
  %421 = vmatpush1.bf16.msra.mxu0 %v337
  %422 = vmatprep.subr.bf16.mxu0 0
  %423 = vmatpush1.bf16.msra.mxu0 %v338
  %424 = vmatprep.subr.bf16.mxu0 0
  %425 = vmatpush1.bf16.msra.mxu0 %v339
  %426 = vmatprep.subr.bf16.mxu0 0
  %427 = vmatpush1.bf16.msra.mxu0 %v340
  %428 = vmatprep.subr.bf16.mxu0 0
  %429 = vmatpush1.bf16.msra.mxu0 %v341
  %430 = vmatprep.subr.bf16.mxu0 0
  %431 = vmatpush1.bf16.msra.mxu0 %v342
  %432 = vmatprep.subr.bf16.mxu0 0
  %433 = vmatpush1.bf16.msra.mxu0 %v343
  %434 = vmatprep.subr.bf16.mxu0 0
  %435 = vmatpush1.bf16.msra.mxu0 %v344
  %436 = vmatprep.subr.bf16.mxu0 0
  %437 = vmatpush1.bf16.msra.mxu0 %v345
  %438 = vmatprep.subr.bf16.mxu0 0
  %439 = vmatpush1.bf16.msra.mxu0 %v346
  %440 = vmatprep.subr.bf16.mxu0 0
  %441 = vmatpush1.bf16.msra.mxu0 %v347
  %442 = vmatprep.subr.bf16.mxu0 0
  %443 = vmatpush1.bf16.msra.mxu0 %v348
  %444 = vmatprep.subr.bf16.mxu0 0
  %445 = vmatpush1.bf16.msra.mxu0 %v349
  %446 = vmatprep.mubr.bf16.mxu0 %v155
  %447 = vmatmul.mubr.bf16.gmra.mrb[0].mxu0 %v154
  %v448 = vpop.f32.mrb[0].mxu0
  %v449 = vadd.f32 0.0, %v448
  %v450 = vpop.f32.mrb[0].mxu0
  %v451 = vpop.f32.mrb[0].mxu0
  %v452 = vadd.f32 0.0, %v451
  %v453 = vpop.f32.mrb[0].mxu0
  %454 = vmatprep.mubr.bf16.mxu0 %v160
  %455 = vmatmul.mubr.bf16.gmra.mrb[0].mxu0 %v159
  %v456 = vpop.f32.mrb[0].mxu0
  %v457 = vadd.f32 0.0, %v456
  %v458 = vpop.f32.mrb[0].mxu0
  %v459 = vpop.f32.mrb[0].mxu0
  %v460 = vadd.f32 0.0, %v459
  %v461 = vpop.f32.mrb[0].mxu0
  %462 = vdwg.mxu0
  %463 = vmatprep.subr.bf16.mxu0 0
  %464 = vmatpush1.bf16.msra.mxu0 %v350
  %465 = vmatprep.subr.bf16.mxu0 0
  %466 = vmatpush1.bf16.msra.mxu0 %v351
  %467 = vmatprep.subr.bf16.mxu0 0
  %468 = vmatpush1.bf16.msra.mxu0 %v352
  %469 = vmatprep.subr.bf16.mxu0 0
  %470 = vmatpush1.bf16.msra.mxu0 %v353
  %471 = vmatprep.subr.bf16.mxu0 0
  %472 = vmatpush1.bf16.msra.mxu0 %v354
  %473 = vmatprep.subr.bf16.mxu0 0
  %474 = vmatpush1.bf16.msra.mxu0 %v355
  %475 = vmatprep.subr.bf16.mxu0 0
  %476 = vmatpush1.bf16.msra.mxu0 %v356
  %477 = vmatprep.subr.bf16.mxu0 0
  %478 = vmatpush1.bf16.msra.mxu0 %v357
  %479 = vmatprep.subr.bf16.mxu0 0
  %480 = vmatpush1.bf16.msra.mxu0 %v358
  %481 = vmatprep.subr.bf16.mxu0 0
  %482 = vmatpush1.bf16.msra.mxu0 %v359
  %483 = vmatprep.subr.bf16.mxu0 0
  %484 = vmatpush1.bf16.msra.mxu0 %v360
  %485 = vmatprep.subr.bf16.mxu0 0
  %486 = vmatpush1.bf16.msra.mxu0 %v361
  %487 = vmatprep.subr.bf16.mxu0 0
  %488 = vmatpush1.bf16.msra.mxu0 %v362
  %489 = vmatprep.subr.bf16.mxu0 0
  %490 = vmatpush1.bf16.msra.mxu0 %v363
  %491 = vmatprep.subr.bf16.mxu0 0
  %492 = vmatpush1.bf16.msra.mxu0 %v364
  %493 = vmatprep.subr.bf16.mxu0 0
  %494 = vmatpush1.bf16.msra.mxu0 %v365
  %495 = vmatprep.mubr.bf16.mxu0 %v157
  %496 = vmatmul.mubr.bf16.gmra.mrb[0].mxu0 %v156
  %v497 = vpop.f32.mrb[0].mxu0
  %v498 = vadd.f32 %v449, %v497
  %v499 = vpop.f32.mrb[0].mxu0
  %v500 = vpop.f32.mrb[0].mxu0
  %v501 = vadd.f32 %v452, %v500
  %v502 = vpop.f32.mrb[0].mxu0
  %503 = vmatprep.mubr.bf16.mxu0 %v162
  %504 = vmatmul.mubr.bf16.gmra.mrb[0].mxu0 %v161
  %v505 = vpop.f32.mrb[0].mxu0
  %v506 = vadd.f32 %v457, %v505
  %v507 = vpop.f32.mrb[0].mxu0
  %v508 = vpop.f32.mrb[0].mxu0
  %v509 = vadd.f32 %v460, %v508
  %v510 = vpop.f32.mrb[0].mxu0
  %511 = vdwg.mxu0
  %512 = vmatprep.subr.bf16.mxu0 0
  %513 = vmatpush1.bf16.msra.mxu0 %v366
  %514 = vmatprep.subr.bf16.mxu0 0
  %515 = vmatpush1.bf16.msra.mxu0 %v367
  %516 = vmatprep.subr.bf16.mxu0 0
  %517 = vmatpush1.bf16.msra.mxu0 %v368
  %518 = vmatprep.subr.bf16.mxu0 0
  %519 = vmatpush1.bf16.msra.mxu0 %v369
  %520 = vmatprep.subr.bf16.mxu0 0
  %521 = vmatpush1.bf16.msra.mxu0 %v370
  %522 = vmatprep.subr.bf16.mxu0 0
  %523 = vmatpush1.bf16.msra.mxu0 %v371
  %524 = vmatprep.subr.bf16.mxu0 0
  %525 = vmatpush1.bf16.msra.mxu0 %v372
  %526 = vmatprep.subr.bf16.mxu0 0
  %527 = vmatpush1.bf16.msra.mxu0 %v373
  %528 = vmatprep.subr.bf16.mxu0 0
  %529 = vmatpush1.bf16.msra.mxu0 0
  %530 = vmatprep.subr.bf16.mxu0 0
  %531 = vmatpush1.bf16.msra.mxu0 0
  %532 = vmatprep.subr.bf16.mxu0 0
  %533 = vmatpush1.bf16.msra.mxu0 0
  %534 = vmatprep.subr.bf16.mxu0 0
  %535 = vmatpush1.bf16.msra.mxu0 0
  %536 = vmatprep.subr.bf16.mxu0 0
  %537 = vmatpush1.bf16.msra.mxu0 0
  %538 = vmatprep.subr.bf16.mxu0 0
  %539 = vmatpush1.bf16.msra.mxu0 0
  %540 = vmatprep.subr.bf16.mxu0 0
  %541 = vmatpush1.bf16.msra.mxu0 0
  %542 = vmatprep.subr.bf16.mxu0 0
  %543 = vmatpush1.bf16.msra.mxu0 0
  %544 = vmatprep.mubr.bf16.mxu0 0
  %545 = vmatmul.mubr.bf16.gmra.mrb[0].mxu0 %v158
  %v546 = vpop.f32.mrb[0].mxu0
  %v547 = vadd.f32 %v498, %v546
  %v548 = vpop.f32.mrb[0].mxu0
  %v549 = vpop.f32.mrb[0].mxu0
  %v550 = vadd.f32 %v501, %v549
  %v551 = vpop.f32.mrb[0].mxu0
  %552 = vmatprep.mubr.bf16.mxu0 0
  %553 = vmatmul.mubr.bf16.gmra.mrb[0].mxu0 %v163
  %v554 = vpop.f32.mrb[0].mxu0
  %v555 = vadd.f32 %v506, %v554
  %v556 = vpop.f32.mrb[0].mxu0
  %v557 = vpop.f32.mrb[0].mxu0
  %v558 = vadd.f32 %v509, %v557
  %v559 = vpop.f32.mrb[0].mxu0
  %560 = vdwg.mxu0
  %v561 = vadd.f32 %v26, %v547
  %v562 = vadd.f32 %v27, %v550
  %v563 = vadd.f32 %v28, %v555
  %v564 = vadd.f32 %v29, %v558
  %565 = vst [vmem:[#allocation2] sm:$0xff] %v561
  %566 = vst [vmem:[#allocation2 + $0x8] sm:$0xff] %v562
  %567 = vst [vmem:[#allocation2 + $0x10] sm:$0xff] %v563
  %568 = vst [vmem:[#allocation2 + $0x18] sm:$0xff] %v564
  // Predicated region
  $region22: #{_lambda_.20} parent=0 // pred_check
    %p569 = pneg %p18
  $region23: #{_lambda_.20} parent=0 // pred_check_branch
    %571 = sbr.rel (%p569) target = $region25
  $region24: #{_lambda_.20} parent=0 // pred_region
    %v572 = vld [vmem:[#allocation2] sm:$0xff]
    %v573 = vld [vmem:[#allocation2 + $0x8] sm:$0xff]
    %v574 = vld [vmem:[#allocation2 + $0x10] sm:$0xff]
    %v575 = vld [vmem:[#allocation2 + $0x18] sm:$0xff]
    %v576 = vld [vmem:[%s2] sm:$0x1]
    %v578 = vlaneseq
    %v579 = vshrl.u32 %v578, 7
    %v580 = vsub.s32 0, %v579
    %v581 = vrot.slane %v576, %v580
    %v583 = vadd.f32 %v572, %v581
    %v584 = vadd.f32 %v573, %v581
    %v585 = vadd.f32 %v574, %v581
    %v586 = vadd.f32 %v575, %v581
    %v587 = vld [vmem:[%s3] sm:$0xf]
    %v588 = vld [vmem:[%s3 + $0x4] sm:$0xf]
    %v589 = vld [vmem:[%s3 + $0x8] sm:$0xf]
    %v590 = vld [vmem:[%s3 + $0xc] sm:$0xf]
    %v591 = vunpack.c.l.bf16 %v587
    %v592 = vunpack.c.l.bf16 %v588
    %v593 = vunpack.c.l.bf16 %v589
    %v594 = vunpack.c.l.bf16 %v590
    %v595 = vadd.f32 %v583, %v591
    %v596 = vadd.f32 %v584, %v592
    %v597 = vadd.f32 %v585, %v593
    %v598 = vadd.f32 %v586, %v594
    %v599 = vmax.f32 %v595, 0.0
    %v600 = vmax.f32 %v596, 0.0
    %v601 = vmax.f32 %v597, 0.0
    %v602 = vmax.f32 %v598, 0.0
    %v603 = vpack.c.bf16 %v600, %v599
    %v604 = vpack.c.bf16 %v602, %v601
    %v607 = vunpack.c.l.b16 %v603
    %v608 = vunpack.c.h.b16 %v603
    %v609 = vunpack.c.l.b16 %v604
    %v610 = vunpack.c.h.b16 %v604
    %v611 = vpack.c.b16 %v607, %v607
    %v612 = vpack.c.b16 %v608, %v608
    %v613 = vpack.c.b16 %v609, %v609
    %v614 = vpack.c.b16 %v610, %v610
    %619 = vst [vmem:[%s4] sm:$0xf] %v611
    %620 = vst [vmem:[%s4 + $0x4] sm:$0xf] %v612
    %621 = vst [vmem:[%s4 + $0x8] sm:$0xf] %v613
    %622 = vst [vmem:[%s4 + $0xc] sm:$0xf] %v614
  $region25: #{_lambda_.20} parent=0 // pred_fallthru
    _
  // Predicated region
  $region26: #{_lambda_.20} parent=0 // pred_check
    _
  $region27: #{_lambda_.20} parent=0 // pred_check_branch
    %624 = sbr.rel (0) target = $region29
  $region28: #{_lambda_.20} parent=0 // pred_region
    _
  $region29: #{_lambda_.20} parent=0 // pred_fallthru
    _
  // Predicated region
  $region30: #{_lambda_.20} parent=0 // pred_check
    _
  $region31: #{_lambda_.20} parent=0 // pred_check_branch
    %626 = sbr.rel (0) target = $region33
  $region32: #{_lambda_.20} parent=0 // pred_region
    _
  $region33: #{_lambda_.20} parent=0 // pred_fallthru
    _

// kernel: _lambda_.23
$region0: #{_lambda_.23}
  #allocation0 [shape = 'u32[]', space=smem, size = 0x4, offset = 0x4, fixed_abs, tag = 'smem constant byte address 0x4 - core index']
  #allocation1 [shape = 'u32[144,128]{1,0:T(1,128)}', space=vmem, size = 0x12000, scoped, tag = 'internal scratch']
  #allocation2 [shape = 'f32[8,128]{1,0:T(8,128)}', space=vmem, size = 0x1000, scoped, tag = 'scratch operand']
  %s0 = inlined_call_operand.vmem [shape: bf16[8,640], index: 0, kind: input, shape index: {}]
  %s1 = inlined_call_operand.vmem [shape: bf16[640,128], index: 1, kind: input, shape index: {}]
  %s2 = inlined_call_operand.vmem [shape: f32[1,128], index: 2, kind: input, shape index: {}]
  %s3 = inlined_call_operand.vmem [shape: bf16[8,128], index: 3, kind: output, shape index: {}]
  %s4 = sld [smem:[#allocation0]]
  $region30: #{_lambda_.23} parent=0
    _
  %s6 = ssub.s32 1, %s4
  %s7 = scalar_select 0, %s6, %s4
  // Predicated region
  $region2: #{_lambda_.23} parent=0 // pred_check
    _
  $region3: #{_lambda_.23} parent=0 // pred_check_branch
    %9 = sbr.rel (0) target = $region5
  $region4: #{_lambda_.23} parent=0 // pred_region
    _
  $region5: #{_lambda_.23} parent=0 // pred_fallthru
    _
  // Predicated region
  $region6: #{_lambda_.23} parent=0 // pred_check
    _
  $region7: #{_lambda_.23} parent=0 // pred_check_branch
    %11 = sbr.rel (0) target = $region9
  $region8: #{_lambda_.23} parent=0 // pred_region
    _
  $region9: #{_lambda_.23} parent=0 // pred_fallthru
    _
  // Predicated region
  $region10: #{_lambda_.23} parent=0 // pred_check
    _
  $region11: #{_lambda_.23} parent=0 // pred_check_branch
    %13 = sbr.rel (0) target = $region13
  $region12: #{_lambda_.23} parent=0 // pred_region
    _
  $region13: #{_lambda_.23} parent=0 // pred_fallthru
    _
  %p15 = scmp.eq.s32.totalorder 0, 0
  // Predicated region
  $region14: #{_lambda_.23} parent=0 // pred_check
    %p16 = pneg %p15
  $region15: #{_lambda_.23} parent=0 // pred_check_branch
    %18 = sbr.rel (%p16) target = $region17
  $region16: #{_lambda_.23} parent=0 // pred_region
    %19 = vst [vmem:[#allocation2] sm:$0xff] 0.0
  $region17: #{_lambda_.23} parent=0 // pred_fallthru
    _
  %v20 = vld [vmem:[#allocation2] sm:$0xff]
  %v21 = vld [vmem:[%s0] sm:$0xff]
  %v22 = vld [vmem:[%s0 + $0x8] sm:$0xff]
  %v23 = vld [vmem:[%s0 + $0x10] sm:$0xf]
  %v24 = vld [vmem:[%s1] sm:$0xf]
  %v25 = vld [vmem:[%s1 + $0x4] sm:$0xf]
  %v26 = vld [vmem:[%s1 + $0x8] sm:$0xf]
  %v27 = vld [vmem:[%s1 + $0xc] sm:$0xf]
  %v28 = vld [vmem:[%s1 + $0x10] sm:$0xf]
  %v29 = vld [vmem:[%s1 + $0x14] sm:$0xf]
  %v30 = vld [vmem:[%s1 + $0x18] sm:$0xf]
  %v31 = vld [vmem:[%s1 + $0x1c] sm:$0xf]
  %v32 = vld [vmem:[%s1 + $0x20] sm:$0xf]
  %v33 = vld [vmem:[%s1 + $0x24] sm:$0xf]
  %v34 = vld [vmem:[%s1 + $0x28] sm:$0xf]
  %v35 = vld [vmem:[%s1 + $0x2c] sm:$0xf]
  %v36 = vld [vmem:[%s1 + $0x30] sm:$0xf]
  %v37 = vld [vmem:[%s1 + $0x34] sm:$0xf]
  %v38 = vld [vmem:[%s1 + $0x38] sm:$0xf]
  %v39 = vld [vmem:[%s1 + $0x3c] sm:$0xf]
  %v40 = vld [vmem:[%s1 + $0x40] sm:$0xf]
  %v41 = vld [vmem:[%s1 + $0x44] sm:$0xf]
  %v42 = vld [vmem:[%s1 + $0x48] sm:$0xf]
  %v43 = vld [vmem:[%s1 + $0x4c] sm:$0xf]
  %v44 = vld [vmem:[%s1 + $0x50] sm:$0xf]
  %v45 = vld [vmem:[%s1 + $0x54] sm:$0xf]
  %v46 = vld [vmem:[%s1 + $0x58] sm:$0xf]
  %v47 = vld [vmem:[%s1 + $0x5c] sm:$0xf]
  %v48 = vld [vmem:[%s1 + $0x60] sm:$0xf]
  %v49 = vld [vmem:[%s1 + $0x64] sm:$0xf]
  %v50 = vld [vmem:[%s1 + $0x68] sm:$0xf]
  %v51 = vld [vmem:[%s1 + $0x6c] sm:$0xf]
  %v52 = vld [vmem:[%s1 + $0x70] sm:$0xf]
  %v53 = vld [vmem:[%s1 + $0x74] sm:$0xf]
  %v54 = vld [vmem:[%s1 + $0x78] sm:$0xf]
  %v55 = vld [vmem:[%s1 + $0x7c] sm:$0xf]
  %v56 = vld [vmem:[%s1 + $0x80] sm:$0xf]
  %v57 = vld [vmem:[%s1 + $0x84] sm:$0xf]
  %v58 = vld [vmem:[%s1 + $0x88] sm:$0xf]
  %v59 = vld [vmem:[%s1 + $0x8c] sm:$0xf]
  %v60 = vld [vmem:[%s1 + $0x90] sm:$0xf]
  %v61 = vld [vmem:[%s1 + $0x94] sm:$0xf]
  %v62 = vld [vmem:[%s1 + $0x98] sm:$0xf]
  %v63 = vld [vmem:[%s1 + $0x9c] sm:$0xf]
  %v64 = vld [vmem:[%s1 + $0xa0] sm:$0xf]
  %v65 = vld [vmem:[%s1 + $0xa4] sm:$0xf]
  %v66 = vld [vmem:[%s1 + $0xa8] sm:$0xf]
  %v67 = vld [vmem:[%s1 + $0xac] sm:$0xf]
  %v68 = vld [vmem:[%s1 + $0xb0] sm:$0xf]
  %v69 = vld [vmem:[%s1 + $0xb4] sm:$0xf]
  %v70 = vld [vmem:[%s1 + $0xb8] sm:$0xf]
  %v71 = vld [vmem:[%s1 + $0xbc] sm:$0xf]
  %v72 = vld [vmem:[%s1 + $0xc0] sm:$0xf]
  %v73 = vld [vmem:[%s1 + $0xc4] sm:$0xf]
  %v74 = vld [vmem:[%s1 + $0xc8] sm:$0xf]
  %v75 = vld [vmem:[%s1 + $0xcc] sm:$0xf]
  %v76 = vld [vmem:[%s1 + $0xd0] sm:$0xf]
  %v77 = vld [vmem:[%s1 + $0xd4] sm:$0xf]
  %v78 = vld [vmem:[%s1 + $0xd8] sm:$0xf]
  %v79 = vld [vmem:[%s1 + $0xdc] sm:$0xf]
  %v80 = vld [vmem:[%s1 + $0xe0] sm:$0xf]
  %v81 = vld [vmem:[%s1 + $0xe4] sm:$0xf]
  %v82 = vld [vmem:[%s1 + $0xe8] sm:$0xf]
  %v83 = vld [vmem:[%s1 + $0xec] sm:$0xf]
  %v84 = vld [vmem:[%s1 + $0xf0] sm:$0xf]
  %v85 = vld [vmem:[%s1 + $0xf4] sm:$0xf]
  %v86 = vld [vmem:[%s1 + $0xf8] sm:$0xf]
  %v87 = vld [vmem:[%s1 + $0xfc] sm:$0xf]
  %v88 = vld [vmem:[%s1 + $0x100] sm:$0xf]
  %v89 = vld [vmem:[%s1 + $0x104] sm:$0xf]
  %v90 = vld [vmem:[%s1 + $0x108] sm:$0xf]
  %v91 = vld [vmem:[%s1 + $0x10c] sm:$0xf]
  %v92 = vld [vmem:[%s1 + $0x110] sm:$0xf]
  %v93 = vld [vmem:[%s1 + $0x114] sm:$0xf]
  %v94 = vld [vmem:[%s1 + $0x118] sm:$0xf]
  %v95 = vld [vmem:[%s1 + $0x11c] sm:$0xf]
  %v96 = vld [vmem:[%s1 + $0x120] sm:$0xf]
  %v97 = vld [vmem:[%s1 + $0x124] sm:$0xf]
  %v98 = vld [vmem:[%s1 + $0x128] sm:$0xf]
  %v99 = vld [vmem:[%s1 + $0x12c] sm:$0xf]
  %v100 = vld [vmem:[%s1 + $0x130] sm:$0xf]
  %v101 = vld [vmem:[%s1 + $0x134] sm:$0xf]
  %v102 = vld [vmem:[%s1 + $0x138] sm:$0xf]
  %v103 = vld [vmem:[%s1 + $0x13c] sm:$0xf]
  %v107 = vunpack.c.l.b16 %v21
  %v108 = vunpack.c.h.b16 %v21
  %v109 = vunpack.c.l.b16 %v22
  %v110 = vunpack.c.h.b16 %v22
  %v111 = vunpack.c.l.b16 %v23
  %v112 = vpack.c.b16 %v107, %v107
  %v113 = vpack.c.b16 %v108, %v108
  %v114 = vpack.c.b16 %v109, %v109
  %v115 = vpack.c.b16 %v110, %v110
  %v116 = vpack.c.b16 %v111, %v111
  %v202 = vunpack.c.l.b16 %v24
  %v203 = vunpack.c.l.b16 %v25
  %v204 = vunpack.c.l.b16 %v26
  %v205 = vunpack.c.l.b16 %v27
  %v206 = vunpack.c.l.b16 %v28
  %v207 = vunpack.c.l.b16 %v29
  %v208 = vunpack.c.l.b16 %v30
  %v209 = vunpack.c.l.b16 %v31
  %v210 = vunpack.c.l.b16 %v32
  %v211 = vunpack.c.l.b16 %v33
  %v212 = vunpack.c.l.b16 %v34
  %v213 = vunpack.c.l.b16 %v35
  %v214 = vunpack.c.l.b16 %v36
  %v215 = vunpack.c.l.b16 %v37
  %v216 = vunpack.c.l.b16 %v38
  %v217 = vunpack.c.l.b16 %v39
  %v218 = vunpack.c.l.b16 %v40
  %v219 = vunpack.c.l.b16 %v41
  %v220 = vunpack.c.l.b16 %v42
  %v221 = vunpack.c.l.b16 %v43
  %v222 = vunpack.c.l.b16 %v44
  %v223 = vunpack.c.l.b16 %v45
  %v224 = vunpack.c.l.b16 %v46
  %v225 = vunpack.c.l.b16 %v47
  %v226 = vunpack.c.l.b16 %v48
  %v227 = vunpack.c.l.b16 %v49
  %v228 = vunpack.c.l.b16 %v50
  %v229 = vunpack.c.l.b16 %v51
  %v230 = vunpack.c.l.b16 %v52
  %v231 = vunpack.c.l.b16 %v53
  %v232 = vunpack.c.l.b16 %v54
  %v233 = vunpack.c.l.b16 %v55
  %v234 = vunpack.c.l.b16 %v56
  %v235 = vunpack.c.l.b16 %v57
  %v236 = vunpack.c.l.b16 %v58
  %v237 = vunpack.c.l.b16 %v59
  %v238 = vunpack.c.l.b16 %v60
  %v239 = vunpack.c.l.b16 %v61
  %v240 = vunpack.c.l.b16 %v62
  %v241 = vunpack.c.l.b16 %v63
  %v242 = vunpack.c.l.b16 %v64
  %v243 = vunpack.c.l.b16 %v65
  %v244 = vunpack.c.l.b16 %v66
  %v245 = vunpack.c.l.b16 %v67
  %v246 = vunpack.c.l.b16 %v68
  %v247 = vunpack.c.l.b16 %v69
  %v248 = vunpack.c.l.b16 %v70
  %v249 = vunpack.c.l.b16 %v71
  %v250 = vunpack.c.l.b16 %v72
  %v251 = vunpack.c.l.b16 %v73
  %v252 = vunpack.c.l.b16 %v74
  %v253 = vunpack.c.l.b16 %v75
  %v254 = vunpack.c.l.b16 %v76
  %v255 = vunpack.c.l.b16 %v77
  %v256 = vunpack.c.l.b16 %v78
  %v257 = vunpack.c.l.b16 %v79
  %v258 = vunpack.c.l.b16 %v80
  %v259 = vunpack.c.l.b16 %v81
  %v260 = vunpack.c.l.b16 %v82
  %v261 = vunpack.c.l.b16 %v83
  %v262 = vunpack.c.l.b16 %v84
  %v263 = vunpack.c.l.b16 %v85
  %v264 = vunpack.c.l.b16 %v86
  %v265 = vunpack.c.l.b16 %v87
  %v266 = vunpack.c.l.b16 %v88
  %v267 = vunpack.c.l.b16 %v89
  %v268 = vunpack.c.l.b16 %v90
  %v269 = vunpack.c.l.b16 %v91
  %v270 = vunpack.c.l.b16 %v92
  %v271 = vunpack.c.l.b16 %v93
  %v272 = vunpack.c.l.b16 %v94
  %v273 = vunpack.c.l.b16 %v95
  %v274 = vunpack.c.l.b16 %v96
  %v275 = vunpack.c.l.b16 %v97
  %v276 = vunpack.c.l.b16 %v98
  %v277 = vunpack.c.l.b16 %v99
  %v278 = vunpack.c.l.b16 %v100
  %v279 = vunpack.c.l.b16 %v101
  %v280 = vunpack.c.l.b16 %v102
  %v281 = vunpack.c.l.b16 %v103
  %v282 = vpack.c.b16 %v203, %v202
  %v283 = vpack.c.b16 %v205, %v204
  %v284 = vpack.c.b16 %v207, %v206
  %v285 = vpack.c.b16 %v209, %v208
  %v286 = vpack.c.b16 %v211, %v210
  %v287 = vpack.c.b16 %v213, %v212
  %v288 = vpack.c.b16 %v215, %v214
  %v289 = vpack.c.b16 %v217, %v216
  %v290 = vpack.c.b16 %v219, %v218
  %v291 = vpack.c.b16 %v221, %v220
  %v292 = vpack.c.b16 %v223, %v222
  %v293 = vpack.c.b16 %v225, %v224
  %v294 = vpack.c.b16 %v227, %v226
  %v295 = vpack.c.b16 %v229, %v228
  %v296 = vpack.c.b16 %v231, %v230
  %v297 = vpack.c.b16 %v233, %v232
  %v298 = vpack.c.b16 %v235, %v234
  %v299 = vpack.c.b16 %v237, %v236
  %v300 = vpack.c.b16 %v239, %v238
  %v301 = vpack.c.b16 %v241, %v240
  %v302 = vpack.c.b16 %v243, %v242
  %v303 = vpack.c.b16 %v245, %v244
  %v304 = vpack.c.b16 %v247, %v246
  %v305 = vpack.c.b16 %v249, %v248
  %v306 = vpack.c.b16 %v251, %v250
  %v307 = vpack.c.b16 %v253, %v252
  %v308 = vpack.c.b16 %v255, %v254
  %v309 = vpack.c.b16 %v257, %v256
  %v310 = vpack.c.b16 %v259, %v258
  %v311 = vpack.c.b16 %v261, %v260
  %v312 = vpack.c.b16 %v263, %v262
  %v313 = vpack.c.b16 %v265, %v264
  %v314 = vpack.c.b16 %v267, %v266
  %v315 = vpack.c.b16 %v269, %v268
  %v316 = vpack.c.b16 %v271, %v270
  %v317 = vpack.c.b16 %v273, %v272
  %v318 = vpack.c.b16 %v275, %v274
  %v319 = vpack.c.b16 %v277, %v276
  %v320 = vpack.c.b16 %v279, %v278
  %v321 = vpack.c.b16 %v281, %v280
  %362 = vmatprep.subr.bf16.mxu0 0
  %363 = vmatpush1.bf16.msra.mxu0 %v282
  %364 = vmatprep.subr.bf16.mxu0 0
  %365 = vmatpush1.bf16.msra.mxu0 %v283
  %366 = vmatprep.subr.bf16.mxu0 0
  %367 = vmatpush1.bf16.msra.mxu0 %v284
  %368 = vmatprep.subr.bf16.mxu0 0
  %369 = vmatpush1.bf16.msra.mxu0 %v285
  %370 = vmatprep.subr.bf16.mxu0 0
  %371 = vmatpush1.bf16.msra.mxu0 %v286
  %372 = vmatprep.subr.bf16.mxu0 0
  %373 = vmatpush1.bf16.msra.mxu0 %v287
  %374 = vmatprep.subr.bf16.mxu0 0
  %375 = vmatpush1.bf16.msra.mxu0 %v288
  %376 = vmatprep.subr.bf16.mxu0 0
  %377 = vmatpush1.bf16.msra.mxu0 %v289
  %378 = vmatprep.subr.bf16.mxu0 0
  %379 = vmatpush1.bf16.msra.mxu0 %v290
  %380 = vmatprep.subr.bf16.mxu0 0
  %381 = vmatpush1.bf16.msra.mxu0 %v291
  %382 = vmatprep.subr.bf16.mxu0 0
  %383 = vmatpush1.bf16.msra.mxu0 %v292
  %384 = vmatprep.subr.bf16.mxu0 0
  %385 = vmatpush1.bf16.msra.mxu0 %v293
  %386 = vmatprep.subr.bf16.mxu0 0
  %387 = vmatpush1.bf16.msra.mxu0 %v294
  %388 = vmatprep.subr.bf16.mxu0 0
  %389 = vmatpush1.bf16.msra.mxu0 %v295
  %390 = vmatprep.subr.bf16.mxu0 0
  %391 = vmatpush1.bf16.msra.mxu0 %v296
  %392 = vmatprep.subr.bf16.mxu0 0
  %393 = vmatpush1.bf16.msra.mxu0 %v297
  %394 = vmatprep.mubr.bf16.mxu0 %v113
  %395 = vmatmul.mubr.bf16.gmra.mrb[0].mxu0 %v112
  %v396 = vpop.f32.mrb[0].mxu0
  %v397 = vadd.f32 0.0, %v396
  %v398 = vpop.f32.mrb[0].mxu0
  %v399 = vpop.f32.mrb[0].mxu0
  %v400 = vpop.f32.mrb[0].mxu0
  %401 = vdwg.mxu0
  %402 = vmatprep.subr.bf16.mxu0 0
  %403 = vmatpush1.bf16.msra.mxu0 %v298
  %404 = vmatprep.subr.bf16.mxu0 0
  %405 = vmatpush1.bf16.msra.mxu0 %v299
  %406 = vmatprep.subr.bf16.mxu0 0
  %407 = vmatpush1.bf16.msra.mxu0 %v300
  %408 = vmatprep.subr.bf16.mxu0 0
  %409 = vmatpush1.bf16.msra.mxu0 %v301
  %410 = vmatprep.subr.bf16.mxu0 0
  %411 = vmatpush1.bf16.msra.mxu0 %v302
  %412 = vmatprep.subr.bf16.mxu0 0
  %413 = vmatpush1.bf16.msra.mxu0 %v303
  %414 = vmatprep.subr.bf16.mxu0 0
  %415 = vmatpush1.bf16.msra.mxu0 %v304
  %416 = vmatprep.subr.bf16.mxu0 0
  %417 = vmatpush1.bf16.msra.mxu0 %v305
  %418 = vmatprep.subr.bf16.mxu0 0
  %419 = vmatpush1.bf16.msra.mxu0 %v306
  %420 = vmatprep.subr.bf16.mxu0 0
  %421 = vmatpush1.bf16.msra.mxu0 %v307
  %422 = vmatprep.subr.bf16.mxu0 0
  %423 = vmatpush1.bf16.msra.mxu0 %v308
  %424 = vmatprep.subr.bf16.mxu0 0
  %425 = vmatpush1.bf16.msra.mxu0 %v309
  %426 = vmatprep.subr.bf16.mxu0 0
  %427 = vmatpush1.bf16.msra.mxu0 %v310
  %428 = vmatprep.subr.bf16.mxu0 0
  %429 = vmatpush1.bf16.msra.mxu0 %v311
  %430 = vmatprep.subr.bf16.mxu0 0
  %431 = vmatpush1.bf16.msra.mxu0 %v312
  %432 = vmatprep.subr.bf16.mxu0 0
  %433 = vmatpush1.bf16.msra.mxu0 %v313
  %434 = vmatprep.mubr.bf16.mxu0 %v115
  %435 = vmatmul.mubr.bf16.gmra.mrb[0].mxu0 %v114
  %v436 = vpop.f32.mrb[0].mxu0
  %v437 = vadd.f32 %v397, %v436
  %v438 = vpop.f32.mrb[0].mxu0
  %v439 = vpop.f32.mrb[0].mxu0
  %v440 = vpop.f32.mrb[0].mxu0
  %441 = vdwg.mxu0
  %442 = vmatprep.subr.bf16.mxu0 0
  %443 = vmatpush1.bf16.msra.mxu0 %v314
  %444 = vmatprep.subr.bf16.mxu0 0
  %445 = vmatpush1.bf16.msra.mxu0 %v315
  %446 = vmatprep.subr.bf16.mxu0 0
  %447 = vmatpush1.bf16.msra.mxu0 %v316
  %448 = vmatprep.subr.bf16.mxu0 0
  %449 = vmatpush1.bf16.msra.mxu0 %v317
  %450 = vmatprep.subr.bf16.mxu0 0
  %451 = vmatpush1.bf16.msra.mxu0 %v318
  %452 = vmatprep.subr.bf16.mxu0 0
  %453 = vmatpush1.bf16.msra.mxu0 %v319
  %454 = vmatprep.subr.bf16.mxu0 0
  %455 = vmatpush1.bf16.msra.mxu0 %v320
  %456 = vmatprep.subr.bf16.mxu0 0
  %457 = vmatpush1.bf16.msra.mxu0 %v321
  %458 = vmatprep.subr.bf16.mxu0 0
  %459 = vmatpush1.bf16.msra.mxu0 0
  %460 = vmatprep.subr.bf16.mxu0 0
  %461 = vmatpush1.bf16.msra.mxu0 0
  %462 = vmatprep.subr.bf16.mxu0 0
  %463 = vmatpush1.bf16.msra.mxu0 0
  %464 = vmatprep.subr.bf16.mxu0 0
  %465 = vmatpush1.bf16.msra.mxu0 0
  %466 = vmatprep.subr.bf16.mxu0 0
  %467 = vmatpush1.bf16.msra.mxu0 0
  %468 = vmatprep.subr.bf16.mxu0 0
  %469 = vmatpush1.bf16.msra.mxu0 0
  %470 = vmatprep.subr.bf16.mxu0 0
  %471 = vmatpush1.bf16.msra.mxu0 0
  %472 = vmatprep.subr.bf16.mxu0 0
  %473 = vmatpush1.bf16.msra.mxu0 0
  %474 = vmatprep.mubr.bf16.mxu0 0
  %475 = vmatmul.mubr.bf16.gmra.mrb[0].mxu0 %v116
  %v476 = vpop.f32.mrb[0].mxu0
  %v477 = vadd.f32 %v437, %v476
  %v478 = vpop.f32.mrb[0].mxu0
  %v479 = vpop.f32.mrb[0].mxu0
  %v480 = vpop.f32.mrb[0].mxu0
  %481 = vdwg.mxu0
  %v482 = vadd.f32 %v20, %v477
  %483 = vst [vmem:[#allocation2] sm:$0xff] %v482
  // Predicated region
  $region18: #{_lambda_.23} parent=0 // pred_check
    %p484 = pneg %p15
  $region19: #{_lambda_.23} parent=0 // pred_check_branch
    %486 = sbr.rel (%p484) target = $region21
  $region20: #{_lambda_.23} parent=0 // pred_region
    %v487 = vld [vmem:[#allocation2] sm:$0xff]
    %v488 = vld [vmem:[%s2] sm:$0x1]
    %v490 = vlaneseq
    %v491 = vshrl.u32 %v490, 7
    %v492 = vsub.s32 0, %v491
    %v493 = vrot.slane %v488, %v492
    %v495 = vadd.f32 %v487, %v493
    %v496 = vmax.f32 %v495, 0.0
    %v497 = vpack.c.bf16 %v496, %v496
    %498 = vst [vmem:[%s3] sm:$0xf] %v497
  $region21: #{_lambda_.23} parent=0 // pred_fallthru
    _
  // Predicated region
  $region22: #{_lambda_.23} parent=0 // pred_check
    _
  $region23: #{_lambda_.23} parent=0 // pred_check_branch
    %500 = sbr.rel (0) target = $region25
  $region24: #{_lambda_.23} parent=0 // pred_region
    _
  $region25: #{_lambda_.23} parent=0 // pred_fallthru
    _
  // Predicated region
  $region26: #{_lambda_.23} parent=0 // pred_check
    _
  $region27: #{_lambda_.23} parent=0 // pred_check_branch
    %502 = sbr.rel (0) target = $region29
  $region28: #{_lambda_.23} parent=0 // pred_region
    _
  $region29: #{_lambda_.23} parent=0 // pred_fallthru
    _

// kernel: _lambda_.25
$region0: #{_lambda_.25}
  #allocation0 [shape = 'u32[]', space=smem, size = 0x4, offset = 0x4, fixed_abs, tag = 'smem constant byte address 0x4 - core index']
  #allocation1 [shape = 'u32[144,128]{1,0:T(1,128)}', space=vmem, size = 0x12000, scoped, tag = 'internal scratch']
  #allocation2 [shape = 'f32[8,128]{1,0:T(8,128)}', space=vmem, size = 0x1000, scoped, tag = 'scratch operand']
  %s0 = inlined_call_operand.vmem [shape: bf16[8,1280], index: 0, kind: input, shape index: {}]
  %s1 = inlined_call_operand.vmem [shape: bf16[1280,128], index: 1, kind: input, shape index: {}]
  %s2 = inlined_call_operand.vmem [shape: f32[1,128], index: 2, kind: input, shape index: {}]
  %s3 = inlined_call_operand.vmem [shape: bf16[8,128], index: 3, kind: input, shape index: {}]
  %s4 = inlined_call_operand.vmem [shape: bf16[8,128], index: 4, kind: output, shape index: {}]
  %s5 = sld [smem:[#allocation0]]
  $region57: #{_lambda_.25} parent=0
    _
  %s7 = ssub.s32 1, %s5
  %s8 = scalar_select 0, %s7, %s5
  loop: start=0, step=1, limit=4
  $region2: #{_lambda_.25} parent=0 // loop_pre_header
    _
  $region3: #{_lambda_.25} parent=0 // loop_header
    %s10 = sphi 0, %s14
    %p11 = scmp.ge.s32.totalorder %s10, 4
    %s17 = sphi 0, %s29
    %s18 = sphi 0, %s25
    %s19 = sphi 0, %s17
    %s20 = sphi 0, %s18
    %s21 = sphi 0, %s19
    %s22 = sphi 0, %s20
    %s34 = sphi 0, %s36
    %s37 = sphi 0, %s34
    %s38 = sphi 0, %s37
    %s54 = sphi 0, %s38
    %s60 = sphi 0, %s62
    %s63 = sphi 0, %s60
    %s64 = sphi 0, %s63
    %s80 = sphi 0, %s64
    %s84 = sphi 0, %s84
    %s86 = sphi 0, %s84
    %s87 = sphi 0, %s86
    %s101 = sphi 0, %s87
    %s107 = sphi 0, %s109
    %s110 = sphi 0, %s107
    %s111 = sphi 0, %s110
    %s127 = sphi 0, %s111
    %s133 = sphi 0, %s135
    %s136 = sphi 0, %s133
    %s137 = sphi 0, %s136
    %s153 = sphi 0, %s137
  $region4: #{_lambda_.25} parent=0 // loop_header_branch
    %13 = sbr.rel (%p11) target = $region8
  $region5: #{_lambda_.25} parent=0 // loop_body
    %s15 = ssub.s32 %s10, 1
    %s16 = ssub.s32 %s10, 2
    %s23 = sadd.s32 1, %s18
    %p24 = scmp.ge.s32.totalorder %s23, 2
    %s25 = scalar_select %p24, 0, %s23
    %s26 = sadd.s32 1, %s17
    %s27 = scalar_select %p24, %s26, %s17
    %p28 = scmp.ge.s32.totalorder %s27, 1
    %s29 = scalar_select %p28, 0, %s27
    %s30 = ssub.s32 %s17, %s29
    %s31 = ssub.s32 %s18, %s25
    %s32 = sor.u32 %s30, %s31
    %p33 = scmp.eq.s32.totalorder %s32, 0
    %s35 = sadd.s32 %s34, 1
    %s36 = scalar_select %p33, %s34, %s35
    %p39 = pneg %p33
    %p40 = scmp.eq.s32.totalorder %s10, 1
    %p41 = por %p39, %p40
    %p42 = scmp.ne.s32.totalorder %s34, %s37
    %p43 = scmp.eq.s32.totalorder %s10, 0
    %p44 = por %p42, %p43
    %p45 = scmp.ne.s32.totalorder %s34, %s37
    %p46 = scmp.eq.s32.totalorder %s15, 1
    %p47 = por %p45, %p46
    %p48 = scmp.ne.s32.totalorder %s37, %s38
    %p49 = scmp.eq.s32.totalorder %s15, 0
    %p50 = por %p48, %p49
    %p51 = scmp.ne.s32.totalorder %s37, %s38
    %p52 = scmp.eq.s32.totalorder %s16, 1
    %p53 = por %p51, %p52
    %p55 = scmp.ne.s32.totalorder %s38, %s54
    %p56 = scmp.eq.s32.totalorder %s16, 0
    %p57 = por %p55, %p56
    %s58 = ssub.s32 %s18, %s25
    %p59 = scmp.eq.s32.totalorder %s58, 0
    %s61 = sadd.s32 %s60, 1
    %s62 = scalar_select %p59, %s60, %s61
    %p65 = pneg %p59
    %p66 = scmp.eq.s32.totalorder %s10, 1
    %p67 = por %p65, %p66
    %p68 = scmp.ne.s32.totalorder %s60, %s63
    %p69 = scmp.eq.s32.totalorder %s10, 0
    %p70 = por %p68, %p69
    %p71 = scmp.ne.s32.totalorder %s60, %s63
    %p72 = scmp.eq.s32.totalorder %s15, 1
    %p73 = por %p71, %p72
    %p74 = scmp.ne.s32.totalorder %s63, %s64
    %p75 = scmp.eq.s32.totalorder %s15, 0
    %p76 = por %p74, %p75
    %p77 = scmp.ne.s32.totalorder %s63, %s64
    %p78 = scmp.eq.s32.totalorder %s16, 1
    %p79 = por %p77, %p78
    %p81 = scmp.ne.s32.totalorder %s64, %s80
    %p82 = scmp.eq.s32.totalorder %s16, 0
    %p83 = por %p81, %p82
    %s85 = sadd.s32 %s84, 1
    %p88 = scmp.eq.s32.totalorder %s10, 1
    %p89 = scmp.ne.s32.totalorder %s84, %s86
    %p90 = scmp.eq.s32.totalorder %s10, 0
    %p91 = por %p89, %p90
    %p92 = scmp.ne.s32.totalorder %s84, %s86
    %p93 = scmp.eq.s32.totalorder %s15, 1
    %p94 = por %p92, %p93
    %p95 = scmp.ne.s32.totalorder %s86, %s87
    %p96 = scmp.eq.s32.totalorder %s15, 0
    %p97 = por %p95, %p96
    %p98 = scmp.ne.s32.totalorder %s86, %s87
    %p99 = scmp.eq.s32.totalorder %s16, 1
    %p100 = por %p98, %p99
    %p102 = scmp.ne.s32.totalorder %s87, %s101
    %p103 = scmp.eq.s32.totalorder %s16, 0
    %p104 = por %p102, %p103
    %s105 = ssub.s32 %s17, %s29
    %p106 = scmp.eq.s32.totalorder %s105, 0
    %s108 = sadd.s32 %s107, 1
    %s109 = scalar_select %p106, %s107, %s108
    %p112 = pneg %p106
    %p113 = scmp.eq.s32.totalorder %s10, 1
    %p114 = por %p112, %p113
    %p115 = scmp.ne.s32.totalorder %s107, %s110
    %p116 = scmp.eq.s32.totalorder %s10, 0
    %p117 = por %p115, %p116
    %p118 = scmp.ne.s32.totalorder %s107, %s110
    %p119 = scmp.eq.s32.totalorder %s15, 1
    %p120 = por %p118, %p119
    %p121 = scmp.ne.s32.totalorder %s110, %s111
    %p122 = scmp.eq.s32.totalorder %s15, 0
    %p123 = por %p121, %p122
    %p124 = scmp.ne.s32.totalorder %s110, %s111
    %p125 = scmp.eq.s32.totalorder %s16, 1
    %p126 = por %p124, %p125
    %p128 = scmp.ne.s32.totalorder %s111, %s127
    %p129 = scmp.eq.s32.totalorder %s16, 0
    %p130 = por %p128, %p129
    %s131 = ssub.s32 %s17, %s29
    %p132 = scmp.eq.s32.totalorder %s131, 0
    %s134 = sadd.s32 %s133, 1
    %s135 = scalar_select %p132, %s133, %s134
    %p138 = pneg %p132
    %p139 = scmp.eq.s32.totalorder %s10, 1
    %p140 = por %p138, %p139
    %p141 = scmp.ne.s32.totalorder %s133, %s136
    %p142 = scmp.eq.s32.totalorder %s10, 0
    %p143 = por %p141, %p142
    %p144 = scmp.ne.s32.totalorder %s133, %s136
    %p145 = scmp.eq.s32.totalorder %s15, 1
    %p146 = por %p144, %p145
    %p147 = scmp.ne.s32.totalorder %s136, %s137
    %p148 = scmp.eq.s32.totalorder %s15, 0
    %p149 = por %p147, %p148
    %p150 = scmp.ne.s32.totalorder %s136, %s137
    %p151 = scmp.eq.s32.totalorder %s16, 1
    %p152 = por %p150, %p151
    %p154 = scmp.ne.s32.totalorder %s137, %s153
    %p155 = scmp.eq.s32.totalorder %s16, 0
    %p156 = por %p154, %p155
    %p157 = scmp.le.s32.totalorder 1, %s10
    %p158 = scmp.lt.s32.totalorder %s10, 3
    %p159 = pnand %p157, %p158
    %p160 = pneg %p159
    // Predicated region
    $region9: #{_lambda_.25} parent=5 // pred_check
      _
    $region10: #{_lambda_.25} parent=5 // pred_check_branch
      %162 = sbr.rel (%p159) target = $region12
    $region11: #{_lambda_.25} parent=5 // pred_region
      %s163 = ssub.s32 %s10, 1
      // Predicated region
      $region13: #{_lambda_.25} parent=11 // pred_check
        %p164 = pneg %p97
      $region14: #{_lambda_.25} parent=11 // pred_check_branch
        %166 = sbr.rel (%p164) target = $region16
      $region15: #{_lambda_.25} parent=11 // pred_region
        _
      $region16: #{_lambda_.25} parent=11 // pred_fallthru
        _
      // Predicated region
      $region17: #{_lambda_.25} parent=11 // pred_check
        %p167 = pneg %p123
      $region18: #{_lambda_.25} parent=11 // pred_check_branch
        %169 = sbr.rel (%p167) target = $region20
      $region19: #{_lambda_.25} parent=11 // pred_region
        %p170 = scmp.lt.s32.totalorder %s19, 0
        %s171 = scalar_select %p170, %s19, 0
        %s172 = smul.addr %s171, 4
        %s173 = scalar_lea.vmem %s3, %s172
      $region20: #{_lambda_.25} parent=11 // pred_fallthru
        _
    $region12: #{_lambda_.25} parent=5 // pred_fallthru
      _
    %p174 = scmp.lt.s32.totalorder %s10, 2
    // Predicated region
    $region21: #{_lambda_.25} parent=5 // pred_check
      %p175 = pneg %p174
    $region22: #{_lambda_.25} parent=5 // pred_check_branch
      %177 = sbr.rel (%p175) target = $region24
    $region23: #{_lambda_.25} parent=5 // pred_region
      // Predicated region
      $region25: #{_lambda_.25} parent=23 // pred_check
        %p178 = pneg %p44
      $region26: #{_lambda_.25} parent=23 // pred_check_branch
        %180 = sbr.rel (%p178) target = $region28
      $region27: #{_lambda_.25} parent=23 // pred_region
        %s181 = smul.u32 5, %s18
        %p182 = scmp.lt.s32.totalorder %s17, 0
        %s183 = scalar_select %p182, %s17, 0
        %p184 = scmp.lt.s32.totalorder %s181, 9
        %s185 = scalar_select %p184, %s181, 9
        %s186 = smul.addr %s183, 10
        %s187 = sadd.s32 %s185, %s186
        %s188 = smul.addr %s187, 4
        %s189 = scalar_lea.vmem %s0, %s188
        %s190 = smul.u32 5, %s18
      $region28: #{_lambda_.25} parent=23 // pred_fallthru
        _
      // Predicated region
      $region29: #{_lambda_.25} parent=23 // pred_check
        %p191 = pneg %p70
      $region30: #{_lambda_.25} parent=23 // pred_check_branch
        %193 = sbr.rel (%p191) target = $region32
      $region31: #{_lambda_.25} parent=23 // pred_region
        %s194 = smul.u32 80, %s18
        %p195 = scmp.lt.s32.totalorder %s194, 159
        %s196 = scalar_select %p195, %s194, 159
        %s197 = smul.addr %s196, 4
        %s198 = scalar_lea.vmem %s1, %s197
        %s199 = smul.u32 80, %s18
      $region32: #{_lambda_.25} parent=23 // pred_fallthru
        _
    $region24: #{_lambda_.25} parent=5 // pred_fallthru
      _
    %p200 = scmp.le.s32.totalorder 1, %s10
    %p201 = scmp.lt.s32.totalorder %s10, 3
    %p202 = pnand %p200, %p201
    %p203 = pneg %p202
    // Predicated region
    $region33: #{_lambda_.25} parent=5 // pred_check
      _
    $region34: #{_lambda_.25} parent=5 // pred_check_branch
      %205 = sbr.rel (%p202) target = $region36
    $region35: #{_lambda_.25} parent=5 // pred_region
      %s206 = ssub.s32 %s10, 1
      %s207 = smul.u32 5, %s20
      %p208 = scmp.lt.s32.totalorder %s19, 0
      %s209 = scalar_select %p208, %s19, 0
      %p210 = scmp.lt.s32.totalorder %s207, 9
      %s211 = scalar_select %p210, %s207, 9
      %s212 = smul.addr %s209, 10
      %s213 = sadd.s32 %s211, %s212
      %s214 = smul.addr %s213, 4
      %s215 = scalar_lea.vmem %s0, %s214
      %p216 = pneg %p50
      %p217 = pneg %p47
      %s218 = smul.u32 80, %s20
      %p219 = scmp.lt.s32.totalorder %s218, 159
      %s220 = scalar_select %p219, %s218, 159
      %s221 = smul.addr %s220, 4
      %s222 = scalar_lea.vmem %s1, %s221
      %p223 = pneg %p76
      %p224 = pneg %p73
      %p225 = pneg %p97
      %p226 = pneg %p94
      %p227 = scmp.lt.s32.totalorder %s19, 0
      %s228 = scalar_select %p227, %s19, 0
      %s229 = smul.addr %s228, 4
      %s230 = scalar_lea.vmem %s3, %s229
      %p231 = pneg %p123
      %p232 = pneg %p120
      %p233 = pneg %p149
      %p234 = pneg %p146
      %p235 = scmp.lt.s32.totalorder %s19, 0
      %s236 = scalar_select %p235, %s19, 0
      %s237 = smul.addr %s236, 4
      %s238 = scalar_lea.vmem %s4, %s237
      %s239 = smul.u32 5, %s20
      %p240 = scmp.lt.s32.totalorder %s19, 0
      %s241 = scalar_select %p240, %s19, 0
      %p242 = scmp.lt.s32.totalorder %s239, 9
      %s243 = scalar_select %p242, %s239, 9
      %s244 = smul.addr %s241, 10
      %s245 = sadd.s32 %s243, %s244
      %s246 = smul.addr %s245, 4
      %s247 = scalar_lea.vmem %s0, %s246
      %s248 = smul.u32 5, %s20
      %s249 = smul.u32 80, %s20
      %p250 = scmp.lt.s32.totalorder %s249, 159
      %s251 = scalar_select %p250, %s249, 159
      %s252 = smul.addr %s251, 4
      %s253 = scalar_lea.vmem %s1, %s252
      %s254 = smul.u32 80, %s20
      %p255 = scmp.lt.s32.totalorder %s19, 0
      %s256 = scalar_select %p255, %s19, 0
      %s257 = smul.addr %s256, 4
      %s258 = scalar_lea.vmem %s3, %s257
      %p259 = scmp.lt.s32.totalorder %s19, 0
      %s260 = scalar_select %p259, %s19, 0
      %s261 = smul.addr %s260, 4
      %s262 = scalar_lea.vmem %s4, %s261
      %p264 = scmp.eq.s32.totalorder %s20, 0
      // Predicated region
      $region37: #{_lambda_.25} parent=35 // pred_check
        %p265 = pneg %p264
      $region38: #{_lambda_.25} parent=35 // pred_check_branch
        %267 = sbr.rel (%p265) target = $region40
      $region39: #{_lambda_.25} parent=35 // pred_region
        %268 = vst [vmem:[#allocation2] sm:$0xff] 0.0
      $region40: #{_lambda_.25} parent=35 // pred_fallthru
        _
      %v269 = vld [vmem:[#allocation2] sm:$0xff]
      %v270 = vld [vmem:[%s247] sm:$0xff]
      %v271 = vld [vmem:[%s247 + $0x8] sm:$0xff]
      %v272 = vld [vmem:[%s247 + $0x10] sm:$0xf]
      %v273 = vld [vmem:[%s253] sm:$0xf]
      %v274 = vld [vmem:[%s253 + $0x4] sm:$0xf]
      %v275 = vld [vmem:[%s253 + $0x8] sm:$0xf]
      %v276 = vld [vmem:[%s253 + $0xc] sm:$0xf]
      %v277 = vld [vmem:[%s253 + $0x10] sm:$0xf]
      %v278 = vld [vmem:[%s253 + $0x14] sm:$0xf]
      %v279 = vld [vmem:[%s253 + $0x18] sm:$0xf]
      %v280 = vld [vmem:[%s253 + $0x1c] sm:$0xf]
      %v281 = vld [vmem:[%s253 + $0x20] sm:$0xf]
      %v282 = vld [vmem:[%s253 + $0x24] sm:$0xf]
      %v283 = vld [vmem:[%s253 + $0x28] sm:$0xf]
      %v284 = vld [vmem:[%s253 + $0x2c] sm:$0xf]
      %v285 = vld [vmem:[%s253 + $0x30] sm:$0xf]
      %v286 = vld [vmem:[%s253 + $0x34] sm:$0xf]
      %v287 = vld [vmem:[%s253 + $0x38] sm:$0xf]
      %v288 = vld [vmem:[%s253 + $0x3c] sm:$0xf]
      %v289 = vld [vmem:[%s253 + $0x40] sm:$0xf]
      %v290 = vld [vmem:[%s253 + $0x44] sm:$0xf]
      %v291 = vld [vmem:[%s253 + $0x48] sm:$0xf]
      %v292 = vld [vmem:[%s253 + $0x4c] sm:$0xf]
      %v293 = vld [vmem:[%s253 + $0x50] sm:$0xf]
      %v294 = vld [vmem:[%s253 + $0x54] sm:$0xf]
      %v295 = vld [vmem:[%s253 + $0x58] sm:$0xf]
      %v296 = vld [vmem:[%s253 + $0x5c] sm:$0xf]
      %v297 = vld [vmem:[%s253 + $0x60] sm:$0xf]
      %v298 = vld [vmem:[%s253 + $0x64] sm:$0xf]
      %v299 = vld [vmem:[%s253 + $0x68] sm:$0xf]
      %v300 = vld [vmem:[%s253 + $0x6c] sm:$0xf]
      %v301 = vld [vmem:[%s253 + $0x70] sm:$0xf]
      %v302 = vld [vmem:[%s253 + $0x74] sm:$0xf]
      %v303 = vld [vmem:[%s253 + $0x78] sm:$0xf]
      %v304 = vld [vmem:[%s253 + $0x7c] sm:$0xf]
      %v305 = vld [vmem:[%s253 + $0x80] sm:$0xf]
      %v306 = vld [vmem:[%s253 + $0x84] sm:$0xf]
      %v307 = vld [vmem:[%s253 + $0x88] sm:$0xf]
      %v308 = vld [vmem:[%s253 + $0x8c] sm:$0xf]
      %v309 = vld [vmem:[%s253 + $0x90] sm:$0xf]
      %v310 = vld [vmem:[%s253 + $0x94] sm:$0xf]
      %v311 = vld [vmem:[%s253 + $0x98] sm:$0xf]
      %v312 = vld [vmem:[%s253 + $0x9c] sm:$0xf]
      %v313 = vld [vmem:[%s253 + $0xa0] sm:$0xf]
      %v314 = vld [vmem:[%s253 + $0xa4] sm:$0xf]
      %v315 = vld [vmem:[%s253 + $0xa8] sm:$0xf]
      %v316 = vld [vmem:[%s253 + $0xac] sm:$0xf]
      %v317 = vld [vmem:[%s253 + $0xb0] sm:$0xf]
      %v318 = vld [vmem:[%s253 + $0xb4] sm:$0xf]
      %v319 = vld [vmem:[%s253 + $0xb8] sm:$0xf]
      %v320 = vld [vmem:[%s253 + $0xbc] sm:$0xf]
      %v321 = vld [vmem:[%s253 + $0xc0] sm:$0xf]
      %v322 = vld [vmem:[%s253 + $0xc4] sm:$0xf]
      %v323 = vld [vmem:[%s253 + $0xc8] sm:$0xf]
      %v324 = vld [vmem:[%s253 + $0xcc] sm:$0xf]
      %v325 = vld [vmem:[%s253 + $0xd0] sm:$0xf]
      %v326 = vld [vmem:[%s253 + $0xd4] sm:$0xf]
      %v327 = vld [vmem:[%s253 + $0xd8] sm:$0xf]
      %v328 = vld [vmem:[%s253 + $0xdc] sm:$0xf]
      %v329 = vld [vmem:[%s253 + $0xe0] sm:$0xf]
      %v330 = vld [vmem:[%s253 + $0xe4] sm:$0xf]
      %v331 = vld [vmem:[%s253 + $0xe8] sm:$0xf]
      %v332 = vld [vmem:[%s253 + $0xec] sm:$0xf]
      %v333 = vld [vmem:[%s253 + $0xf0] sm:$0xf]
      %v334 = vld [vmem:[%s253 + $0xf4] sm:$0xf]
      %v335 = vld [vmem:[%s253 + $0xf8] sm:$0xf]
      %v336 = vld [vmem:[%s253 + $0xfc] sm:$0xf]
      %v337 = vld [vmem:[%s253 + $0x100] sm:$0xf]
      %v338 = vld [vmem:[%s253 + $0x104] sm:$0xf]
      %v339 = vld [vmem:[%s253 + $0x108] sm:$0xf]
      %v340 = vld [vmem:[%s253 + $0x10c] sm:$0xf]
      %v341 = vld [vmem:[%s253 + $0x110] sm:$0xf]
      %v342 = vld [vmem:[%s253 + $0x114] sm:$0xf]
      %v343 = vld [vmem:[%s253 + $0x118] sm:$0xf]
      %v344 = vld [vmem:[%s253 + $0x11c] sm:$0xf]
      %v345 = vld [vmem:[%s253 + $0x120] sm:$0xf]
      %v346 = vld [vmem:[%s253 + $0x124] sm:$0xf]
      %v347 = vld [vmem:[%s253 + $0x128] sm:$0xf]
      %v348 = vld [vmem:[%s253 + $0x12c] sm:$0xf]
      %v349 = vld [vmem:[%s253 + $0x130] sm:$0xf]
      %v350 = vld [vmem:[%s253 + $0x134] sm:$0xf]
      %v351 = vld [vmem:[%s253 + $0x138] sm:$0xf]
      %v352 = vld [vmem:[%s253 + $0x13c] sm:$0xf]
      %v356 = vunpack.c.l.b16 %v270
      %v357 = vunpack.c.h.b16 %v270
      %v358 = vunpack.c.l.b16 %v271
      %v359 = vunpack.c.h.b16 %v271
      %v360 = vunpack.c.l.b16 %v272
      %v361 = vpack.c.b16 %v356, %v356
      %v362 = vpack.c.b16 %v357, %v357
      %v363 = vpack.c.b16 %v358, %v358
      %v364 = vpack.c.b16 %v359, %v359
      %v365 = vpack.c.b16 %v360, %v360
      %v451 = vunpack.c.l.b16 %v273
      %v452 = vunpack.c.l.b16 %v274
      %v453 = vunpack.c.l.b16 %v275
      %v454 = vunpack.c.l.b16 %v276
      %v455 = vunpack.c.l.b16 %v277
      %v456 = vunpack.c.l.b16 %v278
      %v457 = vunpack.c.l.b16 %v279
      %v458 = vunpack.c.l.b16 %v280
      %v459 = vunpack.c.l.b16 %v281
      %v460 = vunpack.c.l.b16 %v282
      %v461 = vunpack.c.l.b16 %v283
      %v462 = vunpack.c.l.b16 %v284
      %v463 = vunpack.c.l.b16 %v285
      %v464 = vunpack.c.l.b16 %v286
      %v465 = vunpack.c.l.b16 %v287
      %v466 = vunpack.c.l.b16 %v288
      %v467 = vunpack.c.l.b16 %v289
      %v468 = vunpack.c.l.b16 %v290
      %v469 = vunpack.c.l.b16 %v291
      %v470 = vunpack.c.l.b16 %v292
      %v471 = vunpack.c.l.b16 %v293
      %v472 = vunpack.c.l.b16 %v294
      %v473 = vunpack.c.l.b16 %v295
      %v474 = vunpack.c.l.b16 %v296
      %v475 = vunpack.c.l.b16 %v297
      %v476 = vunpack.c.l.b16 %v298
      %v477 = vunpack.c.l.b16 %v299
      %v478 = vunpack.c.l.b16 %v300
      %v479 = vunpack.c.l.b16 %v301
      %v480 = vunpack.c.l.b16 %v302
      %v481 = vunpack.c.l.b16 %v303
      %v482 = vunpack.c.l.b16 %v304
      %v483 = vunpack.c.l.b16 %v305
      %v484 = vunpack.c.l.b16 %v306
      %v485 = vunpack.c.l.b16 %v307
      %v486 = vunpack.c.l.b16 %v308
      %v487 = vunpack.c.l.b16 %v309
      %v488 = vunpack.c.l.b16 %v310
      %v489 = vunpack.c.l.b16 %v311
      %v490 = vunpack.c.l.b16 %v312
      %v491 = vunpack.c.l.b16 %v313
      %v492 = vunpack.c.l.b16 %v314
      %v493 = vunpack.c.l.b16 %v315
      %v494 = vunpack.c.l.b16 %v316
      %v495 = vunpack.c.l.b16 %v317
      %v496 = vunpack.c.l.b16 %v318
      %v497 = vunpack.c.l.b16 %v319
      %v498 = vunpack.c.l.b16 %v320
      %v499 = vunpack.c.l.b16 %v321
      %v500 = vunpack.c.l.b16 %v322
      %v501 = vunpack.c.l.b16 %v323
      %v502 = vunpack.c.l.b16 %v324
      %v503 = vunpack.c.l.b16 %v325
      %v504 = vunpack.c.l.b16 %v326
      %v505 = vunpack.c.l.b16 %v327
      %v506 = vunpack.c.l.b16 %v328
      %v507 = vunpack.c.l.b16 %v329
      %v508 = vunpack.c.l.b16 %v330
      %v509 = vunpack.c.l.b16 %v331
      %v510 = vunpack.c.l.b16 %v332
      %v511 = vunpack.c.l.b16 %v333
      %v512 = vunpack.c.l.b16 %v334
      %v513 = vunpack.c.l.b16 %v335
      %v514 = vunpack.c.l.b16 %v336
      %v515 = vunpack.c.l.b16 %v337
      %v516 = vunpack.c.l.b16 %v338
      %v517 = vunpack.c.l.b16 %v339
      %v518 = vunpack.c.l.b16 %v340
      %v519 = vunpack.c.l.b16 %v341
      %v520 = vunpack.c.l.b16 %v342
      %v521 = vunpack.c.l.b16 %v343
      %v522 = vunpack.c.l.b16 %v344
      %v523 = vunpack.c.l.b16 %v345
      %v524 = vunpack.c.l.b16 %v346
      %v525 = vunpack.c.l.b16 %v347
      %v526 = vunpack.c.l.b16 %v348
      %v527 = vunpack.c.l.b16 %v349
      %v528 = vunpack.c.l.b16 %v350
      %v529 = vunpack.c.l.b16 %v351
      %v530 = vunpack.c.l.b16 %v352
      %v531 = vpack.c.b16 %v452, %v451
      %v532 = vpack.c.b16 %v454, %v453
      %v533 = vpack.c.b16 %v456, %v455
      %v534 = vpack.c.b16 %v458, %v457
      %v535 = vpack.c.b16 %v460, %v459
      %v536 = vpack.c.b16 %v462, %v461
      %v537 = vpack.c.b16 %v464, %v463
      %v538 = vpack.c.b16 %v466, %v465
      %v539 = vpack.c.b16 %v468, %v467
      %v540 = vpack.c.b16 %v470, %v469
      %v541 = vpack.c.b16 %v472, %v471
      %v542 = vpack.c.b16 %v474, %v473
      %v543 = vpack.c.b16 %v476, %v475
      %v544 = vpack.c.b16 %v478, %v477
      %v545 = vpack.c.b16 %v480, %v479
      %v546 = vpack.c.b16 %v482, %v481
      %v547 = vpack.c.b16 %v484, %v483
      %v548 = vpack.c.b16 %v486, %v485
      %v549 = vpack.c.b16 %v488, %v487
      %v550 = vpack.c.b16 %v490, %v489
      %v551 = vpack.c.b16 %v492, %v491
      %v552 = vpack.c.b16 %v494, %v493
      %v553 = vpack.c.b16 %v496, %v495
      %v554 = vpack.c.b16 %v498, %v497
      %v555 = vpack.c.b16 %v500, %v499
      %v556 = vpack.c.b16 %v502, %v501
      %v557 = vpack.c.b16 %v504, %v503
      %v558 = vpack.c.b16 %v506, %v505
      %v559 = vpack.c.b16 %v508, %v507
      %v560 = vpack.c.b16 %v510, %v509
      %v561 = vpack.c.b16 %v512, %v511
      %v562 = vpack.c.b16 %v514, %v513
      %v563 = vpack.c.b16 %v516, %v515
      %v564 = vpack.c.b16 %v518, %v517
      %v565 = vpack.c.b16 %v520, %v519
      %v566 = vpack.c.b16 %v522, %v521
      %v567 = vpack.c.b16 %v524, %v523
      %v568 = vpack.c.b16 %v526, %v525
      %v569 = vpack.c.b16 %v528, %v527
      %v570 = vpack.c.b16 %v530, %v529
      %611 = vmatprep.subr.bf16.mxu0 0
      %612 = vmatpush1.bf16.msra.mxu0 %v531
      %613 = vmatprep.subr.bf16.mxu0 0
      %614 = vmatpush1.bf16.msra.mxu0 %v532
      %615 = vmatprep.subr.bf16.mxu0 0
      %616 = vmatpush1.bf16.msra.mxu0 %v533
      %617 = vmatprep.subr.bf16.mxu0 0
      %618 = vmatpush1.bf16.msra.mxu0 %v534
      %619 = vmatprep.subr.bf16.mxu0 0
      %620 = vmatpush1.bf16.msra.mxu0 %v535
      %621 = vmatprep.subr.bf16.mxu0 0
      %622 = vmatpush1.bf16.msra.mxu0 %v536
      %623 = vmatprep.subr.bf16.mxu0 0
      %624 = vmatpush1.bf16.msra.mxu0 %v537
      %625 = vmatprep.subr.bf16.mxu0 0
      %626 = vmatpush1.bf16.msra.mxu0 %v538
      %627 = vmatprep.subr.bf16.mxu0 0
      %628 = vmatpush1.bf16.msra.mxu0 %v539
      %629 = vmatprep.subr.bf16.mxu0 0
      %630 = vmatpush1.bf16.msra.mxu0 %v540
      %631 = vmatprep.subr.bf16.mxu0 0
      %632 = vmatpush1.bf16.msra.mxu0 %v541
      %633 = vmatprep.subr.bf16.mxu0 0
      %634 = vmatpush1.bf16.msra.mxu0 %v542
      %635 = vmatprep.subr.bf16.mxu0 0
      %636 = vmatpush1.bf16.msra.mxu0 %v543
      %637 = vmatprep.subr.bf16.mxu0 0
      %638 = vmatpush1.bf16.msra.mxu0 %v544
      %639 = vmatprep.subr.bf16.mxu0 0
      %640 = vmatpush1.bf16.msra.mxu0 %v545
      %641 = vmatprep.subr.bf16.mxu0 0
      %642 = vmatpush1.bf16.msra.mxu0 %v546
      %643 = vmatprep.mubr.bf16.mxu0 %v362
      %644 = vmatmul.mubr.bf16.gmra.mrb[0].mxu0 %v361
      %v645 = vpop.f32.mrb[0].mxu0
      %v646 = vadd.f32 0.0, %v645
      %v647 = vpop.f32.mrb[0].mxu0
      %v648 = vpop.f32.mrb[0].mxu0
      %v649 = vpop.f32.mrb[0].mxu0
      %650 = vdwg.mxu0
      %651 = vmatprep.subr.bf16.mxu0 0
      %652 = vmatpush1.bf16.msra.mxu0 %v547
      %653 = vmatprep.subr.bf16.mxu0 0
      %654 = vmatpush1.bf16.msra.mxu0 %v548
      %655 = vmatprep.subr.bf16.mxu0 0
      %656 = vmatpush1.bf16.msra.mxu0 %v549
      %657 = vmatprep.subr.bf16.mxu0 0
      %658 = vmatpush1.bf16.msra.mxu0 %v550
      %659 = vmatprep.subr.bf16.mxu0 0
      %660 = vmatpush1.bf16.msra.mxu0 %v551
      %661 = vmatprep.subr.bf16.mxu0 0
      %662 = vmatpush1.bf16.msra.mxu0 %v552
      %663 = vmatprep.subr.bf16.mxu0 0
      %664 = vmatpush1.bf16.msra.mxu0 %v553
      %665 = vmatprep.subr.bf16.mxu0 0
      %666 = vmatpush1.bf16.msra.mxu0 %v554
      %667 = vmatprep.subr.bf16.mxu0 0
      %668 = vmatpush1.bf16.msra.mxu0 %v555
      %669 = vmatprep.subr.bf16.mxu0 0
      %670 = vmatpush1.bf16.msra.mxu0 %v556
      %671 = vmatprep.subr.bf16.mxu0 0
      %672 = vmatpush1.bf16.msra.mxu0 %v557
      %673 = vmatprep.subr.bf16.mxu0 0
      %674 = vmatpush1.bf16.msra.mxu0 %v558
      %675 = vmatprep.subr.bf16.mxu0 0
      %676 = vmatpush1.bf16.msra.mxu0 %v559
      %677 = vmatprep.subr.bf16.mxu0 0
      %678 = vmatpush1.bf16.msra.mxu0 %v560
      %679 = vmatprep.subr.bf16.mxu0 0
      %680 = vmatpush1.bf16.msra.mxu0 %v561
      %681 = vmatprep.subr.bf16.mxu0 0
      %682 = vmatpush1.bf16.msra.mxu0 %v562
      %683 = vmatprep.mubr.bf16.mxu0 %v364
      %684 = vmatmul.mubr.bf16.gmra.mrb[0].mxu0 %v363
      %v685 = vpop.f32.mrb[0].mxu0
      %v686 = vadd.f32 %v646, %v685
      %v687 = vpop.f32.mrb[0].mxu0
      %v688 = vpop.f32.mrb[0].mxu0
      %v689 = vpop.f32.mrb[0].mxu0
      %690 = vdwg.mxu0
      %691 = vmatprep.subr.bf16.mxu0 0
      %692 = vmatpush1.bf16.msra.mxu0 %v563
      %693 = vmatprep.subr.bf16.mxu0 0
      %694 = vmatpush1.bf16.msra.mxu0 %v564
      %695 = vmatprep.subr.bf16.mxu0 0
      %696 = vmatpush1.bf16.msra.mxu0 %v565
      %697 = vmatprep.subr.bf16.mxu0 0
      %698 = vmatpush1.bf16.msra.mxu0 %v566
      %699 = vmatprep.subr.bf16.mxu0 0
      %700 = vmatpush1.bf16.msra.mxu0 %v567
      %701 = vmatprep.subr.bf16.mxu0 0
      %702 = vmatpush1.bf16.msra.mxu0 %v568
      %703 = vmatprep.subr.bf16.mxu0 0
      %704 = vmatpush1.bf16.msra.mxu0 %v569
      %705 = vmatprep.subr.bf16.mxu0 0
      %706 = vmatpush1.bf16.msra.mxu0 %v570
      %707 = vmatprep.subr.bf16.mxu0 0
      %708 = vmatpush1.bf16.msra.mxu0 0
      %709 = vmatprep.subr.bf16.mxu0 0
      %710 = vmatpush1.bf16.msra.mxu0 0
      %711 = vmatprep.subr.bf16.mxu0 0
      %712 = vmatpush1.bf16.msra.mxu0 0
      %713 = vmatprep.subr.bf16.mxu0 0
      %714 = vmatpush1.bf16.msra.mxu0 0
      %715 = vmatprep.subr.bf16.mxu0 0
      %716 = vmatpush1.bf16.msra.mxu0 0
      %717 = vmatprep.subr.bf16.mxu0 0
      %718 = vmatpush1.bf16.msra.mxu0 0
      %719 = vmatprep.subr.bf16.mxu0 0
      %720 = vmatpush1.bf16.msra.mxu0 0
      %721 = vmatprep.subr.bf16.mxu0 0
      %722 = vmatpush1.bf16.msra.mxu0 0
      %723 = vmatprep.mubr.bf16.mxu0 0
      %724 = vmatmul.mubr.bf16.gmra.mrb[0].mxu0 %v365
      %v725 = vpop.f32.mrb[0].mxu0
      %v726 = vadd.f32 %v686, %v725
      %v727 = vpop.f32.mrb[0].mxu0
      %v728 = vpop.f32.mrb[0].mxu0
      %v729 = vpop.f32.mrb[0].mxu0
      %730 = vdwg.mxu0
      %v731 = vadd.f32 %v269, %v726
      %732 = vst [vmem:[#allocation2] sm:$0xff] %v731
      %p733 = scmp.eq.s32.totalorder %s20, 1
      // Predicated region
      $region41: #{_lambda_.25} parent=35 // pred_check
        %p734 = pneg %p733
      $region42: #{_lambda_.25} parent=35 // pred_check_branch
        %736 = sbr.rel (%p734) target = $region44
      $region43: #{_lambda_.25} parent=35 // pred_region
        %v737 = vld [vmem:[#allocation2] sm:$0xff]
        %v738 = vld [vmem:[%s2] sm:$0x1]
        %v740 = vlaneseq
        %v741 = vshrl.u32 %v740, 7
        %v742 = vsub.s32 0, %v741
        %v743 = vrot.slane %v738, %v742
        %v745 = vadd.f32 %v737, %v743
        %v746 = vld [vmem:[%s258] sm:$0xf]
        %v747 = vunpack.c.l.bf16 %v746
        %v748 = vadd.f32 %v745, %v747
        %v749 = vmax.f32 %v748, 0.0
        %v750 = vpack.c.bf16 %v749, %v749
        %751 = vst [vmem:[%s262] sm:$0xf] %v750
      $region44: #{_lambda_.25} parent=35 // pred_fallthru
        _
      %p752 = scmp.lt.s32.totalorder %s19, 0
      %s753 = scalar_select %p752, %s19, 0
      %s754 = smul.addr %s753, 4
      %s755 = scalar_lea.vmem %s4, %s754
      // Predicated region
      $region45: #{_lambda_.25} parent=35 // pred_check
        %p756 = pneg %p146
      $region46: #{_lambda_.25} parent=35 // pred_check_branch
        %758 = sbr.rel (%p756) target = $region48
      $region47: #{_lambda_.25} parent=35 // pred_region
        _
      $region48: #{_lambda_.25} parent=35 // pred_fallthru
        _
      // Predicated region
      $region49: #{_lambda_.25} parent=35 // pred_check
        %p759 = pneg %p146
      $region50: #{_lambda_.25} parent=35 // pred_check_branch
        %761 = sbr.rel (%p759) target = $region52
      $region51: #{_lambda_.25} parent=35 // pred_region
        %p762 = scmp.lt.s32.totalorder %s19, 0
        %s763 = scalar_select %p762, %s19, 0
        %s764 = smul.addr %s763, 4
        %s765 = scalar_lea.vmem %s4, %s764
      $region52: #{_lambda_.25} parent=35 // pred_fallthru
        _
    $region36: #{_lambda_.25} parent=5 // pred_fallthru
      _
    %p766 = scmp.le.s32.totalorder 2, %s10
    // Predicated region
    $region53: #{_lambda_.25} parent=5 // pred_check
      %p767 = pneg %p766
    $region54: #{_lambda_.25} parent=5 // pred_check_branch
      %769 = sbr.rel (%p767) target = $region56
    $region55: #{_lambda_.25} parent=5 // pred_region
      %s770 = ssub.s32 %s10, 2
    $region56: #{_lambda_.25} parent=5 // pred_fallthru
      _
  $region6: #{_lambda_.25} parent=0 // loop_footer
    %s14 = sadd.s32 1, %s10
  $region7: #{_lambda_.25} parent=0 // loop_footer_branch
    %9 = sbr.rel target = $region3
  $region8: #{_lambda_.25} parent=0 // loop_exit
    _

// kernel: _lambda_.24
$region0: #{_lambda_.24}
  #allocation0 [shape = 'u32[]', space=smem, size = 0x4, offset = 0x4, fixed_abs, tag = 'smem constant byte address 0x4 - core index']
  #allocation1 [shape = 'u32[144,128]{1,0:T(1,128)}', space=vmem, size = 0x12000, scoped, tag = 'internal scratch']
  #allocation2 [shape = 'f32[8,128]{1,0:T(8,128)}', space=vmem, size = 0x1000, scoped, tag = 'scratch operand']
  %s0 = inlined_call_operand.vmem [shape: bf16[8,128], index: 0, kind: input, shape index: {}]
  %s1 = inlined_call_operand.vmem [shape: bf16[128,128], index: 1, kind: input, shape index: {}]
  %s2 = inlined_call_operand.vmem [shape: f32[1,128], index: 2, kind: input, shape index: {}]
  %s3 = inlined_call_operand.vmem [shape: bf16[8,128], index: 3, kind: output, shape index: {}]
  %s4 = sld [smem:[#allocation0]]
  $region30: #{_lambda_.24} parent=0
    _
  %s6 = ssub.s32 1, %s4
  %s7 = scalar_select 0, %s6, %s4
  // Predicated region
  $region2: #{_lambda_.24} parent=0 // pred_check
    _
  $region3: #{_lambda_.24} parent=0 // pred_check_branch
    %9 = sbr.rel (0) target = $region5
  $region4: #{_lambda_.24} parent=0 // pred_region
    _
  $region5: #{_lambda_.24} parent=0 // pred_fallthru
    _
  // Predicated region
  $region6: #{_lambda_.24} parent=0 // pred_check
    _
  $region7: #{_lambda_.24} parent=0 // pred_check_branch
    %11 = sbr.rel (0) target = $region9
  $region8: #{_lambda_.24} parent=0 // pred_region
    _
  $region9: #{_lambda_.24} parent=0 // pred_fallthru
    _
  // Predicated region
  $region10: #{_lambda_.24} parent=0 // pred_check
    _
  $region11: #{_lambda_.24} parent=0 // pred_check_branch
    %13 = sbr.rel (0) target = $region13
  $region12: #{_lambda_.24} parent=0 // pred_region
    _
  $region13: #{_lambda_.24} parent=0 // pred_fallthru
    _
  %p15 = scmp.eq.s32.totalorder 0, 0
  // Predicated region
  $region14: #{_lambda_.24} parent=0 // pred_check
    %p16 = pneg %p15
  $region15: #{_lambda_.24} parent=0 // pred_check_branch
    %18 = sbr.rel (%p16) target = $region17
  $region16: #{_lambda_.24} parent=0 // pred_region
    %19 = vst [vmem:[#allocation2] sm:$0xff] 0.0
  $region17: #{_lambda_.24} parent=0 // pred_fallthru
    _
  %v20 = vld [vmem:[#allocation2] sm:$0xff]
  %v21 = vld [vmem:[%s0] sm:$0xf]
  %v22 = vld [vmem:[%s1] sm:$0xf]
  %v23 = vld [vmem:[%s1 + $0x4] sm:$0xf]
  %v24 = vld [vmem:[%s1 + $0x8] sm:$0xf]
  %v25 = vld [vmem:[%s1 + $0xc] sm:$0xf]
  %v26 = vld [vmem:[%s1 + $0x10] sm:$0xf]
  %v27 = vld [vmem:[%s1 + $0x14] sm:$0xf]
  %v28 = vld [vmem:[%s1 + $0x18] sm:$0xf]
  %v29 = vld [vmem:[%s1 + $0x1c] sm:$0xf]
  %v30 = vld [vmem:[%s1 + $0x20] sm:$0xf]
  %v31 = vld [vmem:[%s1 + $0x24] sm:$0xf]
  %v32 = vld [vmem:[%s1 + $0x28] sm:$0xf]
  %v33 = vld [vmem:[%s1 + $0x2c] sm:$0xf]
  %v34 = vld [vmem:[%s1 + $0x30] sm:$0xf]
  %v35 = vld [vmem:[%s1 + $0x34] sm:$0xf]
  %v36 = vld [vmem:[%s1 + $0x38] sm:$0xf]
  %v37 = vld [vmem:[%s1 + $0x3c] sm:$0xf]
  %v54 = vunpack.c.l.b16 %v22
  %v55 = vunpack.c.l.b16 %v23
  %v56 = vunpack.c.l.b16 %v24
  %v57 = vunpack.c.l.b16 %v25
  %v58 = vunpack.c.l.b16 %v26
  %v59 = vunpack.c.l.b16 %v27
  %v60 = vunpack.c.l.b16 %v28
  %v61 = vunpack.c.l.b16 %v29
  %v62 = vunpack.c.l.b16 %v30
  %v63 = vunpack.c.l.b16 %v31
  %v64 = vunpack.c.l.b16 %v32
  %v65 = vunpack.c.l.b16 %v33
  %v66 = vunpack.c.l.b16 %v34
  %v67 = vunpack.c.l.b16 %v35
  %v68 = vunpack.c.l.b16 %v36
  %v69 = vunpack.c.l.b16 %v37
  %v70 = vpack.c.b16 %v55, %v54
  %v71 = vpack.c.b16 %v57, %v56
  %v72 = vpack.c.b16 %v59, %v58
  %v73 = vpack.c.b16 %v61, %v60
  %v74 = vpack.c.b16 %v63, %v62
  %v75 = vpack.c.b16 %v65, %v64
  %v76 = vpack.c.b16 %v67, %v66
  %v77 = vpack.c.b16 %v69, %v68
  %86 = vmatprep.subr.bf16.mxu0 0
  %87 = vmatpush1.bf16.msra.mxu0 %v70
  %88 = vmatprep.subr.bf16.mxu0 0
  %89 = vmatpush1.bf16.msra.mxu0 %v71
  %90 = vmatprep.subr.bf16.mxu0 0
  %91 = vmatpush1.bf16.msra.mxu0 %v72
  %92 = vmatprep.subr.bf16.mxu0 0
  %93 = vmatpush1.bf16.msra.mxu0 %v73
  %94 = vmatprep.subr.bf16.mxu0 0
  %95 = vmatpush1.bf16.msra.mxu0 %v74
  %96 = vmatprep.subr.bf16.mxu0 0
  %97 = vmatpush1.bf16.msra.mxu0 %v75
  %98 = vmatprep.subr.bf16.mxu0 0
  %99 = vmatpush1.bf16.msra.mxu0 %v76
  %100 = vmatprep.subr.bf16.mxu0 0
  %101 = vmatpush1.bf16.msra.mxu0 %v77
  %102 = vmatprep.subr.bf16.mxu0 0
  %103 = vmatpush1.bf16.msra.mxu0 0
  %104 = vmatprep.subr.bf16.mxu0 0
  %105 = vmatpush1.bf16.msra.mxu0 0
  %106 = vmatprep.subr.bf16.mxu0 0
  %107 = vmatpush1.bf16.msra.mxu0 0
  %108 = vmatprep.subr.bf16.mxu0 0
  %109 = vmatpush1.bf16.msra.mxu0 0
  %110 = vmatprep.subr.bf16.mxu0 0
  %111 = vmatpush1.bf16.msra.mxu0 0
  %112 = vmatprep.subr.bf16.mxu0 0
  %113 = vmatpush1.bf16.msra.mxu0 0
  %114 = vmatprep.subr.bf16.mxu0 0
  %115 = vmatpush1.bf16.msra.mxu0 0
  %116 = vmatprep.subr.bf16.mxu0 0
  %117 = vmatpush1.bf16.msra.mxu0 0
  %118 = vmatprep.mubr.bf16.mxu0 0
  %119 = vmatmul.mubr.bf16.gmra.mrb[0].mxu0 %v21
  %v120 = vpop.f32.mrb[0].mxu0
  %v121 = vadd.f32 0.0, %v120
  %v122 = vpop.f32.mrb[0].mxu0
  %v123 = vpop.f32.mrb[0].mxu0
  %v124 = vpop.f32.mrb[0].mxu0
  %125 = vdwg.mxu0
  %v126 = vadd.f32 %v20, %v121
  %127 = vst [vmem:[#allocation2] sm:$0xff] %v126
  // Predicated region
  $region18: #{_lambda_.24} parent=0 // pred_check
    %p128 = pneg %p15
  $region19: #{_lambda_.24} parent=0 // pred_check_branch
    %130 = sbr.rel (%p128) target = $region21
  $region20: #{_lambda_.24} parent=0 // pred_region
    %v131 = vld [vmem:[#allocation2] sm:$0xff]
    %v132 = vld [vmem:[%s2] sm:$0x1]
    %v134 = vlaneseq
    %v135 = vshrl.u32 %v134, 7
    %v136 = vsub.s32 0, %v135
    %v137 = vrot.slane %v132, %v136
    %v139 = vadd.f32 %v131, %v137
    %v140 = vpack.c.bf16 %v139, %v139
    %141 = vst [vmem:[%s3] sm:$0xf] %v140
  $region21: #{_lambda_.24} parent=0 // pred_fallthru
    _
  // Predicated region
  $region22: #{_lambda_.24} parent=0 // pred_check
    _
  $region23: #{_lambda_.24} parent=0 // pred_check_branch
    %143 = sbr.rel (0) target = $region25
  $region24: #{_lambda_.24} parent=0 // pred_region
    _
  $region25: #{_lambda_.24} parent=0 // pred_fallthru
    _
  // Predicated region
  $region26: #{_lambda_.24} parent=0 // pred_check
    _
  $region27: #{_lambda_.24} parent=0 // pred_check_branch
    %145 = sbr.rel (0) target = $region29
  $region28: #{_lambda_.24} parent=0 // pred_region
    _
  $region29: #{_lambda_.24} parent=0 // pred_fallthru
    _

// kernel: _lambda_.26
$region0: #{_lambda_.26}
  #allocation0 [shape = 'u32[]', space=smem, size = 0x4, offset = 0x4, fixed_abs, tag = 'smem constant byte address 0x4 - core index']
  #allocation1 [shape = 'u32[144,128]{1,0:T(1,128)}', space=vmem, size = 0x12000, scoped, tag = 'internal scratch']
  #allocation2 [shape = 'f32[8,128]{1,0:T(8,128)}', space=vmem, size = 0x1000, scoped, tag = 'scratch operand']
  %s0 = inlined_call_operand.vmem [shape: bf16[8,1280], index: 0, kind: input, shape index: {}]
  %s1 = inlined_call_operand.vmem [shape: bf16[1280,128], index: 1, kind: input, shape index: {}]
  %s2 = inlined_call_operand.vmem [shape: f32[1,128], index: 2, kind: input, shape index: {}]
  %s3 = inlined_call_operand.vmem [shape: bf16[8,128], index: 3, kind: output, shape index: {}]
  %s4 = sld [smem:[#allocation0]]
  $region53: #{_lambda_.26} parent=0
    _
  %s6 = ssub.s32 1, %s4
  %s7 = scalar_select 0, %s6, %s4
  loop: start=0, step=1, limit=4
  $region2: #{_lambda_.26} parent=0 // loop_pre_header
    _
  $region3: #{_lambda_.26} parent=0 // loop_header
    %s9 = sphi 0, %s13
    %p10 = scmp.ge.s32.totalorder %s9, 4
    %s16 = sphi 0, %s28
    %s17 = sphi 0, %s24
    %s18 = sphi 0, %s16
    %s19 = sphi 0, %s17
    %s20 = sphi 0, %s18
    %s21 = sphi 0, %s19
    %s33 = sphi 0, %s35
    %s36 = sphi 0, %s33
    %s37 = sphi 0, %s36
    %s53 = sphi 0, %s37
    %s59 = sphi 0, %s61
    %s62 = sphi 0, %s59
    %s63 = sphi 0, %s62
    %s79 = sphi 0, %s63
    %s83 = sphi 0, %s83
    %s85 = sphi 0, %s83
    %s86 = sphi 0, %s85
    %s100 = sphi 0, %s86
    %s106 = sphi 0, %s108
    %s109 = sphi 0, %s106
    %s110 = sphi 0, %s109
    %s126 = sphi 0, %s110
  $region4: #{_lambda_.26} parent=0 // loop_header_branch
    %12 = sbr.rel (%p10) target = $region8
  $region5: #{_lambda_.26} parent=0 // loop_body
    %s14 = ssub.s32 %s9, 1
    %s15 = ssub.s32 %s9, 2
    %s22 = sadd.s32 1, %s17
    %p23 = scmp.ge.s32.totalorder %s22, 2
    %s24 = scalar_select %p23, 0, %s22
    %s25 = sadd.s32 1, %s16
    %s26 = scalar_select %p23, %s25, %s16
    %p27 = scmp.ge.s32.totalorder %s26, 1
    %s28 = scalar_select %p27, 0, %s26
    %s29 = ssub.s32 %s16, %s28
    %s30 = ssub.s32 %s17, %s24
    %s31 = sor.u32 %s29, %s30
    %p32 = scmp.eq.s32.totalorder %s31, 0
    %s34 = sadd.s32 %s33, 1
    %s35 = scalar_select %p32, %s33, %s34
    %p38 = pneg %p32
    %p39 = scmp.eq.s32.totalorder %s9, 1
    %p40 = por %p38, %p39
    %p41 = scmp.ne.s32.totalorder %s33, %s36
    %p42 = scmp.eq.s32.totalorder %s9, 0
    %p43 = por %p41, %p42
    %p44 = scmp.ne.s32.totalorder %s33, %s36
    %p45 = scmp.eq.s32.totalorder %s14, 1
    %p46 = por %p44, %p45
    %p47 = scmp.ne.s32.totalorder %s36, %s37
    %p48 = scmp.eq.s32.totalorder %s14, 0
    %p49 = por %p47, %p48
    %p50 = scmp.ne.s32.totalorder %s36, %s37
    %p51 = scmp.eq.s32.totalorder %s15, 1
    %p52 = por %p50, %p51
    %p54 = scmp.ne.s32.totalorder %s37, %s53
    %p55 = scmp.eq.s32.totalorder %s15, 0
    %p56 = por %p54, %p55
    %s57 = ssub.s32 %s17, %s24
    %p58 = scmp.eq.s32.totalorder %s57, 0
    %s60 = sadd.s32 %s59, 1
    %s61 = scalar_select %p58, %s59, %s60
    %p64 = pneg %p58
    %p65 = scmp.eq.s32.totalorder %s9, 1
    %p66 = por %p64, %p65
    %p67 = scmp.ne.s32.totalorder %s59, %s62
    %p68 = scmp.eq.s32.totalorder %s9, 0
    %p69 = por %p67, %p68
    %p70 = scmp.ne.s32.totalorder %s59, %s62
    %p71 = scmp.eq.s32.totalorder %s14, 1
    %p72 = por %p70, %p71
    %p73 = scmp.ne.s32.totalorder %s62, %s63
    %p74 = scmp.eq.s32.totalorder %s14, 0
    %p75 = por %p73, %p74
    %p76 = scmp.ne.s32.totalorder %s62, %s63
    %p77 = scmp.eq.s32.totalorder %s15, 1
    %p78 = por %p76, %p77
    %p80 = scmp.ne.s32.totalorder %s63, %s79
    %p81 = scmp.eq.s32.totalorder %s15, 0
    %p82 = por %p80, %p81
    %s84 = sadd.s32 %s83, 1
    %p87 = scmp.eq.s32.totalorder %s9, 1
    %p88 = scmp.ne.s32.totalorder %s83, %s85
    %p89 = scmp.eq.s32.totalorder %s9, 0
    %p90 = por %p88, %p89
    %p91 = scmp.ne.s32.totalorder %s83, %s85
    %p92 = scmp.eq.s32.totalorder %s14, 1
    %p93 = por %p91, %p92
    %p94 = scmp.ne.s32.totalorder %s85, %s86
    %p95 = scmp.eq.s32.totalorder %s14, 0
    %p96 = por %p94, %p95
    %p97 = scmp.ne.s32.totalorder %s85, %s86
    %p98 = scmp.eq.s32.totalorder %s15, 1
    %p99 = por %p97, %p98
    %p101 = scmp.ne.s32.totalorder %s86, %s100
    %p102 = scmp.eq.s32.totalorder %s15, 0
    %p103 = por %p101, %p102
    %s104 = ssub.s32 %s16, %s28
    %p105 = scmp.eq.s32.totalorder %s104, 0
    %s107 = sadd.s32 %s106, 1
    %s108 = scalar_select %p105, %s106, %s107
    %p111 = pneg %p105
    %p112 = scmp.eq.s32.totalorder %s9, 1
    %p113 = por %p111, %p112
    %p114 = scmp.ne.s32.totalorder %s106, %s109
    %p115 = scmp.eq.s32.totalorder %s9, 0
    %p116 = por %p114, %p115
    %p117 = scmp.ne.s32.totalorder %s106, %s109
    %p118 = scmp.eq.s32.totalorder %s14, 1
    %p119 = por %p117, %p118
    %p120 = scmp.ne.s32.totalorder %s109, %s110
    %p121 = scmp.eq.s32.totalorder %s14, 0
    %p122 = por %p120, %p121
    %p123 = scmp.ne.s32.totalorder %s109, %s110
    %p124 = scmp.eq.s32.totalorder %s15, 1
    %p125 = por %p123, %p124
    %p127 = scmp.ne.s32.totalorder %s110, %s126
    %p128 = scmp.eq.s32.totalorder %s15, 0
    %p129 = por %p127, %p128
    %p130 = scmp.le.s32.totalorder 1, %s9
    %p131 = scmp.lt.s32.totalorder %s9, 3
    %p132 = pnand %p130, %p131
    %p133 = pneg %p132
    // Predicated region
    $region9: #{_lambda_.26} parent=5 // pred_check
      _
    $region10: #{_lambda_.26} parent=5 // pred_check_branch
      %135 = sbr.rel (%p132) target = $region12
    $region11: #{_lambda_.26} parent=5 // pred_region
      %s136 = ssub.s32 %s9, 1
      // Predicated region
      $region13: #{_lambda_.26} parent=11 // pred_check
        %p137 = pneg %p96
      $region14: #{_lambda_.26} parent=11 // pred_check_branch
        %139 = sbr.rel (%p137) target = $region16
      $region15: #{_lambda_.26} parent=11 // pred_region
        _
      $region16: #{_lambda_.26} parent=11 // pred_fallthru
        _
    $region12: #{_lambda_.26} parent=5 // pred_fallthru
      _
    %p140 = scmp.lt.s32.totalorder %s9, 2
    // Predicated region
    $region17: #{_lambda_.26} parent=5 // pred_check
      %p141 = pneg %p140
    $region18: #{_lambda_.26} parent=5 // pred_check_branch
      %143 = sbr.rel (%p141) target = $region20
    $region19: #{_lambda_.26} parent=5 // pred_region
      // Predicated region
      $region21: #{_lambda_.26} parent=19 // pred_check
        %p144 = pneg %p43
      $region22: #{_lambda_.26} parent=19 // pred_check_branch
        %146 = sbr.rel (%p144) target = $region24
      $region23: #{_lambda_.26} parent=19 // pred_region
        %s147 = smul.u32 5, %s17
        %p148 = scmp.lt.s32.totalorder %s16, 0
        %s149 = scalar_select %p148, %s16, 0
        %p150 = scmp.lt.s32.totalorder %s147, 9
        %s151 = scalar_select %p150, %s147, 9
        %s152 = smul.addr %s149, 10
        %s153 = sadd.s32 %s151, %s152
        %s154 = smul.addr %s153, 4
        %s155 = scalar_lea.vmem %s0, %s154
        %s156 = smul.u32 5, %s17
      $region24: #{_lambda_.26} parent=19 // pred_fallthru
        _
      // Predicated region
      $region25: #{_lambda_.26} parent=19 // pred_check
        %p157 = pneg %p69
      $region26: #{_lambda_.26} parent=19 // pred_check_branch
        %159 = sbr.rel (%p157) target = $region28
      $region27: #{_lambda_.26} parent=19 // pred_region
        %s160 = smul.u32 80, %s17
        %p161 = scmp.lt.s32.totalorder %s160, 159
        %s162 = scalar_select %p161, %s160, 159
        %s163 = smul.addr %s162, 4
        %s164 = scalar_lea.vmem %s1, %s163
        %s165 = smul.u32 80, %s17
      $region28: #{_lambda_.26} parent=19 // pred_fallthru
        _
    $region20: #{_lambda_.26} parent=5 // pred_fallthru
      _
    %p166 = scmp.le.s32.totalorder 1, %s9
    %p167 = scmp.lt.s32.totalorder %s9, 3
    %p168 = pnand %p166, %p167
    %p169 = pneg %p168
    // Predicated region
    $region29: #{_lambda_.26} parent=5 // pred_check
      _
    $region30: #{_lambda_.26} parent=5 // pred_check_branch
      %171 = sbr.rel (%p168) target = $region32
    $region31: #{_lambda_.26} parent=5 // pred_region
      %s172 = ssub.s32 %s9, 1
      %s173 = smul.u32 5, %s19
      %p174 = scmp.lt.s32.totalorder %s18, 0
      %s175 = scalar_select %p174, %s18, 0
      %p176 = scmp.lt.s32.totalorder %s173, 9
      %s177 = scalar_select %p176, %s173, 9
      %s178 = smul.addr %s175, 10
      %s179 = sadd.s32 %s177, %s178
      %s180 = smul.addr %s179, 4
      %s181 = scalar_lea.vmem %s0, %s180
      %p182 = pneg %p49
      %p183 = pneg %p46
      %s184 = smul.u32 80, %s19
      %p185 = scmp.lt.s32.totalorder %s184, 159
      %s186 = scalar_select %p185, %s184, 159
      %s187 = smul.addr %s186, 4
      %s188 = scalar_lea.vmem %s1, %s187
      %p189 = pneg %p75
      %p190 = pneg %p72
      %p191 = pneg %p96
      %p192 = pneg %p93
      %p193 = pneg %p122
      %p194 = pneg %p119
      %p195 = scmp.lt.s32.totalorder %s18, 0
      %s196 = scalar_select %p195, %s18, 0
      %s197 = smul.addr %s196, 4
      %s198 = scalar_lea.vmem %s3, %s197
      %s199 = smul.u32 5, %s19
      %p200 = scmp.lt.s32.totalorder %s18, 0
      %s201 = scalar_select %p200, %s18, 0
      %p202 = scmp.lt.s32.totalorder %s199, 9
      %s203 = scalar_select %p202, %s199, 9
      %s204 = smul.addr %s201, 10
      %s205 = sadd.s32 %s203, %s204
      %s206 = smul.addr %s205, 4
      %s207 = scalar_lea.vmem %s0, %s206
      %s208 = smul.u32 5, %s19
      %s209 = smul.u32 80, %s19
      %p210 = scmp.lt.s32.totalorder %s209, 159
      %s211 = scalar_select %p210, %s209, 159
      %s212 = smul.addr %s211, 4
      %s213 = scalar_lea.vmem %s1, %s212
      %s214 = smul.u32 80, %s19
      %p215 = scmp.lt.s32.totalorder %s18, 0
      %s216 = scalar_select %p215, %s18, 0
      %s217 = smul.addr %s216, 4
      %s218 = scalar_lea.vmem %s3, %s217
      %p220 = scmp.eq.s32.totalorder %s19, 0
      // Predicated region
      $region33: #{_lambda_.26} parent=31 // pred_check
        %p221 = pneg %p220
      $region34: #{_lambda_.26} parent=31 // pred_check_branch
        %223 = sbr.rel (%p221) target = $region36
      $region35: #{_lambda_.26} parent=31 // pred_region
        %224 = vst [vmem:[#allocation2] sm:$0xff] 0.0
      $region36: #{_lambda_.26} parent=31 // pred_fallthru
        _
      %v225 = vld [vmem:[#allocation2] sm:$0xff]
      %v226 = vld [vmem:[%s207] sm:$0xff]
      %v227 = vld [vmem:[%s207 + $0x8] sm:$0xff]
      %v228 = vld [vmem:[%s207 + $0x10] sm:$0xf]
      %v229 = vld [vmem:[%s213] sm:$0xf]
      %v230 = vld [vmem:[%s213 + $0x4] sm:$0xf]
      %v231 = vld [vmem:[%s213 + $0x8] sm:$0xf]
      %v232 = vld [vmem:[%s213 + $0xc] sm:$0xf]
      %v233 = vld [vmem:[%s213 + $0x10] sm:$0xf]
      %v234 = vld [vmem:[%s213 + $0x14] sm:$0xf]
      %v235 = vld [vmem:[%s213 + $0x18] sm:$0xf]
      %v236 = vld [vmem:[%s213 + $0x1c] sm:$0xf]
      %v237 = vld [vmem:[%s213 + $0x20] sm:$0xf]
      %v238 = vld [vmem:[%s213 + $0x24] sm:$0xf]
      %v239 = vld [vmem:[%s213 + $0x28] sm:$0xf]
      %v240 = vld [vmem:[%s213 + $0x2c] sm:$0xf]
      %v241 = vld [vmem:[%s213 + $0x30] sm:$0xf]
      %v242 = vld [vmem:[%s213 + $0x34] sm:$0xf]
      %v243 = vld [vmem:[%s213 + $0x38] sm:$0xf]
      %v244 = vld [vmem:[%s213 + $0x3c] sm:$0xf]
      %v245 = vld [vmem:[%s213 + $0x40] sm:$0xf]
      %v246 = vld [vmem:[%s213 + $0x44] sm:$0xf]
      %v247 = vld [vmem:[%s213 + $0x48] sm:$0xf]
      %v248 = vld [vmem:[%s213 + $0x4c] sm:$0xf]
      %v249 = vld [vmem:[%s213 + $0x50] sm:$0xf]
      %v250 = vld [vmem:[%s213 + $0x54] sm:$0xf]
      %v251 = vld [vmem:[%s213 + $0x58] sm:$0xf]
      %v252 = vld [vmem:[%s213 + $0x5c] sm:$0xf]
      %v253 = vld [vmem:[%s213 + $0x60] sm:$0xf]
      %v254 = vld [vmem:[%s213 + $0x64] sm:$0xf]
      %v255 = vld [vmem:[%s213 + $0x68] sm:$0xf]
      %v256 = vld [vmem:[%s213 + $0x6c] sm:$0xf]
      %v257 = vld [vmem:[%s213 + $0x70] sm:$0xf]
      %v258 = vld [vmem:[%s213 + $0x74] sm:$0xf]
      %v259 = vld [vmem:[%s213 + $0x78] sm:$0xf]
      %v260 = vld [vmem:[%s213 + $0x7c] sm:$0xf]
      %v261 = vld [vmem:[%s213 + $0x80] sm:$0xf]
      %v262 = vld [vmem:[%s213 + $0x84] sm:$0xf]
      %v263 = vld [vmem:[%s213 + $0x88] sm:$0xf]
      %v264 = vld [vmem:[%s213 + $0x8c] sm:$0xf]
      %v265 = vld [vmem:[%s213 + $0x90] sm:$0xf]
      %v266 = vld [vmem:[%s213 + $0x94] sm:$0xf]
      %v267 = vld [vmem:[%s213 + $0x98] sm:$0xf]
      %v268 = vld [vmem:[%s213 + $0x9c] sm:$0xf]
      %v269 = vld [vmem:[%s213 + $0xa0] sm:$0xf]
      %v270 = vld [vmem:[%s213 + $0xa4] sm:$0xf]
      %v271 = vld [vmem:[%s213 + $0xa8] sm:$0xf]
      %v272 = vld [vmem:[%s213 + $0xac] sm:$0xf]
      %v273 = vld [vmem:[%s213 + $0xb0] sm:$0xf]
      %v274 = vld [vmem:[%s213 + $0xb4] sm:$0xf]
      %v275 = vld [vmem:[%s213 + $0xb8] sm:$0xf]
      %v276 = vld [vmem:[%s213 + $0xbc] sm:$0xf]
      %v277 = vld [vmem:[%s213 + $0xc0] sm:$0xf]
      %v278 = vld [vmem:[%s213 + $0xc4] sm:$0xf]
      %v279 = vld [vmem:[%s213 + $0xc8] sm:$0xf]
      %v280 = vld [vmem:[%s213 + $0xcc] sm:$0xf]
      %v281 = vld [vmem:[%s213 + $0xd0] sm:$0xf]
      %v282 = vld [vmem:[%s213 + $0xd4] sm:$0xf]
      %v283 = vld [vmem:[%s213 + $0xd8] sm:$0xf]
      %v284 = vld [vmem:[%s213 + $0xdc] sm:$0xf]
      %v285 = vld [vmem:[%s213 + $0xe0] sm:$0xf]
      %v286 = vld [vmem:[%s213 + $0xe4] sm:$0xf]
      %v287 = vld [vmem:[%s213 + $0xe8] sm:$0xf]
      %v288 = vld [vmem:[%s213 + $0xec] sm:$0xf]
      %v289 = vld [vmem:[%s213 + $0xf0] sm:$0xf]
      %v290 = vld [vmem:[%s213 + $0xf4] sm:$0xf]
      %v291 = vld [vmem:[%s213 + $0xf8] sm:$0xf]
      %v292 = vld [vmem:[%s213 + $0xfc] sm:$0xf]
      %v293 = vld [vmem:[%s213 + $0x100] sm:$0xf]
      %v294 = vld [vmem:[%s213 + $0x104] sm:$0xf]
      %v295 = vld [vmem:[%s213 + $0x108] sm:$0xf]
      %v296 = vld [vmem:[%s213 + $0x10c] sm:$0xf]
      %v297 = vld [vmem:[%s213 + $0x110] sm:$0xf]
      %v298 = vld [vmem:[%s213 + $0x114] sm:$0xf]
      %v299 = vld [vmem:[%s213 + $0x118] sm:$0xf]
      %v300 = vld [vmem:[%s213 + $0x11c] sm:$0xf]
      %v301 = vld [vmem:[%s213 + $0x120] sm:$0xf]
      %v302 = vld [vmem:[%s213 + $0x124] sm:$0xf]
      %v303 = vld [vmem:[%s213 + $0x128] sm:$0xf]
      %v304 = vld [vmem:[%s213 + $0x12c] sm:$0xf]
      %v305 = vld [vmem:[%s213 + $0x130] sm:$0xf]
      %v306 = vld [vmem:[%s213 + $0x134] sm:$0xf]
      %v307 = vld [vmem:[%s213 + $0x138] sm:$0xf]
      %v308 = vld [vmem:[%s213 + $0x13c] sm:$0xf]
      %v312 = vunpack.c.l.b16 %v226
      %v313 = vunpack.c.h.b16 %v226
      %v314 = vunpack.c.l.b16 %v227
      %v315 = vunpack.c.h.b16 %v227
      %v316 = vunpack.c.l.b16 %v228
      %v317 = vpack.c.b16 %v312, %v312
      %v318 = vpack.c.b16 %v313, %v313
      %v319 = vpack.c.b16 %v314, %v314
      %v320 = vpack.c.b16 %v315, %v315
      %v321 = vpack.c.b16 %v316, %v316
      %v407 = vunpack.c.l.b16 %v229
      %v408 = vunpack.c.l.b16 %v230
      %v409 = vunpack.c.l.b16 %v231
      %v410 = vunpack.c.l.b16 %v232
      %v411 = vunpack.c.l.b16 %v233
      %v412 = vunpack.c.l.b16 %v234
      %v413 = vunpack.c.l.b16 %v235
      %v414 = vunpack.c.l.b16 %v236
      %v415 = vunpack.c.l.b16 %v237
      %v416 = vunpack.c.l.b16 %v238
      %v417 = vunpack.c.l.b16 %v239
      %v418 = vunpack.c.l.b16 %v240
      %v419 = vunpack.c.l.b16 %v241
      %v420 = vunpack.c.l.b16 %v242
      %v421 = vunpack.c.l.b16 %v243
      %v422 = vunpack.c.l.b16 %v244
      %v423 = vunpack.c.l.b16 %v245
      %v424 = vunpack.c.l.b16 %v246
      %v425 = vunpack.c.l.b16 %v247
      %v426 = vunpack.c.l.b16 %v248
      %v427 = vunpack.c.l.b16 %v249
      %v428 = vunpack.c.l.b16 %v250
      %v429 = vunpack.c.l.b16 %v251
      %v430 = vunpack.c.l.b16 %v252
      %v431 = vunpack.c.l.b16 %v253
      %v432 = vunpack.c.l.b16 %v254
      %v433 = vunpack.c.l.b16 %v255
      %v434 = vunpack.c.l.b16 %v256
      %v435 = vunpack.c.l.b16 %v257
      %v436 = vunpack.c.l.b16 %v258
      %v437 = vunpack.c.l.b16 %v259
      %v438 = vunpack.c.l.b16 %v260
      %v439 = vunpack.c.l.b16 %v261
      %v440 = vunpack.c.l.b16 %v262
      %v441 = vunpack.c.l.b16 %v263
      %v442 = vunpack.c.l.b16 %v264
      %v443 = vunpack.c.l.b16 %v265
      %v444 = vunpack.c.l.b16 %v266
      %v445 = vunpack.c.l.b16 %v267
      %v446 = vunpack.c.l.b16 %v268
      %v447 = vunpack.c.l.b16 %v269
      %v448 = vunpack.c.l.b16 %v270
      %v449 = vunpack.c.l.b16 %v271
      %v450 = vunpack.c.l.b16 %v272
      %v451 = vunpack.c.l.b16 %v273
      %v452 = vunpack.c.l.b16 %v274
      %v453 = vunpack.c.l.b16 %v275
      %v454 = vunpack.c.l.b16 %v276
      %v455 = vunpack.c.l.b16 %v277
      %v456 = vunpack.c.l.b16 %v278
      %v457 = vunpack.c.l.b16 %v279
      %v458 = vunpack.c.l.b16 %v280
      %v459 = vunpack.c.l.b16 %v281
      %v460 = vunpack.c.l.b16 %v282
      %v461 = vunpack.c.l.b16 %v283
      %v462 = vunpack.c.l.b16 %v284
      %v463 = vunpack.c.l.b16 %v285
      %v464 = vunpack.c.l.b16 %v286
      %v465 = vunpack.c.l.b16 %v287
      %v466 = vunpack.c.l.b16 %v288
      %v467 = vunpack.c.l.b16 %v289
      %v468 = vunpack.c.l.b16 %v290
      %v469 = vunpack.c.l.b16 %v291
      %v470 = vunpack.c.l.b16 %v292
      %v471 = vunpack.c.l.b16 %v293
      %v472 = vunpack.c.l.b16 %v294
      %v473 = vunpack.c.l.b16 %v295
      %v474 = vunpack.c.l.b16 %v296
      %v475 = vunpack.c.l.b16 %v297
      %v476 = vunpack.c.l.b16 %v298
      %v477 = vunpack.c.l.b16 %v299
      %v478 = vunpack.c.l.b16 %v300
      %v479 = vunpack.c.l.b16 %v301
      %v480 = vunpack.c.l.b16 %v302
      %v481 = vunpack.c.l.b16 %v303
      %v482 = vunpack.c.l.b16 %v304
      %v483 = vunpack.c.l.b16 %v305
      %v484 = vunpack.c.l.b16 %v306
      %v485 = vunpack.c.l.b16 %v307
      %v486 = vunpack.c.l.b16 %v308
      %v487 = vpack.c.b16 %v408, %v407
      %v488 = vpack.c.b16 %v410, %v409
      %v489 = vpack.c.b16 %v412, %v411
      %v490 = vpack.c.b16 %v414, %v413
      %v491 = vpack.c.b16 %v416, %v415
      %v492 = vpack.c.b16 %v418, %v417
      %v493 = vpack.c.b16 %v420, %v419
      %v494 = vpack.c.b16 %v422, %v421
      %v495 = vpack.c.b16 %v424, %v423
      %v496 = vpack.c.b16 %v426, %v425
      %v497 = vpack.c.b16 %v428, %v427
      %v498 = vpack.c.b16 %v430, %v429
      %v499 = vpack.c.b16 %v432, %v431
      %v500 = vpack.c.b16 %v434, %v433
      %v501 = vpack.c.b16 %v436, %v435
      %v502 = vpack.c.b16 %v438, %v437
      %v503 = vpack.c.b16 %v440, %v439
      %v504 = vpack.c.b16 %v442, %v441
      %v505 = vpack.c.b16 %v444, %v443
      %v506 = vpack.c.b16 %v446, %v445
      %v507 = vpack.c.b16 %v448, %v447
      %v508 = vpack.c.b16 %v450, %v449
      %v509 = vpack.c.b16 %v452, %v451
      %v510 = vpack.c.b16 %v454, %v453
      %v511 = vpack.c.b16 %v456, %v455
      %v512 = vpack.c.b16 %v458, %v457
      %v513 = vpack.c.b16 %v460, %v459
      %v514 = vpack.c.b16 %v462, %v461
      %v515 = vpack.c.b16 %v464, %v463
      %v516 = vpack.c.b16 %v466, %v465
      %v517 = vpack.c.b16 %v468, %v467
      %v518 = vpack.c.b16 %v470, %v469
      %v519 = vpack.c.b16 %v472, %v471
      %v520 = vpack.c.b16 %v474, %v473
      %v521 = vpack.c.b16 %v476, %v475
      %v522 = vpack.c.b16 %v478, %v477
      %v523 = vpack.c.b16 %v480, %v479
      %v524 = vpack.c.b16 %v482, %v481
      %v525 = vpack.c.b16 %v484, %v483
      %v526 = vpack.c.b16 %v486, %v485
      %567 = vmatprep.subr.bf16.mxu0 0
      %568 = vmatpush1.bf16.msra.mxu0 %v487
      %569 = vmatprep.subr.bf16.mxu0 0
      %570 = vmatpush1.bf16.msra.mxu0 %v488
      %571 = vmatprep.subr.bf16.mxu0 0
      %572 = vmatpush1.bf16.msra.mxu0 %v489
      %573 = vmatprep.subr.bf16.mxu0 0
      %574 = vmatpush1.bf16.msra.mxu0 %v490
      %575 = vmatprep.subr.bf16.mxu0 0
      %576 = vmatpush1.bf16.msra.mxu0 %v491
      %577 = vmatprep.subr.bf16.mxu0 0
      %578 = vmatpush1.bf16.msra.mxu0 %v492
      %579 = vmatprep.subr.bf16.mxu0 0
      %580 = vmatpush1.bf16.msra.mxu0 %v493
      %581 = vmatprep.subr.bf16.mxu0 0
      %582 = vmatpush1.bf16.msra.mxu0 %v494
      %583 = vmatprep.subr.bf16.mxu0 0
      %584 = vmatpush1.bf16.msra.mxu0 %v495
      %585 = vmatprep.subr.bf16.mxu0 0
      %586 = vmatpush1.bf16.msra.mxu0 %v496
      %587 = vmatprep.subr.bf16.mxu0 0
      %588 = vmatpush1.bf16.msra.mxu0 %v497
      %589 = vmatprep.subr.bf16.mxu0 0
      %590 = vmatpush1.bf16.msra.mxu0 %v498
      %591 = vmatprep.subr.bf16.mxu0 0
      %592 = vmatpush1.bf16.msra.mxu0 %v499
      %593 = vmatprep.subr.bf16.mxu0 0
      %594 = vmatpush1.bf16.msra.mxu0 %v500
      %595 = vmatprep.subr.bf16.mxu0 0
      %596 = vmatpush1.bf16.msra.mxu0 %v501
      %597 = vmatprep.subr.bf16.mxu0 0
      %598 = vmatpush1.bf16.msra.mxu0 %v502
      %599 = vmatprep.mubr.bf16.mxu0 %v318
      %600 = vmatmul.mubr.bf16.gmra.mrb[0].mxu0 %v317
      %v601 = vpop.f32.mrb[0].mxu0
      %v602 = vadd.f32 0.0, %v601
      %v603 = vpop.f32.mrb[0].mxu0
      %v604 = vpop.f32.mrb[0].mxu0
      %v605 = vpop.f32.mrb[0].mxu0
      %606 = vdwg.mxu0
      %607 = vmatprep.subr.bf16.mxu0 0
      %608 = vmatpush1.bf16.msra.mxu0 %v503
      %609 = vmatprep.subr.bf16.mxu0 0
      %610 = vmatpush1.bf16.msra.mxu0 %v504
      %611 = vmatprep.subr.bf16.mxu0 0
      %612 = vmatpush1.bf16.msra.mxu0 %v505
      %613 = vmatprep.subr.bf16.mxu0 0
      %614 = vmatpush1.bf16.msra.mxu0 %v506
      %615 = vmatprep.subr.bf16.mxu0 0
      %616 = vmatpush1.bf16.msra.mxu0 %v507
      %617 = vmatprep.subr.bf16.mxu0 0
      %618 = vmatpush1.bf16.msra.mxu0 %v508
      %619 = vmatprep.subr.bf16.mxu0 0
      %620 = vmatpush1.bf16.msra.mxu0 %v509
      %621 = vmatprep.subr.bf16.mxu0 0
      %622 = vmatpush1.bf16.msra.mxu0 %v510
      %623 = vmatprep.subr.bf16.mxu0 0
      %624 = vmatpush1.bf16.msra.mxu0 %v511
      %625 = vmatprep.subr.bf16.mxu0 0
      %626 = vmatpush1.bf16.msra.mxu0 %v512
      %627 = vmatprep.subr.bf16.mxu0 0
      %628 = vmatpush1.bf16.msra.mxu0 %v513
      %629 = vmatprep.subr.bf16.mxu0 0
      %630 = vmatpush1.bf16.msra.mxu0 %v514
      %631 = vmatprep.subr.bf16.mxu0 0
      %632 = vmatpush1.bf16.msra.mxu0 %v515
      %633 = vmatprep.subr.bf16.mxu0 0
      %634 = vmatpush1.bf16.msra.mxu0 %v516
      %635 = vmatprep.subr.bf16.mxu0 0
      %636 = vmatpush1.bf16.msra.mxu0 %v517
      %637 = vmatprep.subr.bf16.mxu0 0
      %638 = vmatpush1.bf16.msra.mxu0 %v518
      %639 = vmatprep.mubr.bf16.mxu0 %v320
      %640 = vmatmul.mubr.bf16.gmra.mrb[0].mxu0 %v319
      %v641 = vpop.f32.mrb[0].mxu0
      %v642 = vadd.f32 %v602, %v641
      %v643 = vpop.f32.mrb[0].mxu0
      %v644 = vpop.f32.mrb[0].mxu0
      %v645 = vpop.f32.mrb[0].mxu0
      %646 = vdwg.mxu0
      %647 = vmatprep.subr.bf16.mxu0 0
      %648 = vmatpush1.bf16.msra.mxu0 %v519
      %649 = vmatprep.subr.bf16.mxu0 0
      %650 = vmatpush1.bf16.msra.mxu0 %v520
      %651 = vmatprep.subr.bf16.mxu0 0
      %652 = vmatpush1.bf16.msra.mxu0 %v521
      %653 = vmatprep.subr.bf16.mxu0 0
      %654 = vmatpush1.bf16.msra.mxu0 %v522
      %655 = vmatprep.subr.bf16.mxu0 0
      %656 = vmatpush1.bf16.msra.mxu0 %v523
      %657 = vmatprep.subr.bf16.mxu0 0
      %658 = vmatpush1.bf16.msra.mxu0 %v524
      %659 = vmatprep.subr.bf16.mxu0 0
      %660 = vmatpush1.bf16.msra.mxu0 %v525
      %661 = vmatprep.subr.bf16.mxu0 0
      %662 = vmatpush1.bf16.msra.mxu0 %v526
      %663 = vmatprep.subr.bf16.mxu0 0
      %664 = vmatpush1.bf16.msra.mxu0 0
      %665 = vmatprep.subr.bf16.mxu0 0
      %666 = vmatpush1.bf16.msra.mxu0 0
      %667 = vmatprep.subr.bf16.mxu0 0
      %668 = vmatpush1.bf16.msra.mxu0 0
      %669 = vmatprep.subr.bf16.mxu0 0
      %670 = vmatpush1.bf16.msra.mxu0 0
      %671 = vmatprep.subr.bf16.mxu0 0
      %672 = vmatpush1.bf16.msra.mxu0 0
      %673 = vmatprep.subr.bf16.mxu0 0
      %674 = vmatpush1.bf16.msra.mxu0 0
      %675 = vmatprep.subr.bf16.mxu0 0
      %676 = vmatpush1.bf16.msra.mxu0 0
      %677 = vmatprep.subr.bf16.mxu0 0
      %678 = vmatpush1.bf16.msra.mxu0 0
      %679 = vmatprep.mubr.bf16.mxu0 0
      %680 = vmatmul.mubr.bf16.gmra.mrb[0].mxu0 %v321
      %v681 = vpop.f32.mrb[0].mxu0
      %v682 = vadd.f32 %v642, %v681
      %v683 = vpop.f32.mrb[0].mxu0
      %v684 = vpop.f32.mrb[0].mxu0
      %v685 = vpop.f32.mrb[0].mxu0
      %686 = vdwg.mxu0
      %v687 = vadd.f32 %v225, %v682
      %688 = vst [vmem:[#allocation2] sm:$0xff] %v687
      %p689 = scmp.eq.s32.totalorder %s19, 1
      // Predicated region
      $region37: #{_lambda_.26} parent=31 // pred_check
        %p690 = pneg %p689
      $region38: #{_lambda_.26} parent=31 // pred_check_branch
        %692 = sbr.rel (%p690) target = $region40
      $region39: #{_lambda_.26} parent=31 // pred_region
        %v693 = vld [vmem:[#allocation2] sm:$0xff]
        %v694 = vld [vmem:[%s2] sm:$0x1]
        %v696 = vlaneseq
        %v697 = vshrl.u32 %v696, 7
        %v698 = vsub.s32 0, %v697
        %v699 = vrot.slane %v694, %v698
        %v701 = vadd.f32 %v693, %v699
        %v702 = vmax.f32 %v701, 0.0
        %v703 = vpack.c.bf16 %v702, %v702
        %704 = vst [vmem:[%s218] sm:$0xf] %v703
      $region40: #{_lambda_.26} parent=31 // pred_fallthru
        _
      %p705 = scmp.lt.s32.totalorder %s18, 0
      %s706 = scalar_select %p705, %s18, 0
      %s707 = smul.addr %s706, 4
      %s708 = scalar_lea.vmem %s3, %s707
      // Predicated region
      $region41: #{_lambda_.26} parent=31 // pred_check
        %p709 = pneg %p119
      $region42: #{_lambda_.26} parent=31 // pred_check_branch
        %711 = sbr.rel (%p709) target = $region44
      $region43: #{_lambda_.26} parent=31 // pred_region
        _
      $region44: #{_lambda_.26} parent=31 // pred_fallthru
        _
      // Predicated region
      $region45: #{_lambda_.26} parent=31 // pred_check
        %p712 = pneg %p119
      $region46: #{_lambda_.26} parent=31 // pred_check_branch
        %714 = sbr.rel (%p712) target = $region48
      $region47: #{_lambda_.26} parent=31 // pred_region
        %p715 = scmp.lt.s32.totalorder %s18, 0
        %s716 = scalar_select %p715, %s18, 0
        %s717 = smul.addr %s716, 4
        %s718 = scalar_lea.vmem %s3, %s717
      $region48: #{_lambda_.26} parent=31 // pred_fallthru
        _
    $region32: #{_lambda_.26} parent=5 // pred_fallthru
      _
    %p719 = scmp.le.s32.totalorder 2, %s9
    // Predicated region
    $region49: #{_lambda_.26} parent=5 // pred_check
      %p720 = pneg %p719
    $region50: #{_lambda_.26} parent=5 // pred_check_branch
      %722 = sbr.rel (%p720) target = $region52
    $region51: #{_lambda_.26} parent=5 // pred_region
      %s723 = ssub.s32 %s9, 2
    $region52: #{_lambda_.26} parent=5 // pred_fallthru
      _
  $region6: #{_lambda_.26} parent=0 // loop_footer
    %s13 = sadd.s32 1, %s9
  $region7: #{_lambda_.26} parent=0 // loop_footer_branch
    %8 = sbr.rel target = $region3
  $region8: #{_lambda_.26} parent=0 // loop_exit
    _

// kernel: _lambda_.28
$region0: #{_lambda_.28}
  #allocation0 [shape = 'u32[]', space=smem, size = 0x4, offset = 0x4, fixed_abs, tag = 'smem constant byte address 0x4 - core index']
  #allocation1 [shape = 'u32[144,128]{1,0:T(1,128)}', space=vmem, size = 0x12000, scoped, tag = 'internal scratch']
  #allocation2 [shape = 'f32[8,256]{1,0:T(8,128)}', space=vmem, size = 0x2000, scoped, tag = 'scratch operand']
  %s0 = inlined_call_operand.vmem [shape: bf16[8,1280], index: 0, kind: input, shape index: {}]
  %s1 = inlined_call_operand.vmem [shape: bf16[1280,256], index: 1, kind: input, shape index: {}]
  %s2 = inlined_call_operand.vmem [shape: f32[1,256], index: 2, kind: input, shape index: {}]
  %s3 = inlined_call_operand.vmem [shape: bf16[8,256], index: 3, kind: output, shape index: {}]
  %s4 = sld [smem:[#allocation0]]
  $region53: #{_lambda_.28} parent=0
    _
  %s6 = ssub.s32 1, %s4
  %s7 = scalar_select 0, %s6, %s4
  loop: start=0, step=1, limit=4
  $region2: #{_lambda_.28} parent=0 // loop_pre_header
    _
  $region3: #{_lambda_.28} parent=0 // loop_header
    %s9 = sphi 0, %s13
    %p10 = scmp.ge.s32.totalorder %s9, 4
    %s16 = sphi 0, %s28
    %s17 = sphi 0, %s24
    %s18 = sphi 0, %s16
    %s19 = sphi 0, %s17
    %s20 = sphi 0, %s18
    %s21 = sphi 0, %s19
    %s33 = sphi 0, %s35
    %s36 = sphi 0, %s33
    %s37 = sphi 0, %s36
    %s53 = sphi 0, %s37
    %s59 = sphi 0, %s61
    %s62 = sphi 0, %s59
    %s63 = sphi 0, %s62
    %s79 = sphi 0, %s63
    %s83 = sphi 0, %s83
    %s85 = sphi 0, %s83
    %s86 = sphi 0, %s85
    %s100 = sphi 0, %s86
    %s106 = sphi 0, %s108
    %s109 = sphi 0, %s106
    %s110 = sphi 0, %s109
    %s126 = sphi 0, %s110
  $region4: #{_lambda_.28} parent=0 // loop_header_branch
    %12 = sbr.rel (%p10) target = $region8
  $region5: #{_lambda_.28} parent=0 // loop_body
    %s14 = ssub.s32 %s9, 1
    %s15 = ssub.s32 %s9, 2
    %s22 = sadd.s32 1, %s17
    %p23 = scmp.ge.s32.totalorder %s22, 2
    %s24 = scalar_select %p23, 0, %s22
    %s25 = sadd.s32 1, %s16
    %s26 = scalar_select %p23, %s25, %s16
    %p27 = scmp.ge.s32.totalorder %s26, 1
    %s28 = scalar_select %p27, 0, %s26
    %s29 = ssub.s32 %s16, %s28
    %s30 = ssub.s32 %s17, %s24
    %s31 = sor.u32 %s29, %s30
    %p32 = scmp.eq.s32.totalorder %s31, 0
    %s34 = sadd.s32 %s33, 1
    %s35 = scalar_select %p32, %s33, %s34
    %p38 = pneg %p32
    %p39 = scmp.eq.s32.totalorder %s9, 1
    %p40 = por %p38, %p39
    %p41 = scmp.ne.s32.totalorder %s33, %s36
    %p42 = scmp.eq.s32.totalorder %s9, 0
    %p43 = por %p41, %p42
    %p44 = scmp.ne.s32.totalorder %s33, %s36
    %p45 = scmp.eq.s32.totalorder %s14, 1
    %p46 = por %p44, %p45
    %p47 = scmp.ne.s32.totalorder %s36, %s37
    %p48 = scmp.eq.s32.totalorder %s14, 0
    %p49 = por %p47, %p48
    %p50 = scmp.ne.s32.totalorder %s36, %s37
    %p51 = scmp.eq.s32.totalorder %s15, 1
    %p52 = por %p50, %p51
    %p54 = scmp.ne.s32.totalorder %s37, %s53
    %p55 = scmp.eq.s32.totalorder %s15, 0
    %p56 = por %p54, %p55
    %s57 = ssub.s32 %s17, %s24
    %p58 = scmp.eq.s32.totalorder %s57, 0
    %s60 = sadd.s32 %s59, 1
    %s61 = scalar_select %p58, %s59, %s60
    %p64 = pneg %p58
    %p65 = scmp.eq.s32.totalorder %s9, 1
    %p66 = por %p64, %p65
    %p67 = scmp.ne.s32.totalorder %s59, %s62
    %p68 = scmp.eq.s32.totalorder %s9, 0
    %p69 = por %p67, %p68
    %p70 = scmp.ne.s32.totalorder %s59, %s62
    %p71 = scmp.eq.s32.totalorder %s14, 1
    %p72 = por %p70, %p71
    %p73 = scmp.ne.s32.totalorder %s62, %s63
    %p74 = scmp.eq.s32.totalorder %s14, 0
    %p75 = por %p73, %p74
    %p76 = scmp.ne.s32.totalorder %s62, %s63
    %p77 = scmp.eq.s32.totalorder %s15, 1
    %p78 = por %p76, %p77
    %p80 = scmp.ne.s32.totalorder %s63, %s79
    %p81 = scmp.eq.s32.totalorder %s15, 0
    %p82 = por %p80, %p81
    %s84 = sadd.s32 %s83, 1
    %p87 = scmp.eq.s32.totalorder %s9, 1
    %p88 = scmp.ne.s32.totalorder %s83, %s85
    %p89 = scmp.eq.s32.totalorder %s9, 0
    %p90 = por %p88, %p89
    %p91 = scmp.ne.s32.totalorder %s83, %s85
    %p92 = scmp.eq.s32.totalorder %s14, 1
    %p93 = por %p91, %p92
    %p94 = scmp.ne.s32.totalorder %s85, %s86
    %p95 = scmp.eq.s32.totalorder %s14, 0
    %p96 = por %p94, %p95
    %p97 = scmp.ne.s32.totalorder %s85, %s86
    %p98 = scmp.eq.s32.totalorder %s15, 1
    %p99 = por %p97, %p98
    %p101 = scmp.ne.s32.totalorder %s86, %s100
    %p102 = scmp.eq.s32.totalorder %s15, 0
    %p103 = por %p101, %p102
    %s104 = ssub.s32 %s16, %s28
    %p105 = scmp.eq.s32.totalorder %s104, 0
    %s107 = sadd.s32 %s106, 1
    %s108 = scalar_select %p105, %s106, %s107
    %p111 = pneg %p105
    %p112 = scmp.eq.s32.totalorder %s9, 1
    %p113 = por %p111, %p112
    %p114 = scmp.ne.s32.totalorder %s106, %s109
    %p115 = scmp.eq.s32.totalorder %s9, 0
    %p116 = por %p114, %p115
    %p117 = scmp.ne.s32.totalorder %s106, %s109
    %p118 = scmp.eq.s32.totalorder %s14, 1
    %p119 = por %p117, %p118
    %p120 = scmp.ne.s32.totalorder %s109, %s110
    %p121 = scmp.eq.s32.totalorder %s14, 0
    %p122 = por %p120, %p121
    %p123 = scmp.ne.s32.totalorder %s109, %s110
    %p124 = scmp.eq.s32.totalorder %s15, 1
    %p125 = por %p123, %p124
    %p127 = scmp.ne.s32.totalorder %s110, %s126
    %p128 = scmp.eq.s32.totalorder %s15, 0
    %p129 = por %p127, %p128
    %p130 = scmp.le.s32.totalorder 1, %s9
    %p131 = scmp.lt.s32.totalorder %s9, 3
    %p132 = pnand %p130, %p131
    %p133 = pneg %p132
    // Predicated region
    $region9: #{_lambda_.28} parent=5 // pred_check
      _
    $region10: #{_lambda_.28} parent=5 // pred_check_branch
      %135 = sbr.rel (%p132) target = $region12
    $region11: #{_lambda_.28} parent=5 // pred_region
      %s136 = ssub.s32 %s9, 1
      // Predicated region
      $region13: #{_lambda_.28} parent=11 // pred_check
        %p137 = pneg %p96
      $region14: #{_lambda_.28} parent=11 // pred_check_branch
        %139 = sbr.rel (%p137) target = $region16
      $region15: #{_lambda_.28} parent=11 // pred_region
        _
      $region16: #{_lambda_.28} parent=11 // pred_fallthru
        _
    $region12: #{_lambda_.28} parent=5 // pred_fallthru
      _
    %p140 = scmp.lt.s32.totalorder %s9, 2
    // Predicated region
    $region17: #{_lambda_.28} parent=5 // pred_check
      %p141 = pneg %p140
    $region18: #{_lambda_.28} parent=5 // pred_check_branch
      %143 = sbr.rel (%p141) target = $region20
    $region19: #{_lambda_.28} parent=5 // pred_region
      // Predicated region
      $region21: #{_lambda_.28} parent=19 // pred_check
        %p144 = pneg %p43
      $region22: #{_lambda_.28} parent=19 // pred_check_branch
        %146 = sbr.rel (%p144) target = $region24
      $region23: #{_lambda_.28} parent=19 // pred_region
        %s147 = smul.u32 5, %s17
        %p148 = scmp.lt.s32.totalorder %s16, 0
        %s149 = scalar_select %p148, %s16, 0
        %p150 = scmp.lt.s32.totalorder %s147, 9
        %s151 = scalar_select %p150, %s147, 9
        %s152 = smul.addr %s149, 10
        %s153 = sadd.s32 %s151, %s152
        %s154 = smul.addr %s153, 4
        %s155 = scalar_lea.vmem %s0, %s154
        %s156 = smul.u32 5, %s17
      $region24: #{_lambda_.28} parent=19 // pred_fallthru
        _
      // Predicated region
      $region25: #{_lambda_.28} parent=19 // pred_check
        %p157 = pneg %p69
      $region26: #{_lambda_.28} parent=19 // pred_check_branch
        %159 = sbr.rel (%p157) target = $region28
      $region27: #{_lambda_.28} parent=19 // pred_region
        %s160 = smul.u32 80, %s17
        %p161 = scmp.lt.s32.totalorder %s160, 159
        %s162 = scalar_select %p161, %s160, 159
        %s163 = smul.addr %s162, 2
        %s164 = smul.addr %s163, 4
        %s165 = scalar_lea.vmem %s1, %s164
        %s166 = smul.u32 80, %s17
      $region28: #{_lambda_.28} parent=19 // pred_fallthru
        _
    $region20: #{_lambda_.28} parent=5 // pred_fallthru
      _
    %p167 = scmp.le.s32.totalorder 1, %s9
    %p168 = scmp.lt.s32.totalorder %s9, 3
    %p169 = pnand %p167, %p168
    %p170 = pneg %p169
    // Predicated region
    $region29: #{_lambda_.28} parent=5 // pred_check
      _
    $region30: #{_lambda_.28} parent=5 // pred_check_branch
      %172 = sbr.rel (%p169) target = $region32
    $region31: #{_lambda_.28} parent=5 // pred_region
      %s173 = ssub.s32 %s9, 1
      %s174 = smul.u32 5, %s19
      %p175 = scmp.lt.s32.totalorder %s18, 0
      %s176 = scalar_select %p175, %s18, 0
      %p177 = scmp.lt.s32.totalorder %s174, 9
      %s178 = scalar_select %p177, %s174, 9
      %s179 = smul.addr %s176, 10
      %s180 = sadd.s32 %s178, %s179
      %s181 = smul.addr %s180, 4
      %s182 = scalar_lea.vmem %s0, %s181
      %p183 = pneg %p49
      %p184 = pneg %p46
      %s185 = smul.u32 80, %s19
      %p186 = scmp.lt.s32.totalorder %s185, 159
      %s187 = scalar_select %p186, %s185, 159
      %s188 = smul.addr %s187, 2
      %s189 = smul.addr %s188, 4
      %s190 = scalar_lea.vmem %s1, %s189
      %p191 = pneg %p75
      %p192 = pneg %p72
      %p193 = pneg %p96
      %p194 = pneg %p93
      %p195 = pneg %p122
      %p196 = pneg %p119
      %p197 = scmp.lt.s32.totalorder %s18, 0
      %s198 = scalar_select %p197, %s18, 0
      %s199 = smul.addr %s198, 2
      %s200 = smul.addr %s199, 4
      %s201 = scalar_lea.vmem %s3, %s200
      %s202 = smul.u32 5, %s19
      %p203 = scmp.lt.s32.totalorder %s18, 0
      %s204 = scalar_select %p203, %s18, 0
      %p205 = scmp.lt.s32.totalorder %s202, 9
      %s206 = scalar_select %p205, %s202, 9
      %s207 = smul.addr %s204, 10
      %s208 = sadd.s32 %s206, %s207
      %s209 = smul.addr %s208, 4
      %s210 = scalar_lea.vmem %s0, %s209
      %s211 = smul.u32 5, %s19
      %s212 = smul.u32 80, %s19
      %p213 = scmp.lt.s32.totalorder %s212, 159
      %s214 = scalar_select %p213, %s212, 159
      %s215 = smul.addr %s214, 2
      %s216 = smul.addr %s215, 4
      %s217 = scalar_lea.vmem %s1, %s216
      %s218 = smul.u32 80, %s19
      %p219 = scmp.lt.s32.totalorder %s18, 0
      %s220 = scalar_select %p219, %s18, 0
      %s221 = smul.addr %s220, 2
      %s222 = smul.addr %s221, 4
      %s223 = scalar_lea.vmem %s3, %s222
      %p225 = scmp.eq.s32.totalorder %s19, 0
      // Predicated region
      $region33: #{_lambda_.28} parent=31 // pred_check
        %p226 = pneg %p225
      $region34: #{_lambda_.28} parent=31 // pred_check_branch
        %228 = sbr.rel (%p226) target = $region36
      $region35: #{_lambda_.28} parent=31 // pred_region
        %229 = vst [vmem:[#allocation2] sm:$0xff] 0.0
        %230 = vst [vmem:[#allocation2 + $0x8] sm:$0xff] 0.0
      $region36: #{_lambda_.28} parent=31 // pred_fallthru
        _
      %v231 = vld [vmem:[#allocation2] sm:$0xff]
      %v232 = vld [vmem:[#allocation2 + $0x8] sm:$0xff]
      %v233 = vld [vmem:[%s210] sm:$0xff]
      %v234 = vld [vmem:[%s210 + $0x8] sm:$0xff]
      %v235 = vld [vmem:[%s210 + $0x10] sm:$0xf]
      %v236 = vld [vmem:[%s217] sm:$0xff]
      %v237 = vld [vmem:[%s217 + $0x8] sm:$0xff]
      %v238 = vld [vmem:[%s217 + $0x10] sm:$0xff]
      %v239 = vld [vmem:[%s217 + $0x18] sm:$0xff]
      %v240 = vld [vmem:[%s217 + $0x20] sm:$0xff]
      %v241 = vld [vmem:[%s217 + $0x28] sm:$0xff]
      %v242 = vld [vmem:[%s217 + $0x30] sm:$0xff]
      %v243 = vld [vmem:[%s217 + $0x38] sm:$0xff]
      %v244 = vld [vmem:[%s217 + $0x40] sm:$0xff]
      %v245 = vld [vmem:[%s217 + $0x48] sm:$0xff]
      %v246 = vld [vmem:[%s217 + $0x50] sm:$0xff]
      %v247 = vld [vmem:[%s217 + $0x58] sm:$0xff]
      %v248 = vld [vmem:[%s217 + $0x60] sm:$0xff]
      %v249 = vld [vmem:[%s217 + $0x68] sm:$0xff]
      %v250 = vld [vmem:[%s217 + $0x70] sm:$0xff]
      %v251 = vld [vmem:[%s217 + $0x78] sm:$0xff]
      %v252 = vld [vmem:[%s217 + $0x80] sm:$0xff]
      %v253 = vld [vmem:[%s217 + $0x88] sm:$0xff]
      %v254 = vld [vmem:[%s217 + $0x90] sm:$0xff]
      %v255 = vld [vmem:[%s217 + $0x98] sm:$0xff]
      %v256 = vld [vmem:[%s217 + $0xa0] sm:$0xff]
      %v257 = vld [vmem:[%s217 + $0xa8] sm:$0xff]
      %v258 = vld [vmem:[%s217 + $0xb0] sm:$0xff]
      %v259 = vld [vmem:[%s217 + $0xb8] sm:$0xff]
      %v260 = vld [vmem:[%s217 + $0xc0] sm:$0xff]
      %v261 = vld [vmem:[%s217 + $0xc8] sm:$0xff]
      %v262 = vld [vmem:[%s217 + $0xd0] sm:$0xff]
      %v263 = vld [vmem:[%s217 + $0xd8] sm:$0xff]
      %v264 = vld [vmem:[%s217 + $0xe0] sm:$0xff]
      %v265 = vld [vmem:[%s217 + $0xe8] sm:$0xff]
      %v266 = vld [vmem:[%s217 + $0xf0] sm:$0xff]
      %v267 = vld [vmem:[%s217 + $0xf8] sm:$0xff]
      %v268 = vld [vmem:[%s217 + $0x100] sm:$0xff]
      %v269 = vld [vmem:[%s217 + $0x108] sm:$0xff]
      %v270 = vld [vmem:[%s217 + $0x110] sm:$0xff]
      %v271 = vld [vmem:[%s217 + $0x118] sm:$0xff]
      %v272 = vld [vmem:[%s217 + $0x120] sm:$0xff]
      %v273 = vld [vmem:[%s217 + $0x128] sm:$0xff]
      %v274 = vld [vmem:[%s217 + $0x130] sm:$0xff]
      %v275 = vld [vmem:[%s217 + $0x138] sm:$0xff]
      %v276 = vld [vmem:[%s217 + $0x140] sm:$0xff]
      %v277 = vld [vmem:[%s217 + $0x148] sm:$0xff]
      %v278 = vld [vmem:[%s217 + $0x150] sm:$0xff]
      %v279 = vld [vmem:[%s217 + $0x158] sm:$0xff]
      %v280 = vld [vmem:[%s217 + $0x160] sm:$0xff]
      %v281 = vld [vmem:[%s217 + $0x168] sm:$0xff]
      %v282 = vld [vmem:[%s217 + $0x170] sm:$0xff]
      %v283 = vld [vmem:[%s217 + $0x178] sm:$0xff]
      %v284 = vld [vmem:[%s217 + $0x180] sm:$0xff]
      %v285 = vld [vmem:[%s217 + $0x188] sm:$0xff]
      %v286 = vld [vmem:[%s217 + $0x190] sm:$0xff]
      %v287 = vld [vmem:[%s217 + $0x198] sm:$0xff]
      %v288 = vld [vmem:[%s217 + $0x1a0] sm:$0xff]
      %v289 = vld [vmem:[%s217 + $0x1a8] sm:$0xff]
      %v290 = vld [vmem:[%s217 + $0x1b0] sm:$0xff]
      %v291 = vld [vmem:[%s217 + $0x1b8] sm:$0xff]
      %v292 = vld [vmem:[%s217 + $0x1c0] sm:$0xff]
      %v293 = vld [vmem:[%s217 + $0x1c8] sm:$0xff]
      %v294 = vld [vmem:[%s217 + $0x1d0] sm:$0xff]
      %v295 = vld [vmem:[%s217 + $0x1d8] sm:$0xff]
      %v296 = vld [vmem:[%s217 + $0x1e0] sm:$0xff]
      %v297 = vld [vmem:[%s217 + $0x1e8] sm:$0xff]
      %v298 = vld [vmem:[%s217 + $0x1f0] sm:$0xff]
      %v299 = vld [vmem:[%s217 + $0x1f8] sm:$0xff]
      %v300 = vld [vmem:[%s217 + $0x200] sm:$0xff]
      %v301 = vld [vmem:[%s217 + $0x208] sm:$0xff]
      %v302 = vld [vmem:[%s217 + $0x210] sm:$0xff]
      %v303 = vld [vmem:[%s217 + $0x218] sm:$0xff]
      %v304 = vld [vmem:[%s217 + $0x220] sm:$0xff]
      %v305 = vld [vmem:[%s217 + $0x228] sm:$0xff]
      %v306 = vld [vmem:[%s217 + $0x230] sm:$0xff]
      %v307 = vld [vmem:[%s217 + $0x238] sm:$0xff]
      %v308 = vld [vmem:[%s217 + $0x240] sm:$0xff]
      %v309 = vld [vmem:[%s217 + $0x248] sm:$0xff]
      %v310 = vld [vmem:[%s217 + $0x250] sm:$0xff]
      %v311 = vld [vmem:[%s217 + $0x258] sm:$0xff]
      %v312 = vld [vmem:[%s217 + $0x260] sm:$0xff]
      %v313 = vld [vmem:[%s217 + $0x268] sm:$0xff]
      %v314 = vld [vmem:[%s217 + $0x270] sm:$0xff]
      %v315 = vld [vmem:[%s217 + $0x278] sm:$0xff]
      %v319 = vunpack.c.l.b16 %v233
      %v320 = vunpack.c.h.b16 %v233
      %v321 = vunpack.c.l.b16 %v234
      %v322 = vunpack.c.h.b16 %v234
      %v323 = vunpack.c.l.b16 %v235
      %v324 = vpack.c.b16 %v319, %v319
      %v325 = vpack.c.b16 %v320, %v320
      %v326 = vpack.c.b16 %v321, %v321
      %v327 = vpack.c.b16 %v322, %v322
      %v328 = vpack.c.b16 %v323, %v323
      %v414 = vunpack.c.l.b16 %v236
      %v415 = vunpack.c.h.b16 %v236
      %v416 = vunpack.c.l.b16 %v237
      %v417 = vunpack.c.h.b16 %v237
      %v418 = vunpack.c.l.b16 %v238
      %v419 = vunpack.c.h.b16 %v238
      %v420 = vunpack.c.l.b16 %v239
      %v421 = vunpack.c.h.b16 %v239
      %v422 = vunpack.c.l.b16 %v240
      %v423 = vunpack.c.h.b16 %v240
      %v424 = vunpack.c.l.b16 %v241
      %v425 = vunpack.c.h.b16 %v241
      %v426 = vunpack.c.l.b16 %v242
      %v427 = vunpack.c.h.b16 %v242
      %v428 = vunpack.c.l.b16 %v243
      %v429 = vunpack.c.h.b16 %v243
      %v430 = vunpack.c.l.b16 %v244
      %v431 = vunpack.c.h.b16 %v244
      %v432 = vunpack.c.l.b16 %v245
      %v433 = vunpack.c.h.b16 %v245
      %v434 = vunpack.c.l.b16 %v246
      %v435 = vunpack.c.h.b16 %v246
      %v436 = vunpack.c.l.b16 %v247
      %v437 = vunpack.c.h.b16 %v247
      %v438 = vunpack.c.l.b16 %v248
      %v439 = vunpack.c.h.b16 %v248
      %v440 = vunpack.c.l.b16 %v249
      %v441 = vunpack.c.h.b16 %v249
      %v442 = vunpack.c.l.b16 %v250
      %v443 = vunpack.c.h.b16 %v250
      %v444 = vunpack.c.l.b16 %v251
      %v445 = vunpack.c.h.b16 %v251
      %v446 = vunpack.c.l.b16 %v252
      %v447 = vunpack.c.h.b16 %v252
      %v448 = vunpack.c.l.b16 %v253
      %v449 = vunpack.c.h.b16 %v253
      %v450 = vunpack.c.l.b16 %v254
      %v451 = vunpack.c.h.b16 %v254
      %v452 = vunpack.c.l.b16 %v255
      %v453 = vunpack.c.h.b16 %v255
      %v454 = vunpack.c.l.b16 %v256
      %v455 = vunpack.c.h.b16 %v256
      %v456 = vunpack.c.l.b16 %v257
      %v457 = vunpack.c.h.b16 %v257
      %v458 = vunpack.c.l.b16 %v258
      %v459 = vunpack.c.h.b16 %v258
      %v460 = vunpack.c.l.b16 %v259
      %v461 = vunpack.c.h.b16 %v259
      %v462 = vunpack.c.l.b16 %v260
      %v463 = vunpack.c.h.b16 %v260
      %v464 = vunpack.c.l.b16 %v261
      %v465 = vunpack.c.h.b16 %v261
      %v466 = vunpack.c.l.b16 %v262
      %v467 = vunpack.c.h.b16 %v262
      %v468 = vunpack.c.l.b16 %v263
      %v469 = vunpack.c.h.b16 %v263
      %v470 = vunpack.c.l.b16 %v264
      %v471 = vunpack.c.h.b16 %v264
      %v472 = vunpack.c.l.b16 %v265
      %v473 = vunpack.c.h.b16 %v265
      %v474 = vunpack.c.l.b16 %v266
      %v475 = vunpack.c.h.b16 %v266
      %v476 = vunpack.c.l.b16 %v267
      %v477 = vunpack.c.h.b16 %v267
      %v478 = vunpack.c.l.b16 %v268
      %v479 = vunpack.c.h.b16 %v268
      %v480 = vunpack.c.l.b16 %v269
      %v481 = vunpack.c.h.b16 %v269
      %v482 = vunpack.c.l.b16 %v270
      %v483 = vunpack.c.h.b16 %v270
      %v484 = vunpack.c.l.b16 %v271
      %v485 = vunpack.c.h.b16 %v271
      %v486 = vunpack.c.l.b16 %v272
      %v487 = vunpack.c.h.b16 %v272
      %v488 = vunpack.c.l.b16 %v273
      %v489 = vunpack.c.h.b16 %v273
      %v490 = vunpack.c.l.b16 %v274
      %v491 = vunpack.c.h.b16 %v274
      %v492 = vunpack.c.l.b16 %v275
      %v493 = vunpack.c.h.b16 %v275
      %v494 = vunpack.c.l.b16 %v276
      %v495 = vunpack.c.h.b16 %v276
      %v496 = vunpack.c.l.b16 %v277
      %v497 = vunpack.c.h.b16 %v277
      %v498 = vunpack.c.l.b16 %v278
      %v499 = vunpack.c.h.b16 %v278
      %v500 = vunpack.c.l.b16 %v279
      %v501 = vunpack.c.h.b16 %v279
      %v502 = vunpack.c.l.b16 %v280
      %v503 = vunpack.c.h.b16 %v280
      %v504 = vunpack.c.l.b16 %v281
      %v505 = vunpack.c.h.b16 %v281
      %v506 = vunpack.c.l.b16 %v282
      %v507 = vunpack.c.h.b16 %v282
      %v508 = vunpack.c.l.b16 %v283
      %v509 = vunpack.c.h.b16 %v283
      %v510 = vunpack.c.l.b16 %v284
      %v511 = vunpack.c.h.b16 %v284
      %v512 = vunpack.c.l.b16 %v285
      %v513 = vunpack.c.h.b16 %v285
      %v514 = vunpack.c.l.b16 %v286
      %v515 = vunpack.c.h.b16 %v286
      %v516 = vunpack.c.l.b16 %v287
      %v517 = vunpack.c.h.b16 %v287
      %v518 = vunpack.c.l.b16 %v288
      %v519 = vunpack.c.h.b16 %v288
      %v520 = vunpack.c.l.b16 %v289
      %v521 = vunpack.c.h.b16 %v289
      %v522 = vunpack.c.l.b16 %v290
      %v523 = vunpack.c.h.b16 %v290
      %v524 = vunpack.c.l.b16 %v291
      %v525 = vunpack.c.h.b16 %v291
      %v526 = vunpack.c.l.b16 %v292
      %v527 = vunpack.c.h.b16 %v292
      %v528 = vunpack.c.l.b16 %v293
      %v529 = vunpack.c.h.b16 %v293
      %v530 = vunpack.c.l.b16 %v294
      %v531 = vunpack.c.h.b16 %v294
      %v532 = vunpack.c.l.b16 %v295
      %v533 = vunpack.c.h.b16 %v295
      %v534 = vunpack.c.l.b16 %v296
      %v535 = vunpack.c.h.b16 %v296
      %v536 = vunpack.c.l.b16 %v297
      %v537 = vunpack.c.h.b16 %v297
      %v538 = vunpack.c.l.b16 %v298
      %v539 = vunpack.c.h.b16 %v298
      %v540 = vunpack.c.l.b16 %v299
      %v541 = vunpack.c.h.b16 %v299
      %v542 = vunpack.c.l.b16 %v300
      %v543 = vunpack.c.h.b16 %v300
      %v544 = vunpack.c.l.b16 %v301
      %v545 = vunpack.c.h.b16 %v301
      %v546 = vunpack.c.l.b16 %v302
      %v547 = vunpack.c.h.b16 %v302
      %v548 = vunpack.c.l.b16 %v303
      %v549 = vunpack.c.h.b16 %v303
      %v550 = vunpack.c.l.b16 %v304
      %v551 = vunpack.c.h.b16 %v304
      %v552 = vunpack.c.l.b16 %v305
      %v553 = vunpack.c.h.b16 %v305
      %v554 = vunpack.c.l.b16 %v306
      %v555 = vunpack.c.h.b16 %v306
      %v556 = vunpack.c.l.b16 %v307
      %v557 = vunpack.c.h.b16 %v307
      %v558 = vunpack.c.l.b16 %v308
      %v559 = vunpack.c.h.b16 %v308
      %v560 = vunpack.c.l.b16 %v309
      %v561 = vunpack.c.h.b16 %v309
      %v562 = vunpack.c.l.b16 %v310
      %v563 = vunpack.c.h.b16 %v310
      %v564 = vunpack.c.l.b16 %v311
      %v565 = vunpack.c.h.b16 %v311
      %v566 = vunpack.c.l.b16 %v312
      %v567 = vunpack.c.h.b16 %v312
      %v568 = vunpack.c.l.b16 %v313
      %v569 = vunpack.c.h.b16 %v313
      %v570 = vunpack.c.l.b16 %v314
      %v571 = vunpack.c.h.b16 %v314
      %v572 = vunpack.c.l.b16 %v315
      %v573 = vunpack.c.h.b16 %v315
      %v574 = vpack.c.b16 %v416, %v414
      %v575 = vpack.c.b16 %v417, %v415
      %v576 = vpack.c.b16 %v420, %v418
      %v577 = vpack.c.b16 %v421, %v419
      %v578 = vpack.c.b16 %v424, %v422
      %v579 = vpack.c.b16 %v425, %v423
      %v580 = vpack.c.b16 %v428, %v426
      %v581 = vpack.c.b16 %v429, %v427
      %v582 = vpack.c.b16 %v432, %v430
      %v583 = vpack.c.b16 %v433, %v431
      %v584 = vpack.c.b16 %v436, %v434
      %v585 = vpack.c.b16 %v437, %v435
      %v586 = vpack.c.b16 %v440, %v438
      %v587 = vpack.c.b16 %v441, %v439
      %v588 = vpack.c.b16 %v444, %v442
      %v589 = vpack.c.b16 %v445, %v443
      %v590 = vpack.c.b16 %v448, %v446
      %v591 = vpack.c.b16 %v449, %v447
      %v592 = vpack.c.b16 %v452, %v450
      %v593 = vpack.c.b16 %v453, %v451
      %v594 = vpack.c.b16 %v456, %v454
      %v595 = vpack.c.b16 %v457, %v455
      %v596 = vpack.c.b16 %v460, %v458
      %v597 = vpack.c.b16 %v461, %v459
      %v598 = vpack.c.b16 %v464, %v462
      %v599 = vpack.c.b16 %v465, %v463
      %v600 = vpack.c.b16 %v468, %v466
      %v601 = vpack.c.b16 %v469, %v467
      %v602 = vpack.c.b16 %v472, %v470
      %v603 = vpack.c.b16 %v473, %v471
      %v604 = vpack.c.b16 %v476, %v474
      %v605 = vpack.c.b16 %v477, %v475
      %v606 = vpack.c.b16 %v480, %v478
      %v607 = vpack.c.b16 %v481, %v479
      %v608 = vpack.c.b16 %v484, %v482
      %v609 = vpack.c.b16 %v485, %v483
      %v610 = vpack.c.b16 %v488, %v486
      %v611 = vpack.c.b16 %v489, %v487
      %v612 = vpack.c.b16 %v492, %v490
      %v613 = vpack.c.b16 %v493, %v491
      %v614 = vpack.c.b16 %v496, %v494
      %v615 = vpack.c.b16 %v497, %v495
      %v616 = vpack.c.b16 %v500, %v498
      %v617 = vpack.c.b16 %v501, %v499
      %v618 = vpack.c.b16 %v504, %v502
      %v619 = vpack.c.b16 %v505, %v503
      %v620 = vpack.c.b16 %v508, %v506
      %v621 = vpack.c.b16 %v509, %v507
      %v622 = vpack.c.b16 %v512, %v510
      %v623 = vpack.c.b16 %v513, %v511
      %v624 = vpack.c.b16 %v516, %v514
      %v625 = vpack.c.b16 %v517, %v515
      %v626 = vpack.c.b16 %v520, %v518
      %v627 = vpack.c.b16 %v521, %v519
      %v628 = vpack.c.b16 %v524, %v522
      %v629 = vpack.c.b16 %v525, %v523
      %v630 = vpack.c.b16 %v528, %v526
      %v631 = vpack.c.b16 %v529, %v527
      %v632 = vpack.c.b16 %v532, %v530
      %v633 = vpack.c.b16 %v533, %v531
      %v634 = vpack.c.b16 %v536, %v534
      %v635 = vpack.c.b16 %v537, %v535
      %v636 = vpack.c.b16 %v540, %v538
      %v637 = vpack.c.b16 %v541, %v539
      %v638 = vpack.c.b16 %v544, %v542
      %v639 = vpack.c.b16 %v545, %v543
      %v640 = vpack.c.b16 %v548, %v546
      %v641 = vpack.c.b16 %v549, %v547
      %v642 = vpack.c.b16 %v552, %v550
      %v643 = vpack.c.b16 %v553, %v551
      %v644 = vpack.c.b16 %v556, %v554
      %v645 = vpack.c.b16 %v557, %v555
      %v646 = vpack.c.b16 %v560, %v558
      %v647 = vpack.c.b16 %v561, %v559
      %v648 = vpack.c.b16 %v564, %v562
      %v649 = vpack.c.b16 %v565, %v563
      %v650 = vpack.c.b16 %v568, %v566
      %v651 = vpack.c.b16 %v569, %v567
      %v652 = vpack.c.b16 %v572, %v570
      %v653 = vpack.c.b16 %v573, %v571
      %734 = vmatprep.subr.bf16.mxu0 %v575
      %735 = vmatpush1.bf16.msra.mxu0 %v574
      %736 = vmatprep.subr.bf16.mxu0 %v577
      %737 = vmatpush1.bf16.msra.mxu0 %v576
      %738 = vmatprep.subr.bf16.mxu0 %v579
      %739 = vmatpush1.bf16.msra.mxu0 %v578
      %740 = vmatprep.subr.bf16.mxu0 %v581
      %741 = vmatpush1.bf16.msra.mxu0 %v580
      %742 = vmatprep.subr.bf16.mxu0 %v583
      %743 = vmatpush1.bf16.msra.mxu0 %v582
      %744 = vmatprep.subr.bf16.mxu0 %v585
      %745 = vmatpush1.bf16.msra.mxu0 %v584
      %746 = vmatprep.subr.bf16.mxu0 %v587
      %747 = vmatpush1.bf16.msra.mxu0 %v586
      %748 = vmatprep.subr.bf16.mxu0 %v589
      %749 = vmatpush1.bf16.msra.mxu0 %v588
      %750 = vmatprep.subr.bf16.mxu0 %v591
      %751 = vmatpush1.bf16.msra.mxu0 %v590
      %752 = vmatprep.subr.bf16.mxu0 %v593
      %753 = vmatpush1.bf16.msra.mxu0 %v592
      %754 = vmatprep.subr.bf16.mxu0 %v595
      %755 = vmatpush1.bf16.msra.mxu0 %v594
      %756 = vmatprep.subr.bf16.mxu0 %v597
      %757 = vmatpush1.bf16.msra.mxu0 %v596
      %758 = vmatprep.subr.bf16.mxu0 %v599
      %759 = vmatpush1.bf16.msra.mxu0 %v598
      %760 = vmatprep.subr.bf16.mxu0 %v601
      %761 = vmatpush1.bf16.msra.mxu0 %v600
      %762 = vmatprep.subr.bf16.mxu0 %v603
      %763 = vmatpush1.bf16.msra.mxu0 %v602
      %764 = vmatprep.subr.bf16.mxu0 %v605
      %765 = vmatpush1.bf16.msra.mxu0 %v604
      %766 = vmatprep.mubr.bf16.mxu0 %v325
      %767 = vmatmul.mubr.bf16.gmra.mrb[0].mxu0 %v324
      %v768 = vpop.f32.mrb[0].mxu0
      %v769 = vadd.f32 0.0, %v768
      %v770 = vpop.f32.mrb[0].mxu0
      %v771 = vadd.f32 0.0, %v770
      %v772 = vpop.f32.mrb[0].mxu0
      %v773 = vpop.f32.mrb[0].mxu0
      %774 = vdwg.mxu0
      %775 = vmatprep.subr.bf16.mxu0 %v607
      %776 = vmatpush1.bf16.msra.mxu0 %v606
      %777 = vmatprep.subr.bf16.mxu0 %v609
      %778 = vmatpush1.bf16.msra.mxu0 %v608
      %779 = vmatprep.subr.bf16.mxu0 %v611
      %780 = vmatpush1.bf16.msra.mxu0 %v610
      %781 = vmatprep.subr.bf16.mxu0 %v613
      %782 = vmatpush1.bf16.msra.mxu0 %v612
      %783 = vmatprep.subr.bf16.mxu0 %v615
      %784 = vmatpush1.bf16.msra.mxu0 %v614
      %785 = vmatprep.subr.bf16.mxu0 %v617
      %786 = vmatpush1.bf16.msra.mxu0 %v616
      %787 = vmatprep.subr.bf16.mxu0 %v619
      %788 = vmatpush1.bf16.msra.mxu0 %v618
      %789 = vmatprep.subr.bf16.mxu0 %v621
      %790 = vmatpush1.bf16.msra.mxu0 %v620
      %791 = vmatprep.subr.bf16.mxu0 %v623
      %792 = vmatpush1.bf16.msra.mxu0 %v622
      %793 = vmatprep.subr.bf16.mxu0 %v625
      %794 = vmatpush1.bf16.msra.mxu0 %v624
      %795 = vmatprep.subr.bf16.mxu0 %v627
      %796 = vmatpush1.bf16.msra.mxu0 %v626
      %797 = vmatprep.subr.bf16.mxu0 %v629
      %798 = vmatpush1.bf16.msra.mxu0 %v628
      %799 = vmatprep.subr.bf16.mxu0 %v631
      %800 = vmatpush1.bf16.msra.mxu0 %v630
      %801 = vmatprep.subr.bf16.mxu0 %v633
      %802 = vmatpush1.bf16.msra.mxu0 %v632
      %803 = vmatprep.subr.bf16.mxu0 %v635
      %804 = vmatpush1.bf16.msra.mxu0 %v634
      %805 = vmatprep.subr.bf16.mxu0 %v637
      %806 = vmatpush1.bf16.msra.mxu0 %v636
      %807 = vmatprep.mubr.bf16.mxu0 %v327
      %808 = vmatmul.mubr.bf16.gmra.mrb[0].mxu0 %v326
      %v809 = vpop.f32.mrb[0].mxu0
      %v810 = vadd.f32 %v769, %v809
      %v811 = vpop.f32.mrb[0].mxu0
      %v812 = vadd.f32 %v771, %v811
      %v813 = vpop.f32.mrb[0].mxu0
      %v814 = vpop.f32.mrb[0].mxu0
      %815 = vdwg.mxu0
      %816 = vmatprep.subr.bf16.mxu0 %v639
      %817 = vmatpush1.bf16.msra.mxu0 %v638
      %818 = vmatprep.subr.bf16.mxu0 %v641
      %819 = vmatpush1.bf16.msra.mxu0 %v640
      %820 = vmatprep.subr.bf16.mxu0 %v643
      %821 = vmatpush1.bf16.msra.mxu0 %v642
      %822 = vmatprep.subr.bf16.mxu0 %v645
      %823 = vmatpush1.bf16.msra.mxu0 %v644
      %824 = vmatprep.subr.bf16.mxu0 %v647
      %825 = vmatpush1.bf16.msra.mxu0 %v646
      %826 = vmatprep.subr.bf16.mxu0 %v649
      %827 = vmatpush1.bf16.msra.mxu0 %v648
      %828 = vmatprep.subr.bf16.mxu0 %v651
      %829 = vmatpush1.bf16.msra.mxu0 %v650
      %830 = vmatprep.subr.bf16.mxu0 %v653
      %831 = vmatpush1.bf16.msra.mxu0 %v652
      %832 = vmatprep.subr.bf16.mxu0 0
      %833 = vmatpush1.bf16.msra.mxu0 0
      %834 = vmatprep.subr.bf16.mxu0 0
      %835 = vmatpush1.bf16.msra.mxu0 0
      %836 = vmatprep.subr.bf16.mxu0 0
      %837 = vmatpush1.bf16.msra.mxu0 0
      %838 = vmatprep.subr.bf16.mxu0 0
      %839 = vmatpush1.bf16.msra.mxu0 0
      %840 = vmatprep.subr.bf16.mxu0 0
      %841 = vmatpush1.bf16.msra.mxu0 0
      %842 = vmatprep.subr.bf16.mxu0 0
      %843 = vmatpush1.bf16.msra.mxu0 0
      %844 = vmatprep.subr.bf16.mxu0 0
      %845 = vmatpush1.bf16.msra.mxu0 0
      %846 = vmatprep.subr.bf16.mxu0 0
      %847 = vmatpush1.bf16.msra.mxu0 0
      %848 = vmatprep.mubr.bf16.mxu0 0
      %849 = vmatmul.mubr.bf16.gmra.mrb[0].mxu0 %v328
      %v850 = vpop.f32.mrb[0].mxu0
      %v851 = vadd.f32 %v810, %v850
      %v852 = vpop.f32.mrb[0].mxu0
      %v853 = vadd.f32 %v812, %v852
      %v854 = vpop.f32.mrb[0].mxu0
      %v855 = vpop.f32.mrb[0].mxu0
      %856 = vdwg.mxu0
      %v857 = vadd.f32 %v231, %v851
      %v858 = vadd.f32 %v232, %v853
      %859 = vst [vmem:[#allocation2] sm:$0xff] %v857
      %860 = vst [vmem:[#allocation2 + $0x8] sm:$0xff] %v858
      %p861 = scmp.eq.s32.totalorder %s19, 1
      // Predicated region
      $region37: #{_lambda_.28} parent=31 // pred_check
        %p862 = pneg %p861
      $region38: #{_lambda_.28} parent=31 // pred_check_branch
        %864 = sbr.rel (%p862) target = $region40
      $region39: #{_lambda_.28} parent=31 // pred_region
        %v865 = vld [vmem:[#allocation2] sm:$0xff]
        %v866 = vld [vmem:[#allocation2 + $0x8] sm:$0xff]
        %v867 = vld [vmem:[%s2] sm:$0x3]
        %v869 = vlaneseq
        %v870 = vshrl.u32 %v869, 7
        %v871 = vsub.s32 0, %v870
        %v872 = vrot.slane %v867, %v871
        %v873 = vlaneseq
        %v874 = vshrl.u32 %v873, 7
        %v875 = vsub.s32 1, %v874
        %v876 = vrot.slane %v867, %v875
        %v879 = vadd.f32 %v865, %v872
        %v880 = vadd.f32 %v866, %v876
        %v881 = vmax.f32 %v879, 0.0
        %v882 = vmax.f32 %v880, 0.0
        %v883 = vpack.c.bf16 %v881, %v881
        %v884 = vpack.c.bf16 %v882, %v882
        %v887 = vunpack.c.l.b16 %v883
        %v888 = vunpack.c.l.b16 %v884
        %v889 = vpack.c.b16 %v888, %v887
        %891 = vst [vmem:[%s223] sm:$0xff] %v889
      $region40: #{_lambda_.28} parent=31 // pred_fallthru
        _
      %p892 = scmp.lt.s32.totalorder %s18, 0
      %s893 = scalar_select %p892, %s18, 0
      %s894 = smul.addr %s893, 2
      %s895 = smul.addr %s894, 4
      %s896 = scalar_lea.vmem %s3, %s895
      // Predicated region
      $region41: #{_lambda_.28} parent=31 // pred_check
        %p897 = pneg %p119
      $region42: #{_lambda_.28} parent=31 // pred_check_branch
        %899 = sbr.rel (%p897) target = $region44
      $region43: #{_lambda_.28} parent=31 // pred_region
        _
      $region44: #{_lambda_.28} parent=31 // pred_fallthru
        _
      // Predicated region
      $region45: #{_lambda_.28} parent=31 // pred_check
        %p900 = pneg %p119
      $region46: #{_lambda_.28} parent=31 // pred_check_branch
        %902 = sbr.rel (%p900) target = $region48
      $region47: #{_lambda_.28} parent=31 // pred_region
        %p903 = scmp.lt.s32.totalorder %s18, 0
        %s904 = scalar_select %p903, %s18, 0
        %s905 = smul.addr %s904, 2
        %s906 = smul.addr %s905, 4
        %s907 = scalar_lea.vmem %s3, %s906
      $region48: #{_lambda_.28} parent=31 // pred_fallthru
        _
    $region32: #{_lambda_.28} parent=5 // pred_fallthru
      _
    %p908 = scmp.le.s32.totalorder 2, %s9
    // Predicated region
    $region49: #{_lambda_.28} parent=5 // pred_check
      %p909 = pneg %p908
    $region50: #{_lambda_.28} parent=5 // pred_check_branch
      %911 = sbr.rel (%p909) target = $region52
    $region51: #{_lambda_.28} parent=5 // pred_region
      %s912 = ssub.s32 %s9, 2
    $region52: #{_lambda_.28} parent=5 // pred_fallthru
      _
  $region6: #{_lambda_.28} parent=0 // loop_footer
    %s13 = sadd.s32 1, %s9
  $region7: #{_lambda_.28} parent=0 // loop_footer_branch
    %8 = sbr.rel target = $region3
  $region8: #{_lambda_.28} parent=0 // loop_exit
    _

// kernel: _lambda_.29
$region0: #{_lambda_.29}
  #allocation0 [shape = 'u32[]', space=smem, size = 0x4, offset = 0x4, fixed_abs, tag = 'smem constant byte address 0x4 - core index']
  #allocation1 [shape = 'u32[144,128]{1,0:T(1,128)}', space=vmem, size = 0x12000, scoped, tag = 'internal scratch']
  #allocation2 [shape = 'f32[8,256]{1,0:T(8,128)}', space=vmem, size = 0x2000, scoped, tag = 'scratch operand']
  %s0 = inlined_call_operand.vmem [shape: bf16[8,128], index: 0, kind: input, shape index: {}]
  %s1 = inlined_call_operand.vmem [shape: bf16[128,256], index: 1, kind: input, shape index: {}]
  %s2 = inlined_call_operand.vmem [shape: f32[1,256], index: 2, kind: input, shape index: {}]
  %s3 = inlined_call_operand.vmem [shape: bf16[8,256], index: 3, kind: output, shape index: {}]
  %s4 = sld [smem:[#allocation0]]
  $region30: #{_lambda_.29} parent=0
    _
  %s6 = ssub.s32 1, %s4
  %s7 = scalar_select 0, %s6, %s4
  // Predicated region
  $region2: #{_lambda_.29} parent=0 // pred_check
    _
  $region3: #{_lambda_.29} parent=0 // pred_check_branch
    %9 = sbr.rel (0) target = $region5
  $region4: #{_lambda_.29} parent=0 // pred_region
    _
  $region5: #{_lambda_.29} parent=0 // pred_fallthru
    _
  // Predicated region
  $region6: #{_lambda_.29} parent=0 // pred_check
    _
  $region7: #{_lambda_.29} parent=0 // pred_check_branch
    %11 = sbr.rel (0) target = $region9
  $region8: #{_lambda_.29} parent=0 // pred_region
    _
  $region9: #{_lambda_.29} parent=0 // pred_fallthru
    _
  // Predicated region
  $region10: #{_lambda_.29} parent=0 // pred_check
    _
  $region11: #{_lambda_.29} parent=0 // pred_check_branch
    %13 = sbr.rel (0) target = $region13
  $region12: #{_lambda_.29} parent=0 // pred_region
    _
  $region13: #{_lambda_.29} parent=0 // pred_fallthru
    _
  %p15 = scmp.eq.s32.totalorder 0, 0
  // Predicated region
  $region14: #{_lambda_.29} parent=0 // pred_check
    %p16 = pneg %p15
  $region15: #{_lambda_.29} parent=0 // pred_check_branch
    %18 = sbr.rel (%p16) target = $region17
  $region16: #{_lambda_.29} parent=0 // pred_region
    %19 = vst [vmem:[#allocation2] sm:$0xff] 0.0
    %20 = vst [vmem:[#allocation2 + $0x8] sm:$0xff] 0.0
  $region17: #{_lambda_.29} parent=0 // pred_fallthru
    _
  %v21 = vld [vmem:[#allocation2] sm:$0xff]
  %v22 = vld [vmem:[#allocation2 + $0x8] sm:$0xff]
  %v23 = vld [vmem:[%s0] sm:$0xf]
  %v24 = vld [vmem:[%s1] sm:$0xff]
  %v25 = vld [vmem:[%s1 + $0x8] sm:$0xff]
  %v26 = vld [vmem:[%s1 + $0x10] sm:$0xff]
  %v27 = vld [vmem:[%s1 + $0x18] sm:$0xff]
  %v28 = vld [vmem:[%s1 + $0x20] sm:$0xff]
  %v29 = vld [vmem:[%s1 + $0x28] sm:$0xff]
  %v30 = vld [vmem:[%s1 + $0x30] sm:$0xff]
  %v31 = vld [vmem:[%s1 + $0x38] sm:$0xff]
  %v32 = vld [vmem:[%s1 + $0x40] sm:$0xff]
  %v33 = vld [vmem:[%s1 + $0x48] sm:$0xff]
  %v34 = vld [vmem:[%s1 + $0x50] sm:$0xff]
  %v35 = vld [vmem:[%s1 + $0x58] sm:$0xff]
  %v36 = vld [vmem:[%s1 + $0x60] sm:$0xff]
  %v37 = vld [vmem:[%s1 + $0x68] sm:$0xff]
  %v38 = vld [vmem:[%s1 + $0x70] sm:$0xff]
  %v39 = vld [vmem:[%s1 + $0x78] sm:$0xff]
  %v56 = vunpack.c.l.b16 %v24
  %v57 = vunpack.c.h.b16 %v24
  %v58 = vunpack.c.l.b16 %v25
  %v59 = vunpack.c.h.b16 %v25
  %v60 = vunpack.c.l.b16 %v26
  %v61 = vunpack.c.h.b16 %v26
  %v62 = vunpack.c.l.b16 %v27
  %v63 = vunpack.c.h.b16 %v27
  %v64 = vunpack.c.l.b16 %v28
  %v65 = vunpack.c.h.b16 %v28
  %v66 = vunpack.c.l.b16 %v29
  %v67 = vunpack.c.h.b16 %v29
  %v68 = vunpack.c.l.b16 %v30
  %v69 = vunpack.c.h.b16 %v30
  %v70 = vunpack.c.l.b16 %v31
  %v71 = vunpack.c.h.b16 %v31
  %v72 = vunpack.c.l.b16 %v32
  %v73 = vunpack.c.h.b16 %v32
  %v74 = vunpack.c.l.b16 %v33
  %v75 = vunpack.c.h.b16 %v33
  %v76 = vunpack.c.l.b16 %v34
  %v77 = vunpack.c.h.b16 %v34
  %v78 = vunpack.c.l.b16 %v35
  %v79 = vunpack.c.h.b16 %v35
  %v80 = vunpack.c.l.b16 %v36
  %v81 = vunpack.c.h.b16 %v36
  %v82 = vunpack.c.l.b16 %v37
  %v83 = vunpack.c.h.b16 %v37
  %v84 = vunpack.c.l.b16 %v38
  %v85 = vunpack.c.h.b16 %v38
  %v86 = vunpack.c.l.b16 %v39
  %v87 = vunpack.c.h.b16 %v39
  %v88 = vpack.c.b16 %v58, %v56
  %v89 = vpack.c.b16 %v59, %v57
  %v90 = vpack.c.b16 %v62, %v60
  %v91 = vpack.c.b16 %v63, %v61
  %v92 = vpack.c.b16 %v66, %v64
  %v93 = vpack.c.b16 %v67, %v65
  %v94 = vpack.c.b16 %v70, %v68
  %v95 = vpack.c.b16 %v71, %v69
  %v96 = vpack.c.b16 %v74, %v72
  %v97 = vpack.c.b16 %v75, %v73
  %v98 = vpack.c.b16 %v78, %v76
  %v99 = vpack.c.b16 %v79, %v77
  %v100 = vpack.c.b16 %v82, %v80
  %v101 = vpack.c.b16 %v83, %v81
  %v102 = vpack.c.b16 %v86, %v84
  %v103 = vpack.c.b16 %v87, %v85
  %120 = vmatprep.subr.bf16.mxu0 %v89
  %121 = vmatpush1.bf16.msra.mxu0 %v88
  %122 = vmatprep.subr.bf16.mxu0 %v91
  %123 = vmatpush1.bf16.msra.mxu0 %v90
  %124 = vmatprep.subr.bf16.mxu0 %v93
  %125 = vmatpush1.bf16.msra.mxu0 %v92
  %126 = vmatprep.subr.bf16.mxu0 %v95
  %127 = vmatpush1.bf16.msra.mxu0 %v94
  %128 = vmatprep.subr.bf16.mxu0 %v97
  %129 = vmatpush1.bf16.msra.mxu0 %v96
  %130 = vmatprep.subr.bf16.mxu0 %v99
  %131 = vmatpush1.bf16.msra.mxu0 %v98
  %132 = vmatprep.subr.bf16.mxu0 %v101
  %133 = vmatpush1.bf16.msra.mxu0 %v100
  %134 = vmatprep.subr.bf16.mxu0 %v103
  %135 = vmatpush1.bf16.msra.mxu0 %v102
  %136 = vmatprep.subr.bf16.mxu0 0
  %137 = vmatpush1.bf16.msra.mxu0 0
  %138 = vmatprep.subr.bf16.mxu0 0
  %139 = vmatpush1.bf16.msra.mxu0 0
  %140 = vmatprep.subr.bf16.mxu0 0
  %141 = vmatpush1.bf16.msra.mxu0 0
  %142 = vmatprep.subr.bf16.mxu0 0
  %143 = vmatpush1.bf16.msra.mxu0 0
  %144 = vmatprep.subr.bf16.mxu0 0
  %145 = vmatpush1.bf16.msra.mxu0 0
  %146 = vmatprep.subr.bf16.mxu0 0
  %147 = vmatpush1.bf16.msra.mxu0 0
  %148 = vmatprep.subr.bf16.mxu0 0
  %149 = vmatpush1.bf16.msra.mxu0 0
  %150 = vmatprep.subr.bf16.mxu0 0
  %151 = vmatpush1.bf16.msra.mxu0 0
  %152 = vmatprep.mubr.bf16.mxu0 0
  %153 = vmatmul.mubr.bf16.gmra.mrb[0].mxu0 %v23
  %v154 = vpop.f32.mrb[0].mxu0
  %v155 = vadd.f32 0.0, %v154
  %v156 = vpop.f32.mrb[0].mxu0
  %v157 = vadd.f32 0.0, %v156
  %v158 = vpop.f32.mrb[0].mxu0
  %v159 = vpop.f32.mrb[0].mxu0
  %160 = vdwg.mxu0
  %v161 = vadd.f32 %v21, %v155
  %v162 = vadd.f32 %v22, %v157
  %163 = vst [vmem:[#allocation2] sm:$0xff] %v161
  %164 = vst [vmem:[#allocation2 + $0x8] sm:$0xff] %v162
  // Predicated region
  $region18: #{_lambda_.29} parent=0 // pred_check
    %p165 = pneg %p15
  $region19: #{_lambda_.29} parent=0 // pred_check_branch
    %167 = sbr.rel (%p165) target = $region21
  $region20: #{_lambda_.29} parent=0 // pred_region
    %v168 = vld [vmem:[#allocation2] sm:$0xff]
    %v169 = vld [vmem:[#allocation2 + $0x8] sm:$0xff]
    %v170 = vld [vmem:[%s2] sm:$0x3]
    %v172 = vlaneseq
    %v173 = vshrl.u32 %v172, 7
    %v174 = vsub.s32 0, %v173
    %v175 = vrot.slane %v170, %v174
    %v176 = vlaneseq
    %v177 = vshrl.u32 %v176, 7
    %v178 = vsub.s32 1, %v177
    %v179 = vrot.slane %v170, %v178
    %v182 = vadd.f32 %v168, %v175
    %v183 = vadd.f32 %v169, %v179
    %v184 = vpack.c.bf16 %v182, %v182
    %v185 = vpack.c.bf16 %v183, %v183
    %v188 = vunpack.c.l.b16 %v184
    %v189 = vunpack.c.l.b16 %v185
    %v190 = vpack.c.b16 %v189, %v188
    %192 = vst [vmem:[%s3] sm:$0xff] %v190
  $region21: #{_lambda_.29} parent=0 // pred_fallthru
    _
  // Predicated region
  $region22: #{_lambda_.29} parent=0 // pred_check
    _
  $region23: #{_lambda_.29} parent=0 // pred_check_branch
    %194 = sbr.rel (0) target = $region25
  $region24: #{_lambda_.29} parent=0 // pred_region
    _
  $region25: #{_lambda_.29} parent=0 // pred_fallthru
    _
  // Predicated region
  $region26: #{_lambda_.29} parent=0 // pred_check
    _
  $region27: #{_lambda_.29} parent=0 // pred_check_branch
    %196 = sbr.rel (0) target = $region29
  $region28: #{_lambda_.29} parent=0 // pred_region
    _
  $region29: #{_lambda_.29} parent=0 // pred_fallthru
    _

// kernel: _lambda_.31
$region0: #{_lambda_.31}
  #allocation0 [shape = 'u32[]', space=smem, size = 0x4, offset = 0x4, fixed_abs, tag = 'smem constant byte address 0x4 - core index']
  #allocation1 [shape = 'u32[144,128]{1,0:T(1,128)}', space=vmem, size = 0x12000, scoped, tag = 'internal scratch']
  #allocation2 [shape = 'f32[8,256]{1,0:T(8,128)}', space=vmem, size = 0x2000, scoped, tag = 'scratch operand']
  %s0 = inlined_call_operand.vmem [shape: bf16[8,2304], index: 0, kind: input, shape index: {}]
  %s1 = inlined_call_operand.vmem [shape: bf16[2304,256], index: 1, kind: input, shape index: {}]
  %s2 = inlined_call_operand.vmem [shape: f32[1,256], index: 2, kind: input, shape index: {}]
  %s3 = inlined_call_operand.vmem [shape: bf16[8,256], index: 3, kind: output, shape index: {}]
  %s4 = sld [smem:[#allocation0]]
  $region53: #{_lambda_.31} parent=0
    _
  %s6 = ssub.s32 1, %s4
  %s7 = scalar_select 0, %s6, %s4
  loop: start=0, step=1, limit=5
  $region2: #{_lambda_.31} parent=0 // loop_pre_header
    _
  $region3: #{_lambda_.31} parent=0 // loop_header
    %s9 = sphi 0, %s13
    %p10 = scmp.ge.s32.totalorder %s9, 5
    %s16 = sphi 0, %s28
    %s17 = sphi 0, %s24
    %s18 = sphi 0, %s16
    %s19 = sphi 0, %s17
    %s20 = sphi 0, %s18
    %s21 = sphi 0, %s19
    %s33 = sphi 0, %s35
    %s36 = sphi 0, %s33
    %s37 = sphi 0, %s36
    %s53 = sphi 0, %s37
    %s59 = sphi 0, %s61
    %s62 = sphi 0, %s59
    %s63 = sphi 0, %s62
    %s79 = sphi 0, %s63
    %s83 = sphi 0, %s83
    %s85 = sphi 0, %s83
    %s86 = sphi 0, %s85
    %s100 = sphi 0, %s86
    %s106 = sphi 0, %s108
    %s109 = sphi 0, %s106
    %s110 = sphi 0, %s109
    %s126 = sphi 0, %s110
  $region4: #{_lambda_.31} parent=0 // loop_header_branch
    %12 = sbr.rel (%p10) target = $region8
  $region5: #{_lambda_.31} parent=0 // loop_body
    %s14 = ssub.s32 %s9, 1
    %s15 = ssub.s32 %s9, 2
    %s22 = sadd.s32 1, %s17
    %p23 = scmp.ge.s32.totalorder %s22, 3
    %s24 = scalar_select %p23, 0, %s22
    %s25 = sadd.s32 1, %s16
    %s26 = scalar_select %p23, %s25, %s16
    %p27 = scmp.ge.s32.totalorder %s26, 1
    %s28 = scalar_select %p27, 0, %s26
    %s29 = ssub.s32 %s16, %s28
    %s30 = ssub.s32 %s17, %s24
    %s31 = sor.u32 %s29, %s30
    %p32 = scmp.eq.s32.totalorder %s31, 0
    %s34 = sadd.s32 %s33, 1
    %s35 = scalar_select %p32, %s33, %s34
    %p38 = pneg %p32
    %p39 = scmp.eq.s32.totalorder %s9, 2
    %p40 = por %p38, %p39
    %p41 = scmp.ne.s32.totalorder %s33, %s36
    %p42 = scmp.eq.s32.totalorder %s9, 0
    %p43 = por %p41, %p42
    %p44 = scmp.ne.s32.totalorder %s33, %s36
    %p45 = scmp.eq.s32.totalorder %s14, 2
    %p46 = por %p44, %p45
    %p47 = scmp.ne.s32.totalorder %s36, %s37
    %p48 = scmp.eq.s32.totalorder %s14, 0
    %p49 = por %p47, %p48
    %p50 = scmp.ne.s32.totalorder %s36, %s37
    %p51 = scmp.eq.s32.totalorder %s15, 2
    %p52 = por %p50, %p51
    %p54 = scmp.ne.s32.totalorder %s37, %s53
    %p55 = scmp.eq.s32.totalorder %s15, 0
    %p56 = por %p54, %p55
    %s57 = ssub.s32 %s17, %s24
    %p58 = scmp.eq.s32.totalorder %s57, 0
    %s60 = sadd.s32 %s59, 1
    %s61 = scalar_select %p58, %s59, %s60
    %p64 = pneg %p58
    %p65 = scmp.eq.s32.totalorder %s9, 2
    %p66 = por %p64, %p65
    %p67 = scmp.ne.s32.totalorder %s59, %s62
    %p68 = scmp.eq.s32.totalorder %s9, 0
    %p69 = por %p67, %p68
    %p70 = scmp.ne.s32.totalorder %s59, %s62
    %p71 = scmp.eq.s32.totalorder %s14, 2
    %p72 = por %p70, %p71
    %p73 = scmp.ne.s32.totalorder %s62, %s63
    %p74 = scmp.eq.s32.totalorder %s14, 0
    %p75 = por %p73, %p74
    %p76 = scmp.ne.s32.totalorder %s62, %s63
    %p77 = scmp.eq.s32.totalorder %s15, 2
    %p78 = por %p76, %p77
    %p80 = scmp.ne.s32.totalorder %s63, %s79
    %p81 = scmp.eq.s32.totalorder %s15, 0
    %p82 = por %p80, %p81
    %s84 = sadd.s32 %s83, 1
    %p87 = scmp.eq.s32.totalorder %s9, 2
    %p88 = scmp.ne.s32.totalorder %s83, %s85
    %p89 = scmp.eq.s32.totalorder %s9, 0
    %p90 = por %p88, %p89
    %p91 = scmp.ne.s32.totalorder %s83, %s85
    %p92 = scmp.eq.s32.totalorder %s14, 2
    %p93 = por %p91, %p92
    %p94 = scmp.ne.s32.totalorder %s85, %s86
    %p95 = scmp.eq.s32.totalorder %s14, 0
    %p96 = por %p94, %p95
    %p97 = scmp.ne.s32.totalorder %s85, %s86
    %p98 = scmp.eq.s32.totalorder %s15, 2
    %p99 = por %p97, %p98
    %p101 = scmp.ne.s32.totalorder %s86, %s100
    %p102 = scmp.eq.s32.totalorder %s15, 0
    %p103 = por %p101, %p102
    %s104 = ssub.s32 %s16, %s28
    %p105 = scmp.eq.s32.totalorder %s104, 0
    %s107 = sadd.s32 %s106, 1
    %s108 = scalar_select %p105, %s106, %s107
    %p111 = pneg %p105
    %p112 = scmp.eq.s32.totalorder %s9, 2
    %p113 = por %p111, %p112
    %p114 = scmp.ne.s32.totalorder %s106, %s109
    %p115 = scmp.eq.s32.totalorder %s9, 0
    %p116 = por %p114, %p115
    %p117 = scmp.ne.s32.totalorder %s106, %s109
    %p118 = scmp.eq.s32.totalorder %s14, 2
    %p119 = por %p117, %p118
    %p120 = scmp.ne.s32.totalorder %s109, %s110
    %p121 = scmp.eq.s32.totalorder %s14, 0
    %p122 = por %p120, %p121
    %p123 = scmp.ne.s32.totalorder %s109, %s110
    %p124 = scmp.eq.s32.totalorder %s15, 2
    %p125 = por %p123, %p124
    %p127 = scmp.ne.s32.totalorder %s110, %s126
    %p128 = scmp.eq.s32.totalorder %s15, 0
    %p129 = por %p127, %p128
    %p130 = scmp.le.s32.totalorder 1, %s9
    %p131 = scmp.lt.s32.totalorder %s9, 4
    %p132 = pnand %p130, %p131
    %p133 = pneg %p132
    // Predicated region
    $region9: #{_lambda_.31} parent=5 // pred_check
      _
    $region10: #{_lambda_.31} parent=5 // pred_check_branch
      %135 = sbr.rel (%p132) target = $region12
    $region11: #{_lambda_.31} parent=5 // pred_region
      %s136 = ssub.s32 %s9, 1
      // Predicated region
      $region13: #{_lambda_.31} parent=11 // pred_check
        %p137 = pneg %p96
      $region14: #{_lambda_.31} parent=11 // pred_check_branch
        %139 = sbr.rel (%p137) target = $region16
      $region15: #{_lambda_.31} parent=11 // pred_region
        _
      $region16: #{_lambda_.31} parent=11 // pred_fallthru
        _
    $region12: #{_lambda_.31} parent=5 // pred_fallthru
      _
    %p140 = scmp.lt.s32.totalorder %s9, 3
    // Predicated region
    $region17: #{_lambda_.31} parent=5 // pred_check
      %p141 = pneg %p140
    $region18: #{_lambda_.31} parent=5 // pred_check_branch
      %143 = sbr.rel (%p141) target = $region20
    $region19: #{_lambda_.31} parent=5 // pred_region
      // Predicated region
      $region21: #{_lambda_.31} parent=19 // pred_check
        %p144 = pneg %p43
      $region22: #{_lambda_.31} parent=19 // pred_check_branch
        %146 = sbr.rel (%p144) target = $region24
      $region23: #{_lambda_.31} parent=19 // pred_region
        %s147 = smul.u32 6, %s17
        %p148 = scmp.lt.s32.totalorder %s16, 0
        %s149 = scalar_select %p148, %s16, 0
        %p150 = scmp.lt.s32.totalorder %s147, 17
        %s151 = scalar_select %p150, %s147, 17
        %s152 = smul.addr %s149, 18
        %s153 = sadd.s32 %s151, %s152
        %s154 = smul.addr %s153, 4
        %s155 = scalar_lea.vmem %s0, %s154
        %s156 = smul.u32 6, %s17
      $region24: #{_lambda_.31} parent=19 // pred_fallthru
        _
      // Predicated region
      $region25: #{_lambda_.31} parent=19 // pred_check
        %p157 = pneg %p69
      $region26: #{_lambda_.31} parent=19 // pred_check_branch
        %159 = sbr.rel (%p157) target = $region28
      $region27: #{_lambda_.31} parent=19 // pred_region
        %s160 = smul.u32 96, %s17
        %p161 = scmp.lt.s32.totalorder %s160, 287
        %s162 = scalar_select %p161, %s160, 287
        %s163 = smul.addr %s162, 2
        %s164 = smul.addr %s163, 4
        %s165 = scalar_lea.vmem %s1, %s164
        %s166 = smul.u32 96, %s17
      $region28: #{_lambda_.31} parent=19 // pred_fallthru
        _
    $region20: #{_lambda_.31} parent=5 // pred_fallthru
      _
    %p167 = scmp.le.s32.totalorder 1, %s9
    %p168 = scmp.lt.s32.totalorder %s9, 4
    %p169 = pnand %p167, %p168
    %p170 = pneg %p169
    // Predicated region
    $region29: #{_lambda_.31} parent=5 // pred_check
      _
    $region30: #{_lambda_.31} parent=5 // pred_check_branch
      %172 = sbr.rel (%p169) target = $region32
    $region31: #{_lambda_.31} parent=5 // pred_region
      %s173 = ssub.s32 %s9, 1
      %s174 = smul.u32 6, %s19
      %p175 = scmp.lt.s32.totalorder %s18, 0
      %s176 = scalar_select %p175, %s18, 0
      %p177 = scmp.lt.s32.totalorder %s174, 17
      %s178 = scalar_select %p177, %s174, 17
      %s179 = smul.addr %s176, 18
      %s180 = sadd.s32 %s178, %s179
      %s181 = smul.addr %s180, 4
      %s182 = scalar_lea.vmem %s0, %s181
      %p183 = pneg %p49
      %p184 = pneg %p46
      %s185 = smul.u32 96, %s19
      %p186 = scmp.lt.s32.totalorder %s185, 287
      %s187 = scalar_select %p186, %s185, 287
      %s188 = smul.addr %s187, 2
      %s189 = smul.addr %s188, 4
      %s190 = scalar_lea.vmem %s1, %s189
      %p191 = pneg %p75
      %p192 = pneg %p72
      %p193 = pneg %p96
      %p194 = pneg %p93
      %p195 = pneg %p122
      %p196 = pneg %p119
      %p197 = scmp.lt.s32.totalorder %s18, 0
      %s198 = scalar_select %p197, %s18, 0
      %s199 = smul.addr %s198, 2
      %s200 = smul.addr %s199, 4
      %s201 = scalar_lea.vmem %s3, %s200
      %s202 = smul.u32 6, %s19
      %p203 = scmp.lt.s32.totalorder %s18, 0
      %s204 = scalar_select %p203, %s18, 0
      %p205 = scmp.lt.s32.totalorder %s202, 17
      %s206 = scalar_select %p205, %s202, 17
      %s207 = smul.addr %s204, 18
      %s208 = sadd.s32 %s206, %s207
      %s209 = smul.addr %s208, 4
      %s210 = scalar_lea.vmem %s0, %s209
      %s211 = smul.u32 6, %s19
      %s212 = smul.u32 96, %s19
      %p213 = scmp.lt.s32.totalorder %s212, 287
      %s214 = scalar_select %p213, %s212, 287
      %s215 = smul.addr %s214, 2
      %s216 = smul.addr %s215, 4
      %s217 = scalar_lea.vmem %s1, %s216
      %s218 = smul.u32 96, %s19
      %p219 = scmp.lt.s32.totalorder %s18, 0
      %s220 = scalar_select %p219, %s18, 0
      %s221 = smul.addr %s220, 2
      %s222 = smul.addr %s221, 4
      %s223 = scalar_lea.vmem %s3, %s222
      %p224 = scmp.eq.s32.totalorder %s19, 0
      // Predicated region
      $region33: #{_lambda_.31} parent=31 // pred_check
        %p225 = pneg %p224
      $region34: #{_lambda_.31} parent=31 // pred_check_branch
        %227 = sbr.rel (%p225) target = $region36
      $region35: #{_lambda_.31} parent=31 // pred_region
        %228 = vst [vmem:[#allocation2] sm:$0xff] 0.0
        %229 = vst [vmem:[#allocation2 + $0x8] sm:$0xff] 0.0
      $region36: #{_lambda_.31} parent=31 // pred_fallthru
        _
      %v230 = vld [vmem:[#allocation2] sm:$0xff]
      %v231 = vld [vmem:[#allocation2 + $0x8] sm:$0xff]
      %v232 = vld [vmem:[%s210] sm:$0xff]
      %v233 = vld [vmem:[%s210 + $0x8] sm:$0xff]
      %v234 = vld [vmem:[%s210 + $0x10] sm:$0xff]
      %v235 = vld [vmem:[%s217] sm:$0xff]
      %v236 = vld [vmem:[%s217 + $0x8] sm:$0xff]
      %v237 = vld [vmem:[%s217 + $0x10] sm:$0xff]
      %v238 = vld [vmem:[%s217 + $0x18] sm:$0xff]
      %v239 = vld [vmem:[%s217 + $0x20] sm:$0xff]
      %v240 = vld [vmem:[%s217 + $0x28] sm:$0xff]
      %v241 = vld [vmem:[%s217 + $0x30] sm:$0xff]
      %v242 = vld [vmem:[%s217 + $0x38] sm:$0xff]
      %v243 = vld [vmem:[%s217 + $0x40] sm:$0xff]
      %v244 = vld [vmem:[%s217 + $0x48] sm:$0xff]
      %v245 = vld [vmem:[%s217 + $0x50] sm:$0xff]
      %v246 = vld [vmem:[%s217 + $0x58] sm:$0xff]
      %v247 = vld [vmem:[%s217 + $0x60] sm:$0xff]
      %v248 = vld [vmem:[%s217 + $0x68] sm:$0xff]
      %v249 = vld [vmem:[%s217 + $0x70] sm:$0xff]
      %v250 = vld [vmem:[%s217 + $0x78] sm:$0xff]
      %v251 = vld [vmem:[%s217 + $0x80] sm:$0xff]
      %v252 = vld [vmem:[%s217 + $0x88] sm:$0xff]
      %v253 = vld [vmem:[%s217 + $0x90] sm:$0xff]
      %v254 = vld [vmem:[%s217 + $0x98] sm:$0xff]
      %v255 = vld [vmem:[%s217 + $0xa0] sm:$0xff]
      %v256 = vld [vmem:[%s217 + $0xa8] sm:$0xff]
      %v257 = vld [vmem:[%s217 + $0xb0] sm:$0xff]
      %v258 = vld [vmem:[%s217 + $0xb8] sm:$0xff]
      %v259 = vld [vmem:[%s217 + $0xc0] sm:$0xff]
      %v260 = vld [vmem:[%s217 + $0xc8] sm:$0xff]
      %v261 = vld [vmem:[%s217 + $0xd0] sm:$0xff]
      %v262 = vld [vmem:[%s217 + $0xd8] sm:$0xff]
      %v263 = vld [vmem:[%s217 + $0xe0] sm:$0xff]
      %v264 = vld [vmem:[%s217 + $0xe8] sm:$0xff]
      %v265 = vld [vmem:[%s217 + $0xf0] sm:$0xff]
      %v266 = vld [vmem:[%s217 + $0xf8] sm:$0xff]
      %v267 = vld [vmem:[%s217 + $0x100] sm:$0xff]
      %v268 = vld [vmem:[%s217 + $0x108] sm:$0xff]
      %v269 = vld [vmem:[%s217 + $0x110] sm:$0xff]
      %v270 = vld [vmem:[%s217 + $0x118] sm:$0xff]
      %v271 = vld [vmem:[%s217 + $0x120] sm:$0xff]
      %v272 = vld [vmem:[%s217 + $0x128] sm:$0xff]
      %v273 = vld [vmem:[%s217 + $0x130] sm:$0xff]
      %v274 = vld [vmem:[%s217 + $0x138] sm:$0xff]
      %v275 = vld [vmem:[%s217 + $0x140] sm:$0xff]
      %v276 = vld [vmem:[%s217 + $0x148] sm:$0xff]
      %v277 = vld [vmem:[%s217 + $0x150] sm:$0xff]
      %v278 = vld [vmem:[%s217 + $0x158] sm:$0xff]
      %v279 = vld [vmem:[%s217 + $0x160] sm:$0xff]
      %v280 = vld [vmem:[%s217 + $0x168] sm:$0xff]
      %v281 = vld [vmem:[%s217 + $0x170] sm:$0xff]
      %v282 = vld [vmem:[%s217 + $0x178] sm:$0xff]
      %v283 = vld [vmem:[%s217 + $0x180] sm:$0xff]
      %v284 = vld [vmem:[%s217 + $0x188] sm:$0xff]
      %v285 = vld [vmem:[%s217 + $0x190] sm:$0xff]
      %v286 = vld [vmem:[%s217 + $0x198] sm:$0xff]
      %v287 = vld [vmem:[%s217 + $0x1a0] sm:$0xff]
      %v288 = vld [vmem:[%s217 + $0x1a8] sm:$0xff]
      %v289 = vld [vmem:[%s217 + $0x1b0] sm:$0xff]
      %v290 = vld [vmem:[%s217 + $0x1b8] sm:$0xff]
      %v291 = vld [vmem:[%s217 + $0x1c0] sm:$0xff]
      %v292 = vld [vmem:[%s217 + $0x1c8] sm:$0xff]
      %v293 = vld [vmem:[%s217 + $0x1d0] sm:$0xff]
      %v294 = vld [vmem:[%s217 + $0x1d8] sm:$0xff]
      %v295 = vld [vmem:[%s217 + $0x1e0] sm:$0xff]
      %v296 = vld [vmem:[%s217 + $0x1e8] sm:$0xff]
      %v297 = vld [vmem:[%s217 + $0x1f0] sm:$0xff]
      %v298 = vld [vmem:[%s217 + $0x1f8] sm:$0xff]
      %v299 = vld [vmem:[%s217 + $0x200] sm:$0xff]
      %v300 = vld [vmem:[%s217 + $0x208] sm:$0xff]
      %v301 = vld [vmem:[%s217 + $0x210] sm:$0xff]
      %v302 = vld [vmem:[%s217 + $0x218] sm:$0xff]
      %v303 = vld [vmem:[%s217 + $0x220] sm:$0xff]
      %v304 = vld [vmem:[%s217 + $0x228] sm:$0xff]
      %v305 = vld [vmem:[%s217 + $0x230] sm:$0xff]
      %v306 = vld [vmem:[%s217 + $0x238] sm:$0xff]
      %v307 = vld [vmem:[%s217 + $0x240] sm:$0xff]
      %v308 = vld [vmem:[%s217 + $0x248] sm:$0xff]
      %v309 = vld [vmem:[%s217 + $0x250] sm:$0xff]
      %v310 = vld [vmem:[%s217 + $0x258] sm:$0xff]
      %v311 = vld [vmem:[%s217 + $0x260] sm:$0xff]
      %v312 = vld [vmem:[%s217 + $0x268] sm:$0xff]
      %v313 = vld [vmem:[%s217 + $0x270] sm:$0xff]
      %v314 = vld [vmem:[%s217 + $0x278] sm:$0xff]
      %v315 = vld [vmem:[%s217 + $0x280] sm:$0xff]
      %v316 = vld [vmem:[%s217 + $0x288] sm:$0xff]
      %v317 = vld [vmem:[%s217 + $0x290] sm:$0xff]
      %v318 = vld [vmem:[%s217 + $0x298] sm:$0xff]
      %v319 = vld [vmem:[%s217 + $0x2a0] sm:$0xff]
      %v320 = vld [vmem:[%s217 + $0x2a8] sm:$0xff]
      %v321 = vld [vmem:[%s217 + $0x2b0] sm:$0xff]
      %v322 = vld [vmem:[%s217 + $0x2b8] sm:$0xff]
      %v323 = vld [vmem:[%s217 + $0x2c0] sm:$0xff]
      %v324 = vld [vmem:[%s217 + $0x2c8] sm:$0xff]
      %v325 = vld [vmem:[%s217 + $0x2d0] sm:$0xff]
      %v326 = vld [vmem:[%s217 + $0x2d8] sm:$0xff]
      %v327 = vld [vmem:[%s217 + $0x2e0] sm:$0xff]
      %v328 = vld [vmem:[%s217 + $0x2e8] sm:$0xff]
      %v329 = vld [vmem:[%s217 + $0x2f0] sm:$0xff]
      %v330 = vld [vmem:[%s217 + $0x2f8] sm:$0xff]
      %v334 = vunpack.c.l.b16 %v232
      %v335 = vunpack.c.h.b16 %v232
      %v336 = vunpack.c.l.b16 %v233
      %v337 = vunpack.c.h.b16 %v233
      %v338 = vunpack.c.l.b16 %v234
      %v339 = vunpack.c.h.b16 %v234
      %v340 = vpack.c.b16 %v334, %v334
      %v341 = vpack.c.b16 %v335, %v335
      %v342 = vpack.c.b16 %v336, %v336
      %v343 = vpack.c.b16 %v337, %v337
      %v344 = vpack.c.b16 %v338, %v338
      %v345 = vpack.c.b16 %v339, %v339
      %v448 = vunpack.c.l.b16 %v235
      %v449 = vunpack.c.h.b16 %v235
      %v450 = vunpack.c.l.b16 %v236
      %v451 = vunpack.c.h.b16 %v236
      %v452 = vunpack.c.l.b16 %v237
      %v453 = vunpack.c.h.b16 %v237
      %v454 = vunpack.c.l.b16 %v238
      %v455 = vunpack.c.h.b16 %v238
      %v456 = vunpack.c.l.b16 %v239
      %v457 = vunpack.c.h.b16 %v239
      %v458 = vunpack.c.l.b16 %v240
      %v459 = vunpack.c.h.b16 %v240
      %v460 = vunpack.c.l.b16 %v241
      %v461 = vunpack.c.h.b16 %v241
      %v462 = vunpack.c.l.b16 %v242
      %v463 = vunpack.c.h.b16 %v242
      %v464 = vunpack.c.l.b16 %v243
      %v465 = vunpack.c.h.b16 %v243
      %v466 = vunpack.c.l.b16 %v244
      %v467 = vunpack.c.h.b16 %v244
      %v468 = vunpack.c.l.b16 %v245
      %v469 = vunpack.c.h.b16 %v245
      %v470 = vunpack.c.l.b16 %v246
      %v471 = vunpack.c.h.b16 %v246
      %v472 = vunpack.c.l.b16 %v247
      %v473 = vunpack.c.h.b16 %v247
      %v474 = vunpack.c.l.b16 %v248
      %v475 = vunpack.c.h.b16 %v248
      %v476 = vunpack.c.l.b16 %v249
      %v477 = vunpack.c.h.b16 %v249
      %v478 = vunpack.c.l.b16 %v250
      %v479 = vunpack.c.h.b16 %v250
      %v480 = vunpack.c.l.b16 %v251
      %v481 = vunpack.c.h.b16 %v251
      %v482 = vunpack.c.l.b16 %v252
      %v483 = vunpack.c.h.b16 %v252
      %v484 = vunpack.c.l.b16 %v253
      %v485 = vunpack.c.h.b16 %v253
      %v486 = vunpack.c.l.b16 %v254
      %v487 = vunpack.c.h.b16 %v254
      %v488 = vunpack.c.l.b16 %v255
      %v489 = vunpack.c.h.b16 %v255
      %v490 = vunpack.c.l.b16 %v256
      %v491 = vunpack.c.h.b16 %v256
      %v492 = vunpack.c.l.b16 %v257
      %v493 = vunpack.c.h.b16 %v257
      %v494 = vunpack.c.l.b16 %v258
      %v495 = vunpack.c.h.b16 %v258
      %v496 = vunpack.c.l.b16 %v259
      %v497 = vunpack.c.h.b16 %v259
      %v498 = vunpack.c.l.b16 %v260
      %v499 = vunpack.c.h.b16 %v260
      %v500 = vunpack.c.l.b16 %v261
      %v501 = vunpack.c.h.b16 %v261
      %v502 = vunpack.c.l.b16 %v262
      %v503 = vunpack.c.h.b16 %v262
      %v504 = vunpack.c.l.b16 %v263
      %v505 = vunpack.c.h.b16 %v263
      %v506 = vunpack.c.l.b16 %v264
      %v507 = vunpack.c.h.b16 %v264
      %v508 = vunpack.c.l.b16 %v265
      %v509 = vunpack.c.h.b16 %v265
      %v510 = vunpack.c.l.b16 %v266
      %v511 = vunpack.c.h.b16 %v266
      %v512 = vunpack.c.l.b16 %v267
      %v513 = vunpack.c.h.b16 %v267
      %v514 = vunpack.c.l.b16 %v268
      %v515 = vunpack.c.h.b16 %v268
      %v516 = vunpack.c.l.b16 %v269
      %v517 = vunpack.c.h.b16 %v269
      %v518 = vunpack.c.l.b16 %v270
      %v519 = vunpack.c.h.b16 %v270
      %v520 = vunpack.c.l.b16 %v271
      %v521 = vunpack.c.h.b16 %v271
      %v522 = vunpack.c.l.b16 %v272
      %v523 = vunpack.c.h.b16 %v272
      %v524 = vunpack.c.l.b16 %v273
      %v525 = vunpack.c.h.b16 %v273
      %v526 = vunpack.c.l.b16 %v274
      %v527 = vunpack.c.h.b16 %v274
      %v528 = vunpack.c.l.b16 %v275
      %v529 = vunpack.c.h.b16 %v275
      %v530 = vunpack.c.l.b16 %v276
      %v531 = vunpack.c.h.b16 %v276
      %v532 = vunpack.c.l.b16 %v277
      %v533 = vunpack.c.h.b16 %v277
      %v534 = vunpack.c.l.b16 %v278
      %v535 = vunpack.c.h.b16 %v278
      %v536 = vunpack.c.l.b16 %v279
      %v537 = vunpack.c.h.b16 %v279
      %v538 = vunpack.c.l.b16 %v280
      %v539 = vunpack.c.h.b16 %v280
      %v540 = vunpack.c.l.b16 %v281
      %v541 = vunpack.c.h.b16 %v281
      %v542 = vunpack.c.l.b16 %v282
      %v543 = vunpack.c.h.b16 %v282
      %v544 = vunpack.c.l.b16 %v283
      %v545 = vunpack.c.h.b16 %v283
      %v546 = vunpack.c.l.b16 %v284
      %v547 = vunpack.c.h.b16 %v284
      %v548 = vunpack.c.l.b16 %v285
      %v549 = vunpack.c.h.b16 %v285
      %v550 = vunpack.c.l.b16 %v286
      %v551 = vunpack.c.h.b16 %v286
      %v552 = vunpack.c.l.b16 %v287
      %v553 = vunpack.c.h.b16 %v287
      %v554 = vunpack.c.l.b16 %v288
      %v555 = vunpack.c.h.b16 %v288
      %v556 = vunpack.c.l.b16 %v289
      %v557 = vunpack.c.h.b16 %v289
      %v558 = vunpack.c.l.b16 %v290
      %v559 = vunpack.c.h.b16 %v290
      %v560 = vunpack.c.l.b16 %v291
      %v561 = vunpack.c.h.b16 %v291
      %v562 = vunpack.c.l.b16 %v292
      %v563 = vunpack.c.h.b16 %v292
      %v564 = vunpack.c.l.b16 %v293
      %v565 = vunpack.c.h.b16 %v293
      %v566 = vunpack.c.l.b16 %v294
      %v567 = vunpack.c.h.b16 %v294
      %v568 = vunpack.c.l.b16 %v295
      %v569 = vunpack.c.h.b16 %v295
      %v570 = vunpack.c.l.b16 %v296
      %v571 = vunpack.c.h.b16 %v296
      %v572 = vunpack.c.l.b16 %v297
      %v573 = vunpack.c.h.b16 %v297
      %v574 = vunpack.c.l.b16 %v298
      %v575 = vunpack.c.h.b16 %v298
      %v576 = vunpack.c.l.b16 %v299
      %v577 = vunpack.c.h.b16 %v299
      %v578 = vunpack.c.l.b16 %v300
      %v579 = vunpack.c.h.b16 %v300
      %v580 = vunpack.c.l.b16 %v301
      %v581 = vunpack.c.h.b16 %v301
      %v582 = vunpack.c.l.b16 %v302
      %v583 = vunpack.c.h.b16 %v302
      %v584 = vunpack.c.l.b16 %v303
      %v585 = vunpack.c.h.b16 %v303
      %v586 = vunpack.c.l.b16 %v304
      %v587 = vunpack.c.h.b16 %v304
      %v588 = vunpack.c.l.b16 %v305
      %v589 = vunpack.c.h.b16 %v305
      %v590 = vunpack.c.l.b16 %v306
      %v591 = vunpack.c.h.b16 %v306
      %v592 = vunpack.c.l.b16 %v307
      %v593 = vunpack.c.h.b16 %v307
      %v594 = vunpack.c.l.b16 %v308
      %v595 = vunpack.c.h.b16 %v308
      %v596 = vunpack.c.l.b16 %v309
      %v597 = vunpack.c.h.b16 %v309
      %v598 = vunpack.c.l.b16 %v310
      %v599 = vunpack.c.h.b16 %v310
      %v600 = vunpack.c.l.b16 %v311
      %v601 = vunpack.c.h.b16 %v311
      %v602 = vunpack.c.l.b16 %v312
      %v603 = vunpack.c.h.b16 %v312
      %v604 = vunpack.c.l.b16 %v313
      %v605 = vunpack.c.h.b16 %v313
      %v606 = vunpack.c.l.b16 %v314
      %v607 = vunpack.c.h.b16 %v314
      %v608 = vunpack.c.l.b16 %v315
      %v609 = vunpack.c.h.b16 %v315
      %v610 = vunpack.c.l.b16 %v316
      %v611 = vunpack.c.h.b16 %v316
      %v612 = vunpack.c.l.b16 %v317
      %v613 = vunpack.c.h.b16 %v317
      %v614 = vunpack.c.l.b16 %v318
      %v615 = vunpack.c.h.b16 %v318
      %v616 = vunpack.c.l.b16 %v319
      %v617 = vunpack.c.h.b16 %v319
      %v618 = vunpack.c.l.b16 %v320
      %v619 = vunpack.c.h.b16 %v320
      %v620 = vunpack.c.l.b16 %v321
      %v621 = vunpack.c.h.b16 %v321
      %v622 = vunpack.c.l.b16 %v322
      %v623 = vunpack.c.h.b16 %v322
      %v624 = vunpack.c.l.b16 %v323
      %v625 = vunpack.c.h.b16 %v323
      %v626 = vunpack.c.l.b16 %v324
      %v627 = vunpack.c.h.b16 %v324
      %v628 = vunpack.c.l.b16 %v325
      %v629 = vunpack.c.h.b16 %v325
      %v630 = vunpack.c.l.b16 %v326
      %v631 = vunpack.c.h.b16 %v326
      %v632 = vunpack.c.l.b16 %v327
      %v633 = vunpack.c.h.b16 %v327
      %v634 = vunpack.c.l.b16 %v328
      %v635 = vunpack.c.h.b16 %v328
      %v636 = vunpack.c.l.b16 %v329
      %v637 = vunpack.c.h.b16 %v329
      %v638 = vunpack.c.l.b16 %v330
      %v639 = vunpack.c.h.b16 %v330
      %v640 = vpack.c.b16 %v450, %v448
      %v641 = vpack.c.b16 %v451, %v449
      %v642 = vpack.c.b16 %v454, %v452
      %v643 = vpack.c.b16 %v455, %v453
      %v644 = vpack.c.b16 %v458, %v456
      %v645 = vpack.c.b16 %v459, %v457
      %v646 = vpack.c.b16 %v462, %v460
      %v647 = vpack.c.b16 %v463, %v461
      %v648 = vpack.c.b16 %v466, %v464
      %v649 = vpack.c.b16 %v467, %v465
      %v650 = vpack.c.b16 %v470, %v468
      %v651 = vpack.c.b16 %v471, %v469
      %v652 = vpack.c.b16 %v474, %v472
      %v653 = vpack.c.b16 %v475, %v473
      %v654 = vpack.c.b16 %v478, %v476
      %v655 = vpack.c.b16 %v479, %v477
      %v656 = vpack.c.b16 %v482, %v480
      %v657 = vpack.c.b16 %v483, %v481
      %v658 = vpack.c.b16 %v486, %v484
      %v659 = vpack.c.b16 %v487, %v485
      %v660 = vpack.c.b16 %v490, %v488
      %v661 = vpack.c.b16 %v491, %v489
      %v662 = vpack.c.b16 %v494, %v492
      %v663 = vpack.c.b16 %v495, %v493
      %v664 = vpack.c.b16 %v498, %v496
      %v665 = vpack.c.b16 %v499, %v497
      %v666 = vpack.c.b16 %v502, %v500
      %v667 = vpack.c.b16 %v503, %v501
      %v668 = vpack.c.b16 %v506, %v504
      %v669 = vpack.c.b16 %v507, %v505
      %v670 = vpack.c.b16 %v510, %v508
      %v671 = vpack.c.b16 %v511, %v509
      %v672 = vpack.c.b16 %v514, %v512
      %v673 = vpack.c.b16 %v515, %v513
      %v674 = vpack.c.b16 %v518, %v516
      %v675 = vpack.c.b16 %v519, %v517
      %v676 = vpack.c.b16 %v522, %v520
      %v677 = vpack.c.b16 %v523, %v521
      %v678 = vpack.c.b16 %v526, %v524
      %v679 = vpack.c.b16 %v527, %v525
      %v680 = vpack.c.b16 %v530, %v528
      %v681 = vpack.c.b16 %v531, %v529
      %v682 = vpack.c.b16 %v534, %v532
      %v683 = vpack.c.b16 %v535, %v533
      %v684 = vpack.c.b16 %v538, %v536
      %v685 = vpack.c.b16 %v539, %v537
      %v686 = vpack.c.b16 %v542, %v540
      %v687 = vpack.c.b16 %v543, %v541
      %v688 = vpack.c.b16 %v546, %v544
      %v689 = vpack.c.b16 %v547, %v545
      %v690 = vpack.c.b16 %v550, %v548
      %v691 = vpack.c.b16 %v551, %v549
      %v692 = vpack.c.b16 %v554, %v552
      %v693 = vpack.c.b16 %v555, %v553
      %v694 = vpack.c.b16 %v558, %v556
      %v695 = vpack.c.b16 %v559, %v557
      %v696 = vpack.c.b16 %v562, %v560
      %v697 = vpack.c.b16 %v563, %v561
      %v698 = vpack.c.b16 %v566, %v564
      %v699 = vpack.c.b16 %v567, %v565
      %v700 = vpack.c.b16 %v570, %v568
      %v701 = vpack.c.b16 %v571, %v569
      %v702 = vpack.c.b16 %v574, %v572
      %v703 = vpack.c.b16 %v575, %v573
      %v704 = vpack.c.b16 %v578, %v576
      %v705 = vpack.c.b16 %v579, %v577
      %v706 = vpack.c.b16 %v582, %v580
      %v707 = vpack.c.b16 %v583, %v581
      %v708 = vpack.c.b16 %v586, %v584
      %v709 = vpack.c.b16 %v587, %v585
      %v710 = vpack.c.b16 %v590, %v588
      %v711 = vpack.c.b16 %v591, %v589
      %v712 = vpack.c.b16 %v594, %v592
      %v713 = vpack.c.b16 %v595, %v593
      %v714 = vpack.c.b16 %v598, %v596
      %v715 = vpack.c.b16 %v599, %v597
      %v716 = vpack.c.b16 %v602, %v600
      %v717 = vpack.c.b16 %v603, %v601
      %v718 = vpack.c.b16 %v606, %v604
      %v719 = vpack.c.b16 %v607, %v605
      %v720 = vpack.c.b16 %v610, %v608
      %v721 = vpack.c.b16 %v611, %v609
      %v722 = vpack.c.b16 %v614, %v612
      %v723 = vpack.c.b16 %v615, %v613
      %v724 = vpack.c.b16 %v618, %v616
      %v725 = vpack.c.b16 %v619, %v617
      %v726 = vpack.c.b16 %v622, %v620
      %v727 = vpack.c.b16 %v623, %v621
      %v728 = vpack.c.b16 %v626, %v624
      %v729 = vpack.c.b16 %v627, %v625
      %v730 = vpack.c.b16 %v630, %v628
      %v731 = vpack.c.b16 %v631, %v629
      %v732 = vpack.c.b16 %v634, %v632
      %v733 = vpack.c.b16 %v635, %v633
      %v734 = vpack.c.b16 %v638, %v636
      %v735 = vpack.c.b16 %v639, %v637
      %832 = vmatprep.subr.bf16.mxu0 %v641
      %833 = vmatpush1.bf16.msra.mxu0 %v640
      %834 = vmatprep.subr.bf16.mxu0 %v643
      %835 = vmatpush1.bf16.msra.mxu0 %v642
      %836 = vmatprep.subr.bf16.mxu0 %v645
      %837 = vmatpush1.bf16.msra.mxu0 %v644
      %838 = vmatprep.subr.bf16.mxu0 %v647
      %839 = vmatpush1.bf16.msra.mxu0 %v646
      %840 = vmatprep.subr.bf16.mxu0 %v649
      %841 = vmatpush1.bf16.msra.mxu0 %v648
      %842 = vmatprep.subr.bf16.mxu0 %v651
      %843 = vmatpush1.bf16.msra.mxu0 %v650
      %844 = vmatprep.subr.bf16.mxu0 %v653
      %845 = vmatpush1.bf16.msra.mxu0 %v652
      %846 = vmatprep.subr.bf16.mxu0 %v655
      %847 = vmatpush1.bf16.msra.mxu0 %v654
      %848 = vmatprep.subr.bf16.mxu0 %v657
      %849 = vmatpush1.bf16.msra.mxu0 %v656
      %850 = vmatprep.subr.bf16.mxu0 %v659
      %851 = vmatpush1.bf16.msra.mxu0 %v658
      %852 = vmatprep.subr.bf16.mxu0 %v661
      %853 = vmatpush1.bf16.msra.mxu0 %v660
      %854 = vmatprep.subr.bf16.mxu0 %v663
      %855 = vmatpush1.bf16.msra.mxu0 %v662
      %856 = vmatprep.subr.bf16.mxu0 %v665
      %857 = vmatpush1.bf16.msra.mxu0 %v664
      %858 = vmatprep.subr.bf16.mxu0 %v667
      %859 = vmatpush1.bf16.msra.mxu0 %v666
      %860 = vmatprep.subr.bf16.mxu0 %v669
      %861 = vmatpush1.bf16.msra.mxu0 %v668
      %862 = vmatprep.subr.bf16.mxu0 %v671
      %863 = vmatpush1.bf16.msra.mxu0 %v670
      %864 = vmatprep.mubr.bf16.mxu0 %v341
      %865 = vmatmul.mubr.bf16.gmra.mrb[0].mxu0 %v340
      %v866 = vpop.f32.mrb[0].mxu0
      %v867 = vadd.f32 0.0, %v866
      %v868 = vpop.f32.mrb[0].mxu0
      %v869 = vadd.f32 0.0, %v868
      %v870 = vpop.f32.mrb[0].mxu0
      %v871 = vpop.f32.mrb[0].mxu0
      %872 = vdwg.mxu0
      %873 = vmatprep.subr.bf16.mxu0 %v673
      %874 = vmatpush1.bf16.msra.mxu0 %v672
      %875 = vmatprep.subr.bf16.mxu0 %v675
      %876 = vmatpush1.bf16.msra.mxu0 %v674
      %877 = vmatprep.subr.bf16.mxu0 %v677
      %878 = vmatpush1.bf16.msra.mxu0 %v676
      %879 = vmatprep.subr.bf16.mxu0 %v679
      %880 = vmatpush1.bf16.msra.mxu0 %v678
      %881 = vmatprep.subr.bf16.mxu0 %v681
      %882 = vmatpush1.bf16.msra.mxu0 %v680
      %883 = vmatprep.subr.bf16.mxu0 %v683
      %884 = vmatpush1.bf16.msra.mxu0 %v682
      %885 = vmatprep.subr.bf16.mxu0 %v685
      %886 = vmatpush1.bf16.msra.mxu0 %v684
      %887 = vmatprep.subr.bf16.mxu0 %v687
      %888 = vmatpush1.bf16.msra.mxu0 %v686
      %889 = vmatprep.subr.bf16.mxu0 %v689
      %890 = vmatpush1.bf16.msra.mxu0 %v688
      %891 = vmatprep.subr.bf16.mxu0 %v691
      %892 = vmatpush1.bf16.msra.mxu0 %v690
      %893 = vmatprep.subr.bf16.mxu0 %v693
      %894 = vmatpush1.bf16.msra.mxu0 %v692
      %895 = vmatprep.subr.bf16.mxu0 %v695
      %896 = vmatpush1.bf16.msra.mxu0 %v694
      %897 = vmatprep.subr.bf16.mxu0 %v697
      %898 = vmatpush1.bf16.msra.mxu0 %v696
      %899 = vmatprep.subr.bf16.mxu0 %v699
      %900 = vmatpush1.bf16.msra.mxu0 %v698
      %901 = vmatprep.subr.bf16.mxu0 %v701
      %902 = vmatpush1.bf16.msra.mxu0 %v700
      %903 = vmatprep.subr.bf16.mxu0 %v703
      %904 = vmatpush1.bf16.msra.mxu0 %v702
      %905 = vmatprep.mubr.bf16.mxu0 %v343
      %906 = vmatmul.mubr.bf16.gmra.mrb[0].mxu0 %v342
      %v907 = vpop.f32.mrb[0].mxu0
      %v908 = vadd.f32 %v867, %v907
      %v909 = vpop.f32.mrb[0].mxu0
      %v910 = vadd.f32 %v869, %v909
      %v911 = vpop.f32.mrb[0].mxu0
      %v912 = vpop.f32.mrb[0].mxu0
      %913 = vdwg.mxu0
      %914 = vmatprep.subr.bf16.mxu0 %v705
      %915 = vmatpush1.bf16.msra.mxu0 %v704
      %916 = vmatprep.subr.bf16.mxu0 %v707
      %917 = vmatpush1.bf16.msra.mxu0 %v706
      %918 = vmatprep.subr.bf16.mxu0 %v709
      %919 = vmatpush1.bf16.msra.mxu0 %v708
      %920 = vmatprep.subr.bf16.mxu0 %v711
      %921 = vmatpush1.bf16.msra.mxu0 %v710
      %922 = vmatprep.subr.bf16.mxu0 %v713
      %923 = vmatpush1.bf16.msra.mxu0 %v712
      %924 = vmatprep.subr.bf16.mxu0 %v715
      %925 = vmatpush1.bf16.msra.mxu0 %v714
      %926 = vmatprep.subr.bf16.mxu0 %v717
      %927 = vmatpush1.bf16.msra.mxu0 %v716
      %928 = vmatprep.subr.bf16.mxu0 %v719
      %929 = vmatpush1.bf16.msra.mxu0 %v718
      %930 = vmatprep.subr.bf16.mxu0 %v721
      %931 = vmatpush1.bf16.msra.mxu0 %v720
      %932 = vmatprep.subr.bf16.mxu0 %v723
      %933 = vmatpush1.bf16.msra.mxu0 %v722
      %934 = vmatprep.subr.bf16.mxu0 %v725
      %935 = vmatpush1.bf16.msra.mxu0 %v724
      %936 = vmatprep.subr.bf16.mxu0 %v727
      %937 = vmatpush1.bf16.msra.mxu0 %v726
      %938 = vmatprep.subr.bf16.mxu0 %v729
      %939 = vmatpush1.bf16.msra.mxu0 %v728
      %940 = vmatprep.subr.bf16.mxu0 %v731
      %941 = vmatpush1.bf16.msra.mxu0 %v730
      %942 = vmatprep.subr.bf16.mxu0 %v733
      %943 = vmatpush1.bf16.msra.mxu0 %v732
      %944 = vmatprep.subr.bf16.mxu0 %v735
      %945 = vmatpush1.bf16.msra.mxu0 %v734
      %946 = vmatprep.mubr.bf16.mxu0 %v345
      %947 = vmatmul.mubr.bf16.gmra.mrb[0].mxu0 %v344
      %v948 = vpop.f32.mrb[0].mxu0
      %v949 = vadd.f32 %v908, %v948
      %v950 = vpop.f32.mrb[0].mxu0
      %v951 = vadd.f32 %v910, %v950
      %v952 = vpop.f32.mrb[0].mxu0
      %v953 = vpop.f32.mrb[0].mxu0
      %954 = vdwg.mxu0
      %v955 = vadd.f32 %v230, %v949
      %v956 = vadd.f32 %v231, %v951
      %957 = vst [vmem:[#allocation2] sm:$0xff] %v955
      %958 = vst [vmem:[#allocation2 + $0x8] sm:$0xff] %v956
      %p959 = scmp.eq.s32.totalorder %s19, 2
      // Predicated region
      $region37: #{_lambda_.31} parent=31 // pred_check
        %p960 = pneg %p959
      $region38: #{_lambda_.31} parent=31 // pred_check_branch
        %962 = sbr.rel (%p960) target = $region40
      $region39: #{_lambda_.31} parent=31 // pred_region
        %v963 = vld [vmem:[#allocation2] sm:$0xff]
        %v964 = vld [vmem:[#allocation2 + $0x8] sm:$0xff]
        %v965 = vld [vmem:[%s2] sm:$0x3]
        %v967 = vlaneseq
        %v968 = vshrl.u32 %v967, 7
        %v969 = vsub.s32 0, %v968
        %v970 = vrot.slane %v965, %v969
        %v971 = vlaneseq
        %v972 = vshrl.u32 %v971, 7
        %v973 = vsub.s32 1, %v972
        %v974 = vrot.slane %v965, %v973
        %v977 = vadd.f32 %v963, %v970
        %v978 = vadd.f32 %v964, %v974
        %v979 = vmax.f32 %v977, 0.0
        %v980 = vmax.f32 %v978, 0.0
        %v981 = vpack.c.bf16 %v979, %v979
        %v982 = vpack.c.bf16 %v980, %v980
        %v985 = vunpack.c.l.b16 %v981
        %v986 = vunpack.c.l.b16 %v982
        %v987 = vpack.c.b16 %v986, %v985
        %989 = vst [vmem:[%s223] sm:$0xff] %v987
      $region40: #{_lambda_.31} parent=31 // pred_fallthru
        _
      %p990 = scmp.lt.s32.totalorder %s18, 0
      %s991 = scalar_select %p990, %s18, 0
      %s992 = smul.addr %s991, 2
      %s993 = smul.addr %s992, 4
      %s994 = scalar_lea.vmem %s3, %s993
      // Predicated region
      $region41: #{_lambda_.31} parent=31 // pred_check
        %p995 = pneg %p119
      $region42: #{_lambda_.31} parent=31 // pred_check_branch
        %997 = sbr.rel (%p995) target = $region44
      $region43: #{_lambda_.31} parent=31 // pred_region
        _
      $region44: #{_lambda_.31} parent=31 // pred_fallthru
        _
      // Predicated region
      $region45: #{_lambda_.31} parent=31 // pred_check
        %p998 = pneg %p119
      $region46: #{_lambda_.31} parent=31 // pred_check_branch
        %1000 = sbr.rel (%p998) target = $region48
      $region47: #{_lambda_.31} parent=31 // pred_region
        %p1001 = scmp.lt.s32.totalorder %s18, 0
        %s1002 = scalar_select %p1001, %s18, 0
        %s1003 = smul.addr %s1002, 2
        %s1004 = smul.addr %s1003, 4
        %s1005 = scalar_lea.vmem %s3, %s1004
      $region48: #{_lambda_.31} parent=31 // pred_fallthru
        _
    $region32: #{_lambda_.31} parent=5 // pred_fallthru
      _
    %p1006 = scmp.le.s32.totalorder 2, %s9
    // Predicated region
    $region49: #{_lambda_.31} parent=5 // pred_check
      %p1007 = pneg %p1006
    $region50: #{_lambda_.31} parent=5 // pred_check_branch
      %1009 = sbr.rel (%p1007) target = $region52
    $region51: #{_lambda_.31} parent=5 // pred_region
      %s1010 = ssub.s32 %s9, 2
    $region52: #{_lambda_.31} parent=5 // pred_fallthru
      _
  $region6: #{_lambda_.31} parent=0 // loop_footer
    %s13 = sadd.s32 1, %s9
  $region7: #{_lambda_.31} parent=0 // loop_footer_branch
    %8 = sbr.rel target = $region3
  $region8: #{_lambda_.31} parent=0 // loop_exit
    _

// kernel: _lambda_.30
$region0: #{_lambda_.30}
  #allocation0 [shape = 'u32[]', space=smem, size = 0x4, offset = 0x4, fixed_abs, tag = 'smem constant byte address 0x4 - core index']
  #allocation1 [shape = 'u32[144,128]{1,0:T(1,128)}', space=vmem, size = 0x12000, scoped, tag = 'internal scratch']
  #allocation2 [shape = 'f32[8,256]{1,0:T(8,128)}', space=vmem, size = 0x2000, scoped, tag = 'scratch operand']
  %s0 = inlined_call_operand.vmem [shape: bf16[8,2304], index: 0, kind: input, shape index: {}]
  %s1 = inlined_call_operand.vmem [shape: bf16[2304,256], index: 1, kind: input, shape index: {}]
  %s2 = inlined_call_operand.vmem [shape: f32[1,256], index: 2, kind: input, shape index: {}]
  %s3 = inlined_call_operand.vmem [shape: bf16[8,256], index: 3, kind: input, shape index: {}]
  %s4 = inlined_call_operand.vmem [shape: bf16[8,256], index: 4, kind: output, shape index: {}]
  %s5 = sld [smem:[#allocation0]]
  $region57: #{_lambda_.30} parent=0
    _
  %s7 = ssub.s32 1, %s5
  %s8 = scalar_select 0, %s7, %s5
  loop: start=0, step=1, limit=5
  $region2: #{_lambda_.30} parent=0 // loop_pre_header
    _
  $region3: #{_lambda_.30} parent=0 // loop_header
    %s10 = sphi 0, %s14
    %p11 = scmp.ge.s32.totalorder %s10, 5
    %s17 = sphi 0, %s29
    %s18 = sphi 0, %s25
    %s19 = sphi 0, %s17
    %s20 = sphi 0, %s18
    %s21 = sphi 0, %s19
    %s22 = sphi 0, %s20
    %s34 = sphi 0, %s36
    %s37 = sphi 0, %s34
    %s38 = sphi 0, %s37
    %s54 = sphi 0, %s38
    %s60 = sphi 0, %s62
    %s63 = sphi 0, %s60
    %s64 = sphi 0, %s63
    %s80 = sphi 0, %s64
    %s84 = sphi 0, %s84
    %s86 = sphi 0, %s84
    %s87 = sphi 0, %s86
    %s101 = sphi 0, %s87
    %s107 = sphi 0, %s109
    %s110 = sphi 0, %s107
    %s111 = sphi 0, %s110
    %s127 = sphi 0, %s111
    %s133 = sphi 0, %s135
    %s136 = sphi 0, %s133
    %s137 = sphi 0, %s136
    %s153 = sphi 0, %s137
  $region4: #{_lambda_.30} parent=0 // loop_header_branch
    %13 = sbr.rel (%p11) target = $region8
  $region5: #{_lambda_.30} parent=0 // loop_body
    %s15 = ssub.s32 %s10, 1
    %s16 = ssub.s32 %s10, 2
    %s23 = sadd.s32 1, %s18
    %p24 = scmp.ge.s32.totalorder %s23, 3
    %s25 = scalar_select %p24, 0, %s23
    %s26 = sadd.s32 1, %s17
    %s27 = scalar_select %p24, %s26, %s17
    %p28 = scmp.ge.s32.totalorder %s27, 1
    %s29 = scalar_select %p28, 0, %s27
    %s30 = ssub.s32 %s17, %s29
    %s31 = ssub.s32 %s18, %s25
    %s32 = sor.u32 %s30, %s31
    %p33 = scmp.eq.s32.totalorder %s32, 0
    %s35 = sadd.s32 %s34, 1
    %s36 = scalar_select %p33, %s34, %s35
    %p39 = pneg %p33
    %p40 = scmp.eq.s32.totalorder %s10, 2
    %p41 = por %p39, %p40
    %p42 = scmp.ne.s32.totalorder %s34, %s37
    %p43 = scmp.eq.s32.totalorder %s10, 0
    %p44 = por %p42, %p43
    %p45 = scmp.ne.s32.totalorder %s34, %s37
    %p46 = scmp.eq.s32.totalorder %s15, 2
    %p47 = por %p45, %p46
    %p48 = scmp.ne.s32.totalorder %s37, %s38
    %p49 = scmp.eq.s32.totalorder %s15, 0
    %p50 = por %p48, %p49
    %p51 = scmp.ne.s32.totalorder %s37, %s38
    %p52 = scmp.eq.s32.totalorder %s16, 2
    %p53 = por %p51, %p52
    %p55 = scmp.ne.s32.totalorder %s38, %s54
    %p56 = scmp.eq.s32.totalorder %s16, 0
    %p57 = por %p55, %p56
    %s58 = ssub.s32 %s18, %s25
    %p59 = scmp.eq.s32.totalorder %s58, 0
    %s61 = sadd.s32 %s60, 1
    %s62 = scalar_select %p59, %s60, %s61
    %p65 = pneg %p59
    %p66 = scmp.eq.s32.totalorder %s10, 2
    %p67 = por %p65, %p66
    %p68 = scmp.ne.s32.totalorder %s60, %s63
    %p69 = scmp.eq.s32.totalorder %s10, 0
    %p70 = por %p68, %p69
    %p71 = scmp.ne.s32.totalorder %s60, %s63
    %p72 = scmp.eq.s32.totalorder %s15, 2
    %p73 = por %p71, %p72
    %p74 = scmp.ne.s32.totalorder %s63, %s64
    %p75 = scmp.eq.s32.totalorder %s15, 0
    %p76 = por %p74, %p75
    %p77 = scmp.ne.s32.totalorder %s63, %s64
    %p78 = scmp.eq.s32.totalorder %s16, 2
    %p79 = por %p77, %p78
    %p81 = scmp.ne.s32.totalorder %s64, %s80
    %p82 = scmp.eq.s32.totalorder %s16, 0
    %p83 = por %p81, %p82
    %s85 = sadd.s32 %s84, 1
    %p88 = scmp.eq.s32.totalorder %s10, 2
    %p89 = scmp.ne.s32.totalorder %s84, %s86
    %p90 = scmp.eq.s32.totalorder %s10, 0
    %p91 = por %p89, %p90
    %p92 = scmp.ne.s32.totalorder %s84, %s86
    %p93 = scmp.eq.s32.totalorder %s15, 2
    %p94 = por %p92, %p93
    %p95 = scmp.ne.s32.totalorder %s86, %s87
    %p96 = scmp.eq.s32.totalorder %s15, 0
    %p97 = por %p95, %p96
    %p98 = scmp.ne.s32.totalorder %s86, %s87
    %p99 = scmp.eq.s32.totalorder %s16, 2
    %p100 = por %p98, %p99
    %p102 = scmp.ne.s32.totalorder %s87, %s101
    %p103 = scmp.eq.s32.totalorder %s16, 0
    %p104 = por %p102, %p103
    %s105 = ssub.s32 %s17, %s29
    %p106 = scmp.eq.s32.totalorder %s105, 0
    %s108 = sadd.s32 %s107, 1
    %s109 = scalar_select %p106, %s107, %s108
    %p112 = pneg %p106
    %p113 = scmp.eq.s32.totalorder %s10, 2
    %p114 = por %p112, %p113
    %p115 = scmp.ne.s32.totalorder %s107, %s110
    %p116 = scmp.eq.s32.totalorder %s10, 0
    %p117 = por %p115, %p116
    %p118 = scmp.ne.s32.totalorder %s107, %s110
    %p119 = scmp.eq.s32.totalorder %s15, 2
    %p120 = por %p118, %p119
    %p121 = scmp.ne.s32.totalorder %s110, %s111
    %p122 = scmp.eq.s32.totalorder %s15, 0
    %p123 = por %p121, %p122
    %p124 = scmp.ne.s32.totalorder %s110, %s111
    %p125 = scmp.eq.s32.totalorder %s16, 2
    %p126 = por %p124, %p125
    %p128 = scmp.ne.s32.totalorder %s111, %s127
    %p129 = scmp.eq.s32.totalorder %s16, 0
    %p130 = por %p128, %p129
    %s131 = ssub.s32 %s17, %s29
    %p132 = scmp.eq.s32.totalorder %s131, 0
    %s134 = sadd.s32 %s133, 1
    %s135 = scalar_select %p132, %s133, %s134
    %p138 = pneg %p132
    %p139 = scmp.eq.s32.totalorder %s10, 2
    %p140 = por %p138, %p139
    %p141 = scmp.ne.s32.totalorder %s133, %s136
    %p142 = scmp.eq.s32.totalorder %s10, 0
    %p143 = por %p141, %p142
    %p144 = scmp.ne.s32.totalorder %s133, %s136
    %p145 = scmp.eq.s32.totalorder %s15, 2
    %p146 = por %p144, %p145
    %p147 = scmp.ne.s32.totalorder %s136, %s137
    %p148 = scmp.eq.s32.totalorder %s15, 0
    %p149 = por %p147, %p148
    %p150 = scmp.ne.s32.totalorder %s136, %s137
    %p151 = scmp.eq.s32.totalorder %s16, 2
    %p152 = por %p150, %p151
    %p154 = scmp.ne.s32.totalorder %s137, %s153
    %p155 = scmp.eq.s32.totalorder %s16, 0
    %p156 = por %p154, %p155
    %p157 = scmp.le.s32.totalorder 1, %s10
    %p158 = scmp.lt.s32.totalorder %s10, 4
    %p159 = pnand %p157, %p158
    %p160 = pneg %p159
    // Predicated region
    $region9: #{_lambda_.30} parent=5 // pred_check
      _
    $region10: #{_lambda_.30} parent=5 // pred_check_branch
      %162 = sbr.rel (%p159) target = $region12
    $region11: #{_lambda_.30} parent=5 // pred_region
      %s163 = ssub.s32 %s10, 1
      // Predicated region
      $region13: #{_lambda_.30} parent=11 // pred_check
        %p164 = pneg %p97
      $region14: #{_lambda_.30} parent=11 // pred_check_branch
        %166 = sbr.rel (%p164) target = $region16
      $region15: #{_lambda_.30} parent=11 // pred_region
        _
      $region16: #{_lambda_.30} parent=11 // pred_fallthru
        _
      // Predicated region
      $region17: #{_lambda_.30} parent=11 // pred_check
        %p167 = pneg %p123
      $region18: #{_lambda_.30} parent=11 // pred_check_branch
        %169 = sbr.rel (%p167) target = $region20
      $region19: #{_lambda_.30} parent=11 // pred_region
        %p170 = scmp.lt.s32.totalorder %s19, 0
        %s171 = scalar_select %p170, %s19, 0
        %s172 = smul.addr %s171, 2
        %s173 = smul.addr %s172, 4
        %s174 = scalar_lea.vmem %s3, %s173
      $region20: #{_lambda_.30} parent=11 // pred_fallthru
        _
    $region12: #{_lambda_.30} parent=5 // pred_fallthru
      _
    %p175 = scmp.lt.s32.totalorder %s10, 3
    // Predicated region
    $region21: #{_lambda_.30} parent=5 // pred_check
      %p176 = pneg %p175
    $region22: #{_lambda_.30} parent=5 // pred_check_branch
      %178 = sbr.rel (%p176) target = $region24
    $region23: #{_lambda_.30} parent=5 // pred_region
      // Predicated region
      $region25: #{_lambda_.30} parent=23 // pred_check
        %p179 = pneg %p44
      $region26: #{_lambda_.30} parent=23 // pred_check_branch
        %181 = sbr.rel (%p179) target = $region28
      $region27: #{_lambda_.30} parent=23 // pred_region
        %s182 = smul.u32 6, %s18
        %p183 = scmp.lt.s32.totalorder %s17, 0
        %s184 = scalar_select %p183, %s17, 0
        %p185 = scmp.lt.s32.totalorder %s182, 17
        %s186 = scalar_select %p185, %s182, 17
        %s187 = smul.addr %s184, 18
        %s188 = sadd.s32 %s186, %s187
        %s189 = smul.addr %s188, 4
        %s190 = scalar_lea.vmem %s0, %s189
        %s191 = smul.u32 6, %s18
      $region28: #{_lambda_.30} parent=23 // pred_fallthru
        _
      // Predicated region
      $region29: #{_lambda_.30} parent=23 // pred_check
        %p192 = pneg %p70
      $region30: #{_lambda_.30} parent=23 // pred_check_branch
        %194 = sbr.rel (%p192) target = $region32
      $region31: #{_lambda_.30} parent=23 // pred_region
        %s195 = smul.u32 96, %s18
        %p196 = scmp.lt.s32.totalorder %s195, 287
        %s197 = scalar_select %p196, %s195, 287
        %s198 = smul.addr %s197, 2
        %s199 = smul.addr %s198, 4
        %s200 = scalar_lea.vmem %s1, %s199
        %s201 = smul.u32 96, %s18
      $region32: #{_lambda_.30} parent=23 // pred_fallthru
        _
    $region24: #{_lambda_.30} parent=5 // pred_fallthru
      _
    %p202 = scmp.le.s32.totalorder 1, %s10
    %p203 = scmp.lt.s32.totalorder %s10, 4
    %p204 = pnand %p202, %p203
    %p205 = pneg %p204
    // Predicated region
    $region33: #{_lambda_.30} parent=5 // pred_check
      _
    $region34: #{_lambda_.30} parent=5 // pred_check_branch
      %207 = sbr.rel (%p204) target = $region36
    $region35: #{_lambda_.30} parent=5 // pred_region
      %s208 = ssub.s32 %s10, 1
      %s209 = smul.u32 6, %s20
      %p210 = scmp.lt.s32.totalorder %s19, 0
      %s211 = scalar_select %p210, %s19, 0
      %p212 = scmp.lt.s32.totalorder %s209, 17
      %s213 = scalar_select %p212, %s209, 17
      %s214 = smul.addr %s211, 18
      %s215 = sadd.s32 %s213, %s214
      %s216 = smul.addr %s215, 4
      %s217 = scalar_lea.vmem %s0, %s216
      %p218 = pneg %p50
      %p219 = pneg %p47
      %s220 = smul.u32 96, %s20
      %p221 = scmp.lt.s32.totalorder %s220, 287
      %s222 = scalar_select %p221, %s220, 287
      %s223 = smul.addr %s222, 2
      %s224 = smul.addr %s223, 4
      %s225 = scalar_lea.vmem %s1, %s224
      %p226 = pneg %p76
      %p227 = pneg %p73
      %p228 = pneg %p97
      %p229 = pneg %p94
      %p230 = scmp.lt.s32.totalorder %s19, 0
      %s231 = scalar_select %p230, %s19, 0
      %s232 = smul.addr %s231, 2
      %s233 = smul.addr %s232, 4
      %s234 = scalar_lea.vmem %s3, %s233
      %p235 = pneg %p123
      %p236 = pneg %p120
      %p237 = pneg %p149
      %p238 = pneg %p146
      %p239 = scmp.lt.s32.totalorder %s19, 0
      %s240 = scalar_select %p239, %s19, 0
      %s241 = smul.addr %s240, 2
      %s242 = smul.addr %s241, 4
      %s243 = scalar_lea.vmem %s4, %s242
      %s244 = smul.u32 6, %s20
      %p245 = scmp.lt.s32.totalorder %s19, 0
      %s246 = scalar_select %p245, %s19, 0
      %p247 = scmp.lt.s32.totalorder %s244, 17
      %s248 = scalar_select %p247, %s244, 17
      %s249 = smul.addr %s246, 18
      %s250 = sadd.s32 %s248, %s249
      %s251 = smul.addr %s250, 4
      %s252 = scalar_lea.vmem %s0, %s251
      %s253 = smul.u32 6, %s20
      %s254 = smul.u32 96, %s20
      %p255 = scmp.lt.s32.totalorder %s254, 287
      %s256 = scalar_select %p255, %s254, 287
      %s257 = smul.addr %s256, 2
      %s258 = smul.addr %s257, 4
      %s259 = scalar_lea.vmem %s1, %s258
      %s260 = smul.u32 96, %s20
      %p261 = scmp.lt.s32.totalorder %s19, 0
      %s262 = scalar_select %p261, %s19, 0
      %s263 = smul.addr %s262, 2
      %s264 = smul.addr %s263, 4
      %s265 = scalar_lea.vmem %s3, %s264
      %p266 = scmp.lt.s32.totalorder %s19, 0
      %s267 = scalar_select %p266, %s19, 0
      %s268 = smul.addr %s267, 2
      %s269 = smul.addr %s268, 4
      %s270 = scalar_lea.vmem %s4, %s269
      %p271 = scmp.eq.s32.totalorder %s20, 0
      // Predicated region
      $region37: #{_lambda_.30} parent=35 // pred_check
        %p272 = pneg %p271
      $region38: #{_lambda_.30} parent=35 // pred_check_branch
        %274 = sbr.rel (%p272) target = $region40
      $region39: #{_lambda_.30} parent=35 // pred_region
        %275 = vst [vmem:[#allocation2] sm:$0xff] 0.0
        %276 = vst [vmem:[#allocation2 + $0x8] sm:$0xff] 0.0
      $region40: #{_lambda_.30} parent=35 // pred_fallthru
        _
      %v277 = vld [vmem:[#allocation2] sm:$0xff]
      %v278 = vld [vmem:[#allocation2 + $0x8] sm:$0xff]
      %v279 = vld [vmem:[%s252] sm:$0xff]
      %v280 = vld [vmem:[%s252 + $0x8] sm:$0xff]
      %v281 = vld [vmem:[%s252 + $0x10] sm:$0xff]
      %v282 = vld [vmem:[%s259] sm:$0xff]
      %v283 = vld [vmem:[%s259 + $0x8] sm:$0xff]
      %v284 = vld [vmem:[%s259 + $0x10] sm:$0xff]
      %v285 = vld [vmem:[%s259 + $0x18] sm:$0xff]
      %v286 = vld [vmem:[%s259 + $0x20] sm:$0xff]
      %v287 = vld [vmem:[%s259 + $0x28] sm:$0xff]
      %v288 = vld [vmem:[%s259 + $0x30] sm:$0xff]
      %v289 = vld [vmem:[%s259 + $0x38] sm:$0xff]
      %v290 = vld [vmem:[%s259 + $0x40] sm:$0xff]
      %v291 = vld [vmem:[%s259 + $0x48] sm:$0xff]
      %v292 = vld [vmem:[%s259 + $0x50] sm:$0xff]
      %v293 = vld [vmem:[%s259 + $0x58] sm:$0xff]
      %v294 = vld [vmem:[%s259 + $0x60] sm:$0xff]
      %v295 = vld [vmem:[%s259 + $0x68] sm:$0xff]
      %v296 = vld [vmem:[%s259 + $0x70] sm:$0xff]
      %v297 = vld [vmem:[%s259 + $0x78] sm:$0xff]
      %v298 = vld [vmem:[%s259 + $0x80] sm:$0xff]
      %v299 = vld [vmem:[%s259 + $0x88] sm:$0xff]
      %v300 = vld [vmem:[%s259 + $0x90] sm:$0xff]
      %v301 = vld [vmem:[%s259 + $0x98] sm:$0xff]
      %v302 = vld [vmem:[%s259 + $0xa0] sm:$0xff]
      %v303 = vld [vmem:[%s259 + $0xa8] sm:$0xff]
      %v304 = vld [vmem:[%s259 + $0xb0] sm:$0xff]
      %v305 = vld [vmem:[%s259 + $0xb8] sm:$0xff]
      %v306 = vld [vmem:[%s259 + $0xc0] sm:$0xff]
      %v307 = vld [vmem:[%s259 + $0xc8] sm:$0xff]
      %v308 = vld [vmem:[%s259 + $0xd0] sm:$0xff]
      %v309 = vld [vmem:[%s259 + $0xd8] sm:$0xff]
      %v310 = vld [vmem:[%s259 + $0xe0] sm:$0xff]
      %v311 = vld [vmem:[%s259 + $0xe8] sm:$0xff]
      %v312 = vld [vmem:[%s259 + $0xf0] sm:$0xff]
      %v313 = vld [vmem:[%s259 + $0xf8] sm:$0xff]
      %v314 = vld [vmem:[%s259 + $0x100] sm:$0xff]
      %v315 = vld [vmem:[%s259 + $0x108] sm:$0xff]
      %v316 = vld [vmem:[%s259 + $0x110] sm:$0xff]
      %v317 = vld [vmem:[%s259 + $0x118] sm:$0xff]
      %v318 = vld [vmem:[%s259 + $0x120] sm:$0xff]
      %v319 = vld [vmem:[%s259 + $0x128] sm:$0xff]
      %v320 = vld [vmem:[%s259 + $0x130] sm:$0xff]
      %v321 = vld [vmem:[%s259 + $0x138] sm:$0xff]
      %v322 = vld [vmem:[%s259 + $0x140] sm:$0xff]
      %v323 = vld [vmem:[%s259 + $0x148] sm:$0xff]
      %v324 = vld [vmem:[%s259 + $0x150] sm:$0xff]
      %v325 = vld [vmem:[%s259 + $0x158] sm:$0xff]
      %v326 = vld [vmem:[%s259 + $0x160] sm:$0xff]
      %v327 = vld [vmem:[%s259 + $0x168] sm:$0xff]
      %v328 = vld [vmem:[%s259 + $0x170] sm:$0xff]
      %v329 = vld [vmem:[%s259 + $0x178] sm:$0xff]
      %v330 = vld [vmem:[%s259 + $0x180] sm:$0xff]
      %v331 = vld [vmem:[%s259 + $0x188] sm:$0xff]
      %v332 = vld [vmem:[%s259 + $0x190] sm:$0xff]
      %v333 = vld [vmem:[%s259 + $0x198] sm:$0xff]
      %v334 = vld [vmem:[%s259 + $0x1a0] sm:$0xff]
      %v335 = vld [vmem:[%s259 + $0x1a8] sm:$0xff]
      %v336 = vld [vmem:[%s259 + $0x1b0] sm:$0xff]
      %v337 = vld [vmem:[%s259 + $0x1b8] sm:$0xff]
      %v338 = vld [vmem:[%s259 + $0x1c0] sm:$0xff]
      %v339 = vld [vmem:[%s259 + $0x1c8] sm:$0xff]
      %v340 = vld [vmem:[%s259 + $0x1d0] sm:$0xff]
      %v341 = vld [vmem:[%s259 + $0x1d8] sm:$0xff]
      %v342 = vld [vmem:[%s259 + $0x1e0] sm:$0xff]
      %v343 = vld [vmem:[%s259 + $0x1e8] sm:$0xff]
      %v344 = vld [vmem:[%s259 + $0x1f0] sm:$0xff]
      %v345 = vld [vmem:[%s259 + $0x1f8] sm:$0xff]
      %v346 = vld [vmem:[%s259 + $0x200] sm:$0xff]
      %v347 = vld [vmem:[%s259 + $0x208] sm:$0xff]
      %v348 = vld [vmem:[%s259 + $0x210] sm:$0xff]
      %v349 = vld [vmem:[%s259 + $0x218] sm:$0xff]
      %v350 = vld [vmem:[%s259 + $0x220] sm:$0xff]
      %v351 = vld [vmem:[%s259 + $0x228] sm:$0xff]
      %v352 = vld [vmem:[%s259 + $0x230] sm:$0xff]
      %v353 = vld [vmem:[%s259 + $0x238] sm:$0xff]
      %v354 = vld [vmem:[%s259 + $0x240] sm:$0xff]
      %v355 = vld [vmem:[%s259 + $0x248] sm:$0xff]
      %v356 = vld [vmem:[%s259 + $0x250] sm:$0xff]
      %v357 = vld [vmem:[%s259 + $0x258] sm:$0xff]
      %v358 = vld [vmem:[%s259 + $0x260] sm:$0xff]
      %v359 = vld [vmem:[%s259 + $0x268] sm:$0xff]
      %v360 = vld [vmem:[%s259 + $0x270] sm:$0xff]
      %v361 = vld [vmem:[%s259 + $0x278] sm:$0xff]
      %v362 = vld [vmem:[%s259 + $0x280] sm:$0xff]
      %v363 = vld [vmem:[%s259 + $0x288] sm:$0xff]
      %v364 = vld [vmem:[%s259 + $0x290] sm:$0xff]
      %v365 = vld [vmem:[%s259 + $0x298] sm:$0xff]
      %v366 = vld [vmem:[%s259 + $0x2a0] sm:$0xff]
      %v367 = vld [vmem:[%s259 + $0x2a8] sm:$0xff]
      %v368 = vld [vmem:[%s259 + $0x2b0] sm:$0xff]
      %v369 = vld [vmem:[%s259 + $0x2b8] sm:$0xff]
      %v370 = vld [vmem:[%s259 + $0x2c0] sm:$0xff]
      %v371 = vld [vmem:[%s259 + $0x2c8] sm:$0xff]
      %v372 = vld [vmem:[%s259 + $0x2d0] sm:$0xff]
      %v373 = vld [vmem:[%s259 + $0x2d8] sm:$0xff]
      %v374 = vld [vmem:[%s259 + $0x2e0] sm:$0xff]
      %v375 = vld [vmem:[%s259 + $0x2e8] sm:$0xff]
      %v376 = vld [vmem:[%s259 + $0x2f0] sm:$0xff]
      %v377 = vld [vmem:[%s259 + $0x2f8] sm:$0xff]
      %v381 = vunpack.c.l.b16 %v279
      %v382 = vunpack.c.h.b16 %v279
      %v383 = vunpack.c.l.b16 %v280
      %v384 = vunpack.c.h.b16 %v280
      %v385 = vunpack.c.l.b16 %v281
      %v386 = vunpack.c.h.b16 %v281
      %v387 = vpack.c.b16 %v381, %v381
      %v388 = vpack.c.b16 %v382, %v382
      %v389 = vpack.c.b16 %v383, %v383
      %v390 = vpack.c.b16 %v384, %v384
      %v391 = vpack.c.b16 %v385, %v385
      %v392 = vpack.c.b16 %v386, %v386
      %v495 = vunpack.c.l.b16 %v282
      %v496 = vunpack.c.h.b16 %v282
      %v497 = vunpack.c.l.b16 %v283
      %v498 = vunpack.c.h.b16 %v283
      %v499 = vunpack.c.l.b16 %v284
      %v500 = vunpack.c.h.b16 %v284
      %v501 = vunpack.c.l.b16 %v285
      %v502 = vunpack.c.h.b16 %v285
      %v503 = vunpack.c.l.b16 %v286
      %v504 = vunpack.c.h.b16 %v286
      %v505 = vunpack.c.l.b16 %v287
      %v506 = vunpack.c.h.b16 %v287
      %v507 = vunpack.c.l.b16 %v288
      %v508 = vunpack.c.h.b16 %v288
      %v509 = vunpack.c.l.b16 %v289
      %v510 = vunpack.c.h.b16 %v289
      %v511 = vunpack.c.l.b16 %v290
      %v512 = vunpack.c.h.b16 %v290
      %v513 = vunpack.c.l.b16 %v291
      %v514 = vunpack.c.h.b16 %v291
      %v515 = vunpack.c.l.b16 %v292
      %v516 = vunpack.c.h.b16 %v292
      %v517 = vunpack.c.l.b16 %v293
      %v518 = vunpack.c.h.b16 %v293
      %v519 = vunpack.c.l.b16 %v294
      %v520 = vunpack.c.h.b16 %v294
      %v521 = vunpack.c.l.b16 %v295
      %v522 = vunpack.c.h.b16 %v295
      %v523 = vunpack.c.l.b16 %v296
      %v524 = vunpack.c.h.b16 %v296
      %v525 = vunpack.c.l.b16 %v297
      %v526 = vunpack.c.h.b16 %v297
      %v527 = vunpack.c.l.b16 %v298
      %v528 = vunpack.c.h.b16 %v298
      %v529 = vunpack.c.l.b16 %v299
      %v530 = vunpack.c.h.b16 %v299
      %v531 = vunpack.c.l.b16 %v300
      %v532 = vunpack.c.h.b16 %v300
      %v533 = vunpack.c.l.b16 %v301
      %v534 = vunpack.c.h.b16 %v301
      %v535 = vunpack.c.l.b16 %v302
      %v536 = vunpack.c.h.b16 %v302
      %v537 = vunpack.c.l.b16 %v303
      %v538 = vunpack.c.h.b16 %v303
      %v539 = vunpack.c.l.b16 %v304
      %v540 = vunpack.c.h.b16 %v304
      %v541 = vunpack.c.l.b16 %v305
      %v542 = vunpack.c.h.b16 %v305
      %v543 = vunpack.c.l.b16 %v306
      %v544 = vunpack.c.h.b16 %v306
      %v545 = vunpack.c.l.b16 %v307
      %v546 = vunpack.c.h.b16 %v307
      %v547 = vunpack.c.l.b16 %v308
      %v548 = vunpack.c.h.b16 %v308
      %v549 = vunpack.c.l.b16 %v309
      %v550 = vunpack.c.h.b16 %v309
      %v551 = vunpack.c.l.b16 %v310
      %v552 = vunpack.c.h.b16 %v310
      %v553 = vunpack.c.l.b16 %v311
      %v554 = vunpack.c.h.b16 %v311
      %v555 = vunpack.c.l.b16 %v312
      %v556 = vunpack.c.h.b16 %v312
      %v557 = vunpack.c.l.b16 %v313
      %v558 = vunpack.c.h.b16 %v313
      %v559 = vunpack.c.l.b16 %v314
      %v560 = vunpack.c.h.b16 %v314
      %v561 = vunpack.c.l.b16 %v315
      %v562 = vunpack.c.h.b16 %v315
      %v563 = vunpack.c.l.b16 %v316
      %v564 = vunpack.c.h.b16 %v316
      %v565 = vunpack.c.l.b16 %v317
      %v566 = vunpack.c.h.b16 %v317
      %v567 = vunpack.c.l.b16 %v318
      %v568 = vunpack.c.h.b16 %v318
      %v569 = vunpack.c.l.b16 %v319
      %v570 = vunpack.c.h.b16 %v319
      %v571 = vunpack.c.l.b16 %v320
      %v572 = vunpack.c.h.b16 %v320
      %v573 = vunpack.c.l.b16 %v321
      %v574 = vunpack.c.h.b16 %v321
      %v575 = vunpack.c.l.b16 %v322
      %v576 = vunpack.c.h.b16 %v322
      %v577 = vunpack.c.l.b16 %v323
      %v578 = vunpack.c.h.b16 %v323
      %v579 = vunpack.c.l.b16 %v324
      %v580 = vunpack.c.h.b16 %v324
      %v581 = vunpack.c.l.b16 %v325
      %v582 = vunpack.c.h.b16 %v325
      %v583 = vunpack.c.l.b16 %v326
      %v584 = vunpack.c.h.b16 %v326
      %v585 = vunpack.c.l.b16 %v327
      %v586 = vunpack.c.h.b16 %v327
      %v587 = vunpack.c.l.b16 %v328
      %v588 = vunpack.c.h.b16 %v328
      %v589 = vunpack.c.l.b16 %v329
      %v590 = vunpack.c.h.b16 %v329
      %v591 = vunpack.c.l.b16 %v330
      %v592 = vunpack.c.h.b16 %v330
      %v593 = vunpack.c.l.b16 %v331
      %v594 = vunpack.c.h.b16 %v331
      %v595 = vunpack.c.l.b16 %v332
      %v596 = vunpack.c.h.b16 %v332
      %v597 = vunpack.c.l.b16 %v333
      %v598 = vunpack.c.h.b16 %v333
      %v599 = vunpack.c.l.b16 %v334
      %v600 = vunpack.c.h.b16 %v334
      %v601 = vunpack.c.l.b16 %v335
      %v602 = vunpack.c.h.b16 %v335
      %v603 = vunpack.c.l.b16 %v336
      %v604 = vunpack.c.h.b16 %v336
      %v605 = vunpack.c.l.b16 %v337
      %v606 = vunpack.c.h.b16 %v337
      %v607 = vunpack.c.l.b16 %v338
      %v608 = vunpack.c.h.b16 %v338
      %v609 = vunpack.c.l.b16 %v339
      %v610 = vunpack.c.h.b16 %v339
      %v611 = vunpack.c.l.b16 %v340
      %v612 = vunpack.c.h.b16 %v340
      %v613 = vunpack.c.l.b16 %v341
      %v614 = vunpack.c.h.b16 %v341
      %v615 = vunpack.c.l.b16 %v342
      %v616 = vunpack.c.h.b16 %v342
      %v617 = vunpack.c.l.b16 %v343
      %v618 = vunpack.c.h.b16 %v343
      %v619 = vunpack.c.l.b16 %v344
      %v620 = vunpack.c.h.b16 %v344
      %v621 = vunpack.c.l.b16 %v345
      %v622 = vunpack.c.h.b16 %v345
      %v623 = vunpack.c.l.b16 %v346
      %v624 = vunpack.c.h.b16 %v346
      %v625 = vunpack.c.l.b16 %v347
      %v626 = vunpack.c.h.b16 %v347
      %v627 = vunpack.c.l.b16 %v348
      %v628 = vunpack.c.h.b16 %v348
      %v629 = vunpack.c.l.b16 %v349
      %v630 = vunpack.c.h.b16 %v349
      %v631 = vunpack.c.l.b16 %v350
      %v632 = vunpack.c.h.b16 %v350
      %v633 = vunpack.c.l.b16 %v351
      %v634 = vunpack.c.h.b16 %v351
      %v635 = vunpack.c.l.b16 %v352
      %v636 = vunpack.c.h.b16 %v352
      %v637 = vunpack.c.l.b16 %v353
      %v638 = vunpack.c.h.b16 %v353
      %v639 = vunpack.c.l.b16 %v354
      %v640 = vunpack.c.h.b16 %v354
      %v641 = vunpack.c.l.b16 %v355
      %v642 = vunpack.c.h.b16 %v355
      %v643 = vunpack.c.l.b16 %v356
      %v644 = vunpack.c.h.b16 %v356
      %v645 = vunpack.c.l.b16 %v357
      %v646 = vunpack.c.h.b16 %v357
      %v647 = vunpack.c.l.b16 %v358
      %v648 = vunpack.c.h.b16 %v358
      %v649 = vunpack.c.l.b16 %v359
      %v650 = vunpack.c.h.b16 %v359
      %v651 = vunpack.c.l.b16 %v360
      %v652 = vunpack.c.h.b16 %v360
      %v653 = vunpack.c.l.b16 %v361
      %v654 = vunpack.c.h.b16 %v361
      %v655 = vunpack.c.l.b16 %v362
      %v656 = vunpack.c.h.b16 %v362
      %v657 = vunpack.c.l.b16 %v363
      %v658 = vunpack.c.h.b16 %v363
      %v659 = vunpack.c.l.b16 %v364
      %v660 = vunpack.c.h.b16 %v364
      %v661 = vunpack.c.l.b16 %v365
      %v662 = vunpack.c.h.b16 %v365
      %v663 = vunpack.c.l.b16 %v366
      %v664 = vunpack.c.h.b16 %v366
      %v665 = vunpack.c.l.b16 %v367
      %v666 = vunpack.c.h.b16 %v367
      %v667 = vunpack.c.l.b16 %v368
      %v668 = vunpack.c.h.b16 %v368
      %v669 = vunpack.c.l.b16 %v369
      %v670 = vunpack.c.h.b16 %v369
      %v671 = vunpack.c.l.b16 %v370
      %v672 = vunpack.c.h.b16 %v370
      %v673 = vunpack.c.l.b16 %v371
      %v674 = vunpack.c.h.b16 %v371
      %v675 = vunpack.c.l.b16 %v372
      %v676 = vunpack.c.h.b16 %v372
      %v677 = vunpack.c.l.b16 %v373
      %v678 = vunpack.c.h.b16 %v373
      %v679 = vunpack.c.l.b16 %v374
      %v680 = vunpack.c.h.b16 %v374
      %v681 = vunpack.c.l.b16 %v375
      %v682 = vunpack.c.h.b16 %v375
      %v683 = vunpack.c.l.b16 %v376
      %v684 = vunpack.c.h.b16 %v376
      %v685 = vunpack.c.l.b16 %v377
      %v686 = vunpack.c.h.b16 %v377
      %v687 = vpack.c.b16 %v497, %v495
      %v688 = vpack.c.b16 %v498, %v496
      %v689 = vpack.c.b16 %v501, %v499
      %v690 = vpack.c.b16 %v502, %v500
      %v691 = vpack.c.b16 %v505, %v503
      %v692 = vpack.c.b16 %v506, %v504
      %v693 = vpack.c.b16 %v509, %v507
      %v694 = vpack.c.b16 %v510, %v508
      %v695 = vpack.c.b16 %v513, %v511
      %v696 = vpack.c.b16 %v514, %v512
      %v697 = vpack.c.b16 %v517, %v515
      %v698 = vpack.c.b16 %v518, %v516
      %v699 = vpack.c.b16 %v521, %v519
      %v700 = vpack.c.b16 %v522, %v520
      %v701 = vpack.c.b16 %v525, %v523
      %v702 = vpack.c.b16 %v526, %v524
      %v703 = vpack.c.b16 %v529, %v527
      %v704 = vpack.c.b16 %v530, %v528
      %v705 = vpack.c.b16 %v533, %v531
      %v706 = vpack.c.b16 %v534, %v532
      %v707 = vpack.c.b16 %v537, %v535
      %v708 = vpack.c.b16 %v538, %v536
      %v709 = vpack.c.b16 %v541, %v539
      %v710 = vpack.c.b16 %v542, %v540
      %v711 = vpack.c.b16 %v545, %v543
      %v712 = vpack.c.b16 %v546, %v544
      %v713 = vpack.c.b16 %v549, %v547
      %v714 = vpack.c.b16 %v550, %v548
      %v715 = vpack.c.b16 %v553, %v551
      %v716 = vpack.c.b16 %v554, %v552
      %v717 = vpack.c.b16 %v557, %v555
      %v718 = vpack.c.b16 %v558, %v556
      %v719 = vpack.c.b16 %v561, %v559
      %v720 = vpack.c.b16 %v562, %v560
      %v721 = vpack.c.b16 %v565, %v563
      %v722 = vpack.c.b16 %v566, %v564
      %v723 = vpack.c.b16 %v569, %v567
      %v724 = vpack.c.b16 %v570, %v568
      %v725 = vpack.c.b16 %v573, %v571
      %v726 = vpack.c.b16 %v574, %v572
      %v727 = vpack.c.b16 %v577, %v575
      %v728 = vpack.c.b16 %v578, %v576
      %v729 = vpack.c.b16 %v581, %v579
      %v730 = vpack.c.b16 %v582, %v580
      %v731 = vpack.c.b16 %v585, %v583
      %v732 = vpack.c.b16 %v586, %v584
      %v733 = vpack.c.b16 %v589, %v587
      %v734 = vpack.c.b16 %v590, %v588
      %v735 = vpack.c.b16 %v593, %v591
      %v736 = vpack.c.b16 %v594, %v592
      %v737 = vpack.c.b16 %v597, %v595
      %v738 = vpack.c.b16 %v598, %v596
      %v739 = vpack.c.b16 %v601, %v599
      %v740 = vpack.c.b16 %v602, %v600
      %v741 = vpack.c.b16 %v605, %v603
      %v742 = vpack.c.b16 %v606, %v604
      %v743 = vpack.c.b16 %v609, %v607
      %v744 = vpack.c.b16 %v610, %v608
      %v745 = vpack.c.b16 %v613, %v611
      %v746 = vpack.c.b16 %v614, %v612
      %v747 = vpack.c.b16 %v617, %v615
      %v748 = vpack.c.b16 %v618, %v616
      %v749 = vpack.c.b16 %v621, %v619
      %v750 = vpack.c.b16 %v622, %v620
      %v751 = vpack.c.b16 %v625, %v623
      %v752 = vpack.c.b16 %v626, %v624
      %v753 = vpack.c.b16 %v629, %v627
      %v754 = vpack.c.b16 %v630, %v628
      %v755 = vpack.c.b16 %v633, %v631
      %v756 = vpack.c.b16 %v634, %v632
      %v757 = vpack.c.b16 %v637, %v635
      %v758 = vpack.c.b16 %v638, %v636
      %v759 = vpack.c.b16 %v641, %v639
      %v760 = vpack.c.b16 %v642, %v640
      %v761 = vpack.c.b16 %v645, %v643
      %v762 = vpack.c.b16 %v646, %v644
      %v763 = vpack.c.b16 %v649, %v647
      %v764 = vpack.c.b16 %v650, %v648
      %v765 = vpack.c.b16 %v653, %v651
      %v766 = vpack.c.b16 %v654, %v652
      %v767 = vpack.c.b16 %v657, %v655
      %v768 = vpack.c.b16 %v658, %v656
      %v769 = vpack.c.b16 %v661, %v659
      %v770 = vpack.c.b16 %v662, %v660
      %v771 = vpack.c.b16 %v665, %v663
      %v772 = vpack.c.b16 %v666, %v664
      %v773 = vpack.c.b16 %v669, %v667
      %v774 = vpack.c.b16 %v670, %v668
      %v775 = vpack.c.b16 %v673, %v671
      %v776 = vpack.c.b16 %v674, %v672
      %v777 = vpack.c.b16 %v677, %v675
      %v778 = vpack.c.b16 %v678, %v676
      %v779 = vpack.c.b16 %v681, %v679
      %v780 = vpack.c.b16 %v682, %v680
      %v781 = vpack.c.b16 %v685, %v683
      %v782 = vpack.c.b16 %v686, %v684
      %879 = vmatprep.subr.bf16.mxu0 %v688
      %880 = vmatpush1.bf16.msra.mxu0 %v687
      %881 = vmatprep.subr.bf16.mxu0 %v690
      %882 = vmatpush1.bf16.msra.mxu0 %v689
      %883 = vmatprep.subr.bf16.mxu0 %v692
      %884 = vmatpush1.bf16.msra.mxu0 %v691
      %885 = vmatprep.subr.bf16.mxu0 %v694
      %886 = vmatpush1.bf16.msra.mxu0 %v693
      %887 = vmatprep.subr.bf16.mxu0 %v696
      %888 = vmatpush1.bf16.msra.mxu0 %v695
      %889 = vmatprep.subr.bf16.mxu0 %v698
      %890 = vmatpush1.bf16.msra.mxu0 %v697
      %891 = vmatprep.subr.bf16.mxu0 %v700
      %892 = vmatpush1.bf16.msra.mxu0 %v699
      %893 = vmatprep.subr.bf16.mxu0 %v702
      %894 = vmatpush1.bf16.msra.mxu0 %v701
      %895 = vmatprep.subr.bf16.mxu0 %v704
      %896 = vmatpush1.bf16.msra.mxu0 %v703
      %897 = vmatprep.subr.bf16.mxu0 %v706
      %898 = vmatpush1.bf16.msra.mxu0 %v705
      %899 = vmatprep.subr.bf16.mxu0 %v708
      %900 = vmatpush1.bf16.msra.mxu0 %v707
      %901 = vmatprep.subr.bf16.mxu0 %v710
      %902 = vmatpush1.bf16.msra.mxu0 %v709
      %903 = vmatprep.subr.bf16.mxu0 %v712
      %904 = vmatpush1.bf16.msra.mxu0 %v711
      %905 = vmatprep.subr.bf16.mxu0 %v714
      %906 = vmatpush1.bf16.msra.mxu0 %v713
      %907 = vmatprep.subr.bf16.mxu0 %v716
      %908 = vmatpush1.bf16.msra.mxu0 %v715
      %909 = vmatprep.subr.bf16.mxu0 %v718
      %910 = vmatpush1.bf16.msra.mxu0 %v717
      %911 = vmatprep.mubr.bf16.mxu0 %v388
      %912 = vmatmul.mubr.bf16.gmra.mrb[0].mxu0 %v387
      %v913 = vpop.f32.mrb[0].mxu0
      %v914 = vadd.f32 0.0, %v913
      %v915 = vpop.f32.mrb[0].mxu0
      %v916 = vadd.f32 0.0, %v915
      %v917 = vpop.f32.mrb[0].mxu0
      %v918 = vpop.f32.mrb[0].mxu0
      %919 = vdwg.mxu0
      %920 = vmatprep.subr.bf16.mxu0 %v720
      %921 = vmatpush1.bf16.msra.mxu0 %v719
      %922 = vmatprep.subr.bf16.mxu0 %v722
      %923 = vmatpush1.bf16.msra.mxu0 %v721
      %924 = vmatprep.subr.bf16.mxu0 %v724
      %925 = vmatpush1.bf16.msra.mxu0 %v723
      %926 = vmatprep.subr.bf16.mxu0 %v726
      %927 = vmatpush1.bf16.msra.mxu0 %v725
      %928 = vmatprep.subr.bf16.mxu0 %v728
      %929 = vmatpush1.bf16.msra.mxu0 %v727
      %930 = vmatprep.subr.bf16.mxu0 %v730
      %931 = vmatpush1.bf16.msra.mxu0 %v729
      %932 = vmatprep.subr.bf16.mxu0 %v732
      %933 = vmatpush1.bf16.msra.mxu0 %v731
      %934 = vmatprep.subr.bf16.mxu0 %v734
      %935 = vmatpush1.bf16.msra.mxu0 %v733
      %936 = vmatprep.subr.bf16.mxu0 %v736
      %937 = vmatpush1.bf16.msra.mxu0 %v735
      %938 = vmatprep.subr.bf16.mxu0 %v738
      %939 = vmatpush1.bf16.msra.mxu0 %v737
      %940 = vmatprep.subr.bf16.mxu0 %v740
      %941 = vmatpush1.bf16.msra.mxu0 %v739
      %942 = vmatprep.subr.bf16.mxu0 %v742
      %943 = vmatpush1.bf16.msra.mxu0 %v741
      %944 = vmatprep.subr.bf16.mxu0 %v744
      %945 = vmatpush1.bf16.msra.mxu0 %v743
      %946 = vmatprep.subr.bf16.mxu0 %v746
      %947 = vmatpush1.bf16.msra.mxu0 %v745
      %948 = vmatprep.subr.bf16.mxu0 %v748
      %949 = vmatpush1.bf16.msra.mxu0 %v747
      %950 = vmatprep.subr.bf16.mxu0 %v750
      %951 = vmatpush1.bf16.msra.mxu0 %v749
      %952 = vmatprep.mubr.bf16.mxu0 %v390
      %953 = vmatmul.mubr.bf16.gmra.mrb[0].mxu0 %v389
      %v954 = vpop.f32.mrb[0].mxu0
      %v955 = vadd.f32 %v914, %v954
      %v956 = vpop.f32.mrb[0].mxu0
      %v957 = vadd.f32 %v916, %v956
      %v958 = vpop.f32.mrb[0].mxu0
      %v959 = vpop.f32.mrb[0].mxu0
      %960 = vdwg.mxu0
      %961 = vmatprep.subr.bf16.mxu0 %v752
      %962 = vmatpush1.bf16.msra.mxu0 %v751
      %963 = vmatprep.subr.bf16.mxu0 %v754
      %964 = vmatpush1.bf16.msra.mxu0 %v753
      %965 = vmatprep.subr.bf16.mxu0 %v756
      %966 = vmatpush1.bf16.msra.mxu0 %v755
      %967 = vmatprep.subr.bf16.mxu0 %v758
      %968 = vmatpush1.bf16.msra.mxu0 %v757
      %969 = vmatprep.subr.bf16.mxu0 %v760
      %970 = vmatpush1.bf16.msra.mxu0 %v759
      %971 = vmatprep.subr.bf16.mxu0 %v762
      %972 = vmatpush1.bf16.msra.mxu0 %v761
      %973 = vmatprep.subr.bf16.mxu0 %v764
      %974 = vmatpush1.bf16.msra.mxu0 %v763
      %975 = vmatprep.subr.bf16.mxu0 %v766
      %976 = vmatpush1.bf16.msra.mxu0 %v765
      %977 = vmatprep.subr.bf16.mxu0 %v768
      %978 = vmatpush1.bf16.msra.mxu0 %v767
      %979 = vmatprep.subr.bf16.mxu0 %v770
      %980 = vmatpush1.bf16.msra.mxu0 %v769
      %981 = vmatprep.subr.bf16.mxu0 %v772
      %982 = vmatpush1.bf16.msra.mxu0 %v771
      %983 = vmatprep.subr.bf16.mxu0 %v774
      %984 = vmatpush1.bf16.msra.mxu0 %v773
      %985 = vmatprep.subr.bf16.mxu0 %v776
      %986 = vmatpush1.bf16.msra.mxu0 %v775
      %987 = vmatprep.subr.bf16.mxu0 %v778
      %988 = vmatpush1.bf16.msra.mxu0 %v777
      %989 = vmatprep.subr.bf16.mxu0 %v780
      %990 = vmatpush1.bf16.msra.mxu0 %v779
      %991 = vmatprep.subr.bf16.mxu0 %v782
      %992 = vmatpush1.bf16.msra.mxu0 %v781
      %993 = vmatprep.mubr.bf16.mxu0 %v392
      %994 = vmatmul.mubr.bf16.gmra.mrb[0].mxu0 %v391
      %v995 = vpop.f32.mrb[0].mxu0
      %v996 = vadd.f32 %v955, %v995
      %v997 = vpop.f32.mrb[0].mxu0
      %v998 = vadd.f32 %v957, %v997
      %v999 = vpop.f32.mrb[0].mxu0
      %v1000 = vpop.f32.mrb[0].mxu0
      %1001 = vdwg.mxu0
      %v1002 = vadd.f32 %v277, %v996
      %v1003 = vadd.f32 %v278, %v998
      %1004 = vst [vmem:[#allocation2] sm:$0xff] %v1002
      %1005 = vst [vmem:[#allocation2 + $0x8] sm:$0xff] %v1003
      %p1006 = scmp.eq.s32.totalorder %s20, 2
      // Predicated region
      $region41: #{_lambda_.30} parent=35 // pred_check
        %p1007 = pneg %p1006
      $region42: #{_lambda_.30} parent=35 // pred_check_branch
        %1009 = sbr.rel (%p1007) target = $region44
      $region43: #{_lambda_.30} parent=35 // pred_region
        %v1010 = vld [vmem:[#allocation2] sm:$0xff]
        %v1011 = vld [vmem:[#allocation2 + $0x8] sm:$0xff]
        %v1012 = vld [vmem:[%s2] sm:$0x3]
        %v1014 = vlaneseq
        %v1015 = vshrl.u32 %v1014, 7
        %v1016 = vsub.s32 0, %v1015
        %v1017 = vrot.slane %v1012, %v1016
        %v1018 = vlaneseq
        %v1019 = vshrl.u32 %v1018, 7
        %v1020 = vsub.s32 1, %v1019
        %v1021 = vrot.slane %v1012, %v1020
        %v1024 = vadd.f32 %v1010, %v1017
        %v1025 = vadd.f32 %v1011, %v1021
        %v1026 = vld [vmem:[%s265] sm:$0xff]
        %v1027 = vunpack.c.l.bf16 %v1026
        %v1028 = vunpack.c.h.bf16 %v1026
        %v1029 = vadd.f32 %v1024, %v1027
        %v1030 = vadd.f32 %v1025, %v1028
        %v1031 = vmax.f32 %v1029, 0.0
        %v1032 = vmax.f32 %v1030, 0.0
        %v1033 = vpack.c.bf16 %v1031, %v1031
        %v1034 = vpack.c.bf16 %v1032, %v1032
        %v1037 = vunpack.c.l.b16 %v1033
        %v1038 = vunpack.c.l.b16 %v1034
        %v1039 = vpack.c.b16 %v1038, %v1037
        %1041 = vst [vmem:[%s270] sm:$0xff] %v1039
      $region44: #{_lambda_.30} parent=35 // pred_fallthru
        _
      %p1042 = scmp.lt.s32.totalorder %s19, 0
      %s1043 = scalar_select %p1042, %s19, 0
      %s1044 = smul.addr %s1043, 2
      %s1045 = smul.addr %s1044, 4
      %s1046 = scalar_lea.vmem %s4, %s1045
      // Predicated region
      $region45: #{_lambda_.30} parent=35 // pred_check
        %p1047 = pneg %p146
      $region46: #{_lambda_.30} parent=35 // pred_check_branch
        %1049 = sbr.rel (%p1047) target = $region48
      $region47: #{_lambda_.30} parent=35 // pred_region
        _
      $region48: #{_lambda_.30} parent=35 // pred_fallthru
        _
      // Predicated region
      $region49: #{_lambda_.30} parent=35 // pred_check
        %p1050 = pneg %p146
      $region50: #{_lambda_.30} parent=35 // pred_check_branch
        %1052 = sbr.rel (%p1050) target = $region52
      $region51: #{_lambda_.30} parent=35 // pred_region
        %p1053 = scmp.lt.s32.totalorder %s19, 0
        %s1054 = scalar_select %p1053, %s19, 0
        %s1055 = smul.addr %s1054, 2
        %s1056 = smul.addr %s1055, 4
        %s1057 = scalar_lea.vmem %s4, %s1056
      $region52: #{_lambda_.30} parent=35 // pred_fallthru
        _
    $region36: #{_lambda_.30} parent=5 // pred_fallthru
      _
    %p1058 = scmp.le.s32.totalorder 2, %s10
    // Predicated region
    $region53: #{_lambda_.30} parent=5 // pred_check
      %p1059 = pneg %p1058
    $region54: #{_lambda_.30} parent=5 // pred_check_branch
      %1061 = sbr.rel (%p1059) target = $region56
    $region55: #{_lambda_.30} parent=5 // pred_region
      %s1062 = ssub.s32 %s10, 2
    $region56: #{_lambda_.30} parent=5 // pred_fallthru
      _
  $region6: #{_lambda_.30} parent=0 // loop_footer
    %s14 = sadd.s32 1, %s10
  $region7: #{_lambda_.30} parent=0 // loop_footer_branch
    %9 = sbr.rel target = $region3
  $region8: #{_lambda_.30} parent=0 // loop_exit
    _

// kernel: _lambda_.33
$region0: #{_lambda_.33}
  #allocation0 [shape = 'u32[]', space=smem, size = 0x4, offset = 0x4, fixed_abs, tag = 'smem constant byte address 0x4 - core index']
  #allocation1 [shape = 'u32[144,128]{1,0:T(1,128)}', space=vmem, size = 0x12000, scoped, tag = 'internal scratch']
  #allocation2 [shape = 'f32[8,128]{1,0:T(8,128)}', space=vmem, size = 0x1000, scoped, tag = 'scratch operand']
  %s0 = inlined_call_operand.vmem [shape: bf16[8,256], index: 0, kind: input, shape index: {}]
  %s1 = inlined_call_operand.vmem [shape: bf16[256,128], index: 1, kind: input, shape index: {}]
  %s2 = inlined_call_operand.vmem [shape: f32[1,128], index: 2, kind: input, shape index: {}]
  %s3 = inlined_call_operand.vmem [shape: f32[8,128], index: 3, kind: output, shape index: {}]
  %s4 = sld [smem:[#allocation0]]
  $region30: #{_lambda_.33} parent=0
    _
  %s6 = ssub.s32 1, %s4
  %s7 = scalar_select 0, %s6, %s4
  // Predicated region
  $region2: #{_lambda_.33} parent=0 // pred_check
    _
  $region3: #{_lambda_.33} parent=0 // pred_check_branch
    %9 = sbr.rel (0) target = $region5
  $region4: #{_lambda_.33} parent=0 // pred_region
    _
  $region5: #{_lambda_.33} parent=0 // pred_fallthru
    _
  // Predicated region
  $region6: #{_lambda_.33} parent=0 // pred_check
    _
  $region7: #{_lambda_.33} parent=0 // pred_check_branch
    %11 = sbr.rel (0) target = $region9
  $region8: #{_lambda_.33} parent=0 // pred_region
    _
  $region9: #{_lambda_.33} parent=0 // pred_fallthru
    _
  // Predicated region
  $region10: #{_lambda_.33} parent=0 // pred_check
    _
  $region11: #{_lambda_.33} parent=0 // pred_check_branch
    %13 = sbr.rel (0) target = $region13
  $region12: #{_lambda_.33} parent=0 // pred_region
    _
  $region13: #{_lambda_.33} parent=0 // pred_fallthru
    _
  %p15 = scmp.eq.s32.totalorder 0, 0
  // Predicated region
  $region14: #{_lambda_.33} parent=0 // pred_check
    %p16 = pneg %p15
  $region15: #{_lambda_.33} parent=0 // pred_check_branch
    %18 = sbr.rel (%p16) target = $region17
  $region16: #{_lambda_.33} parent=0 // pred_region
    %19 = vst [vmem:[#allocation2] sm:$0xff] 0.0
  $region17: #{_lambda_.33} parent=0 // pred_fallthru
    _
  %v20 = vld [vmem:[#allocation2] sm:$0xff]
  %v21 = vld [vmem:[%s0] sm:$0xff]
  %v22 = vld [vmem:[%s1] sm:$0xf]
  %v23 = vld [vmem:[%s1 + $0x4] sm:$0xf]
  %v24 = vld [vmem:[%s1 + $0x8] sm:$0xf]
  %v25 = vld [vmem:[%s1 + $0xc] sm:$0xf]
  %v26 = vld [vmem:[%s1 + $0x10] sm:$0xf]
  %v27 = vld [vmem:[%s1 + $0x14] sm:$0xf]
  %v28 = vld [vmem:[%s1 + $0x18] sm:$0xf]
  %v29 = vld [vmem:[%s1 + $0x1c] sm:$0xf]
  %v30 = vld [vmem:[%s1 + $0x20] sm:$0xf]
  %v31 = vld [vmem:[%s1 + $0x24] sm:$0xf]
  %v32 = vld [vmem:[%s1 + $0x28] sm:$0xf]
  %v33 = vld [vmem:[%s1 + $0x2c] sm:$0xf]
  %v34 = vld [vmem:[%s1 + $0x30] sm:$0xf]
  %v35 = vld [vmem:[%s1 + $0x34] sm:$0xf]
  %v36 = vld [vmem:[%s1 + $0x38] sm:$0xf]
  %v37 = vld [vmem:[%s1 + $0x3c] sm:$0xf]
  %v38 = vld [vmem:[%s1 + $0x40] sm:$0xf]
  %v39 = vld [vmem:[%s1 + $0x44] sm:$0xf]
  %v40 = vld [vmem:[%s1 + $0x48] sm:$0xf]
  %v41 = vld [vmem:[%s1 + $0x4c] sm:$0xf]
  %v42 = vld [vmem:[%s1 + $0x50] sm:$0xf]
  %v43 = vld [vmem:[%s1 + $0x54] sm:$0xf]
  %v44 = vld [vmem:[%s1 + $0x58] sm:$0xf]
  %v45 = vld [vmem:[%s1 + $0x5c] sm:$0xf]
  %v46 = vld [vmem:[%s1 + $0x60] sm:$0xf]
  %v47 = vld [vmem:[%s1 + $0x64] sm:$0xf]
  %v48 = vld [vmem:[%s1 + $0x68] sm:$0xf]
  %v49 = vld [vmem:[%s1 + $0x6c] sm:$0xf]
  %v50 = vld [vmem:[%s1 + $0x70] sm:$0xf]
  %v51 = vld [vmem:[%s1 + $0x74] sm:$0xf]
  %v52 = vld [vmem:[%s1 + $0x78] sm:$0xf]
  %v53 = vld [vmem:[%s1 + $0x7c] sm:$0xf]
  %v55 = vunpack.c.l.b16 %v21
  %v56 = vunpack.c.h.b16 %v21
  %v57 = vpack.c.b16 %v55, %v55
  %v58 = vpack.c.b16 %v56, %v56
  %v93 = vunpack.c.l.b16 %v22
  %v94 = vunpack.c.l.b16 %v23
  %v95 = vunpack.c.l.b16 %v24
  %v96 = vunpack.c.l.b16 %v25
  %v97 = vunpack.c.l.b16 %v26
  %v98 = vunpack.c.l.b16 %v27
  %v99 = vunpack.c.l.b16 %v28
  %v100 = vunpack.c.l.b16 %v29
  %v101 = vunpack.c.l.b16 %v30
  %v102 = vunpack.c.l.b16 %v31
  %v103 = vunpack.c.l.b16 %v32
  %v104 = vunpack.c.l.b16 %v33
  %v105 = vunpack.c.l.b16 %v34
  %v106 = vunpack.c.l.b16 %v35
  %v107 = vunpack.c.l.b16 %v36
  %v108 = vunpack.c.l.b16 %v37
  %v109 = vunpack.c.l.b16 %v38
  %v110 = vunpack.c.l.b16 %v39
  %v111 = vunpack.c.l.b16 %v40
  %v112 = vunpack.c.l.b16 %v41
  %v113 = vunpack.c.l.b16 %v42
  %v114 = vunpack.c.l.b16 %v43
  %v115 = vunpack.c.l.b16 %v44
  %v116 = vunpack.c.l.b16 %v45
  %v117 = vunpack.c.l.b16 %v46
  %v118 = vunpack.c.l.b16 %v47
  %v119 = vunpack.c.l.b16 %v48
  %v120 = vunpack.c.l.b16 %v49
  %v121 = vunpack.c.l.b16 %v50
  %v122 = vunpack.c.l.b16 %v51
  %v123 = vunpack.c.l.b16 %v52
  %v124 = vunpack.c.l.b16 %v53
  %v125 = vpack.c.b16 %v94, %v93
  %v126 = vpack.c.b16 %v96, %v95
  %v127 = vpack.c.b16 %v98, %v97
  %v128 = vpack.c.b16 %v100, %v99
  %v129 = vpack.c.b16 %v102, %v101
  %v130 = vpack.c.b16 %v104, %v103
  %v131 = vpack.c.b16 %v106, %v105
  %v132 = vpack.c.b16 %v108, %v107
  %v133 = vpack.c.b16 %v110, %v109
  %v134 = vpack.c.b16 %v112, %v111
  %v135 = vpack.c.b16 %v114, %v113
  %v136 = vpack.c.b16 %v116, %v115
  %v137 = vpack.c.b16 %v118, %v117
  %v138 = vpack.c.b16 %v120, %v119
  %v139 = vpack.c.b16 %v122, %v121
  %v140 = vpack.c.b16 %v124, %v123
  %157 = vmatprep.subr.bf16.mxu0 0
  %158 = vmatpush1.bf16.msra.mxu0 %v125
  %159 = vmatprep.subr.bf16.mxu0 0
  %160 = vmatpush1.bf16.msra.mxu0 %v126
  %161 = vmatprep.subr.bf16.mxu0 0
  %162 = vmatpush1.bf16.msra.mxu0 %v127
  %163 = vmatprep.subr.bf16.mxu0 0
  %164 = vmatpush1.bf16.msra.mxu0 %v128
  %165 = vmatprep.subr.bf16.mxu0 0
  %166 = vmatpush1.bf16.msra.mxu0 %v129
  %167 = vmatprep.subr.bf16.mxu0 0
  %168 = vmatpush1.bf16.msra.mxu0 %v130
  %169 = vmatprep.subr.bf16.mxu0 0
  %170 = vmatpush1.bf16.msra.mxu0 %v131
  %171 = vmatprep.subr.bf16.mxu0 0
  %172 = vmatpush1.bf16.msra.mxu0 %v132
  %173 = vmatprep.subr.bf16.mxu0 0
  %174 = vmatpush1.bf16.msra.mxu0 %v133
  %175 = vmatprep.subr.bf16.mxu0 0
  %176 = vmatpush1.bf16.msra.mxu0 %v134
  %177 = vmatprep.subr.bf16.mxu0 0
  %178 = vmatpush1.bf16.msra.mxu0 %v135
  %179 = vmatprep.subr.bf16.mxu0 0
  %180 = vmatpush1.bf16.msra.mxu0 %v136
  %181 = vmatprep.subr.bf16.mxu0 0
  %182 = vmatpush1.bf16.msra.mxu0 %v137
  %183 = vmatprep.subr.bf16.mxu0 0
  %184 = vmatpush1.bf16.msra.mxu0 %v138
  %185 = vmatprep.subr.bf16.mxu0 0
  %186 = vmatpush1.bf16.msra.mxu0 %v139
  %187 = vmatprep.subr.bf16.mxu0 0
  %188 = vmatpush1.bf16.msra.mxu0 %v140
  %189 = vmatprep.mubr.bf16.mxu0 %v58
  %190 = vmatmul.mubr.bf16.gmra.mrb[0].mxu0 %v57
  %v191 = vpop.f32.mrb[0].mxu0
  %v192 = vadd.f32 0.0, %v191
  %v193 = vpop.f32.mrb[0].mxu0
  %v194 = vpop.f32.mrb[0].mxu0
  %v195 = vpop.f32.mrb[0].mxu0
  %196 = vdwg.mxu0
  %v197 = vadd.f32 %v20, %v192
  %198 = vst [vmem:[#allocation2] sm:$0xff] %v197
  // Predicated region
  $region18: #{_lambda_.33} parent=0 // pred_check
    %p199 = pneg %p15
  $region19: #{_lambda_.33} parent=0 // pred_check_branch
    %201 = sbr.rel (%p199) target = $region21
  $region20: #{_lambda_.33} parent=0 // pred_region
    %v202 = vld [vmem:[#allocation2] sm:$0xff]
    %v203 = vld [vmem:[%s2] sm:$0x1]
    %v205 = vlaneseq
    %v206 = vshrl.u32 %v205, 7
    %v207 = vsub.s32 0, %v206
    %v208 = vrot.slane %v203, %v207
    %v210 = vadd.f32 %v202, %v208
    %211 = vst [vmem:[%s3] sm:$0xff] %v210
  $region21: #{_lambda_.33} parent=0 // pred_fallthru
    _
  // Predicated region
  $region22: #{_lambda_.33} parent=0 // pred_check
    _
  $region23: #{_lambda_.33} parent=0 // pred_check_branch
    %213 = sbr.rel (0) target = $region25
  $region24: #{_lambda_.33} parent=0 // pred_region
    _
  $region25: #{_lambda_.33} parent=0 // pred_fallthru
    _
  // Predicated region
  $region26: #{_lambda_.33} parent=0 // pred_check
    _
  $region27: #{_lambda_.33} parent=0 // pred_check_branch
    %215 = sbr.rel (0) target = $region29
  $region28: #{_lambda_.33} parent=0 // pred_region
    _
  $region29: #{_lambda_.33} parent=0 // pred_fallthru
    _

</llo_original>
